<compile_context>
chip_gen: v6e
topology: v6e:2x2x1
jax: 0.10.0
libtpu: 0.0.40
codegen_flags: <defaults>
</compile_context>

<pallas_src>
import numpy as np
import jax
import jax.numpy as jnp
from jax import lax
from jax.experimental import pallas as pl
from jax.experimental.pallas import tpu as pltpu

# ----------------------------- config (small) ---------------------------------
TGT = 8          # decoder sequence length
SRC = 8          # encoder sequence length
BATCH = 2
EMBED = 32       # cfg.decoder.embed_dim
FFN = 64         # cfg.decoder.ffn_embed_dim
HEADS = 4        # cfg.decoder.attention_heads
HEAD_DIM = EMBED // HEADS
BH = BATCH * HEADS
LN_EPS = 1e-5
NEG = -1e9                      # additive mask value; exp underflows to 0 in f32
SCALING = HEAD_DIM ** -0.5

# packed per-(batch*head) projection weight columns: [self q|k|v | cross q | cross k|v]
_SQKV0 = 0
_CQ0 = 3 * HEAD_DIM
_CKV0 = 4 * HEAD_DIM

# packed (rows, EMBED) vector buffer rows
(_LN_SELF_G, _LN_SELF_B, _LN_ENC_G, _LN_ENC_B, _LN_FIN_G, _LN_FIN_B,
 _BO_SELF, _BO_CROSS, _B_FC2) = range(9)


# ------------------------------- kernel --------------------------------------
def _decoder_layer_kernel(
    x_ref,        # (B, T, E)   decoder input
    enc_ref,      # (B, S, E)   encoder output
    mself_ref,    # (BH, T, T)  additive mask: causal + self key padding
    mcross_ref,   # (BH, T, S)  additive mask: encoder key padding
    wh_ref,       # (BH, E, 6D) packed per-head projection weights, (in,out)
    bh_ref,       # (BH, 1, 6D) packed per-head projection biases
    wo_ref,       # (BH, 2D, E) per-head out-proj weights [self | cross]
    w1_ref,       # (E, F)      fc1 weight, (in,out)
    b1_ref,       # (1, F)      fc1 bias
    w2_ref,       # (F, E)      fc2 weight, (in,out)
    vec_ref,      # (9, E)      LN gammas/betas, out-proj biases, fc2 bias
    out_ref,      # (B*T, E)
    attn_ref,     # (B, T, S)   head-averaged cross-attention weights
):
    D = HEAD_DIM
    x3 = x_ref[...]
    enc3 = enc_ref[...]
    wh = wh_ref[...]
    bh = bh_ref[...]
    wo = wo_ref[...]
    vec = vec_ref[...]

    x2 = x3.reshape(BATCH * TGT, EMBED)          # rows ordered (b, t)

    def bcast_heads(z3, rows):
        # (B, rows, E) -> (B*H, rows, E) with n = b*HEADS + h (leading-dim ops only)
        return jnp.broadcast_to(z3[:, None], (BATCH, HEADS, rows, EMBED)
                                ).reshape(BH, rows, EMBED)

    def layer_norm(z, g_row, b_row):
        mu = jnp.mean(z, axis=-1, keepdims=True)
        var = jnp.mean((z - mu) ** 2, axis=-1, keepdims=True)
        return ((z - mu) * lax.rsqrt(var + LN_EPS)
                * vec[g_row:g_row + 1, :] + vec[b_row:b_row + 1, :])

    def proj(src_bh, c0, c1):
        # batched per-head linear: (BH,R,E) x (BH,E,c1-c0) -> (BH,R,c1-c0)
        return jnp.einsum("nre,neo->nro", src_bh, wh[:, :, c0:c1],
                          preferred_element_type=jnp.float32) + bh[:, :, c0:c1]

    def merge_heads(z):
        # (BH, T, E) -> sum over heads -> (B*T, E); unrolled adds (no major-dim reduce)
        z4 = z.reshape(BATCH, HEADS, TGT, EMBED)
        acc = z4[:, 0]
        for h in range(1, HEADS):
            acc = acc + z4[:, h]
        return acc.reshape(BATCH * TGT, EMBED)

    def attend(q, k, v, mask, wo_slice, bo_row):
        # q:(BH,T,D)  k,v:(BH,K,D)  mask:(BH,T,K)  wo_slice:(BH,D,E)
        s = jnp.einsum("nqd,nkd->nqk", q * SCALING, k,
                       preferred_element_type=jnp.float32) + mask
        m = jnp.max(s, axis=-1, keepdims=True)
        e = jnp.exp(s - m)
        p = e * (1.0 / jnp.sum(e, axis=-1, keepdims=True))   # reciprocal-multiply
        ctx = jnp.einsum("nqk,nkd->nqd", p, v,
                         preferred_element_type=jnp.float32)
        z = jnp.einsum("nsd,nde->nse", ctx, wo_slice,
                       preferred_element_type=jnp.float32)
        return merge_heads(z) + vec[bo_row:bo_row + 1, :], p

    # ---------------- self-attention block (post-norm) ----------------
    x_bh = bcast_heads(x3, TGT)
    qkv = proj(x_bh, _SQKV0, _SQKV0 + 3 * D)                    # (BH, T, 3D)
    sa_out, _ = attend(qkv[:, :, 0:D], qkv[:, :, D:2 * D], qkv[:, :, 2 * D:3 * D],
                       mself_ref[...], wo[:, 0:D, :], _BO_SELF)
    x1 = layer_norm(x2 + sa_out, _LN_SELF_G, _LN_SELF_B)

    # ---------------- encoder (cross) attention block (post-norm) -----
    x1_bh = bcast_heads(x1.reshape(BATCH, TGT, EMBED), TGT)
    qc = proj(x1_bh, _CQ0, _CQ0 + D)                            # (BH, T, D)
    enc_bh = bcast_heads(enc3, SRC)
    kvc = proj(enc_bh, _CKV0, _CKV0 + 2 * D)                    # (BH, S, 2D)
    ca_out, pc = attend(qc, kvc[:, :, 0:D], kvc[:, :, D:2 * D],
                        mcross_ref[...], wo[:, D:2 * D, :], _BO_CROSS)
    xe = layer_norm(x1 + ca_out, _LN_ENC_G, _LN_ENC_B)

    # head-averaged cross-attention weights (module returns these in eval)
    pc4 = pc.reshape(BATCH, HEADS, TGT, SRC)
    pacc = pc4[:, 0]
    for h in range(1, HEADS):
        pacc = pacc + pc4[:, h]
    attn_ref[...] = pacc * (1.0 / HEADS)

    # ---------------- feed-forward block (post-norm) ------------------
    hfc = lax.dot_general(xe, w1_ref[...], (((1,), (0,)), ((), ())),
                          preferred_element_type=jnp.float32) + b1_ref[...]
    hfc = jnp.maximum(hfc, 0.0)                                  # relu
    hfc = lax.dot_general(hfc, w2_ref[...], (((1,), (0,)), ((), ())),
                          preferred_element_type=jnp.float32) + vec[_B_FC2:_B_FC2 + 1, :]
    out_ref[...] = layer_norm(xe + hfc, _LN_FIN_G, _LN_FIN_B)


# --------------------------- parameter packing --------------------------------
def _heads_in_out(w):
    # torch nn.Linear weight (out=H*D, in=E) -> per-head (H, E, D), (in,out) layout
    return jnp.transpose(w.reshape(HEADS, HEAD_DIM, EMBED), (0, 2, 1))


def _heads_bias(b):
    return b.reshape(HEADS, 1, HEAD_DIM)


def _oproj_heads(w):
    # torch out_proj weight (out=E, in=H*D) -> per-head (H, D, E)
    return jnp.transpose(w.reshape(EMBED, HEADS, HEAD_DIM), (1, 2, 0))


def prepare_params(p):
    w_heads = jnp.concatenate(
        [_heads_in_out(p["wq"]), _heads_in_out(p["wk"]), _heads_in_out(p["wv"]),
         _heads_in_out(p["cwq"]), _heads_in_out(p["cwk"]), _heads_in_out(p["cwv"])],
        axis=2)                                                  # (H, E, 6D)
    b_heads = jnp.concatenate(
        [_heads_bias(p["bq"]), _heads_bias(p["bk"]), _heads_bias(p["bv"]),
         _heads_bias(p["cbq"]), _heads_bias(p["cbk"]), _heads_bias(p["cbv"])],
        axis=2)                                                  # (H, 1, 6D)
    w_oproj = jnp.concatenate(
        [_oproj_heads(p["wo"]), _oproj_heads(p["cwo"])], axis=1)  # (H, 2D, E)
    vec = jnp.stack(
        [p["ln_self_g"], p["ln_self_b"], p["ln_enc_g"], p["ln_enc_b"],
         p["ln_fin_g"], p["ln_fin_b"], p["bo"], p["cbo"], p["b2"]], axis=0)  # (9,E)
    return (jnp.tile(w_heads, (BATCH, 1, 1)),
            jnp.tile(b_heads, (BATCH, 1, 1)),
            jnp.tile(w_oproj, (BATCH, 1, 1)),
            p["w1"].T, p["b1"].reshape(1, FFN), p["w2"].T, vec)


def build_masks(self_attn_mask, self_pad, enc_pad):
    m_self = jnp.zeros((BATCH, TGT, TGT), jnp.float32)
    if self_attn_mask is not None:
        m_self = m_self + self_attn_mask[None].astype(jnp.float32)
    if self_pad is not None:
        m_self = m_self + jnp.where(self_pad, NEG, 0.0)[:, None, :].astype(jnp.float32)
    m_cross = jnp.zeros((BATCH, TGT, SRC), jnp.float32)
    if enc_pad is not None:
        m_cross = m_cross + jnp.where(enc_pad, NEG, 0.0)[:, None, :].astype(jnp.float32)
    # n = b*HEADS + h ordering
    return jnp.repeat(m_self, HEADS, axis=0), jnp.repeat(m_cross, HEADS, axis=0)


# ------------------------------- wrapper --------------------------------------
def _full_spec(shape):
    return pl.BlockSpec(shape, lambda i: (0,) * len(shape))


def transformer_decoder_layer(x_tbe, encoder_out_sbe, self_attn_mask,
                              self_attn_padding_mask, encoder_padding_mask, p):
    """x_tbe: (TGT, BATCH, EMBED); encoder_out_sbe: (SRC, BATCH, EMBED);
    self_attn_mask: (TGT, TGT) additive float or None;
    self_attn_padding_mask: (BATCH, TGT) bool or None;
    encoder_padding_mask: (BATCH, SRC) bool or None.
    Returns (x_out (TGT, BATCH, EMBED), attn (BATCH, TGT, SRC))."""
    x3 = jnp.transpose(x_tbe, (1, 0, 2)).astype(jnp.float32)
    enc3 = jnp.transpose(encoder_out_sbe, (1, 0, 2)).astype(jnp.float32)
    m_self, m_cross = build_masks(self_attn_mask, self_attn_padding_mask,
                                  encoder_padding_mask)
    w_heads, b_heads, w_oproj, w1t, b1, w2t, vec = prepare_params(p)

    inputs = (x3, enc3, m_self, m_cross, w_heads, b_heads, w_oproj,
              w1t, b1, w2t, vec)
    in_specs = [_full_spec(tuple(a.shape)) for a in inputs]

    out2, attn_avg = pl.pallas_call(
        _decoder_layer_kernel,
        out_shape=(jax.ShapeDtypeStruct((BATCH * TGT, EMBED), jnp.float32),
                   jax.ShapeDtypeStruct((BATCH, TGT, SRC), jnp.float32)),
        grid_spec=pltpu.PrefetchScalarGridSpec(
            num_scalar_prefetch=0,
            grid=(1,),                                     # single fused step
            in_specs=in_specs,
            out_specs=(_full_spec((BATCH * TGT, EMBED)),
                       _full_spec((BATCH, TGT, SRC))),
        ),
        compiler_params=pltpu.CompilerParams(
            dimension_semantics=("arbitrary",)),
    )(*inputs)

    x_out = jnp.transpose(out2.reshape(BATCH, TGT, EMBED), (1, 0, 2))
    return x_out, attn_avg


# ----------------------------- plain-JAX reference ----------------------------
def reference(x_tbe, enc_sbe, self_attn_mask, self_pad, enc_pad, p):
    x = x_tbe.astype(jnp.float32)
    enc = enc_sbe.astype(jnp.float32)

    def lin(z, w, b):
        return z @ w.T + b

    def ln_(z, g, b):
        mu = z.mean(-1, keepdims=True)
        var = ((z - mu) ** 2).mean(-1, keepdims=True)
        return (z - mu) * lax.rsqrt(var + LN_EPS) * g + b

    def mha(q_in, kv_in, wq, bq, wk, bk, wv, bv, wo, bo, attn_mask, key_pad):
        tlen, b_, _ = q_in.shape
        slen = kv_in.shape[0]
        q = lin(q_in, wq, bq) * SCALING
        k = lin(kv_in, wk, bk)
        v = lin(kv_in, wv, bv)

        def split(z, length):
            return jnp.transpose(z.reshape(length, b_, HEADS, HEAD_DIM),
                                 (1, 2, 0, 3))

        qh, kh, vh = split(q, tlen), split(k, slen), split(v, slen)
        s = jnp.einsum("bhqd,bhkd->bhqk", qh, kh)
        if attn_mask is not None:
            s = s + attn_mask[None, None]
        if key_pad is not None:
            s = jnp.where(key_pad[:, None, None, :], -jnp.inf, s)
        pattn = jax.nn.softmax(s, axis=-1)
        o = jnp.einsum("bhqk,bhkd->bhqd", pattn, vh)
        o = jnp.transpose(o, (2, 0, 1, 3)).reshape(tlen, b_, EMBED)
        return lin(o, wo, bo), pattn

    # self-attention block (post-norm)
    res = x
    sa, _ = mha(x, x, p["wq"], p["bq"], p["wk"], p["bk"], p["wv"], p["bv"],
                p["wo"], p["bo"], self_attn_mask, self_pad)
    x = ln_(res + sa, p["ln_self_g"], p["ln_self_b"])
    # encoder attention block (post-norm)
    res = x
    ca, pattn = mha(x, enc, p["cwq"], p["cbq"], p["cwk"], p["cbk"],
                    p["cwv"], p["cbv"], p["cwo"], p["cbo"], None, enc_pad)
    x = ln_(res + ca, p["ln_enc_g"], p["ln_enc_b"])
    attn_avg = pattn.mean(axis=1)                      # (B, T, S)
    # feed-forward block (post-norm)
    res = x
    h = jnp.maximum(lin(x, p["w1"], p["b1"]), 0.0)
    h = lin(h, p["w2"], p["b2"])
    x = ln_(res + h, p["ln_fin_g"], p["ln_fin_b"])
    return x, attn_avg


# --------------------------------- main ---------------------------------------
if __name__ == "__main__":
    key = jax.random.PRNGKey(0)
    ks = jax.random.split(key, 32)
    kit = iter(ks)

    def nrm(shape, scale=0.02):
        return jax.random.normal(next(kit), shape, jnp.float32) * scale

    params = {
        # self-attention (torch nn.Linear layout: (out,in) weights, (out,) biases)
        "wq": nrm((EMBED, EMBED)), "bq": nrm((EMBED,)),
        "wk": nrm((EMBED, EMBED)), "bk": nrm((EMBED,)),
        "wv": nrm((EMBED, EMBED)), "bv": nrm((EMBED,)),
        "wo": nrm((EMBED, EMBED)), "bo": nrm((EMBED,)),
        # encoder (cross) attention
        "cwq": nrm((EMBED, EMBED)), "cbq": nrm((EMBED,)),
        "cwk": nrm((EMBED, EMBED)), "cbk": nrm((EMBED,)),
        "cwv": nrm((EMBED, EMBED)), "cbv": nrm((EMBED,)),
        "cwo": nrm((EMBED, EMBED)), "cbo": nrm((EMBED,)),
        # layer norms
        "ln_self_g": 1.0 + nrm((EMBED,), 0.1), "ln_self_b": nrm((EMBED,), 0.1),
        "ln_enc_g": 1.0 + nrm((EMBED,), 0.1), "ln_enc_b": nrm((EMBED,), 0.1),
        "ln_fin_g": 1.0 + nrm((EMBED,), 0.1), "ln_fin_b": nrm((EMBED,), 0.1),
        # feed-forward
        "w1": nrm((FFN, EMBED)), "b1": nrm((FFN,)),
        "w2": nrm((EMBED, FFN)), "b2": nrm((EMBED,)),
    }

    x = jax.random.normal(next(kit), (TGT, BATCH, EMBED), jnp.float32)
    enc = jax.random.normal(next(kit), (SRC, BATCH, EMBED), jnp.float32)

    # causal (future) mask, additive, like fairseq's buffered_future_mask
    idx = jnp.arange(TGT)
    causal_add = jnp.where(idx[None, :] > idx[:, None], NEG, 0.0).astype(jnp.float32)
    # self-attn key padding: last target position of batch element 1 is padding
    self_pad = jnp.zeros((BATCH, TGT), dtype=bool).at[1, TGT - 1:].set(True)
    # encoder key padding: last two source positions of batch element 0
    enc_pad = jnp.zeros((BATCH, SRC), dtype=bool).at[0, SRC - 2:].set(True)

    out, attn = transformer_decoder_layer(x, enc, causal_add, self_pad,
                                          enc_pad, params)
    out = jax.block_until_ready(out)
    attn = jax.block_until_ready(attn)

    ref_out, ref_attn = reference(x, enc, causal_add, self_pad, enc_pad, params)
    np.testing.assert_allclose(np.asarray(out), np.asarray(ref_out),
                               rtol=1e-4, atol=1e-5)
    np.testing.assert_allclose(np.asarray(attn), np.asarray(ref_attn),
                               rtol=1e-4, atol=1e-5)
    print("KERNEL_OK")
</pallas_src>

<mosaic_0001>
module attributes {stable_mosaic.version = 11 : i64} {
  func.func @_decoder_layer_kernel(%arg0: i32, %arg1: memref<2x8x32xf32, #tpu.memory_space<vmem>>, %arg2: memref<2x8x32xf32, #tpu.memory_space<vmem>>, %arg3: memref<8x8x8xf32, #tpu.memory_space<vmem>>, %arg4: memref<8x8x8xf32, #tpu.memory_space<vmem>>, %arg5: memref<8x32x48xf32, #tpu.memory_space<vmem>>, %arg6: memref<8x1x48xf32, #tpu.memory_space<vmem>>, %arg7: memref<8x16x32xf32, #tpu.memory_space<vmem>>, %arg8: memref<32x64xf32, #tpu.memory_space<vmem>>, %arg9: memref<1x64xf32, #tpu.memory_space<vmem>>, %arg10: memref<64x32xf32, #tpu.memory_space<vmem>>, %arg11: memref<9x32xf32, #tpu.memory_space<vmem>>, %arg12: memref<16x32xf32, #tpu.memory_space<vmem>>, %arg13: memref<2x8x8xf32, #tpu.memory_space<vmem>>) attributes {dimension_semantics = [#tpu.dimension_semantics<arbitrary>], iteration_bounds = array<i64: 1>, scalar_prefetch = 0 : i64, scratch_operands = 0 : i64, tpu.core_type = #tpu.core_type<tc>, window_params = [{pipeline_mode = #tpu.pipeline_mode<synchronous>, transform_indices = @transform_0, window_bounds = array<i64: 2, 8, 32>}, {pipeline_mode = #tpu.pipeline_mode<synchronous>, transform_indices = @transform_1, window_bounds = array<i64: 2, 8, 32>}, {pipeline_mode = #tpu.pipeline_mode<synchronous>, transform_indices = @transform_2, window_bounds = array<i64: 8, 8, 8>}, {pipeline_mode = #tpu.pipeline_mode<synchronous>, transform_indices = @transform_3, window_bounds = array<i64: 8, 8, 8>}, {pipeline_mode = #tpu.pipeline_mode<synchronous>, transform_indices = @transform_4, window_bounds = array<i64: 8, 32, 48>}, {pipeline_mode = #tpu.pipeline_mode<synchronous>, transform_indices = @transform_5, window_bounds = array<i64: 8, 1, 48>}, {pipeline_mode = #tpu.pipeline_mode<synchronous>, transform_indices = @transform_6, window_bounds = array<i64: 8, 16, 32>}, {pipeline_mode = #tpu.pipeline_mode<synchronous>, transform_indices = @transform_7, window_bounds = array<i64: 32, 64>}, {pipeline_mode = #tpu.pipeline_mode<synchronous>, transform_indices = @transform_8, window_bounds = array<i64: 1, 64>}, {pipeline_mode = #tpu.pipeline_mode<synchronous>, transform_indices = @transform_9, window_bounds = array<i64: 64, 32>}, {pipeline_mode = #tpu.pipeline_mode<synchronous>, transform_indices = @transform_10, window_bounds = array<i64: 9, 32>}, {pipeline_mode = #tpu.pipeline_mode<synchronous>, transform_indices = @transform_11, window_bounds = array<i64: 16, 32>}, {pipeline_mode = #tpu.pipeline_mode<synchronous>, transform_indices = @transform_12, window_bounds = array<i64: 2, 8, 8>}]} {
    %c0 = arith.constant 0 : index
    %c0_0 = arith.constant 0 : index
    %c0_1 = arith.constant 0 : index
    %0 = vector.load %arg1[%c0, %c0_0, %c0_1] : memref<2x8x32xf32, #tpu.memory_space<vmem>>, vector<2x8x32xf32>
    %c0_2 = arith.constant 0 : index
    %c0_3 = arith.constant 0 : index
    %c0_4 = arith.constant 0 : index
    %1 = vector.load %arg2[%c0_2, %c0_3, %c0_4] : memref<2x8x32xf32, #tpu.memory_space<vmem>>, vector<2x8x32xf32>
    %c0_5 = arith.constant 0 : index
    %c0_6 = arith.constant 0 : index
    %c0_7 = arith.constant 0 : index
    %2 = vector.load %arg5[%c0_5, %c0_6, %c0_7] : memref<8x32x48xf32, #tpu.memory_space<vmem>>, vector<8x32x48xf32>
    %c0_8 = arith.constant 0 : index
    %c0_9 = arith.constant 0 : index
    %c0_10 = arith.constant 0 : index
    %3 = vector.load %arg6[%c0_8, %c0_9, %c0_10] : memref<8x1x48xf32, #tpu.memory_space<vmem>>, vector<8x1x48xf32>
    %c0_11 = arith.constant 0 : index
    %c0_12 = arith.constant 0 : index
    %c0_13 = arith.constant 0 : index
    %4 = vector.load %arg7[%c0_11, %c0_12, %c0_13] : memref<8x16x32xf32, #tpu.memory_space<vmem>>, vector<8x16x32xf32>
    %c0_14 = arith.constant 0 : index
    %c0_15 = arith.constant 0 : index
    %5 = vector.load %arg11[%c0_14, %c0_15] : memref<9x32xf32, #tpu.memory_space<vmem>>, vector<9x32xf32>
    %6 = vector.shape_cast %0 : vector<2x8x32xf32> to vector<16x32xf32>
    %7 = vector.shape_cast %0 : vector<2x8x32xf32> to vector<2x1x8x32xf32>
    %8 = vector.shape_cast %7 : vector<2x1x8x32xf32> to vector<2x1x8x32xf32>
    %9 = vector.broadcast %8 : vector<2x1x8x32xf32> to vector<2x4x8x32xf32>
    %10 = vector.shape_cast %9 : vector<2x4x8x32xf32> to vector<8x8x32xf32>
    %11 = vector.extract_strided_slice %2 {offsets = [0, 0, 0], sizes = [8, 32, 24], strides = [1, 1, 1]} : vector<8x32x48xf32> to vector<8x32x24xf32>
    "tpu.trace_start"() <{level = 10 : i32, message = "nre,neo->nro"}> : () -> ()
    %cst = arith.constant dense<0.000000e+00> : vector<8x8x24xf32>
    %12 = tpu.matmul %10, %11, %cst {dimension_numbers = #tpu.dot_dimension_numbers<[2], [1], [1], [2], [0, 0, 0, 1, 1, 2], [0], [0]>} : vector<8x8x32xf32>, vector<8x32x24xf32>, vector<8x8x24xf32> -> vector<8x8x24xf32>
    "tpu.trace_stop"() : () -> ()
    %13 = vector.extract_strided_slice %3 {offsets = [0, 0, 0], sizes = [8, 1, 24], strides = [1, 1, 1]} : vector<8x1x48xf32> to vector<8x1x24xf32>
    %14 = vector.broadcast %13 : vector<8x1x24xf32> to vector<8x8x24xf32>
    %15 = arith.addf %12, %14 : vector<8x8x24xf32>
    %16 = vector.extract_strided_slice %15 {offsets = [0, 0, 0], sizes = [8, 8, 8], strides = [1, 1, 1]} : vector<8x8x24xf32> to vector<8x8x8xf32>
    %17 = vector.extract_strided_slice %15 {offsets = [0, 0, 8], sizes = [8, 8, 8], strides = [1, 1, 1]} : vector<8x8x24xf32> to vector<8x8x8xf32>
    %18 = vector.extract_strided_slice %15 {offsets = [0, 0, 16], sizes = [8, 8, 8], strides = [1, 1, 1]} : vector<8x8x24xf32> to vector<8x8x8xf32>
    %c0_16 = arith.constant 0 : index
    %c0_17 = arith.constant 0 : index
    %c0_18 = arith.constant 0 : index
    %19 = vector.load %arg3[%c0_16, %c0_17, %c0_18] : memref<8x8x8xf32, #tpu.memory_space<vmem>>, vector<8x8x8xf32>
    %20 = vector.extract_strided_slice %4 {offsets = [0, 0, 0], sizes = [8, 8, 32], strides = [1, 1, 1]} : vector<8x16x32xf32> to vector<8x8x32xf32>
    %cst_19 = arith.constant 0.353553385 : f32
    %21 = vector.broadcast %cst_19 : f32 to vector<8x8x8xf32>
    %22 = arith.mulf %16, %21 : vector<8x8x8xf32>
    "tpu.trace_start"() <{level = 10 : i32, message = "nqd,nkd->nqk"}> : () -> ()
    %cst_20 = arith.constant dense<0.000000e+00> : vector<8x8x8xf32>
    %23 = tpu.matmul %22, %17, %cst_20 {dimension_numbers = #tpu.dot_dimension_numbers<[2], [2], [1], [1], [0, 0, 0, 1, 1, 1], [0], [0]>} : vector<8x8x8xf32>, vector<8x8x8xf32>, vector<8x8x8xf32> -> vector<8x8x8xf32>
    "tpu.trace_stop"() : () -> ()
    %24 = arith.addf %23, %19 : vector<8x8x8xf32>
    %cst_21 = arith.constant dense<0xFF800000> : vector<8x8xf32>
    %25 = vector.multi_reduction <maximumf>, %24, %cst_21 [2] : vector<8x8x8xf32> to vector<8x8xf32>
    %26 = vector.shape_cast %25 : vector<8x8xf32> to vector<8x8x1xf32>
    %27 = vector.broadcast %26 : vector<8x8x1xf32> to vector<8x8x8xf32>
    %28 = arith.subf %24, %27 : vector<8x8x8xf32>
    %29 = math.exp %28 : vector<8x8x8xf32>
    %cst_22 = arith.constant dense<0.000000e+00> : vector<8x8xf32>
    %30 = vector.multi_reduction <add>, %29, %cst_22 [2] : vector<8x8x8xf32> to vector<8x8xf32>
    %31 = vector.shape_cast %30 : vector<8x8xf32> to vector<8x8x1xf32>
    %cst_23 = arith.constant 1.000000e+00 : f32
    %32 = vector.broadcast %cst_23 : f32 to vector<8x8x1xf32>
    %33 = arith.divf %32, %31 : vector<8x8x1xf32>
    %34 = vector.broadcast %33 : vector<8x8x1xf32> to vector<8x8x8xf32>
    %35 = arith.mulf %29, %34 : vector<8x8x8xf32>
    "tpu.trace_start"() <{level = 10 : i32, message = "nqk,nkd->nqd"}> : () -> ()
    %cst_24 = arith.constant dense<0.000000e+00> : vector<8x8x8xf32>
    %36 = tpu.matmul %35, %18, %cst_24 {dimension_numbers = #tpu.dot_dimension_numbers<[2], [1], [1], [2], [0, 0, 0, 1, 1, 2], [0], [0]>} : vector<8x8x8xf32>, vector<8x8x8xf32>, vector<8x8x8xf32> -> vector<8x8x8xf32>
    "tpu.trace_stop"() : () -> ()
    "tpu.trace_start"() <{level = 10 : i32, message = "nsd,nde->nse"}> : () -> ()
    %cst_25 = arith.constant dense<0.000000e+00> : vector<8x8x32xf32>
    %37 = tpu.matmul %36, %20, %cst_25 {dimension_numbers = #tpu.dot_dimension_numbers<[2], [1], [1], [2], [0, 0, 0, 1, 1, 2], [0], [0]>} : vector<8x8x8xf32>, vector<8x8x32xf32>, vector<8x8x32xf32> -> vector<8x8x32xf32>
    "tpu.trace_stop"() : () -> ()
    %38 = vector.shape_cast %37 : vector<8x8x32xf32> to vector<2x4x8x32xf32>
    %39 = vector.extract_strided_slice %38 {offsets = [0, 0, 0, 0], sizes = [2, 1, 8, 32], strides = [1, 1, 1, 1]} : vector<2x4x8x32xf32> to vector<2x1x8x32xf32>
    %40 = vector.shape_cast %39 : vector<2x1x8x32xf32> to vector<2x8x32xf32>
    %41 = vector.extract_strided_slice %38 {offsets = [0, 1, 0, 0], sizes = [2, 1, 8, 32], strides = [1, 1, 1, 1]} : vector<2x4x8x32xf32> to vector<2x1x8x32xf32>
    %42 = vector.shape_cast %41 : vector<2x1x8x32xf32> to vector<2x8x32xf32>
    %43 = arith.addf %40, %42 : vector<2x8x32xf32>
    %44 = vector.extract_strided_slice %38 {offsets = [0, 2, 0, 0], sizes = [2, 1, 8, 32], strides = [1, 1, 1, 1]} : vector<2x4x8x32xf32> to vector<2x1x8x32xf32>
    %45 = vector.shape_cast %44 : vector<2x1x8x32xf32> to vector<2x8x32xf32>
    %46 = arith.addf %43, %45 : vector<2x8x32xf32>
    %47 = vector.extract_strided_slice %38 {offsets = [0, 3, 0, 0], sizes = [2, 1, 8, 32], strides = [1, 1, 1, 1]} : vector<2x4x8x32xf32> to vector<2x1x8x32xf32>
    %48 = vector.shape_cast %47 : vector<2x1x8x32xf32> to vector<2x8x32xf32>
    %49 = arith.addf %46, %48 : vector<2x8x32xf32>
    %50 = vector.shape_cast %49 : vector<2x8x32xf32> to vector<16x32xf32>
    %51 = vector.extract_strided_slice %5 {offsets = [6, 0], sizes = [1, 32], strides = [1, 1]} : vector<9x32xf32> to vector<1x32xf32>
    %52 = vector.broadcast %51 : vector<1x32xf32> to vector<16x32xf32>
    %53 = arith.addf %50, %52 : vector<16x32xf32>
    %54 = arith.addf %6, %53 : vector<16x32xf32>
    %cst_26 = arith.constant dense<0.000000e+00> : vector<16xf32>
    %55 = vector.multi_reduction <add>, %54, %cst_26 [1] : vector<16x32xf32> to vector<16xf32>
    %56 = vector.shape_cast %55 : vector<16xf32> to vector<16x1xf32>
    %cst_27 = arith.constant 3.200000e+01 : f32
    %57 = vector.broadcast %cst_27 : f32 to vector<16x1xf32>
    %58 = arith.divf %56, %57 : vector<16x1xf32>
    %59 = vector.broadcast %58 : vector<16x1xf32> to vector<16x32xf32>
    %60 = arith.subf %54, %59 : vector<16x32xf32>
    %61 = arith.mulf %60, %60 : vector<16x32xf32>
    %cst_28 = arith.constant dense<0.000000e+00> : vector<16xf32>
    %62 = vector.multi_reduction <add>, %61, %cst_28 [1] : vector<16x32xf32> to vector<16xf32>
    %63 = vector.shape_cast %62 : vector<16xf32> to vector<16x1xf32>
    %cst_29 = arith.constant 3.200000e+01 : f32
    %64 = vector.broadcast %cst_29 : f32 to vector<16x1xf32>
    %65 = arith.divf %63, %64 : vector<16x1xf32>
    %66 = vector.broadcast %58 : vector<16x1xf32> to vector<16x32xf32>
    %67 = arith.subf %54, %66 : vector<16x32xf32>
    %cst_30 = arith.constant 9.99999974E-6 : f32
    %68 = vector.broadcast %cst_30 : f32 to vector<16x1xf32>
    %69 = arith.addf %65, %68 : vector<16x1xf32>
    %70 = math.rsqrt %69 : vector<16x1xf32>
    %71 = vector.broadcast %70 : vector<16x1xf32> to vector<16x32xf32>
    %72 = arith.mulf %67, %71 : vector<16x32xf32>
    %73 = vector.extract_strided_slice %5 {offsets = [0, 0], sizes = [1, 32], strides = [1, 1]} : vector<9x32xf32> to vector<1x32xf32>
    %74 = vector.broadcast %73 : vector<1x32xf32> to vector<16x32xf32>
    %75 = arith.mulf %72, %74 : vector<16x32xf32>
    %76 = vector.extract_strided_slice %5 {offsets = [1, 0], sizes = [1, 32], strides = [1, 1]} : vector<9x32xf32> to vector<1x32xf32>
    %77 = vector.broadcast %76 : vector<1x32xf32> to vector<16x32xf32>
    %78 = arith.addf %75, %77 : vector<16x32xf32>
    %79 = vector.shape_cast %78 : vector<16x32xf32> to vector<2x8x32xf32>
    %80 = vector.shape_cast %79 : vector<2x8x32xf32> to vector<2x1x8x32xf32>
    %81 = vector.shape_cast %80 : vector<2x1x8x32xf32> to vector<2x1x8x32xf32>
    %82 = vector.broadcast %81 : vector<2x1x8x32xf32> to vector<2x4x8x32xf32>
    %83 = vector.shape_cast %82 : vector<2x4x8x32xf32> to vector<8x8x32xf32>
    %84 = vector.extract_strided_slice %2 {offsets = [0, 0, 24], sizes = [8, 32, 8], strides = [1, 1, 1]} : vector<8x32x48xf32> to vector<8x32x8xf32>
    "tpu.trace_start"() <{level = 10 : i32, message = "nre,neo->nro"}> : () -> ()
    %cst_31 = arith.constant dense<0.000000e+00> : vector<8x8x8xf32>
    %85 = tpu.matmul %83, %84, %cst_31 {dimension_numbers = #tpu.dot_dimension_numbers<[2], [1], [1], [2], [0, 0, 0, 1, 1, 2], [0], [0]>} : vector<8x8x32xf32>, vector<8x32x8xf32>, vector<8x8x8xf32> -> vector<8x8x8xf32>
    "tpu.trace_stop"() : () -> ()
    %86 = vector.extract_strided_slice %3 {offsets = [0, 0, 24], sizes = [8, 1, 8], strides = [1, 1, 1]} : vector<8x1x48xf32> to vector<8x1x8xf32>
    %87 = vector.broadcast %86 : vector<8x1x8xf32> to vector<8x8x8xf32>
    %88 = arith.addf %85, %87 : vector<8x8x8xf32>
    %89 = vector.shape_cast %1 : vector<2x8x32xf32> to vector<2x1x8x32xf32>
    %90 = vector.shape_cast %89 : vector<2x1x8x32xf32> to vector<2x1x8x32xf32>
    %91 = vector.broadcast %90 : vector<2x1x8x32xf32> to vector<2x4x8x32xf32>
    %92 = vector.shape_cast %91 : vector<2x4x8x32xf32> to vector<8x8x32xf32>
    %93 = vector.extract_strided_slice %2 {offsets = [0, 0, 32], sizes = [8, 32, 16], strides = [1, 1, 1]} : vector<8x32x48xf32> to vector<8x32x16xf32>
    "tpu.trace_start"() <{level = 10 : i32, message = "nre,neo->nro"}> : () -> ()
    %cst_32 = arith.constant dense<0.000000e+00> : vector<8x8x16xf32>
    %94 = tpu.matmul %92, %93, %cst_32 {dimension_numbers = #tpu.dot_dimension_numbers<[2], [1], [1], [2], [0, 0, 0, 1, 1, 2], [0], [0]>} : vector<8x8x32xf32>, vector<8x32x16xf32>, vector<8x8x16xf32> -> vector<8x8x16xf32>
    "tpu.trace_stop"() : () -> ()
    %95 = vector.extract_strided_slice %3 {offsets = [0, 0, 32], sizes = [8, 1, 16], strides = [1, 1, 1]} : vector<8x1x48xf32> to vector<8x1x16xf32>
    %96 = vector.broadcast %95 : vector<8x1x16xf32> to vector<8x8x16xf32>
    %97 = arith.addf %94, %96 : vector<8x8x16xf32>
    %98 = vector.extract_strided_slice %97 {offsets = [0, 0, 0], sizes = [8, 8, 8], strides = [1, 1, 1]} : vector<8x8x16xf32> to vector<8x8x8xf32>
    %99 = vector.extract_strided_slice %97 {offsets = [0, 0, 8], sizes = [8, 8, 8], strides = [1, 1, 1]} : vector<8x8x16xf32> to vector<8x8x8xf32>
    %c0_33 = arith.constant 0 : index
    %c0_34 = arith.constant 0 : index
    %c0_35 = arith.constant 0 : index
    %100 = vector.load %arg4[%c0_33, %c0_34, %c0_35] : memref<8x8x8xf32, #tpu.memory_space<vmem>>, vector<8x8x8xf32>
    %101 = vector.extract_strided_slice %4 {offsets = [0, 8, 0], sizes = [8, 8, 32], strides = [1, 1, 1]} : vector<8x16x32xf32> to vector<8x8x32xf32>
    %cst_36 = arith.constant 0.353553385 : f32
    %102 = vector.broadcast %cst_36 : f32 to vector<8x8x8xf32>
    %103 = arith.mulf %88, %102 : vector<8x8x8xf32>
    "tpu.trace_start"() <{level = 10 : i32, message = "nqd,nkd->nqk"}> : () -> ()
    %cst_37 = arith.constant dense<0.000000e+00> : vector<8x8x8xf32>
    %104 = tpu.matmul %103, %98, %cst_37 {dimension_numbers = #tpu.dot_dimension_numbers<[2], [2], [1], [1], [0, 0, 0, 1, 1, 1], [0], [0]>} : vector<8x8x8xf32>, vector<8x8x8xf32>, vector<8x8x8xf32> -> vector<8x8x8xf32>
    "tpu.trace_stop"() : () -> ()
    %105 = arith.addf %104, %100 : vector<8x8x8xf32>
    %cst_38 = arith.constant dense<0xFF800000> : vector<8x8xf32>
    %106 = vector.multi_reduction <maximumf>, %105, %cst_38 [2] : vector<8x8x8xf32> to vector<8x8xf32>
    %107 = vector.shape_cast %106 : vector<8x8xf32> to vector<8x8x1xf32>
    %108 = vector.broadcast %107 : vector<8x8x1xf32> to vector<8x8x8xf32>
    %109 = arith.subf %105, %108 : vector<8x8x8xf32>
    %110 = math.exp %109 : vector<8x8x8xf32>
    %cst_39 = arith.constant dense<0.000000e+00> : vector<8x8xf32>
    %111 = vector.multi_reduction <add>, %110, %cst_39 [2] : vector<8x8x8xf32> to vector<8x8xf32>
    %112 = vector.shape_cast %111 : vector<8x8xf32> to vector<8x8x1xf32>
    %cst_40 = arith.constant 1.000000e+00 : f32
    %113 = vector.broadcast %cst_40 : f32 to vector<8x8x1xf32>
    %114 = arith.divf %113, %112 : vector<8x8x1xf32>
    %115 = vector.broadcast %114 : vector<8x8x1xf32> to vector<8x8x8xf32>
    %116 = arith.mulf %110, %115 : vector<8x8x8xf32>
    "tpu.trace_start"() <{level = 10 : i32, message = "nqk,nkd->nqd"}> : () -> ()
    %cst_41 = arith.constant dense<0.000000e+00> : vector<8x8x8xf32>
    %117 = tpu.matmul %116, %99, %cst_41 {dimension_numbers = #tpu.dot_dimension_numbers<[2], [1], [1], [2], [0, 0, 0, 1, 1, 2], [0], [0]>} : vector<8x8x8xf32>, vector<8x8x8xf32>, vector<8x8x8xf32> -> vector<8x8x8xf32>
    "tpu.trace_stop"() : () -> ()
    "tpu.trace_start"() <{level = 10 : i32, message = "nsd,nde->nse"}> : () -> ()
    %cst_42 = arith.constant dense<0.000000e+00> : vector<8x8x32xf32>
    %118 = tpu.matmul %117, %101, %cst_42 {dimension_numbers = #tpu.dot_dimension_numbers<[2], [1], [1], [2], [0, 0, 0, 1, 1, 2], [0], [0]>} : vector<8x8x8xf32>, vector<8x8x32xf32>, vector<8x8x32xf32> -> vector<8x8x32xf32>
    "tpu.trace_stop"() : () -> ()
    %119 = vector.shape_cast %118 : vector<8x8x32xf32> to vector<2x4x8x32xf32>
    %120 = vector.extract_strided_slice %119 {offsets = [0, 0, 0, 0], sizes = [2, 1, 8, 32], strides = [1, 1, 1, 1]} : vector<2x4x8x32xf32> to vector<2x1x8x32xf32>
    %121 = vector.shape_cast %120 : vector<2x1x8x32xf32> to vector<2x8x32xf32>
    %122 = vector.extract_strided_slice %119 {offsets = [0, 1, 0, 0], sizes = [2, 1, 8, 32], strides = [1, 1, 1, 1]} : vector<2x4x8x32xf32> to vector<2x1x8x32xf32>
    %123 = vector.shape_cast %122 : vector<2x1x8x32xf32> to vector<2x8x32xf32>
    %124 = arith.addf %121, %123 : vector<2x8x32xf32>
    %125 = vector.extract_strided_slice %119 {offsets = [0, 2, 0, 0], sizes = [2, 1, 8, 32], strides = [1, 1, 1, 1]} : vector<2x4x8x32xf32> to vector<2x1x8x32xf32>
    %126 = vector.shape_cast %125 : vector<2x1x8x32xf32> to vector<2x8x32xf32>
    %127 = arith.addf %124, %126 : vector<2x8x32xf32>
    %128 = vector.extract_strided_slice %119 {offsets = [0, 3, 0, 0], sizes = [2, 1, 8, 32], strides = [1, 1, 1, 1]} : vector<2x4x8x32xf32> to vector<2x1x8x32xf32>
    %129 = vector.shape_cast %128 : vector<2x1x8x32xf32> to vector<2x8x32xf32>
    %130 = arith.addf %127, %129 : vector<2x8x32xf32>
    %131 = vector.shape_cast %130 : vector<2x8x32xf32> to vector<16x32xf32>
    %132 = vector.extract_strided_slice %5 {offsets = [7, 0], sizes = [1, 32], strides = [1, 1]} : vector<9x32xf32> to vector<1x32xf32>
    %133 = vector.broadcast %132 : vector<1x32xf32> to vector<16x32xf32>
    %134 = arith.addf %131, %133 : vector<16x32xf32>
    %135 = arith.addf %78, %134 : vector<16x32xf32>
    %cst_43 = arith.constant dense<0.000000e+00> : vector<16xf32>
    %136 = vector.multi_reduction <add>, %135, %cst_43 [1] : vector<16x32xf32> to vector<16xf32>
    %137 = vector.shape_cast %136 : vector<16xf32> to vector<16x1xf32>
    %cst_44 = arith.constant 3.200000e+01 : f32
    %138 = vector.broadcast %cst_44 : f32 to vector<16x1xf32>
    %139 = arith.divf %137, %138 : vector<16x1xf32>
    %140 = vector.broadcast %139 : vector<16x1xf32> to vector<16x32xf32>
    %141 = arith.subf %135, %140 : vector<16x32xf32>
    %142 = arith.mulf %141, %141 : vector<16x32xf32>
    %cst_45 = arith.constant dense<0.000000e+00> : vector<16xf32>
    %143 = vector.multi_reduction <add>, %142, %cst_45 [1] : vector<16x32xf32> to vector<16xf32>
    %144 = vector.shape_cast %143 : vector<16xf32> to vector<16x1xf32>
    %cst_46 = arith.constant 3.200000e+01 : f32
    %145 = vector.broadcast %cst_46 : f32 to vector<16x1xf32>
    %146 = arith.divf %144, %145 : vector<16x1xf32>
    %147 = vector.broadcast %139 : vector<16x1xf32> to vector<16x32xf32>
    %148 = arith.subf %135, %147 : vector<16x32xf32>
    %cst_47 = arith.constant 9.99999974E-6 : f32
    %149 = vector.broadcast %cst_47 : f32 to vector<16x1xf32>
    %150 = arith.addf %146, %149 : vector<16x1xf32>
    %151 = math.rsqrt %150 : vector<16x1xf32>
    %152 = vector.broadcast %151 : vector<16x1xf32> to vector<16x32xf32>
    %153 = arith.mulf %148, %152 : vector<16x32xf32>
    %154 = vector.extract_strided_slice %5 {offsets = [2, 0], sizes = [1, 32], strides = [1, 1]} : vector<9x32xf32> to vector<1x32xf32>
    %155 = vector.broadcast %154 : vector<1x32xf32> to vector<16x32xf32>
    %156 = arith.mulf %153, %155 : vector<16x32xf32>
    %157 = vector.extract_strided_slice %5 {offsets = [3, 0], sizes = [1, 32], strides = [1, 1]} : vector<9x32xf32> to vector<1x32xf32>
    %158 = vector.broadcast %157 : vector<1x32xf32> to vector<16x32xf32>
    %159 = arith.addf %156, %158 : vector<16x32xf32>
    %160 = vector.shape_cast %116 : vector<8x8x8xf32> to vector<2x4x8x8xf32>
    %161 = vector.extract_strided_slice %160 {offsets = [0, 0, 0, 0], sizes = [2, 1, 8, 8], strides = [1, 1, 1, 1]} : vector<2x4x8x8xf32> to vector<2x1x8x8xf32>
    %162 = vector.shape_cast %161 : vector<2x1x8x8xf32> to vector<2x8x8xf32>
    %163 = vector.extract_strided_slice %160 {offsets = [0, 1, 0, 0], sizes = [2, 1, 8, 8], strides = [1, 1, 1, 1]} : vector<2x4x8x8xf32> to vector<2x1x8x8xf32>
    %164 = vector.shape_cast %163 : vector<2x1x8x8xf32> to vector<2x8x8xf32>
    %165 = arith.addf %162, %164 : vector<2x8x8xf32>
    %166 = vector.extract_strided_slice %160 {offsets = [0, 2, 0, 0], sizes = [2, 1, 8, 8], strides = [1, 1, 1, 1]} : vector<2x4x8x8xf32> to vector<2x1x8x8xf32>
    %167 = vector.shape_cast %166 : vector<2x1x8x8xf32> to vector<2x8x8xf32>
    %168 = arith.addf %165, %167 : vector<2x8x8xf32>
    %169 = vector.extract_strided_slice %160 {offsets = [0, 3, 0, 0], sizes = [2, 1, 8, 8], strides = [1, 1, 1, 1]} : vector<2x4x8x8xf32> to vector<2x1x8x8xf32>
    %170 = vector.shape_cast %169 : vector<2x1x8x8xf32> to vector<2x8x8xf32>
    %171 = arith.addf %168, %170 : vector<2x8x8xf32>
    %cst_48 = arith.constant 2.500000e-01 : f32
    %172 = vector.broadcast %cst_48 : f32 to vector<2x8x8xf32>
    %173 = arith.mulf %171, %172 : vector<2x8x8xf32>
    %c0_49 = arith.constant 0 : index
    %c0_50 = arith.constant 0 : index
    %c0_51 = arith.constant 0 : index
    %174 = vector.load %arg13[%c0_49, %c0_50, %c0_51] : memref<2x8x8xf32, #tpu.memory_space<vmem>>, vector<2x8x8xf32>
    tpu.vector_store %arg13[%c0_49, %c0_50, %c0_51], %173 {strides = array<i32>} : memref<2x8x8xf32, #tpu.memory_space<vmem>>, vector<2x8x8xf32>,
    %c0_52 = arith.constant 0 : index
    %c0_53 = arith.constant 0 : index
    %175 = vector.load %arg8[%c0_52, %c0_53] : memref<32x64xf32, #tpu.memory_space<vmem>>, vector<32x64xf32>
    %cst_54 = arith.constant dense<0.000000e+00> : vector<16x64xf32>
    %176 = tpu.matmul %159, %175, %cst_54 {dimension_numbers = #tpu.dot_dimension_numbers<[1], [0], [0], [1], [0, 0, 1, 1], [], []>} : vector<16x32xf32>, vector<32x64xf32>, vector<16x64xf32> -> vector<16x64xf32>
    %c0_55 = arith.constant 0 : index
    %c0_56 = arith.constant 0 : index
    %177 = vector.load %arg9[%c0_55, %c0_56] : memref<1x64xf32, #tpu.memory_space<vmem>>, vector<1x64xf32>
    %178 = vector.broadcast %177 : vector<1x64xf32> to vector<16x64xf32>
    %179 = arith.addf %176, %178 : vector<16x64xf32>
    %cst_57 = arith.constant 0.000000e+00 : f32
    %180 = vector.broadcast %cst_57 : f32 to vector<16x64xf32>
    %181 = arith.maximumf %179, %180 : vector<16x64xf32>
    %c0_58 = arith.constant 0 : index
    %c0_59 = arith.constant 0 : index
    %182 = vector.load %arg10[%c0_58, %c0_59] : memref<64x32xf32, #tpu.memory_space<vmem>>, vector<64x32xf32>
    %cst_60 = arith.constant dense<0.000000e+00> : vector<16x32xf32>
    %183 = tpu.matmul %181, %182, %cst_60 {dimension_numbers = #tpu.dot_dimension_numbers<[1], [0], [0], [1], [0, 0, 1, 1], [], []>} : vector<16x64xf32>, vector<64x32xf32>, vector<16x32xf32> -> vector<16x32xf32>
    %184 = vector.extract_strided_slice %5 {offsets = [8, 0], sizes = [1, 32], strides = [1, 1]} : vector<9x32xf32> to vector<1x32xf32>
    %185 = vector.broadcast %184 : vector<1x32xf32> to vector<16x32xf32>
    %186 = arith.addf %183, %185 : vector<16x32xf32>
    %187 = arith.addf %159, %186 : vector<16x32xf32>
    %cst_61 = arith.constant dense<0.000000e+00> : vector<16xf32>
    %188 = vector.multi_reduction <add>, %187, %cst_61 [1] : vector<16x32xf32> to vector<16xf32>
    %189 = vector.shape_cast %188 : vector<16xf32> to vector<16x1xf32>
    %cst_62 = arith.constant 3.200000e+01 : f32
    %190 = vector.broadcast %cst_62 : f32 to vector<16x1xf32>
    %191 = arith.divf %189, %190 : vector<16x1xf32>
    %192 = vector.broadcast %191 : vector<16x1xf32> to vector<16x32xf32>
    %193 = arith.subf %187, %192 : vector<16x32xf32>
    %194 = arith.mulf %193, %193 : vector<16x32xf32>
    %cst_63 = arith.constant dense<0.000000e+00> : vector<16xf32>
    %195 = vector.multi_reduction <add>, %194, %cst_63 [1] : vector<16x32xf32> to vector<16xf32>
    %196 = vector.shape_cast %195 : vector<16xf32> to vector<16x1xf32>
    %cst_64 = arith.constant 3.200000e+01 : f32
    %197 = vector.broadcast %cst_64 : f32 to vector<16x1xf32>
    %198 = arith.divf %196, %197 : vector<16x1xf32>
    %199 = vector.broadcast %191 : vector<16x1xf32> to vector<16x32xf32>
    %200 = arith.subf %187, %199 : vector<16x32xf32>
    %cst_65 = arith.constant 9.99999974E-6 : f32
    %201 = vector.broadcast %cst_65 : f32 to vector<16x1xf32>
    %202 = arith.addf %198, %201 : vector<16x1xf32>
    %203 = math.rsqrt %202 : vector<16x1xf32>
    %204 = vector.broadcast %203 : vector<16x1xf32> to vector<16x32xf32>
    %205 = arith.mulf %200, %204 : vector<16x32xf32>
    %206 = vector.extract_strided_slice %5 {offsets = [4, 0], sizes = [1, 32], strides = [1, 1]} : vector<9x32xf32> to vector<1x32xf32>
    %207 = vector.broadcast %206 : vector<1x32xf32> to vector<16x32xf32>
    %208 = arith.mulf %205, %207 : vector<16x32xf32>
    %209 = vector.extract_strided_slice %5 {offsets = [5, 0], sizes = [1, 32], strides = [1, 1]} : vector<9x32xf32> to vector<1x32xf32>
    %210 = vector.broadcast %209 : vector<1x32xf32> to vector<16x32xf32>
    %211 = arith.addf %208, %210 : vector<16x32xf32>
    %c0_66 = arith.constant 0 : index
    %c0_67 = arith.constant 0 : index
    %212 = vector.load %arg12[%c0_66, %c0_67] : memref<16x32xf32, #tpu.memory_space<vmem>>, vector<16x32xf32>
    tpu.vector_store %arg12[%c0_66, %c0_67], %211 {strides = array<i32>} : memref<16x32xf32, #tpu.memory_space<vmem>>, vector<16x32xf32>,
    return
  }
  func.func @transform_0(%arg0: i32) -> (i32, i32, i32) {
    %c0_i32 = arith.constant 0 : i32
    %c0_i32_0 = arith.constant 0 : i32
    %c0_i32_1 = arith.constant 0 : i32
    %c0_i32_2 = arith.constant 0 : i32
    return %c0_i32, %c0_i32_0, %c0_i32_1 : i32, i32, i32
  }
  func.func @transform_1(%arg0: i32) -> (i32, i32, i32) {
    %c0_i32 = arith.constant 0 : i32
    %c0_i32_0 = arith.constant 0 : i32
    %c0_i32_1 = arith.constant 0 : i32
    %c0_i32_2 = arith.constant 0 : i32
    return %c0_i32, %c0_i32_0, %c0_i32_1 : i32, i32, i32
  }
  func.func @transform_2(%arg0: i32) -> (i32, i32, i32) {
    %c0_i32 = arith.constant 0 : i32
    %c0_i32_0 = arith.constant 0 : i32
    %c0_i32_1 = arith.constant 0 : i32
    %c0_i32_2 = arith.constant 0 : i32
    return %c0_i32, %c0_i32_0, %c0_i32_1 : i32, i32, i32
  }
  func.func @transform_3(%arg0: i32) -> (i32, i32, i32) {
    %c0_i32 = arith.constant 0 : i32
    %c0_i32_0 = arith.constant 0 : i32
    %c0_i32_1 = arith.constant 0 : i32
    %c0_i32_2 = arith.constant 0 : i32
    return %c0_i32, %c0_i32_0, %c0_i32_1 : i32, i32, i32
  }
  func.func @transform_4(%arg0: i32) -> (i32, i32, i32) {
    %c0_i32 = arith.constant 0 : i32
    %c0_i32_0 = arith.constant 0 : i32
    %c0_i32_1 = arith.constant 0 : i32
    %c0_i32_2 = arith.constant 0 : i32
    return %c0_i32, %c0_i32_0, %c0_i32_1 : i32, i32, i32
  }
  func.func @transform_5(%arg0: i32) -> (i32, i32, i32) {
    %c0_i32 = arith.constant 0 : i32
    %c0_i32_0 = arith.constant 0 : i32
    %c0_i32_1 = arith.constant 0 : i32
    %c0_i32_2 = arith.constant 0 : i32
    return %c0_i32, %c0_i32_0, %c0_i32_1 : i32, i32, i32
  }
  func.func @transform_6(%arg0: i32) -> (i32, i32, i32) {
    %c0_i32 = arith.constant 0 : i32
    %c0_i32_0 = arith.constant 0 : i32
    %c0_i32_1 = arith.constant 0 : i32
    %c0_i32_2 = arith.constant 0 : i32
    return %c0_i32, %c0_i32_0, %c0_i32_1 : i32, i32, i32
  }
  func.func @transform_7(%arg0: i32) -> (i32, i32) {
    %c0_i32 = arith.constant 0 : i32
    %c0_i32_0 = arith.constant 0 : i32
    %c0_i32_1 = arith.constant 0 : i32
    return %c0_i32, %c0_i32_0 : i32, i32
  }
  func.func @transform_8(%arg0: i32) -> (i32, i32) {
    %c0_i32 = arith.constant 0 : i32
    %c0_i32_0 = arith.constant 0 : i32
    %c0_i32_1 = arith.constant 0 : i32
    return %c0_i32, %c0_i32_0 : i32, i32
  }
  func.func @transform_9(%arg0: i32) -> (i32, i32) {
    %c0_i32 = arith.constant 0 : i32
    %c0_i32_0 = arith.constant 0 : i32
    %c0_i32_1 = arith.constant 0 : i32
    return %c0_i32, %c0_i32_0 : i32, i32
  }
  func.func @transform_10(%arg0: i32) -> (i32, i32) {
    %c0_i32 = arith.constant 0 : i32
    %c0_i32_0 = arith.constant 0 : i32
    %c0_i32_1 = arith.constant 0 : i32
    return %c0_i32, %c0_i32_0 : i32, i32
  }
  func.func @transform_11(%arg0: i32) -> (i32, i32) {
    %c0_i32 = arith.constant 0 : i32
    %c0_i32_0 = arith.constant 0 : i32
    %c0_i32_1 = arith.constant 0 : i32
    return %c0_i32, %c0_i32_0 : i32, i32
  }
  func.func @transform_12(%arg0: i32) -> (i32, i32, i32) {
    %c0_i32 = arith.constant 0 : i32
    %c0_i32_0 = arith.constant 0 : i32
    %c0_i32_1 = arith.constant 0 : i32
    %c0_i32_2 = arith.constant 0 : i32
    return %c0_i32, %c0_i32_0, %c0_i32_1 : i32, i32, i32
  }
}

</mosaic_0001>

<llo_original>
// kernel: tpu_custom_call.1
$region0: #{tpu_custom_call.1}
  #allocation0 [shape = 'u32[]', space=smem, size = 0x4, offset = 0x4, fixed_abs, tag = 'smem constant byte address 0x4 - core index']
  #allocation1 [shape = 'u32[144,128]{1,0:T(1,128)}', space=vmem, size = 0x12000, scoped, tag = 'internal scratch']
  %s0 = inlined_call_operand.hbm [shape: f32[2,8,32], index: 0, kind: input, shape index: {}]
  %s1 = inlined_call_operand.hbm [shape: f32[2,8,32], index: 1, kind: input, shape index: {}]
  %s2 = inlined_call_operand.vmem [shape: f32[8,8,8], index: 2, kind: input, shape index: {}]
  %s3 = inlined_call_operand.hbm [shape: f32[8,8,8], index: 3, kind: input, shape index: {}]
  %s4 = inlined_call_operand.hbm [shape: f32[8,32,48], index: 4, kind: input, shape index: {}]
  %s5 = inlined_call_operand.hbm [shape: f32[8,1,48], index: 5, kind: input, shape index: {}]
  %s6 = inlined_call_operand.hbm [shape: f32[8,16,32], index: 6, kind: input, shape index: {}]
  %s7 = inlined_call_operand.vmem [shape: f32[32,64], index: 7, kind: input, shape index: {}]
  %s8 = inlined_call_operand.hbm [shape: f32[1,64], index: 8, kind: input, shape index: {}]
  %s9 = inlined_call_operand.vmem [shape: f32[64,32], index: 9, kind: input, shape index: {}]
  %s10 = inlined_call_operand.vmem [shape: f32[9,32], index: 10, kind: input, shape index: {}]
  %s11 = inlined_call_operand.hbm [shape: f32[16,32], index: 11, kind: output, shape index: {0}]
  %s12 = inlined_call_operand.hbm [shape: f32[2,8,8], index: 12, kind: output, shape index: {1}]
  %13 = xla_tuple %s11, %s12
  %s14 = sld [smem:[#allocation0]]
  $region90: #{tpu_custom_call.1} parent=0
    _
  %s16 = ssub.s32 1, %s14
  %s17 = scalar_select 0, %s16, %s14
  $region1: #{tpu_custom_call.1} parent=0
    #allocation2 [shape = 'u8[8192]{0}', space=vmem, size = 0x2000, scoped, tag = 'input window, operand 0, single buffered']
    #allocation3 [shape = 's32[1]{0}', space=sflag, size = 0x4, scoped, tag = 'scoped memory for tpu_custom_call.1']
    #allocation4 [shape = 's32[1]{0}', space=sflag, size = 0x4, scoped, tag = 'scoped memory for tpu_custom_call.1']
    #allocation5 [shape = 'u8[8192]{0}', space=vmem, size = 0x2000, scoped, tag = 'input window, operand 1, single buffered']
    #allocation6 [shape = 's32[1]{0}', space=sflag, size = 0x4, scoped, tag = 'scoped memory for tpu_custom_call.1']
    #allocation7 [shape = 'u8[32768]{0}', space=vmem, size = 0x8000, scoped, tag = 'input window, operand 3, single buffered']
    #allocation8 [shape = 'u8[131072]{0}', space=vmem, size = 0x20000, scoped, tag = 'input window, operand 4, single buffered']
    #allocation9 [shape = 's32[1]{0}', space=sflag, size = 0x4, scoped, tag = 'scoped memory for tpu_custom_call.1']
    #allocation10 [shape = 'u8[4096]{0}', space=vmem, size = 0x1000, scoped, tag = 'input window, operand 5, single buffered']
    #allocation11 [shape = 'u8[65536]{0}', space=vmem, size = 0x10000, scoped, tag = 'input window, operand 6, single buffered']
    #allocation12 [shape = 's32[1]{0}', space=sflag, size = 0x4, scoped, tag = 'scoped memory for tpu_custom_call.1']
    #allocation13 [shape = 'u8[512]{0}', space=vmem, size = 0x400, scoped, tag = 'input window, operand 8, single buffered']
    #allocation14 [shape = 'u8[8192]{0}', space=vmem, size = 0x2000, scoped, tag = 'output window, operand 0, single buffered']
    #allocation15 [shape = 'u8[8192]{0}', space=vmem, size = 0x2000, scoped, tag = 'output window, operand 1, single buffered']
    #allocation16 [shape = 's32[1]{0}', space=sflag, size = 0x4, scoped, tag = 'scoped memory for tpu_custom_call.1']
    %18 = vsyncpa [#allocation3], 0
    %19 = vsyncpa [#allocation6], 0
    %20 = vsyncpa [#allocation9], 0
    %21 = vsyncpa [#allocation12], 0
    %22 = vsyncpa [#allocation4], 0
    %23 = vsyncpa [#allocation16], 0
    // Predicated region
    $region2: #{tpu_custom_call.1} parent=1 // pred_check
      _
    $region3: #{tpu_custom_call.1} parent=1 // pred_check_branch
      %25 = sbr.rel (0) target = $region5
    $region4: #{tpu_custom_call.1} parent=1 // pred_region
      %s27 = ssub.s32 256, 256
      %28 = vsyncadd [#allocation3], %s27
      %s29 = sshll.u32 [#allocation2], 4
      %s30 = int_to_ptr.vmem [resolvable:$true] %s29
      %35 = dma.hbm_to_vmem [thread:$0]  %s0, 256, %s30, [#allocation3], 128, 128, 8
    $region5: #{tpu_custom_call.1} parent=1 // pred_fallthru
      _
    // Predicated region
    $region6: #{tpu_custom_call.1} parent=1 // pred_check
      _
    $region7: #{tpu_custom_call.1} parent=1 // pred_check_branch
      %37 = sbr.rel (0) target = $region9
    $region8: #{tpu_custom_call.1} parent=1 // pred_region
      %s39 = ssub.s32 256, 256
      %40 = vsyncadd [#allocation6], %s39
      %s41 = sshll.u32 [#allocation5], 4
      %s42 = int_to_ptr.vmem [resolvable:$true] %s41
      %47 = dma.hbm_to_vmem [thread:$0]  %s1, 256, %s42, [#allocation6], 128, 128, 8
    $region9: #{tpu_custom_call.1} parent=1 // pred_fallthru
      _
    // Predicated region
    $region10: #{tpu_custom_call.1} parent=1 // pred_check
      _
    $region11: #{tpu_custom_call.1} parent=1 // pred_check_branch
      %49 = sbr.rel (0) target = $region13
    $region12: #{tpu_custom_call.1} parent=1 // pred_region
      _
    $region13: #{tpu_custom_call.1} parent=1 // pred_fallthru
      _
    // Predicated region
    $region14: #{tpu_custom_call.1} parent=1 // pred_check
      _
    $region15: #{tpu_custom_call.1} parent=1 // pred_check_branch
      %51 = sbr.rel (0) target = $region17
    $region16: #{tpu_custom_call.1} parent=1 // pred_region
      %s53 = ssub.s32 1024, 1024
      %54 = vsyncadd [#allocation6], %s53
      %s55 = sshll.u32 [#allocation7], 4
      %s56 = int_to_ptr.vmem [resolvable:$true] %s55
      %61 = dma.hbm_to_vmem [thread:$0]  %s3, 1024, %s56, [#allocation6], 128, 128, 8
    $region17: #{tpu_custom_call.1} parent=1 // pred_fallthru
      _
    // Predicated region
    $region18: #{tpu_custom_call.1} parent=1 // pred_check
      _
    $region19: #{tpu_custom_call.1} parent=1 // pred_check_branch
      %63 = sbr.rel (0) target = $region21
    $region20: #{tpu_custom_call.1} parent=1 // pred_region
      %s65 = ssub.s32 4096, 4096
      %66 = vsyncadd [#allocation9], %s65
      %s67 = sshll.u32 [#allocation8], 4
      %s68 = int_to_ptr.vmem [resolvable:$true] %s67
      %73 = dma.hbm_to_vmem [thread:$0]  %s4, 4096, %s68, [#allocation9], 128, 128, 8
    $region21: #{tpu_custom_call.1} parent=1 // pred_fallthru
      _
    // Predicated region
    $region22: #{tpu_custom_call.1} parent=1 // pred_check
      _
    $region23: #{tpu_custom_call.1} parent=1 // pred_check_branch
      %75 = sbr.rel (0) target = $region25
    $region24: #{tpu_custom_call.1} parent=1 // pred_region
      %s77 = ssub.s32 128, 128
      %78 = vsyncadd [#allocation9], %s77
      %s79 = sshll.u32 [#allocation10], 4
      %s80 = int_to_ptr.vmem [resolvable:$true] %s79
      %85 = dma.hbm_to_vmem [thread:$0]  %s5, 128, %s80, [#allocation9], 16, 16, 1
    $region25: #{tpu_custom_call.1} parent=1 // pred_fallthru
      _
    // Predicated region
    $region26: #{tpu_custom_call.1} parent=1 // pred_check
      _
    $region27: #{tpu_custom_call.1} parent=1 // pred_check_branch
      %87 = sbr.rel (0) target = $region29
    $region28: #{tpu_custom_call.1} parent=1 // pred_region
      %s89 = ssub.s32 2048, 2048
      %90 = vsyncadd [#allocation12], %s89
      %s91 = sshll.u32 [#allocation11], 4
      %s92 = int_to_ptr.vmem [resolvable:$true] %s91
      %97 = dma.hbm_to_vmem [thread:$0]  %s6, 2048, %s92, [#allocation12], 128, 128, 8
    $region29: #{tpu_custom_call.1} parent=1 // pred_fallthru
      _
    // Predicated region
    $region30: #{tpu_custom_call.1} parent=1 // pred_check
      _
    $region31: #{tpu_custom_call.1} parent=1 // pred_check_branch
      %99 = sbr.rel (0) target = $region33
    $region32: #{tpu_custom_call.1} parent=1 // pred_region
      _
    $region33: #{tpu_custom_call.1} parent=1 // pred_fallthru
      _
    // Predicated region
    $region34: #{tpu_custom_call.1} parent=1 // pred_check
      _
    $region35: #{tpu_custom_call.1} parent=1 // pred_check_branch
      %101 = sbr.rel (0) target = $region37
    $region36: #{tpu_custom_call.1} parent=1 // pred_region
      %s103 = ssub.s32 16, 16
      %104 = vsyncadd [#allocation12], %s103
      %s106 = sshll.u32 [#allocation13], 4
      %s107 = int_to_ptr.vmem [resolvable:$true] %s106
      %109 = dma.hbm_to_vmem [thread:$0]  %s8, 16, %s107, [#allocation12]
    $region37: #{tpu_custom_call.1} parent=1 // pred_fallthru
      _
    // Predicated region
    $region38: #{tpu_custom_call.1} parent=1 // pred_check
      _
    $region39: #{tpu_custom_call.1} parent=1 // pred_check_branch
      %111 = sbr.rel (0) target = $region41
    $region40: #{tpu_custom_call.1} parent=1 // pred_region
      _
    $region41: #{tpu_custom_call.1} parent=1 // pred_fallthru
      _
    // Predicated region
    $region42: #{tpu_custom_call.1} parent=1 // pred_check
      _
    $region43: #{tpu_custom_call.1} parent=1 // pred_check_branch
      %113 = sbr.rel (0) target = $region45
    $region44: #{tpu_custom_call.1} parent=1 // pred_region
      _
    $region45: #{tpu_custom_call.1} parent=1 // pred_fallthru
      _
    // Predicated region
    $region46: #{tpu_custom_call.1} parent=1 // pred_check
      _
    $region47: #{tpu_custom_call.1} parent=1 // pred_check_branch
      %115 = sbr.rel (0) target = $region49
    $region48: #{tpu_custom_call.1} parent=1 // pred_region
      %116 = dma.done [#allocation3], 256
    $region49: #{tpu_custom_call.1} parent=1 // pred_fallthru
      _
    // Predicated region
    $region50: #{tpu_custom_call.1} parent=1 // pred_check
      _
    $region51: #{tpu_custom_call.1} parent=1 // pred_check_branch
      %118 = sbr.rel (0) target = $region53
    $region52: #{tpu_custom_call.1} parent=1 // pred_region
      %119 = dma.done [#allocation6], 256
    $region53: #{tpu_custom_call.1} parent=1 // pred_fallthru
      _
    // Predicated region
    $region54: #{tpu_custom_call.1} parent=1 // pred_check
      _
    $region55: #{tpu_custom_call.1} parent=1 // pred_check_branch
      %121 = sbr.rel (0) target = $region57
    $region56: #{tpu_custom_call.1} parent=1 // pred_region
      %122 = dma.done [#allocation6], 1024
    $region57: #{tpu_custom_call.1} parent=1 // pred_fallthru
      _
    // Predicated region
    $region58: #{tpu_custom_call.1} parent=1 // pred_check
      _
    $region59: #{tpu_custom_call.1} parent=1 // pred_check_branch
      %124 = sbr.rel (0) target = $region61
    $region60: #{tpu_custom_call.1} parent=1 // pred_region
      %125 = dma.done [#allocation9], 4096
    $region61: #{tpu_custom_call.1} parent=1 // pred_fallthru
      _
    // Predicated region
    $region62: #{tpu_custom_call.1} parent=1 // pred_check
      _
    $region63: #{tpu_custom_call.1} parent=1 // pred_check_branch
      %127 = sbr.rel (0) target = $region65
    $region64: #{tpu_custom_call.1} parent=1 // pred_region
      %128 = dma.done [#allocation9], 128
    $region65: #{tpu_custom_call.1} parent=1 // pred_fallthru
      _
    // Predicated region
    $region66: #{tpu_custom_call.1} parent=1 // pred_check
      _
    $region67: #{tpu_custom_call.1} parent=1 // pred_check_branch
      %130 = sbr.rel (0) target = $region69
    $region68: #{tpu_custom_call.1} parent=1 // pred_region
      %131 = dma.done [#allocation12], 2048
    $region69: #{tpu_custom_call.1} parent=1 // pred_fallthru
      _
    // Predicated region
    $region70: #{tpu_custom_call.1} parent=1 // pred_check
      _
    $region71: #{tpu_custom_call.1} parent=1 // pred_check_branch
      %133 = sbr.rel (0) target = $region73
    $region72: #{tpu_custom_call.1} parent=1 // pred_region
      %134 = dma.done [#allocation12], 16
    $region73: #{tpu_custom_call.1} parent=1 // pred_fallthru
      _
    %v135 = vld [vmem:[#allocation2] sm:$0xff]
    %v136 = vld [vmem:[#allocation2 + $0x8] sm:$0xff]
    %v137 = vld [vmem:[#allocation5] sm:$0xff]
    %v138 = vld [vmem:[#allocation5 + $0x8] sm:$0xff]
    %v139 = vld [vmem:[#allocation8] sm:$0xff]
    %v140 = vld [vmem:[#allocation8 + $0x8] sm:$0xff]
    %v141 = vld [vmem:[#allocation8 + $0x10] sm:$0xff]
    %v142 = vld [vmem:[#allocation8 + $0x18] sm:$0xff]
    %v143 = vld [vmem:[#allocation8 + $0x20] sm:$0xff]
    %v144 = vld [vmem:[#allocation8 + $0x28] sm:$0xff]
    %v145 = vld [vmem:[#allocation8 + $0x30] sm:$0xff]
    %v146 = vld [vmem:[#allocation8 + $0x38] sm:$0xff]
    %v147 = vld [vmem:[#allocation8 + $0x40] sm:$0xff]
    %v148 = vld [vmem:[#allocation8 + $0x48] sm:$0xff]
    %v149 = vld [vmem:[#allocation8 + $0x50] sm:$0xff]
    %v150 = vld [vmem:[#allocation8 + $0x58] sm:$0xff]
    %v151 = vld [vmem:[#allocation8 + $0x60] sm:$0xff]
    %v152 = vld [vmem:[#allocation8 + $0x68] sm:$0xff]
    %v153 = vld [vmem:[#allocation8 + $0x70] sm:$0xff]
    %v154 = vld [vmem:[#allocation8 + $0x78] sm:$0xff]
    %v155 = vld [vmem:[#allocation8 + $0x80] sm:$0xff]
    %v156 = vld [vmem:[#allocation8 + $0x88] sm:$0xff]
    %v157 = vld [vmem:[#allocation8 + $0x90] sm:$0xff]
    %v158 = vld [vmem:[#allocation8 + $0x98] sm:$0xff]
    %v159 = vld [vmem:[#allocation8 + $0xa0] sm:$0xff]
    %v160 = vld [vmem:[#allocation8 + $0xa8] sm:$0xff]
    %v161 = vld [vmem:[#allocation8 + $0xb0] sm:$0xff]
    %v162 = vld [vmem:[#allocation8 + $0xb8] sm:$0xff]
    %v163 = vld [vmem:[#allocation8 + $0xc0] sm:$0xff]
    %v164 = vld [vmem:[#allocation8 + $0xc8] sm:$0xff]
    %v165 = vld [vmem:[#allocation8 + $0xd0] sm:$0xff]
    %v166 = vld [vmem:[#allocation8 + $0xd8] sm:$0xff]
    %v167 = vld [vmem:[#allocation8 + $0xe0] sm:$0xff]
    %v168 = vld [vmem:[#allocation8 + $0xe8] sm:$0xff]
    %v169 = vld [vmem:[#allocation8 + $0xf0] sm:$0xff]
    %v170 = vld [vmem:[#allocation8 + $0xf8] sm:$0xff]
    %v171 = vld [vmem:[#allocation10] sm:$0x1]
    %v172 = vld [vmem:[#allocation10 + $0x1] sm:$0x1]
    %v173 = vld [vmem:[#allocation10 + $0x2] sm:$0x1]
    %v174 = vld [vmem:[#allocation10 + $0x3] sm:$0x1]
    %v175 = vld [vmem:[#allocation10 + $0x4] sm:$0x1]
    %v176 = vld [vmem:[#allocation10 + $0x5] sm:$0x1]
    %v177 = vld [vmem:[#allocation10 + $0x6] sm:$0x1]
    %v178 = vld [vmem:[#allocation10 + $0x7] sm:$0x1]
    %v179 = vld [vmem:[#allocation11] sm:$0xff]
    %v180 = vld [vmem:[#allocation11 + $0x8] sm:$0xff]
    %v181 = vld [vmem:[#allocation11 + $0x10] sm:$0xff]
    %v182 = vld [vmem:[#allocation11 + $0x18] sm:$0xff]
    %v183 = vld [vmem:[#allocation11 + $0x20] sm:$0xff]
    %v184 = vld [vmem:[#allocation11 + $0x28] sm:$0xff]
    %v185 = vld [vmem:[#allocation11 + $0x30] sm:$0xff]
    %v186 = vld [vmem:[#allocation11 + $0x38] sm:$0xff]
    %v187 = vld [vmem:[#allocation11 + $0x40] sm:$0xff]
    %v188 = vld [vmem:[#allocation11 + $0x48] sm:$0xff]
    %v189 = vld [vmem:[#allocation11 + $0x50] sm:$0xff]
    %v190 = vld [vmem:[#allocation11 + $0x58] sm:$0xff]
    %v191 = vld [vmem:[#allocation11 + $0x60] sm:$0xff]
    %v192 = vld [vmem:[#allocation11 + $0x68] sm:$0xff]
    %v193 = vld [vmem:[#allocation11 + $0x70] sm:$0xff]
    %v194 = vld [vmem:[#allocation11 + $0x78] sm:$0xff]
    %v195 = vld [vmem:[%s10] sm:$0xff]
    %v196 = vld [vmem:[%s10 + $0x8] sm:$0x1]
    %v205 = vlaneseq
    %v206 = vshrl.u32 %v205, 7
    %v207 = vsub.s32 0, %v206
    %v208 = vrot.slane %v171, %v207
    %v209 = vlaneseq
    %v210 = vshrl.u32 %v209, 7
    %v211 = vsub.s32 0, %v210
    %v212 = vrot.slane %v172, %v211
    %v213 = vlaneseq
    %v214 = vshrl.u32 %v213, 7
    %v215 = vsub.s32 0, %v214
    %v216 = vrot.slane %v173, %v215
    %v217 = vlaneseq
    %v218 = vshrl.u32 %v217, 7
    %v219 = vsub.s32 0, %v218
    %v220 = vrot.slane %v174, %v219
    %v221 = vlaneseq
    %v222 = vshrl.u32 %v221, 7
    %v223 = vsub.s32 0, %v222
    %v224 = vrot.slane %v175, %v223
    %v225 = vlaneseq
    %v226 = vshrl.u32 %v225, 7
    %v227 = vsub.s32 0, %v226
    %v228 = vrot.slane %v176, %v227
    %v229 = vlaneseq
    %v230 = vshrl.u32 %v229, 7
    %v231 = vsub.s32 0, %v230
    %v232 = vrot.slane %v177, %v231
    %v233 = vlaneseq
    %v234 = vshrl.u32 %v233, 7
    %v235 = vsub.s32 0, %v234
    %v236 = vrot.slane %v178, %v235
    %vm245 = vcmask 261120
    %v247 = vsel %vm245, %v135, 0
    %249 = vmatprep.subr.mxu0 0.0
    %250 = vmatpush1.msra.mxu0 0.0
    %251 = vmatprep.subr.mxu0 0.0
    %252 = vmatpush1.msra.mxu0 0.0
    %253 = vmatprep.subr.mxu0 0.0
    %254 = vmatpush1.msra.mxu0 0.0
    %255 = vmatprep.subr.mxu0 0.0
    %256 = vmatpush1.msra.mxu0 0.0
    %257 = vmatprep.subr.mxu0 0.0
    %258 = vmatpush1.msra.mxu0 0.0
    %259 = vmatprep.subr.mxu0 0.0
    %260 = vmatpush1.msra.mxu0 0.0
    %261 = vmatprep.subr.mxu0 0.0
    %262 = vmatpush1.msra.mxu0 0.0
    %263 = vmatprep.subr.mxu0 0.0
    %264 = vmatpush1.msra.mxu0 0.0
    %265 = vmatprep.subr.mxu0 0.0
    %266 = vmatpush1.msra.mxu0 0.0
    %267 = vmatprep.subr.mxu0 0.0
    %268 = vmatpush1.msra.mxu0 0.0
    %269 = vmatprep.subr.mxu0 0.0
    %270 = vmatpush1.msra.mxu0 0.0
    %271 = vmatprep.subr.mxu0 0.0
    %272 = vmatpush1.msra.mxu0 0.0
    %273 = vmatprep.subr.mxu0 0.0
    %274 = vmatpush1.msra.mxu0 %v142
    %275 = vmatprep.subr.mxu0 0.0
    %276 = vmatpush1.msra.mxu0 %v141
    %277 = vmatprep.subr.mxu0 0.0
    %278 = vmatpush1.msra.mxu0 %v140
    %279 = vmatprep.subr.mxu0 0.0
    %280 = vmatpush1.msra.mxu0 %v139
    %281 = vmatprep.subr.mxu0 0.0
    %282 = vmatpush2.msra.mxu0 0.0
    %283 = vmatprep.subr.mxu0 0.0
    %284 = vmatpush2.msra.mxu0 0.0
    %285 = vmatprep.subr.mxu0 0.0
    %286 = vmatpush2.msra.mxu0 0.0
    %287 = vmatprep.subr.mxu0 0.0
    %288 = vmatpush2.msra.mxu0 0.0
    %289 = vmatprep.subr.mxu0 0.0
    %290 = vmatpush2.msra.mxu0 0.0
    %291 = vmatprep.subr.mxu0 0.0
    %292 = vmatpush2.msra.mxu0 0.0
    %293 = vmatprep.subr.mxu0 0.0
    %294 = vmatpush2.msra.mxu0 0.0
    %295 = vmatprep.subr.mxu0 0.0
    %296 = vmatpush2.msra.mxu0 0.0
    %297 = vmatprep.subr.mxu0 0.0
    %298 = vmatpush2.msra.mxu0 0.0
    %299 = vmatprep.subr.mxu0 0.0
    %300 = vmatpush2.msra.mxu0 0.0
    %301 = vmatprep.subr.mxu0 0.0
    %302 = vmatpush2.msra.mxu0 0.0
    %303 = vmatprep.subr.mxu0 0.0
    %304 = vmatpush2.msra.mxu0 0.0
    %305 = vmatprep.subr.mxu0 0.0
    %306 = vmatpush2.msra.mxu0 0.0
    %307 = vmatprep.subr.mxu0 0.0
    %308 = vmatpush2.msra.mxu0 0.0
    %309 = vmatprep.subr.mxu0 0.0
    %310 = vmatpush2.msra.mxu0 0.0
    %311 = vmatprep.subr.mxu0 0.0
    %312 = vmatpush2.msra.mxu0 0.0
    %313 = vmatprep.mubr.f32.mxu0 0.0
    %314 = vmatmul.mubr.f32.gmra.mxu0 %v247
    %v315 = vpop.f32.mrf.mxu0
    %v316 = vadd.f32 %v208, %v315
    %v317 = vpop.f32.mrf.mxu0
    %318 = vdwg.mxu0
    %319 = vmatprep.subr.mxu0 0.0
    %320 = vmatpush1.msra.mxu0 0.0
    %321 = vmatprep.subr.mxu0 0.0
    %322 = vmatpush1.msra.mxu0 0.0
    %323 = vmatprep.subr.mxu0 0.0
    %324 = vmatpush1.msra.mxu0 0.0
    %325 = vmatprep.subr.mxu0 0.0
    %326 = vmatpush1.msra.mxu0 0.0
    %327 = vmatprep.subr.mxu0 0.0
    %328 = vmatpush1.msra.mxu0 0.0
    %329 = vmatprep.subr.mxu0 0.0
    %330 = vmatpush1.msra.mxu0 0.0
    %331 = vmatprep.subr.mxu0 0.0
    %332 = vmatpush1.msra.mxu0 0.0
    %333 = vmatprep.subr.mxu0 0.0
    %334 = vmatpush1.msra.mxu0 0.0
    %335 = vmatprep.subr.mxu0 0.0
    %336 = vmatpush1.msra.mxu0 0.0
    %337 = vmatprep.subr.mxu0 0.0
    %338 = vmatpush1.msra.mxu0 0.0
    %339 = vmatprep.subr.mxu0 0.0
    %340 = vmatpush1.msra.mxu0 0.0
    %341 = vmatprep.subr.mxu0 0.0
    %342 = vmatpush1.msra.mxu0 0.0
    %343 = vmatprep.subr.mxu0 0.0
    %344 = vmatpush1.msra.mxu0 %v146
    %345 = vmatprep.subr.mxu0 0.0
    %346 = vmatpush1.msra.mxu0 %v145
    %347 = vmatprep.subr.mxu0 0.0
    %348 = vmatpush1.msra.mxu0 %v144
    %349 = vmatprep.subr.mxu0 0.0
    %350 = vmatpush1.msra.mxu0 %v143
    %351 = vmatprep.subr.mxu0 0.0
    %352 = vmatpush2.msra.mxu0 0.0
    %353 = vmatprep.subr.mxu0 0.0
    %354 = vmatpush2.msra.mxu0 0.0
    %355 = vmatprep.subr.mxu0 0.0
    %356 = vmatpush2.msra.mxu0 0.0
    %357 = vmatprep.subr.mxu0 0.0
    %358 = vmatpush2.msra.mxu0 0.0
    %359 = vmatprep.subr.mxu0 0.0
    %360 = vmatpush2.msra.mxu0 0.0
    %361 = vmatprep.subr.mxu0 0.0
    %362 = vmatpush2.msra.mxu0 0.0
    %363 = vmatprep.subr.mxu0 0.0
    %364 = vmatpush2.msra.mxu0 0.0
    %365 = vmatprep.subr.mxu0 0.0
    %366 = vmatpush2.msra.mxu0 0.0
    %367 = vmatprep.subr.mxu0 0.0
    %368 = vmatpush2.msra.mxu0 0.0
    %369 = vmatprep.subr.mxu0 0.0
    %370 = vmatpush2.msra.mxu0 0.0
    %371 = vmatprep.subr.mxu0 0.0
    %372 = vmatpush2.msra.mxu0 0.0
    %373 = vmatprep.subr.mxu0 0.0
    %374 = vmatpush2.msra.mxu0 0.0
    %375 = vmatprep.subr.mxu0 0.0
    %376 = vmatpush2.msra.mxu0 0.0
    %377 = vmatprep.subr.mxu0 0.0
    %378 = vmatpush2.msra.mxu0 0.0
    %379 = vmatprep.subr.mxu0 0.0
    %380 = vmatpush2.msra.mxu0 0.0
    %381 = vmatprep.subr.mxu0 0.0
    %382 = vmatpush2.msra.mxu0 0.0
    %383 = vmatprep.mubr.f32.mxu0 0.0
    %384 = vmatmul.mubr.f32.gmra.mxu0 %v247
    %v385 = vpop.f32.mrf.mxu0
    %v386 = vadd.f32 %v212, %v385
    %v387 = vpop.f32.mrf.mxu0
    %388 = vdwg.mxu0
    %389 = vmatprep.subr.mxu0 0.0
    %390 = vmatpush1.msra.mxu0 0.0
    %391 = vmatprep.subr.mxu0 0.0
    %392 = vmatpush1.msra.mxu0 0.0
    %393 = vmatprep.subr.mxu0 0.0
    %394 = vmatpush1.msra.mxu0 0.0
    %395 = vmatprep.subr.mxu0 0.0
    %396 = vmatpush1.msra.mxu0 0.0
    %397 = vmatprep.subr.mxu0 0.0
    %398 = vmatpush1.msra.mxu0 0.0
    %399 = vmatprep.subr.mxu0 0.0
    %400 = vmatpush1.msra.mxu0 0.0
    %401 = vmatprep.subr.mxu0 0.0
    %402 = vmatpush1.msra.mxu0 0.0
    %403 = vmatprep.subr.mxu0 0.0
    %404 = vmatpush1.msra.mxu0 0.0
    %405 = vmatprep.subr.mxu0 0.0
    %406 = vmatpush1.msra.mxu0 0.0
    %407 = vmatprep.subr.mxu0 0.0
    %408 = vmatpush1.msra.mxu0 0.0
    %409 = vmatprep.subr.mxu0 0.0
    %410 = vmatpush1.msra.mxu0 0.0
    %411 = vmatprep.subr.mxu0 0.0
    %412 = vmatpush1.msra.mxu0 0.0
    %413 = vmatprep.subr.mxu0 0.0
    %414 = vmatpush1.msra.mxu0 %v150
    %415 = vmatprep.subr.mxu0 0.0
    %416 = vmatpush1.msra.mxu0 %v149
    %417 = vmatprep.subr.mxu0 0.0
    %418 = vmatpush1.msra.mxu0 %v148
    %419 = vmatprep.subr.mxu0 0.0
    %420 = vmatpush1.msra.mxu0 %v147
    %421 = vmatprep.subr.mxu0 0.0
    %422 = vmatpush2.msra.mxu0 0.0
    %423 = vmatprep.subr.mxu0 0.0
    %424 = vmatpush2.msra.mxu0 0.0
    %425 = vmatprep.subr.mxu0 0.0
    %426 = vmatpush2.msra.mxu0 0.0
    %427 = vmatprep.subr.mxu0 0.0
    %428 = vmatpush2.msra.mxu0 0.0
    %429 = vmatprep.subr.mxu0 0.0
    %430 = vmatpush2.msra.mxu0 0.0
    %431 = vmatprep.subr.mxu0 0.0
    %432 = vmatpush2.msra.mxu0 0.0
    %433 = vmatprep.subr.mxu0 0.0
    %434 = vmatpush2.msra.mxu0 0.0
    %435 = vmatprep.subr.mxu0 0.0
    %436 = vmatpush2.msra.mxu0 0.0
    %437 = vmatprep.subr.mxu0 0.0
    %438 = vmatpush2.msra.mxu0 0.0
    %439 = vmatprep.subr.mxu0 0.0
    %440 = vmatpush2.msra.mxu0 0.0
    %441 = vmatprep.subr.mxu0 0.0
    %442 = vmatpush2.msra.mxu0 0.0
    %443 = vmatprep.subr.mxu0 0.0
    %444 = vmatpush2.msra.mxu0 0.0
    %445 = vmatprep.subr.mxu0 0.0
    %446 = vmatpush2.msra.mxu0 0.0
    %447 = vmatprep.subr.mxu0 0.0
    %448 = vmatpush2.msra.mxu0 0.0
    %449 = vmatprep.subr.mxu0 0.0
    %450 = vmatpush2.msra.mxu0 0.0
    %451 = vmatprep.subr.mxu0 0.0
    %452 = vmatpush2.msra.mxu0 0.0
    %453 = vmatprep.mubr.f32.mxu0 0.0
    %454 = vmatmul.mubr.f32.gmra.mxu0 %v247
    %v455 = vpop.f32.mrf.mxu0
    %v456 = vadd.f32 %v216, %v455
    %v457 = vpop.f32.mrf.mxu0
    %458 = vdwg.mxu0
    %459 = vmatprep.subr.mxu0 0.0
    %460 = vmatpush1.msra.mxu0 0.0
    %461 = vmatprep.subr.mxu0 0.0
    %462 = vmatpush1.msra.mxu0 0.0
    %463 = vmatprep.subr.mxu0 0.0
    %464 = vmatpush1.msra.mxu0 0.0
    %465 = vmatprep.subr.mxu0 0.0
    %466 = vmatpush1.msra.mxu0 0.0
    %467 = vmatprep.subr.mxu0 0.0
    %468 = vmatpush1.msra.mxu0 0.0
    %469 = vmatprep.subr.mxu0 0.0
    %470 = vmatpush1.msra.mxu0 0.0
    %471 = vmatprep.subr.mxu0 0.0
    %472 = vmatpush1.msra.mxu0 0.0
    %473 = vmatprep.subr.mxu0 0.0
    %474 = vmatpush1.msra.mxu0 0.0
    %475 = vmatprep.subr.mxu0 0.0
    %476 = vmatpush1.msra.mxu0 0.0
    %477 = vmatprep.subr.mxu0 0.0
    %478 = vmatpush1.msra.mxu0 0.0
    %479 = vmatprep.subr.mxu0 0.0
    %480 = vmatpush1.msra.mxu0 0.0
    %481 = vmatprep.subr.mxu0 0.0
    %482 = vmatpush1.msra.mxu0 0.0
    %483 = vmatprep.subr.mxu0 0.0
    %484 = vmatpush1.msra.mxu0 %v154
    %485 = vmatprep.subr.mxu0 0.0
    %486 = vmatpush1.msra.mxu0 %v153
    %487 = vmatprep.subr.mxu0 0.0
    %488 = vmatpush1.msra.mxu0 %v152
    %489 = vmatprep.subr.mxu0 0.0
    %490 = vmatpush1.msra.mxu0 %v151
    %491 = vmatprep.subr.mxu0 0.0
    %492 = vmatpush2.msra.mxu0 0.0
    %493 = vmatprep.subr.mxu0 0.0
    %494 = vmatpush2.msra.mxu0 0.0
    %495 = vmatprep.subr.mxu0 0.0
    %496 = vmatpush2.msra.mxu0 0.0
    %497 = vmatprep.subr.mxu0 0.0
    %498 = vmatpush2.msra.mxu0 0.0
    %499 = vmatprep.subr.mxu0 0.0
    %500 = vmatpush2.msra.mxu0 0.0
    %501 = vmatprep.subr.mxu0 0.0
    %502 = vmatpush2.msra.mxu0 0.0
    %503 = vmatprep.subr.mxu0 0.0
    %504 = vmatpush2.msra.mxu0 0.0
    %505 = vmatprep.subr.mxu0 0.0
    %506 = vmatpush2.msra.mxu0 0.0
    %507 = vmatprep.subr.mxu0 0.0
    %508 = vmatpush2.msra.mxu0 0.0
    %509 = vmatprep.subr.mxu0 0.0
    %510 = vmatpush2.msra.mxu0 0.0
    %511 = vmatprep.subr.mxu0 0.0
    %512 = vmatpush2.msra.mxu0 0.0
    %513 = vmatprep.subr.mxu0 0.0
    %514 = vmatpush2.msra.mxu0 0.0
    %515 = vmatprep.subr.mxu0 0.0
    %516 = vmatpush2.msra.mxu0 0.0
    %517 = vmatprep.subr.mxu0 0.0
    %518 = vmatpush2.msra.mxu0 0.0
    %519 = vmatprep.subr.mxu0 0.0
    %520 = vmatpush2.msra.mxu0 0.0
    %521 = vmatprep.subr.mxu0 0.0
    %522 = vmatpush2.msra.mxu0 0.0
    %523 = vmatprep.mubr.f32.mxu0 0.0
    %524 = vmatmul.mubr.f32.gmra.mxu0 %v247
    %v525 = vpop.f32.mrf.mxu0
    %v526 = vadd.f32 %v220, %v525
    %v527 = vpop.f32.mrf.mxu0
    %528 = vdwg.mxu0
    %v530 = vsel %vm245, %v136, 0
    %532 = vmatprep.subr.mxu0 0.0
    %533 = vmatpush1.msra.mxu0 0.0
    %534 = vmatprep.subr.mxu0 0.0
    %535 = vmatpush1.msra.mxu0 0.0
    %536 = vmatprep.subr.mxu0 0.0
    %537 = vmatpush1.msra.mxu0 0.0
    %538 = vmatprep.subr.mxu0 0.0
    %539 = vmatpush1.msra.mxu0 0.0
    %540 = vmatprep.subr.mxu0 0.0
    %541 = vmatpush1.msra.mxu0 0.0
    %542 = vmatprep.subr.mxu0 0.0
    %543 = vmatpush1.msra.mxu0 0.0
    %544 = vmatprep.subr.mxu0 0.0
    %545 = vmatpush1.msra.mxu0 0.0
    %546 = vmatprep.subr.mxu0 0.0
    %547 = vmatpush1.msra.mxu0 0.0
    %548 = vmatprep.subr.mxu0 0.0
    %549 = vmatpush1.msra.mxu0 0.0
    %550 = vmatprep.subr.mxu0 0.0
    %551 = vmatpush1.msra.mxu0 0.0
    %552 = vmatprep.subr.mxu0 0.0
    %553 = vmatpush1.msra.mxu0 0.0
    %554 = vmatprep.subr.mxu0 0.0
    %555 = vmatpush1.msra.mxu0 0.0
    %556 = vmatprep.subr.mxu0 0.0
    %557 = vmatpush1.msra.mxu0 %v158
    %558 = vmatprep.subr.mxu0 0.0
    %559 = vmatpush1.msra.mxu0 %v157
    %560 = vmatprep.subr.mxu0 0.0
    %561 = vmatpush1.msra.mxu0 %v156
    %562 = vmatprep.subr.mxu0 0.0
    %563 = vmatpush1.msra.mxu0 %v155
    %564 = vmatprep.subr.mxu0 0.0
    %565 = vmatpush2.msra.mxu0 0.0
    %566 = vmatprep.subr.mxu0 0.0
    %567 = vmatpush2.msra.mxu0 0.0
    %568 = vmatprep.subr.mxu0 0.0
    %569 = vmatpush2.msra.mxu0 0.0
    %570 = vmatprep.subr.mxu0 0.0
    %571 = vmatpush2.msra.mxu0 0.0
    %572 = vmatprep.subr.mxu0 0.0
    %573 = vmatpush2.msra.mxu0 0.0
    %574 = vmatprep.subr.mxu0 0.0
    %575 = vmatpush2.msra.mxu0 0.0
    %576 = vmatprep.subr.mxu0 0.0
    %577 = vmatpush2.msra.mxu0 0.0
    %578 = vmatprep.subr.mxu0 0.0
    %579 = vmatpush2.msra.mxu0 0.0
    %580 = vmatprep.subr.mxu0 0.0
    %581 = vmatpush2.msra.mxu0 0.0
    %582 = vmatprep.subr.mxu0 0.0
    %583 = vmatpush2.msra.mxu0 0.0
    %584 = vmatprep.subr.mxu0 0.0
    %585 = vmatpush2.msra.mxu0 0.0
    %586 = vmatprep.subr.mxu0 0.0
    %587 = vmatpush2.msra.mxu0 0.0
    %588 = vmatprep.subr.mxu0 0.0
    %589 = vmatpush2.msra.mxu0 0.0
    %590 = vmatprep.subr.mxu0 0.0
    %591 = vmatpush2.msra.mxu0 0.0
    %592 = vmatprep.subr.mxu0 0.0
    %593 = vmatpush2.msra.mxu0 0.0
    %594 = vmatprep.subr.mxu0 0.0
    %595 = vmatpush2.msra.mxu0 0.0
    %596 = vmatprep.mubr.f32.mxu0 0.0
    %597 = vmatmul.mubr.f32.gmra.mxu0 %v530
    %v598 = vpop.f32.mrf.mxu0
    %v599 = vadd.f32 %v224, %v598
    %v600 = vpop.f32.mrf.mxu0
    %601 = vdwg.mxu0
    %602 = vmatprep.subr.mxu0 0.0
    %603 = vmatpush1.msra.mxu0 0.0
    %604 = vmatprep.subr.mxu0 0.0
    %605 = vmatpush1.msra.mxu0 0.0
    %606 = vmatprep.subr.mxu0 0.0
    %607 = vmatpush1.msra.mxu0 0.0
    %608 = vmatprep.subr.mxu0 0.0
    %609 = vmatpush1.msra.mxu0 0.0
    %610 = vmatprep.subr.mxu0 0.0
    %611 = vmatpush1.msra.mxu0 0.0
    %612 = vmatprep.subr.mxu0 0.0
    %613 = vmatpush1.msra.mxu0 0.0
    %614 = vmatprep.subr.mxu0 0.0
    %615 = vmatpush1.msra.mxu0 0.0
    %616 = vmatprep.subr.mxu0 0.0
    %617 = vmatpush1.msra.mxu0 0.0
    %618 = vmatprep.subr.mxu0 0.0
    %619 = vmatpush1.msra.mxu0 0.0
    %620 = vmatprep.subr.mxu0 0.0
    %621 = vmatpush1.msra.mxu0 0.0
    %622 = vmatprep.subr.mxu0 0.0
    %623 = vmatpush1.msra.mxu0 0.0
    %624 = vmatprep.subr.mxu0 0.0
    %625 = vmatpush1.msra.mxu0 0.0
    %626 = vmatprep.subr.mxu0 0.0
    %627 = vmatpush1.msra.mxu0 %v162
    %628 = vmatprep.subr.mxu0 0.0
    %629 = vmatpush1.msra.mxu0 %v161
    %630 = vmatprep.subr.mxu0 0.0
    %631 = vmatpush1.msra.mxu0 %v160
    %632 = vmatprep.subr.mxu0 0.0
    %633 = vmatpush1.msra.mxu0 %v159
    %634 = vmatprep.subr.mxu0 0.0
    %635 = vmatpush2.msra.mxu0 0.0
    %636 = vmatprep.subr.mxu0 0.0
    %637 = vmatpush2.msra.mxu0 0.0
    %638 = vmatprep.subr.mxu0 0.0
    %639 = vmatpush2.msra.mxu0 0.0
    %640 = vmatprep.subr.mxu0 0.0
    %641 = vmatpush2.msra.mxu0 0.0
    %642 = vmatprep.subr.mxu0 0.0
    %643 = vmatpush2.msra.mxu0 0.0
    %644 = vmatprep.subr.mxu0 0.0
    %645 = vmatpush2.msra.mxu0 0.0
    %646 = vmatprep.subr.mxu0 0.0
    %647 = vmatpush2.msra.mxu0 0.0
    %648 = vmatprep.subr.mxu0 0.0
    %649 = vmatpush2.msra.mxu0 0.0
    %650 = vmatprep.subr.mxu0 0.0
    %651 = vmatpush2.msra.mxu0 0.0
    %652 = vmatprep.subr.mxu0 0.0
    %653 = vmatpush2.msra.mxu0 0.0
    %654 = vmatprep.subr.mxu0 0.0
    %655 = vmatpush2.msra.mxu0 0.0
    %656 = vmatprep.subr.mxu0 0.0
    %657 = vmatpush2.msra.mxu0 0.0
    %658 = vmatprep.subr.mxu0 0.0
    %659 = vmatpush2.msra.mxu0 0.0
    %660 = vmatprep.subr.mxu0 0.0
    %661 = vmatpush2.msra.mxu0 0.0
    %662 = vmatprep.subr.mxu0 0.0
    %663 = vmatpush2.msra.mxu0 0.0
    %664 = vmatprep.subr.mxu0 0.0
    %665 = vmatpush2.msra.mxu0 0.0
    %666 = vmatprep.mubr.f32.mxu0 0.0
    %667 = vmatmul.mubr.f32.gmra.mxu0 %v530
    %v668 = vpop.f32.mrf.mxu0
    %v669 = vadd.f32 %v228, %v668
    %v670 = vpop.f32.mrf.mxu0
    %671 = vdwg.mxu0
    %672 = vmatprep.subr.mxu0 0.0
    %673 = vmatpush1.msra.mxu0 0.0
    %674 = vmatprep.subr.mxu0 0.0
    %675 = vmatpush1.msra.mxu0 0.0
    %676 = vmatprep.subr.mxu0 0.0
    %677 = vmatpush1.msra.mxu0 0.0
    %678 = vmatprep.subr.mxu0 0.0
    %679 = vmatpush1.msra.mxu0 0.0
    %680 = vmatprep.subr.mxu0 0.0
    %681 = vmatpush1.msra.mxu0 0.0
    %682 = vmatprep.subr.mxu0 0.0
    %683 = vmatpush1.msra.mxu0 0.0
    %684 = vmatprep.subr.mxu0 0.0
    %685 = vmatpush1.msra.mxu0 0.0
    %686 = vmatprep.subr.mxu0 0.0
    %687 = vmatpush1.msra.mxu0 0.0
    %688 = vmatprep.subr.mxu0 0.0
    %689 = vmatpush1.msra.mxu0 0.0
    %690 = vmatprep.subr.mxu0 0.0
    %691 = vmatpush1.msra.mxu0 0.0
    %692 = vmatprep.subr.mxu0 0.0
    %693 = vmatpush1.msra.mxu0 0.0
    %694 = vmatprep.subr.mxu0 0.0
    %695 = vmatpush1.msra.mxu0 0.0
    %696 = vmatprep.subr.mxu0 0.0
    %697 = vmatpush1.msra.mxu0 %v166
    %698 = vmatprep.subr.mxu0 0.0
    %699 = vmatpush1.msra.mxu0 %v165
    %700 = vmatprep.subr.mxu0 0.0
    %701 = vmatpush1.msra.mxu0 %v164
    %702 = vmatprep.subr.mxu0 0.0
    %703 = vmatpush1.msra.mxu0 %v163
    %704 = vmatprep.subr.mxu0 0.0
    %705 = vmatpush2.msra.mxu0 0.0
    %706 = vmatprep.subr.mxu0 0.0
    %707 = vmatpush2.msra.mxu0 0.0
    %708 = vmatprep.subr.mxu0 0.0
    %709 = vmatpush2.msra.mxu0 0.0
    %710 = vmatprep.subr.mxu0 0.0
    %711 = vmatpush2.msra.mxu0 0.0
    %712 = vmatprep.subr.mxu0 0.0
    %713 = vmatpush2.msra.mxu0 0.0
    %714 = vmatprep.subr.mxu0 0.0
    %715 = vmatpush2.msra.mxu0 0.0
    %716 = vmatprep.subr.mxu0 0.0
    %717 = vmatpush2.msra.mxu0 0.0
    %718 = vmatprep.subr.mxu0 0.0
    %719 = vmatpush2.msra.mxu0 0.0
    %720 = vmatprep.subr.mxu0 0.0
    %721 = vmatpush2.msra.mxu0 0.0
    %722 = vmatprep.subr.mxu0 0.0
    %723 = vmatpush2.msra.mxu0 0.0
    %724 = vmatprep.subr.mxu0 0.0
    %725 = vmatpush2.msra.mxu0 0.0
    %726 = vmatprep.subr.mxu0 0.0
    %727 = vmatpush2.msra.mxu0 0.0
    %728 = vmatprep.subr.mxu0 0.0
    %729 = vmatpush2.msra.mxu0 0.0
    %730 = vmatprep.subr.mxu0 0.0
    %731 = vmatpush2.msra.mxu0 0.0
    %732 = vmatprep.subr.mxu0 0.0
    %733 = vmatpush2.msra.mxu0 0.0
    %734 = vmatprep.subr.mxu0 0.0
    %735 = vmatpush2.msra.mxu0 0.0
    %736 = vmatprep.mubr.f32.mxu0 0.0
    %737 = vmatmul.mubr.f32.gmra.mxu0 %v530
    %v738 = vpop.f32.mrf.mxu0
    %v739 = vadd.f32 %v232, %v738
    %v740 = vpop.f32.mrf.mxu0
    %741 = vdwg.mxu0
    %742 = vmatprep.subr.mxu0 0.0
    %743 = vmatpush1.msra.mxu0 0.0
    %744 = vmatprep.subr.mxu0 0.0
    %745 = vmatpush1.msra.mxu0 0.0
    %746 = vmatprep.subr.mxu0 0.0
    %747 = vmatpush1.msra.mxu0 0.0
    %748 = vmatprep.subr.mxu0 0.0
    %749 = vmatpush1.msra.mxu0 0.0
    %750 = vmatprep.subr.mxu0 0.0
    %751 = vmatpush1.msra.mxu0 0.0
    %752 = vmatprep.subr.mxu0 0.0
    %753 = vmatpush1.msra.mxu0 0.0
    %754 = vmatprep.subr.mxu0 0.0
    %755 = vmatpush1.msra.mxu0 0.0
    %756 = vmatprep.subr.mxu0 0.0
    %757 = vmatpush1.msra.mxu0 0.0
    %758 = vmatprep.subr.mxu0 0.0
    %759 = vmatpush1.msra.mxu0 0.0
    %760 = vmatprep.subr.mxu0 0.0
    %761 = vmatpush1.msra.mxu0 0.0
    %762 = vmatprep.subr.mxu0 0.0
    %763 = vmatpush1.msra.mxu0 0.0
    %764 = vmatprep.subr.mxu0 0.0
    %765 = vmatpush1.msra.mxu0 0.0
    %766 = vmatprep.subr.mxu0 0.0
    %767 = vmatpush1.msra.mxu0 %v170
    %768 = vmatprep.subr.mxu0 0.0
    %769 = vmatpush1.msra.mxu0 %v169
    %770 = vmatprep.subr.mxu0 0.0
    %771 = vmatpush1.msra.mxu0 %v168
    %772 = vmatprep.subr.mxu0 0.0
    %773 = vmatpush1.msra.mxu0 %v167
    %774 = vmatprep.subr.mxu0 0.0
    %775 = vmatpush2.msra.mxu0 0.0
    %776 = vmatprep.subr.mxu0 0.0
    %777 = vmatpush2.msra.mxu0 0.0
    %778 = vmatprep.subr.mxu0 0.0
    %779 = vmatpush2.msra.mxu0 0.0
    %780 = vmatprep.subr.mxu0 0.0
    %781 = vmatpush2.msra.mxu0 0.0
    %782 = vmatprep.subr.mxu0 0.0
    %783 = vmatpush2.msra.mxu0 0.0
    %784 = vmatprep.subr.mxu0 0.0
    %785 = vmatpush2.msra.mxu0 0.0
    %786 = vmatprep.subr.mxu0 0.0
    %787 = vmatpush2.msra.mxu0 0.0
    %788 = vmatprep.subr.mxu0 0.0
    %789 = vmatpush2.msra.mxu0 0.0
    %790 = vmatprep.subr.mxu0 0.0
    %791 = vmatpush2.msra.mxu0 0.0
    %792 = vmatprep.subr.mxu0 0.0
    %793 = vmatpush2.msra.mxu0 0.0
    %794 = vmatprep.subr.mxu0 0.0
    %795 = vmatpush2.msra.mxu0 0.0
    %796 = vmatprep.subr.mxu0 0.0
    %797 = vmatpush2.msra.mxu0 0.0
    %798 = vmatprep.subr.mxu0 0.0
    %799 = vmatpush2.msra.mxu0 0.0
    %800 = vmatprep.subr.mxu0 0.0
    %801 = vmatpush2.msra.mxu0 0.0
    %802 = vmatprep.subr.mxu0 0.0
    %803 = vmatpush2.msra.mxu0 0.0
    %804 = vmatprep.subr.mxu0 0.0
    %805 = vmatpush2.msra.mxu0 0.0
    %806 = vmatprep.mubr.f32.mxu0 0.0
    %807 = vmatmul.mubr.f32.gmra.mxu0 %v530
    %v808 = vpop.f32.mrf.mxu0
    %v809 = vadd.f32 %v236, %v808
    %v810 = vpop.f32.mrf.mxu0
    %811 = vdwg.mxu0
    %v812 = vld [vmem:[%s2] sm:$0xff]
    %v813 = vld [vmem:[%s2 + $0x8] sm:$0xff]
    %v814 = vld [vmem:[%s2 + $0x10] sm:$0xff]
    %v815 = vld [vmem:[%s2 + $0x18] sm:$0xff]
    %v816 = vld [vmem:[%s2 + $0x20] sm:$0xff]
    %v817 = vld [vmem:[%s2 + $0x28] sm:$0xff]
    %v818 = vld [vmem:[%s2 + $0x30] sm:$0xff]
    %v819 = vld [vmem:[%s2 + $0x38] sm:$0xff]
    %v820 = vmul.f32 %v316, 0.35355338
    %v821 = vmul.f32 %v386, 0.35355338
    %v822 = vmul.f32 %v456, 0.35355338
    %v823 = vmul.f32 %v526, 0.35355338
    %v824 = vmul.f32 %v599, 0.35355338
    %v825 = vmul.f32 %v669, 0.35355338
    %v826 = vmul.f32 %v739, 0.35355338
    %v827 = vmul.f32 %v809, 0.35355338
    %829 = vrot.lane.b32.xlu0 %v316, 120
    %v830 = vpop.permute.xlu0 %829
    %vm831 = vcmask 64512
    %v833 = vsel %vm831, %v820, 0
    %v835 = vsel %vm831, %v830, 0
    %837 = vmatprep.subr.mxu0 0.0
    %838 = vmatpush1.xpose.msra.mxu0 0.0
    %839 = vmatprep.subr.mxu0 0.0
    %840 = vmatpush1.xpose.msra.mxu0 0.0
    %841 = vmatprep.subr.mxu0 0.0
    %842 = vmatpush1.xpose.msra.mxu0 0.0
    %843 = vmatprep.subr.mxu0 0.0
    %844 = vmatpush1.xpose.msra.mxu0 0.0
    %845 = vmatprep.subr.mxu0 0.0
    %846 = vmatpush1.xpose.msra.mxu0 0.0
    %847 = vmatprep.subr.mxu0 0.0
    %848 = vmatpush1.xpose.msra.mxu0 0.0
    %849 = vmatprep.subr.mxu0 0.0
    %850 = vmatpush1.xpose.msra.mxu0 0.0
    %851 = vmatprep.subr.mxu0 0.0
    %852 = vmatpush1.xpose.msra.mxu0 0.0
    %853 = vmatprep.subr.mxu0 0.0
    %854 = vmatpush1.xpose.msra.mxu0 0.0
    %855 = vmatprep.subr.mxu0 0.0
    %856 = vmatpush1.xpose.msra.mxu0 0.0
    %857 = vmatprep.subr.mxu0 0.0
    %858 = vmatpush1.xpose.msra.mxu0 0.0
    %859 = vmatprep.subr.mxu0 0.0
    %860 = vmatpush1.xpose.msra.mxu0 0.0
    %861 = vmatprep.subr.mxu0 0.0
    %862 = vmatpush1.xpose.msra.mxu0 0.0
    %863 = vmatprep.subr.mxu0 0.0
    %864 = vmatpush1.xpose.msra.mxu0 0.0
    %865 = vmatprep.subr.mxu0 0.0
    %866 = vmatpush1.xpose.msra.mxu0 0.0
    %867 = vmatprep.subr.mxu0 0.0
    %868 = vmatpush1.xpose.msra.mxu0 %v835
    %869 = vmatprep.subr.mxu0 0.0
    %870 = vmatpush2.xpose.msra.mxu0 0.0
    %871 = vmatprep.subr.mxu0 0.0
    %872 = vmatpush2.xpose.msra.mxu0 0.0
    %873 = vmatprep.subr.mxu0 0.0
    %874 = vmatpush2.xpose.msra.mxu0 0.0
    %875 = vmatprep.subr.mxu0 0.0
    %876 = vmatpush2.xpose.msra.mxu0 0.0
    %877 = vmatprep.subr.mxu0 0.0
    %878 = vmatpush2.xpose.msra.mxu0 0.0
    %879 = vmatprep.subr.mxu0 0.0
    %880 = vmatpush2.xpose.msra.mxu0 0.0
    %881 = vmatprep.subr.mxu0 0.0
    %882 = vmatpush2.xpose.msra.mxu0 0.0
    %883 = vmatprep.subr.mxu0 0.0
    %884 = vmatpush2.xpose.msra.mxu0 0.0
    %885 = vmatprep.subr.mxu0 0.0
    %886 = vmatpush2.xpose.msra.mxu0 0.0
    %887 = vmatprep.subr.mxu0 0.0
    %888 = vmatpush2.xpose.msra.mxu0 0.0
    %889 = vmatprep.subr.mxu0 0.0
    %890 = vmatpush2.xpose.msra.mxu0 0.0
    %891 = vmatprep.subr.mxu0 0.0
    %892 = vmatpush2.xpose.msra.mxu0 0.0
    %893 = vmatprep.subr.mxu0 0.0
    %894 = vmatpush2.xpose.msra.mxu0 0.0
    %895 = vmatprep.subr.mxu0 0.0
    %896 = vmatpush2.xpose.msra.mxu0 0.0
    %897 = vmatprep.subr.mxu0 0.0
    %898 = vmatpush2.xpose.msra.mxu0 0.0
    %899 = vmatprep.subr.mxu0 0.0
    %900 = vmatpush2.xpose.msra.mxu0 0.0
    %901 = vmatprep.mubr.f32.mxu0 0.0
    %902 = vmatmul.mubr.f32.gmra.mxu0 %v833
    %v903 = vpop.f32.mrf.mxu0
    %v904 = vadd.f32 %v812, %v903
    %v905 = vpop.f32.mrf.mxu0
    %906 = vdwg.mxu0
    %908 = vrot.lane.b32.xlu0 %v386, 120
    %v909 = vpop.permute.xlu0 %908
    %v911 = vsel %vm831, %v821, 0
    %v913 = vsel %vm831, %v909, 0
    %915 = vmatprep.subr.mxu0 0.0
    %916 = vmatpush1.xpose.msra.mxu0 0.0
    %917 = vmatprep.subr.mxu0 0.0
    %918 = vmatpush1.xpose.msra.mxu0 0.0
    %919 = vmatprep.subr.mxu0 0.0
    %920 = vmatpush1.xpose.msra.mxu0 0.0
    %921 = vmatprep.subr.mxu0 0.0
    %922 = vmatpush1.xpose.msra.mxu0 0.0
    %923 = vmatprep.subr.mxu0 0.0
    %924 = vmatpush1.xpose.msra.mxu0 0.0
    %925 = vmatprep.subr.mxu0 0.0
    %926 = vmatpush1.xpose.msra.mxu0 0.0
    %927 = vmatprep.subr.mxu0 0.0
    %928 = vmatpush1.xpose.msra.mxu0 0.0
    %929 = vmatprep.subr.mxu0 0.0
    %930 = vmatpush1.xpose.msra.mxu0 0.0
    %931 = vmatprep.subr.mxu0 0.0
    %932 = vmatpush1.xpose.msra.mxu0 0.0
    %933 = vmatprep.subr.mxu0 0.0
    %934 = vmatpush1.xpose.msra.mxu0 0.0
    %935 = vmatprep.subr.mxu0 0.0
    %936 = vmatpush1.xpose.msra.mxu0 0.0
    %937 = vmatprep.subr.mxu0 0.0
    %938 = vmatpush1.xpose.msra.mxu0 0.0
    %939 = vmatprep.subr.mxu0 0.0
    %940 = vmatpush1.xpose.msra.mxu0 0.0
    %941 = vmatprep.subr.mxu0 0.0
    %942 = vmatpush1.xpose.msra.mxu0 0.0
    %943 = vmatprep.subr.mxu0 0.0
    %944 = vmatpush1.xpose.msra.mxu0 0.0
    %945 = vmatprep.subr.mxu0 0.0
    %946 = vmatpush1.xpose.msra.mxu0 %v913
    %947 = vmatprep.subr.mxu0 0.0
    %948 = vmatpush2.xpose.msra.mxu0 0.0
    %949 = vmatprep.subr.mxu0 0.0
    %950 = vmatpush2.xpose.msra.mxu0 0.0
    %951 = vmatprep.subr.mxu0 0.0
    %952 = vmatpush2.xpose.msra.mxu0 0.0
    %953 = vmatprep.subr.mxu0 0.0
    %954 = vmatpush2.xpose.msra.mxu0 0.0
    %955 = vmatprep.subr.mxu0 0.0
    %956 = vmatpush2.xpose.msra.mxu0 0.0
    %957 = vmatprep.subr.mxu0 0.0
    %958 = vmatpush2.xpose.msra.mxu0 0.0
    %959 = vmatprep.subr.mxu0 0.0
    %960 = vmatpush2.xpose.msra.mxu0 0.0
    %961 = vmatprep.subr.mxu0 0.0
    %962 = vmatpush2.xpose.msra.mxu0 0.0
    %963 = vmatprep.subr.mxu0 0.0
    %964 = vmatpush2.xpose.msra.mxu0 0.0
    %965 = vmatprep.subr.mxu0 0.0
    %966 = vmatpush2.xpose.msra.mxu0 0.0
    %967 = vmatprep.subr.mxu0 0.0
    %968 = vmatpush2.xpose.msra.mxu0 0.0
    %969 = vmatprep.subr.mxu0 0.0
    %970 = vmatpush2.xpose.msra.mxu0 0.0
    %971 = vmatprep.subr.mxu0 0.0
    %972 = vmatpush2.xpose.msra.mxu0 0.0
    %973 = vmatprep.subr.mxu0 0.0
    %974 = vmatpush2.xpose.msra.mxu0 0.0
    %975 = vmatprep.subr.mxu0 0.0
    %976 = vmatpush2.xpose.msra.mxu0 0.0
    %977 = vmatprep.subr.mxu0 0.0
    %978 = vmatpush2.xpose.msra.mxu0 0.0
    %979 = vmatprep.mubr.f32.mxu0 0.0
    %980 = vmatmul.mubr.f32.gmra.mxu0 %v911
    %v981 = vpop.f32.mrf.mxu0
    %v982 = vadd.f32 %v813, %v981
    %v983 = vpop.f32.mrf.mxu0
    %984 = vdwg.mxu0
    %986 = vrot.lane.b32.xlu0 %v456, 120
    %v987 = vpop.permute.xlu0 %986
    %v989 = vsel %vm831, %v822, 0
    %v991 = vsel %vm831, %v987, 0
    %993 = vmatprep.subr.mxu0 0.0
    %994 = vmatpush1.xpose.msra.mxu0 0.0
    %995 = vmatprep.subr.mxu0 0.0
    %996 = vmatpush1.xpose.msra.mxu0 0.0
    %997 = vmatprep.subr.mxu0 0.0
    %998 = vmatpush1.xpose.msra.mxu0 0.0
    %999 = vmatprep.subr.mxu0 0.0
    %1000 = vmatpush1.xpose.msra.mxu0 0.0
    %1001 = vmatprep.subr.mxu0 0.0
    %1002 = vmatpush1.xpose.msra.mxu0 0.0
    %1003 = vmatprep.subr.mxu0 0.0
    %1004 = vmatpush1.xpose.msra.mxu0 0.0
    %1005 = vmatprep.subr.mxu0 0.0
    %1006 = vmatpush1.xpose.msra.mxu0 0.0
    %1007 = vmatprep.subr.mxu0 0.0
    %1008 = vmatpush1.xpose.msra.mxu0 0.0
    %1009 = vmatprep.subr.mxu0 0.0
    %1010 = vmatpush1.xpose.msra.mxu0 0.0
    %1011 = vmatprep.subr.mxu0 0.0
    %1012 = vmatpush1.xpose.msra.mxu0 0.0
    %1013 = vmatprep.subr.mxu0 0.0
    %1014 = vmatpush1.xpose.msra.mxu0 0.0
    %1015 = vmatprep.subr.mxu0 0.0
    %1016 = vmatpush1.xpose.msra.mxu0 0.0
    %1017 = vmatprep.subr.mxu0 0.0
    %1018 = vmatpush1.xpose.msra.mxu0 0.0
    %1019 = vmatprep.subr.mxu0 0.0
    %1020 = vmatpush1.xpose.msra.mxu0 0.0
    %1021 = vmatprep.subr.mxu0 0.0
    %1022 = vmatpush1.xpose.msra.mxu0 0.0
    %1023 = vmatprep.subr.mxu0 0.0
    %1024 = vmatpush1.xpose.msra.mxu0 %v991
    %1025 = vmatprep.subr.mxu0 0.0
    %1026 = vmatpush2.xpose.msra.mxu0 0.0
    %1027 = vmatprep.subr.mxu0 0.0
    %1028 = vmatpush2.xpose.msra.mxu0 0.0
    %1029 = vmatprep.subr.mxu0 0.0
    %1030 = vmatpush2.xpose.msra.mxu0 0.0
    %1031 = vmatprep.subr.mxu0 0.0
    %1032 = vmatpush2.xpose.msra.mxu0 0.0
    %1033 = vmatprep.subr.mxu0 0.0
    %1034 = vmatpush2.xpose.msra.mxu0 0.0
    %1035 = vmatprep.subr.mxu0 0.0
    %1036 = vmatpush2.xpose.msra.mxu0 0.0
    %1037 = vmatprep.subr.mxu0 0.0
    %1038 = vmatpush2.xpose.msra.mxu0 0.0
    %1039 = vmatprep.subr.mxu0 0.0
    %1040 = vmatpush2.xpose.msra.mxu0 0.0
    %1041 = vmatprep.subr.mxu0 0.0
    %1042 = vmatpush2.xpose.msra.mxu0 0.0
    %1043 = vmatprep.subr.mxu0 0.0
    %1044 = vmatpush2.xpose.msra.mxu0 0.0
    %1045 = vmatprep.subr.mxu0 0.0
    %1046 = vmatpush2.xpose.msra.mxu0 0.0
    %1047 = vmatprep.subr.mxu0 0.0
    %1048 = vmatpush2.xpose.msra.mxu0 0.0
    %1049 = vmatprep.subr.mxu0 0.0
    %1050 = vmatpush2.xpose.msra.mxu0 0.0
    %1051 = vmatprep.subr.mxu0 0.0
    %1052 = vmatpush2.xpose.msra.mxu0 0.0
    %1053 = vmatprep.subr.mxu0 0.0
    %1054 = vmatpush2.xpose.msra.mxu0 0.0
    %1055 = vmatprep.subr.mxu0 0.0
    %1056 = vmatpush2.xpose.msra.mxu0 0.0
    %1057 = vmatprep.mubr.f32.mxu0 0.0
    %1058 = vmatmul.mubr.f32.gmra.mxu0 %v989
    %v1059 = vpop.f32.mrf.mxu0
    %v1060 = vadd.f32 %v814, %v1059
    %v1061 = vpop.f32.mrf.mxu0
    %1062 = vdwg.mxu0
    %1064 = vrot.lane.b32.xlu0 %v526, 120
    %v1065 = vpop.permute.xlu0 %1064
    %v1067 = vsel %vm831, %v823, 0
    %v1069 = vsel %vm831, %v1065, 0
    %1071 = vmatprep.subr.mxu0 0.0
    %1072 = vmatpush1.xpose.msra.mxu0 0.0
    %1073 = vmatprep.subr.mxu0 0.0
    %1074 = vmatpush1.xpose.msra.mxu0 0.0
    %1075 = vmatprep.subr.mxu0 0.0
    %1076 = vmatpush1.xpose.msra.mxu0 0.0
    %1077 = vmatprep.subr.mxu0 0.0
    %1078 = vmatpush1.xpose.msra.mxu0 0.0
    %1079 = vmatprep.subr.mxu0 0.0
    %1080 = vmatpush1.xpose.msra.mxu0 0.0
    %1081 = vmatprep.subr.mxu0 0.0
    %1082 = vmatpush1.xpose.msra.mxu0 0.0
    %1083 = vmatprep.subr.mxu0 0.0
    %1084 = vmatpush1.xpose.msra.mxu0 0.0
    %1085 = vmatprep.subr.mxu0 0.0
    %1086 = vmatpush1.xpose.msra.mxu0 0.0
    %1087 = vmatprep.subr.mxu0 0.0
    %1088 = vmatpush1.xpose.msra.mxu0 0.0
    %1089 = vmatprep.subr.mxu0 0.0
    %1090 = vmatpush1.xpose.msra.mxu0 0.0
    %1091 = vmatprep.subr.mxu0 0.0
    %1092 = vmatpush1.xpose.msra.mxu0 0.0
    %1093 = vmatprep.subr.mxu0 0.0
    %1094 = vmatpush1.xpose.msra.mxu0 0.0
    %1095 = vmatprep.subr.mxu0 0.0
    %1096 = vmatpush1.xpose.msra.mxu0 0.0
    %1097 = vmatprep.subr.mxu0 0.0
    %1098 = vmatpush1.xpose.msra.mxu0 0.0
    %1099 = vmatprep.subr.mxu0 0.0
    %1100 = vmatpush1.xpose.msra.mxu0 0.0
    %1101 = vmatprep.subr.mxu0 0.0
    %1102 = vmatpush1.xpose.msra.mxu0 %v1069
    %1103 = vmatprep.subr.mxu0 0.0
    %1104 = vmatpush2.xpose.msra.mxu0 0.0
    %1105 = vmatprep.subr.mxu0 0.0
    %1106 = vmatpush2.xpose.msra.mxu0 0.0
    %1107 = vmatprep.subr.mxu0 0.0
    %1108 = vmatpush2.xpose.msra.mxu0 0.0
    %1109 = vmatprep.subr.mxu0 0.0
    %1110 = vmatpush2.xpose.msra.mxu0 0.0
    %1111 = vmatprep.subr.mxu0 0.0
    %1112 = vmatpush2.xpose.msra.mxu0 0.0
    %1113 = vmatprep.subr.mxu0 0.0
    %1114 = vmatpush2.xpose.msra.mxu0 0.0
    %1115 = vmatprep.subr.mxu0 0.0
    %1116 = vmatpush2.xpose.msra.mxu0 0.0
    %1117 = vmatprep.subr.mxu0 0.0
    %1118 = vmatpush2.xpose.msra.mxu0 0.0
    %1119 = vmatprep.subr.mxu0 0.0
    %1120 = vmatpush2.xpose.msra.mxu0 0.0
    %1121 = vmatprep.subr.mxu0 0.0
    %1122 = vmatpush2.xpose.msra.mxu0 0.0
    %1123 = vmatprep.subr.mxu0 0.0
    %1124 = vmatpush2.xpose.msra.mxu0 0.0
    %1125 = vmatprep.subr.mxu0 0.0
    %1126 = vmatpush2.xpose.msra.mxu0 0.0
    %1127 = vmatprep.subr.mxu0 0.0
    %1128 = vmatpush2.xpose.msra.mxu0 0.0
    %1129 = vmatprep.subr.mxu0 0.0
    %1130 = vmatpush2.xpose.msra.mxu0 0.0
    %1131 = vmatprep.subr.mxu0 0.0
    %1132 = vmatpush2.xpose.msra.mxu0 0.0
    %1133 = vmatprep.subr.mxu0 0.0
    %1134 = vmatpush2.xpose.msra.mxu0 0.0
    %1135 = vmatprep.mubr.f32.mxu0 0.0
    %1136 = vmatmul.mubr.f32.gmra.mxu0 %v1067
    %v1137 = vpop.f32.mrf.mxu0
    %v1138 = vadd.f32 %v815, %v1137
    %v1139 = vpop.f32.mrf.mxu0
    %1140 = vdwg.mxu0
    %1142 = vrot.lane.b32.xlu0 %v599, 120
    %v1143 = vpop.permute.xlu0 %1142
    %v1145 = vsel %vm831, %v824, 0
    %v1147 = vsel %vm831, %v1143, 0
    %1149 = vmatprep.subr.mxu0 0.0
    %1150 = vmatpush1.xpose.msra.mxu0 0.0
    %1151 = vmatprep.subr.mxu0 0.0
    %1152 = vmatpush1.xpose.msra.mxu0 0.0
    %1153 = vmatprep.subr.mxu0 0.0
    %1154 = vmatpush1.xpose.msra.mxu0 0.0
    %1155 = vmatprep.subr.mxu0 0.0
    %1156 = vmatpush1.xpose.msra.mxu0 0.0
    %1157 = vmatprep.subr.mxu0 0.0
    %1158 = vmatpush1.xpose.msra.mxu0 0.0
    %1159 = vmatprep.subr.mxu0 0.0
    %1160 = vmatpush1.xpose.msra.mxu0 0.0
    %1161 = vmatprep.subr.mxu0 0.0
    %1162 = vmatpush1.xpose.msra.mxu0 0.0
    %1163 = vmatprep.subr.mxu0 0.0
    %1164 = vmatpush1.xpose.msra.mxu0 0.0
    %1165 = vmatprep.subr.mxu0 0.0
    %1166 = vmatpush1.xpose.msra.mxu0 0.0
    %1167 = vmatprep.subr.mxu0 0.0
    %1168 = vmatpush1.xpose.msra.mxu0 0.0
    %1169 = vmatprep.subr.mxu0 0.0
    %1170 = vmatpush1.xpose.msra.mxu0 0.0
    %1171 = vmatprep.subr.mxu0 0.0
    %1172 = vmatpush1.xpose.msra.mxu0 0.0
    %1173 = vmatprep.subr.mxu0 0.0
    %1174 = vmatpush1.xpose.msra.mxu0 0.0
    %1175 = vmatprep.subr.mxu0 0.0
    %1176 = vmatpush1.xpose.msra.mxu0 0.0
    %1177 = vmatprep.subr.mxu0 0.0
    %1178 = vmatpush1.xpose.msra.mxu0 0.0
    %1179 = vmatprep.subr.mxu0 0.0
    %1180 = vmatpush1.xpose.msra.mxu0 %v1147
    %1181 = vmatprep.subr.mxu0 0.0
    %1182 = vmatpush2.xpose.msra.mxu0 0.0
    %1183 = vmatprep.subr.mxu0 0.0
    %1184 = vmatpush2.xpose.msra.mxu0 0.0
    %1185 = vmatprep.subr.mxu0 0.0
    %1186 = vmatpush2.xpose.msra.mxu0 0.0
    %1187 = vmatprep.subr.mxu0 0.0
    %1188 = vmatpush2.xpose.msra.mxu0 0.0
    %1189 = vmatprep.subr.mxu0 0.0
    %1190 = vmatpush2.xpose.msra.mxu0 0.0
    %1191 = vmatprep.subr.mxu0 0.0
    %1192 = vmatpush2.xpose.msra.mxu0 0.0
    %1193 = vmatprep.subr.mxu0 0.0
    %1194 = vmatpush2.xpose.msra.mxu0 0.0
    %1195 = vmatprep.subr.mxu0 0.0
    %1196 = vmatpush2.xpose.msra.mxu0 0.0
    %1197 = vmatprep.subr.mxu0 0.0
    %1198 = vmatpush2.xpose.msra.mxu0 0.0
    %1199 = vmatprep.subr.mxu0 0.0
    %1200 = vmatpush2.xpose.msra.mxu0 0.0
    %1201 = vmatprep.subr.mxu0 0.0
    %1202 = vmatpush2.xpose.msra.mxu0 0.0
    %1203 = vmatprep.subr.mxu0 0.0
    %1204 = vmatpush2.xpose.msra.mxu0 0.0
    %1205 = vmatprep.subr.mxu0 0.0
    %1206 = vmatpush2.xpose.msra.mxu0 0.0
    %1207 = vmatprep.subr.mxu0 0.0
    %1208 = vmatpush2.xpose.msra.mxu0 0.0
    %1209 = vmatprep.subr.mxu0 0.0
    %1210 = vmatpush2.xpose.msra.mxu0 0.0
    %1211 = vmatprep.subr.mxu0 0.0
    %1212 = vmatpush2.xpose.msra.mxu0 0.0
    %1213 = vmatprep.mubr.f32.mxu0 0.0
    %1214 = vmatmul.mubr.f32.gmra.mxu0 %v1145
    %v1215 = vpop.f32.mrf.mxu0
    %v1216 = vadd.f32 %v816, %v1215
    %v1217 = vpop.f32.mrf.mxu0
    %1218 = vdwg.mxu0
    %1220 = vrot.lane.b32.xlu0 %v669, 120
    %v1221 = vpop.permute.xlu0 %1220
    %v1223 = vsel %vm831, %v825, 0
    %v1225 = vsel %vm831, %v1221, 0
    %1227 = vmatprep.subr.mxu0 0.0
    %1228 = vmatpush1.xpose.msra.mxu0 0.0
    %1229 = vmatprep.subr.mxu0 0.0
    %1230 = vmatpush1.xpose.msra.mxu0 0.0
    %1231 = vmatprep.subr.mxu0 0.0
    %1232 = vmatpush1.xpose.msra.mxu0 0.0
    %1233 = vmatprep.subr.mxu0 0.0
    %1234 = vmatpush1.xpose.msra.mxu0 0.0
    %1235 = vmatprep.subr.mxu0 0.0
    %1236 = vmatpush1.xpose.msra.mxu0 0.0
    %1237 = vmatprep.subr.mxu0 0.0
    %1238 = vmatpush1.xpose.msra.mxu0 0.0
    %1239 = vmatprep.subr.mxu0 0.0
    %1240 = vmatpush1.xpose.msra.mxu0 0.0
    %1241 = vmatprep.subr.mxu0 0.0
    %1242 = vmatpush1.xpose.msra.mxu0 0.0
    %1243 = vmatprep.subr.mxu0 0.0
    %1244 = vmatpush1.xpose.msra.mxu0 0.0
    %1245 = vmatprep.subr.mxu0 0.0
    %1246 = vmatpush1.xpose.msra.mxu0 0.0
    %1247 = vmatprep.subr.mxu0 0.0
    %1248 = vmatpush1.xpose.msra.mxu0 0.0
    %1249 = vmatprep.subr.mxu0 0.0
    %1250 = vmatpush1.xpose.msra.mxu0 0.0
    %1251 = vmatprep.subr.mxu0 0.0
    %1252 = vmatpush1.xpose.msra.mxu0 0.0
    %1253 = vmatprep.subr.mxu0 0.0
    %1254 = vmatpush1.xpose.msra.mxu0 0.0
    %1255 = vmatprep.subr.mxu0 0.0
    %1256 = vmatpush1.xpose.msra.mxu0 0.0
    %1257 = vmatprep.subr.mxu0 0.0
    %1258 = vmatpush1.xpose.msra.mxu0 %v1225
    %1259 = vmatprep.subr.mxu0 0.0
    %1260 = vmatpush2.xpose.msra.mxu0 0.0
    %1261 = vmatprep.subr.mxu0 0.0
    %1262 = vmatpush2.xpose.msra.mxu0 0.0
    %1263 = vmatprep.subr.mxu0 0.0
    %1264 = vmatpush2.xpose.msra.mxu0 0.0
    %1265 = vmatprep.subr.mxu0 0.0
    %1266 = vmatpush2.xpose.msra.mxu0 0.0
    %1267 = vmatprep.subr.mxu0 0.0
    %1268 = vmatpush2.xpose.msra.mxu0 0.0
    %1269 = vmatprep.subr.mxu0 0.0
    %1270 = vmatpush2.xpose.msra.mxu0 0.0
    %1271 = vmatprep.subr.mxu0 0.0
    %1272 = vmatpush2.xpose.msra.mxu0 0.0
    %1273 = vmatprep.subr.mxu0 0.0
    %1274 = vmatpush2.xpose.msra.mxu0 0.0
    %1275 = vmatprep.subr.mxu0 0.0
    %1276 = vmatpush2.xpose.msra.mxu0 0.0
    %1277 = vmatprep.subr.mxu0 0.0
    %1278 = vmatpush2.xpose.msra.mxu0 0.0
    %1279 = vmatprep.subr.mxu0 0.0
    %1280 = vmatpush2.xpose.msra.mxu0 0.0
    %1281 = vmatprep.subr.mxu0 0.0
    %1282 = vmatpush2.xpose.msra.mxu0 0.0
    %1283 = vmatprep.subr.mxu0 0.0
    %1284 = vmatpush2.xpose.msra.mxu0 0.0
    %1285 = vmatprep.subr.mxu0 0.0
    %1286 = vmatpush2.xpose.msra.mxu0 0.0
    %1287 = vmatprep.subr.mxu0 0.0
    %1288 = vmatpush2.xpose.msra.mxu0 0.0
    %1289 = vmatprep.subr.mxu0 0.0
    %1290 = vmatpush2.xpose.msra.mxu0 0.0
    %1291 = vmatprep.mubr.f32.mxu0 0.0
    %1292 = vmatmul.mubr.f32.gmra.mxu0 %v1223
    %v1293 = vpop.f32.mrf.mxu0
    %v1294 = vadd.f32 %v817, %v1293
    %v1295 = vpop.f32.mrf.mxu0
    %1296 = vdwg.mxu0
    %1298 = vrot.lane.b32.xlu0 %v739, 120
    %v1299 = vpop.permute.xlu0 %1298
    %v1301 = vsel %vm831, %v826, 0
    %v1303 = vsel %vm831, %v1299, 0
    %1305 = vmatprep.subr.mxu0 0.0
    %1306 = vmatpush1.xpose.msra.mxu0 0.0
    %1307 = vmatprep.subr.mxu0 0.0
    %1308 = vmatpush1.xpose.msra.mxu0 0.0
    %1309 = vmatprep.subr.mxu0 0.0
    %1310 = vmatpush1.xpose.msra.mxu0 0.0
    %1311 = vmatprep.subr.mxu0 0.0
    %1312 = vmatpush1.xpose.msra.mxu0 0.0
    %1313 = vmatprep.subr.mxu0 0.0
    %1314 = vmatpush1.xpose.msra.mxu0 0.0
    %1315 = vmatprep.subr.mxu0 0.0
    %1316 = vmatpush1.xpose.msra.mxu0 0.0
    %1317 = vmatprep.subr.mxu0 0.0
    %1318 = vmatpush1.xpose.msra.mxu0 0.0
    %1319 = vmatprep.subr.mxu0 0.0
    %1320 = vmatpush1.xpose.msra.mxu0 0.0
    %1321 = vmatprep.subr.mxu0 0.0
    %1322 = vmatpush1.xpose.msra.mxu0 0.0
    %1323 = vmatprep.subr.mxu0 0.0
    %1324 = vmatpush1.xpose.msra.mxu0 0.0
    %1325 = vmatprep.subr.mxu0 0.0
    %1326 = vmatpush1.xpose.msra.mxu0 0.0
    %1327 = vmatprep.subr.mxu0 0.0
    %1328 = vmatpush1.xpose.msra.mxu0 0.0
    %1329 = vmatprep.subr.mxu0 0.0
    %1330 = vmatpush1.xpose.msra.mxu0 0.0
    %1331 = vmatprep.subr.mxu0 0.0
    %1332 = vmatpush1.xpose.msra.mxu0 0.0
    %1333 = vmatprep.subr.mxu0 0.0
    %1334 = vmatpush1.xpose.msra.mxu0 0.0
    %1335 = vmatprep.subr.mxu0 0.0
    %1336 = vmatpush1.xpose.msra.mxu0 %v1303
    %1337 = vmatprep.subr.mxu0 0.0
    %1338 = vmatpush2.xpose.msra.mxu0 0.0
    %1339 = vmatprep.subr.mxu0 0.0
    %1340 = vmatpush2.xpose.msra.mxu0 0.0
    %1341 = vmatprep.subr.mxu0 0.0
    %1342 = vmatpush2.xpose.msra.mxu0 0.0
    %1343 = vmatprep.subr.mxu0 0.0
    %1344 = vmatpush2.xpose.msra.mxu0 0.0
    %1345 = vmatprep.subr.mxu0 0.0
    %1346 = vmatpush2.xpose.msra.mxu0 0.0
    %1347 = vmatprep.subr.mxu0 0.0
    %1348 = vmatpush2.xpose.msra.mxu0 0.0
    %1349 = vmatprep.subr.mxu0 0.0
    %1350 = vmatpush2.xpose.msra.mxu0 0.0
    %1351 = vmatprep.subr.mxu0 0.0
    %1352 = vmatpush2.xpose.msra.mxu0 0.0
    %1353 = vmatprep.subr.mxu0 0.0
    %1354 = vmatpush2.xpose.msra.mxu0 0.0
    %1355 = vmatprep.subr.mxu0 0.0
    %1356 = vmatpush2.xpose.msra.mxu0 0.0
    %1357 = vmatprep.subr.mxu0 0.0
    %1358 = vmatpush2.xpose.msra.mxu0 0.0
    %1359 = vmatprep.subr.mxu0 0.0
    %1360 = vmatpush2.xpose.msra.mxu0 0.0
    %1361 = vmatprep.subr.mxu0 0.0
    %1362 = vmatpush2.xpose.msra.mxu0 0.0
    %1363 = vmatprep.subr.mxu0 0.0
    %1364 = vmatpush2.xpose.msra.mxu0 0.0
    %1365 = vmatprep.subr.mxu0 0.0
    %1366 = vmatpush2.xpose.msra.mxu0 0.0
    %1367 = vmatprep.subr.mxu0 0.0
    %1368 = vmatpush2.xpose.msra.mxu0 0.0
    %1369 = vmatprep.mubr.f32.mxu0 0.0
    %1370 = vmatmul.mubr.f32.gmra.mxu0 %v1301
    %v1371 = vpop.f32.mrf.mxu0
    %v1372 = vadd.f32 %v818, %v1371
    %v1373 = vpop.f32.mrf.mxu0
    %1374 = vdwg.mxu0
    %1376 = vrot.lane.b32.xlu0 %v809, 120
    %v1377 = vpop.permute.xlu0 %1376
    %v1379 = vsel %vm831, %v827, 0
    %v1381 = vsel %vm831, %v1377, 0
    %1383 = vmatprep.subr.mxu0 0.0
    %1384 = vmatpush1.xpose.msra.mxu0 0.0
    %1385 = vmatprep.subr.mxu0 0.0
    %1386 = vmatpush1.xpose.msra.mxu0 0.0
    %1387 = vmatprep.subr.mxu0 0.0
    %1388 = vmatpush1.xpose.msra.mxu0 0.0
    %1389 = vmatprep.subr.mxu0 0.0
    %1390 = vmatpush1.xpose.msra.mxu0 0.0
    %1391 = vmatprep.subr.mxu0 0.0
    %1392 = vmatpush1.xpose.msra.mxu0 0.0
    %1393 = vmatprep.subr.mxu0 0.0
    %1394 = vmatpush1.xpose.msra.mxu0 0.0
    %1395 = vmatprep.subr.mxu0 0.0
    %1396 = vmatpush1.xpose.msra.mxu0 0.0
    %1397 = vmatprep.subr.mxu0 0.0
    %1398 = vmatpush1.xpose.msra.mxu0 0.0
    %1399 = vmatprep.subr.mxu0 0.0
    %1400 = vmatpush1.xpose.msra.mxu0 0.0
    %1401 = vmatprep.subr.mxu0 0.0
    %1402 = vmatpush1.xpose.msra.mxu0 0.0
    %1403 = vmatprep.subr.mxu0 0.0
    %1404 = vmatpush1.xpose.msra.mxu0 0.0
    %1405 = vmatprep.subr.mxu0 0.0
    %1406 = vmatpush1.xpose.msra.mxu0 0.0
    %1407 = vmatprep.subr.mxu0 0.0
    %1408 = vmatpush1.xpose.msra.mxu0 0.0
    %1409 = vmatprep.subr.mxu0 0.0
    %1410 = vmatpush1.xpose.msra.mxu0 0.0
    %1411 = vmatprep.subr.mxu0 0.0
    %1412 = vmatpush1.xpose.msra.mxu0 0.0
    %1413 = vmatprep.subr.mxu0 0.0
    %1414 = vmatpush1.xpose.msra.mxu0 %v1381
    %1415 = vmatprep.subr.mxu0 0.0
    %1416 = vmatpush2.xpose.msra.mxu0 0.0
    %1417 = vmatprep.subr.mxu0 0.0
    %1418 = vmatpush2.xpose.msra.mxu0 0.0
    %1419 = vmatprep.subr.mxu0 0.0
    %1420 = vmatpush2.xpose.msra.mxu0 0.0
    %1421 = vmatprep.subr.mxu0 0.0
    %1422 = vmatpush2.xpose.msra.mxu0 0.0
    %1423 = vmatprep.subr.mxu0 0.0
    %1424 = vmatpush2.xpose.msra.mxu0 0.0
    %1425 = vmatprep.subr.mxu0 0.0
    %1426 = vmatpush2.xpose.msra.mxu0 0.0
    %1427 = vmatprep.subr.mxu0 0.0
    %1428 = vmatpush2.xpose.msra.mxu0 0.0
    %1429 = vmatprep.subr.mxu0 0.0
    %1430 = vmatpush2.xpose.msra.mxu0 0.0
    %1431 = vmatprep.subr.mxu0 0.0
    %1432 = vmatpush2.xpose.msra.mxu0 0.0
    %1433 = vmatprep.subr.mxu0 0.0
    %1434 = vmatpush2.xpose.msra.mxu0 0.0
    %1435 = vmatprep.subr.mxu0 0.0
    %1436 = vmatpush2.xpose.msra.mxu0 0.0
    %1437 = vmatprep.subr.mxu0 0.0
    %1438 = vmatpush2.xpose.msra.mxu0 0.0
    %1439 = vmatprep.subr.mxu0 0.0
    %1440 = vmatpush2.xpose.msra.mxu0 0.0
    %1441 = vmatprep.subr.mxu0 0.0
    %1442 = vmatpush2.xpose.msra.mxu0 0.0
    %1443 = vmatprep.subr.mxu0 0.0
    %1444 = vmatpush2.xpose.msra.mxu0 0.0
    %1445 = vmatprep.subr.mxu0 0.0
    %1446 = vmatpush2.xpose.msra.mxu0 0.0
    %1447 = vmatprep.mubr.f32.mxu0 0.0
    %1448 = vmatmul.mubr.f32.gmra.mxu0 %v1379
    %v1449 = vpop.f32.mrf.mxu0
    %v1450 = vadd.f32 %v819, %v1449
    %v1451 = vpop.f32.mrf.mxu0
    %1452 = vdwg.mxu0
    %v1453 = vsel %vm831, %v904, -inf
    %1454 = vmax.xlane.f32.xlu0 %v1453
    %v1455 = vpop.xlane.xlu0 %1454
    %v1456 = vsel %vm831, %v982, -inf
    %1457 = vmax.xlane.f32.xlu0 %v1456
    %v1458 = vpop.xlane.xlu0 %1457
    %v1459 = vsel %vm831, %v1060, -inf
    %1460 = vmax.xlane.f32.xlu0 %v1459
    %v1461 = vpop.xlane.xlu0 %1460
    %v1462 = vsel %vm831, %v1138, -inf
    %1463 = vmax.xlane.f32.xlu0 %v1462
    %v1464 = vpop.xlane.xlu0 %1463
    %v1465 = vsel %vm831, %v1216, -inf
    %1466 = vmax.xlane.f32.xlu0 %v1465
    %v1467 = vpop.xlane.xlu0 %1466
    %v1468 = vsel %vm831, %v1294, -inf
    %1469 = vmax.xlane.f32.xlu0 %v1468
    %v1470 = vpop.xlane.xlu0 %1469
    %v1471 = vsel %vm831, %v1372, -inf
    %1472 = vmax.xlane.f32.xlu0 %v1471
    %v1473 = vpop.xlane.xlu0 %1472
    %v1474 = vsel %vm831, %v1450, -inf
    %1475 = vmax.xlane.f32.xlu0 %v1474
    %v1476 = vpop.xlane.xlu0 %1475
    %v1477 = vsub.f32 %v904, %v1455
    %v1478 = vsub.f32 %v982, %v1458
    %v1479 = vsub.f32 %v1060, %v1461
    %v1480 = vsub.f32 %v1138, %v1464
    %v1481 = vsub.f32 %v1216, %v1467
    %v1482 = vsub.f32 %v1294, %v1470
    %v1483 = vsub.f32 %v1372, %v1473
    %v1484 = vsub.f32 %v1450, %v1476
    %v1485 = vmul.f32 %v1477, 1.442695
    %v1486 = vpow.pop %v1485
    %v1487 = vmul.f32 %v1478, 1.442695
    %v1488 = vpow.pop %v1487
    %v1489 = vmul.f32 %v1479, 1.442695
    %v1490 = vpow.pop %v1489
    %v1491 = vmul.f32 %v1480, 1.442695
    %v1492 = vpow.pop %v1491
    %v1493 = vmul.f32 %v1481, 1.442695
    %v1494 = vpow.pop %v1493
    %v1495 = vmul.f32 %v1482, 1.442695
    %v1496 = vpow.pop %v1495
    %v1497 = vmul.f32 %v1483, 1.442695
    %v1498 = vpow.pop %v1497
    %v1499 = vmul.f32 %v1484, 1.442695
    %v1500 = vpow.pop %v1499
    %v1501 = vsel %vm831, %v1486, 0.0
    %1502 = vadd.xlane.f32.xlu0 %v1501
    %v1503 = vpop.xlane.xlu0 %1502
    %v1504 = vsel %vm831, %v1488, 0.0
    %1505 = vadd.xlane.f32.xlu0 %v1504
    %v1506 = vpop.xlane.xlu0 %1505
    %v1507 = vsel %vm831, %v1490, 0.0
    %1508 = vadd.xlane.f32.xlu0 %v1507
    %v1509 = vpop.xlane.xlu0 %1508
    %v1510 = vsel %vm831, %v1492, 0.0
    %1511 = vadd.xlane.f32.xlu0 %v1510
    %v1512 = vpop.xlane.xlu0 %1511
    %v1513 = vsel %vm831, %v1494, 0.0
    %1514 = vadd.xlane.f32.xlu0 %v1513
    %v1515 = vpop.xlane.xlu0 %1514
    %v1516 = vsel %vm831, %v1496, 0.0
    %1517 = vadd.xlane.f32.xlu0 %v1516
    %v1518 = vpop.xlane.xlu0 %1517
    %v1519 = vsel %vm831, %v1498, 0.0
    %1520 = vadd.xlane.f32.xlu0 %v1519
    %v1521 = vpop.xlane.xlu0 %1520
    %v1522 = vsel %vm831, %v1500, 0.0
    %1523 = vadd.xlane.f32.xlu0 %v1522
    %v1524 = vpop.xlane.xlu0 %1523
    %v1525 = vrcp.pop %v1503
    %v1526 = vmul.f32 1.0, %v1525
    %v1527 = vrcp.pop %v1506
    %v1528 = vmul.f32 1.0, %v1527
    %v1529 = vrcp.pop %v1509
    %v1530 = vmul.f32 1.0, %v1529
    %v1531 = vrcp.pop %v1512
    %v1532 = vmul.f32 1.0, %v1531
    %v1533 = vrcp.pop %v1515
    %v1534 = vmul.f32 1.0, %v1533
    %v1535 = vrcp.pop %v1518
    %v1536 = vmul.f32 1.0, %v1535
    %v1537 = vrcp.pop %v1521
    %v1538 = vmul.f32 1.0, %v1537
    %v1539 = vrcp.pop %v1524
    %v1540 = vmul.f32 1.0, %v1539
    %v1541 = vmul.f32 %v1486, %v1526
    %v1542 = vmul.f32 %v1488, %v1528
    %v1543 = vmul.f32 %v1490, %v1530
    %v1544 = vmul.f32 %v1492, %v1532
    %v1545 = vmul.f32 %v1494, %v1534
    %v1546 = vmul.f32 %v1496, %v1536
    %v1547 = vmul.f32 %v1498, %v1538
    %v1548 = vmul.f32 %v1500, %v1540
    %1549 = vrot.lane.b32.xlu0 %v316, 112
    %v1550 = vpop.permute.xlu0 %1549
    %v1553 = vsel %vm831, %v1541, 0
    %1555 = vmatprep.subr.mxu0 0.0
    %1556 = vmatpush1.msra.mxu0 0.0
    %1557 = vmatprep.subr.mxu0 0.0
    %1558 = vmatpush1.msra.mxu0 0.0
    %1559 = vmatprep.subr.mxu0 0.0
    %1560 = vmatpush1.msra.mxu0 0.0
    %1561 = vmatprep.subr.mxu0 0.0
    %1562 = vmatpush1.msra.mxu0 0.0
    %1563 = vmatprep.subr.mxu0 0.0
    %1564 = vmatpush1.msra.mxu0 0.0
    %1565 = vmatprep.subr.mxu0 0.0
    %1566 = vmatpush1.msra.mxu0 0.0
    %1567 = vmatprep.subr.mxu0 0.0
    %1568 = vmatpush1.msra.mxu0 0.0
    %1569 = vmatprep.subr.mxu0 0.0
    %1570 = vmatpush1.msra.mxu0 0.0
    %1571 = vmatprep.subr.mxu0 0.0
    %1572 = vmatpush1.msra.mxu0 0.0
    %1573 = vmatprep.subr.mxu0 0.0
    %1574 = vmatpush1.msra.mxu0 0.0
    %1575 = vmatprep.subr.mxu0 0.0
    %1576 = vmatpush1.msra.mxu0 0.0
    %1577 = vmatprep.subr.mxu0 0.0
    %1578 = vmatpush1.msra.mxu0 0.0
    %1579 = vmatprep.subr.mxu0 0.0
    %1580 = vmatpush1.msra.mxu0 0.0
    %1581 = vmatprep.subr.mxu0 0.0
    %1582 = vmatpush1.msra.mxu0 0.0
    %1583 = vmatprep.subr.mxu0 0.0
    %1584 = vmatpush1.msra.mxu0 0.0
    %1585 = vmatprep.subr.mxu0 0.0
    %1586 = vmatpush1.msra.mxu0 %v1550
    %1587 = vmatprep.subr.mxu0 0.0
    %1588 = vmatpush2.msra.mxu0 0.0
    %1589 = vmatprep.subr.mxu0 0.0
    %1590 = vmatpush2.msra.mxu0 0.0
    %1591 = vmatprep.subr.mxu0 0.0
    %1592 = vmatpush2.msra.mxu0 0.0
    %1593 = vmatprep.subr.mxu0 0.0
    %1594 = vmatpush2.msra.mxu0 0.0
    %1595 = vmatprep.subr.mxu0 0.0
    %1596 = vmatpush2.msra.mxu0 0.0
    %1597 = vmatprep.subr.mxu0 0.0
    %1598 = vmatpush2.msra.mxu0 0.0
    %1599 = vmatprep.subr.mxu0 0.0
    %1600 = vmatpush2.msra.mxu0 0.0
    %1601 = vmatprep.subr.mxu0 0.0
    %1602 = vmatpush2.msra.mxu0 0.0
    %1603 = vmatprep.subr.mxu0 0.0
    %1604 = vmatpush2.msra.mxu0 0.0
    %1605 = vmatprep.subr.mxu0 0.0
    %1606 = vmatpush2.msra.mxu0 0.0
    %1607 = vmatprep.subr.mxu0 0.0
    %1608 = vmatpush2.msra.mxu0 0.0
    %1609 = vmatprep.subr.mxu0 0.0
    %1610 = vmatpush2.msra.mxu0 0.0
    %1611 = vmatprep.subr.mxu0 0.0
    %1612 = vmatpush2.msra.mxu0 0.0
    %1613 = vmatprep.subr.mxu0 0.0
    %1614 = vmatpush2.msra.mxu0 0.0
    %1615 = vmatprep.subr.mxu0 0.0
    %1616 = vmatpush2.msra.mxu0 0.0
    %1617 = vmatprep.subr.mxu0 0.0
    %1618 = vmatpush2.msra.mxu0 0.0
    %1619 = vmatprep.mubr.f32.mxu0 0.0
    %1620 = vmatmul.mubr.f32.gmra.mxu0 %v1553
    %v1621 = vpop.f32.mrf.mxu0
    %v1622 = vadd.f32 0.0, %v1621
    %v1623 = vpop.f32.mrf.mxu0
    %1624 = vdwg.mxu0
    %1625 = vrot.lane.b32.xlu0 %v386, 112
    %v1626 = vpop.permute.xlu0 %1625
    %v1629 = vsel %vm831, %v1542, 0
    %1631 = vmatprep.subr.mxu0 0.0
    %1632 = vmatpush1.msra.mxu0 0.0
    %1633 = vmatprep.subr.mxu0 0.0
    %1634 = vmatpush1.msra.mxu0 0.0
    %1635 = vmatprep.subr.mxu0 0.0
    %1636 = vmatpush1.msra.mxu0 0.0
    %1637 = vmatprep.subr.mxu0 0.0
    %1638 = vmatpush1.msra.mxu0 0.0
    %1639 = vmatprep.subr.mxu0 0.0
    %1640 = vmatpush1.msra.mxu0 0.0
    %1641 = vmatprep.subr.mxu0 0.0
    %1642 = vmatpush1.msra.mxu0 0.0
    %1643 = vmatprep.subr.mxu0 0.0
    %1644 = vmatpush1.msra.mxu0 0.0
    %1645 = vmatprep.subr.mxu0 0.0
    %1646 = vmatpush1.msra.mxu0 0.0
    %1647 = vmatprep.subr.mxu0 0.0
    %1648 = vmatpush1.msra.mxu0 0.0
    %1649 = vmatprep.subr.mxu0 0.0
    %1650 = vmatpush1.msra.mxu0 0.0
    %1651 = vmatprep.subr.mxu0 0.0
    %1652 = vmatpush1.msra.mxu0 0.0
    %1653 = vmatprep.subr.mxu0 0.0
    %1654 = vmatpush1.msra.mxu0 0.0
    %1655 = vmatprep.subr.mxu0 0.0
    %1656 = vmatpush1.msra.mxu0 0.0
    %1657 = vmatprep.subr.mxu0 0.0
    %1658 = vmatpush1.msra.mxu0 0.0
    %1659 = vmatprep.subr.mxu0 0.0
    %1660 = vmatpush1.msra.mxu0 0.0
    %1661 = vmatprep.subr.mxu0 0.0
    %1662 = vmatpush1.msra.mxu0 %v1626
    %1663 = vmatprep.subr.mxu0 0.0
    %1664 = vmatpush2.msra.mxu0 0.0
    %1665 = vmatprep.subr.mxu0 0.0
    %1666 = vmatpush2.msra.mxu0 0.0
    %1667 = vmatprep.subr.mxu0 0.0
    %1668 = vmatpush2.msra.mxu0 0.0
    %1669 = vmatprep.subr.mxu0 0.0
    %1670 = vmatpush2.msra.mxu0 0.0
    %1671 = vmatprep.subr.mxu0 0.0
    %1672 = vmatpush2.msra.mxu0 0.0
    %1673 = vmatprep.subr.mxu0 0.0
    %1674 = vmatpush2.msra.mxu0 0.0
    %1675 = vmatprep.subr.mxu0 0.0
    %1676 = vmatpush2.msra.mxu0 0.0
    %1677 = vmatprep.subr.mxu0 0.0
    %1678 = vmatpush2.msra.mxu0 0.0
    %1679 = vmatprep.subr.mxu0 0.0
    %1680 = vmatpush2.msra.mxu0 0.0
    %1681 = vmatprep.subr.mxu0 0.0
    %1682 = vmatpush2.msra.mxu0 0.0
    %1683 = vmatprep.subr.mxu0 0.0
    %1684 = vmatpush2.msra.mxu0 0.0
    %1685 = vmatprep.subr.mxu0 0.0
    %1686 = vmatpush2.msra.mxu0 0.0
    %1687 = vmatprep.subr.mxu0 0.0
    %1688 = vmatpush2.msra.mxu0 0.0
    %1689 = vmatprep.subr.mxu0 0.0
    %1690 = vmatpush2.msra.mxu0 0.0
    %1691 = vmatprep.subr.mxu0 0.0
    %1692 = vmatpush2.msra.mxu0 0.0
    %1693 = vmatprep.subr.mxu0 0.0
    %1694 = vmatpush2.msra.mxu0 0.0
    %1695 = vmatprep.mubr.f32.mxu0 0.0
    %1696 = vmatmul.mubr.f32.gmra.mxu0 %v1629
    %v1697 = vpop.f32.mrf.mxu0
    %v1698 = vadd.f32 0.0, %v1697
    %v1699 = vpop.f32.mrf.mxu0
    %1700 = vdwg.mxu0
    %1701 = vrot.lane.b32.xlu0 %v456, 112
    %v1702 = vpop.permute.xlu0 %1701
    %v1705 = vsel %vm831, %v1543, 0
    %1707 = vmatprep.subr.mxu0 0.0
    %1708 = vmatpush1.msra.mxu0 0.0
    %1709 = vmatprep.subr.mxu0 0.0
    %1710 = vmatpush1.msra.mxu0 0.0
    %1711 = vmatprep.subr.mxu0 0.0
    %1712 = vmatpush1.msra.mxu0 0.0
    %1713 = vmatprep.subr.mxu0 0.0
    %1714 = vmatpush1.msra.mxu0 0.0
    %1715 = vmatprep.subr.mxu0 0.0
    %1716 = vmatpush1.msra.mxu0 0.0
    %1717 = vmatprep.subr.mxu0 0.0
    %1718 = vmatpush1.msra.mxu0 0.0
    %1719 = vmatprep.subr.mxu0 0.0
    %1720 = vmatpush1.msra.mxu0 0.0
    %1721 = vmatprep.subr.mxu0 0.0
    %1722 = vmatpush1.msra.mxu0 0.0
    %1723 = vmatprep.subr.mxu0 0.0
    %1724 = vmatpush1.msra.mxu0 0.0
    %1725 = vmatprep.subr.mxu0 0.0
    %1726 = vmatpush1.msra.mxu0 0.0
    %1727 = vmatprep.subr.mxu0 0.0
    %1728 = vmatpush1.msra.mxu0 0.0
    %1729 = vmatprep.subr.mxu0 0.0
    %1730 = vmatpush1.msra.mxu0 0.0
    %1731 = vmatprep.subr.mxu0 0.0
    %1732 = vmatpush1.msra.mxu0 0.0
    %1733 = vmatprep.subr.mxu0 0.0
    %1734 = vmatpush1.msra.mxu0 0.0
    %1735 = vmatprep.subr.mxu0 0.0
    %1736 = vmatpush1.msra.mxu0 0.0
    %1737 = vmatprep.subr.mxu0 0.0
    %1738 = vmatpush1.msra.mxu0 %v1702
    %1739 = vmatprep.subr.mxu0 0.0
    %1740 = vmatpush2.msra.mxu0 0.0
    %1741 = vmatprep.subr.mxu0 0.0
    %1742 = vmatpush2.msra.mxu0 0.0
    %1743 = vmatprep.subr.mxu0 0.0
    %1744 = vmatpush2.msra.mxu0 0.0
    %1745 = vmatprep.subr.mxu0 0.0
    %1746 = vmatpush2.msra.mxu0 0.0
    %1747 = vmatprep.subr.mxu0 0.0
    %1748 = vmatpush2.msra.mxu0 0.0
    %1749 = vmatprep.subr.mxu0 0.0
    %1750 = vmatpush2.msra.mxu0 0.0
    %1751 = vmatprep.subr.mxu0 0.0
    %1752 = vmatpush2.msra.mxu0 0.0
    %1753 = vmatprep.subr.mxu0 0.0
    %1754 = vmatpush2.msra.mxu0 0.0
    %1755 = vmatprep.subr.mxu0 0.0
    %1756 = vmatpush2.msra.mxu0 0.0
    %1757 = vmatprep.subr.mxu0 0.0
    %1758 = vmatpush2.msra.mxu0 0.0
    %1759 = vmatprep.subr.mxu0 0.0
    %1760 = vmatpush2.msra.mxu0 0.0
    %1761 = vmatprep.subr.mxu0 0.0
    %1762 = vmatpush2.msra.mxu0 0.0
    %1763 = vmatprep.subr.mxu0 0.0
    %1764 = vmatpush2.msra.mxu0 0.0
    %1765 = vmatprep.subr.mxu0 0.0
    %1766 = vmatpush2.msra.mxu0 0.0
    %1767 = vmatprep.subr.mxu0 0.0
    %1768 = vmatpush2.msra.mxu0 0.0
    %1769 = vmatprep.subr.mxu0 0.0
    %1770 = vmatpush2.msra.mxu0 0.0
    %1771 = vmatprep.mubr.f32.mxu0 0.0
    %1772 = vmatmul.mubr.f32.gmra.mxu0 %v1705
    %v1773 = vpop.f32.mrf.mxu0
    %v1774 = vadd.f32 0.0, %v1773
    %v1775 = vpop.f32.mrf.mxu0
    %1776 = vdwg.mxu0
    %1777 = vrot.lane.b32.xlu0 %v526, 112
    %v1778 = vpop.permute.xlu0 %1777
    %v1781 = vsel %vm831, %v1544, 0
    %1783 = vmatprep.subr.mxu0 0.0
    %1784 = vmatpush1.msra.mxu0 0.0
    %1785 = vmatprep.subr.mxu0 0.0
    %1786 = vmatpush1.msra.mxu0 0.0
    %1787 = vmatprep.subr.mxu0 0.0
    %1788 = vmatpush1.msra.mxu0 0.0
    %1789 = vmatprep.subr.mxu0 0.0
    %1790 = vmatpush1.msra.mxu0 0.0
    %1791 = vmatprep.subr.mxu0 0.0
    %1792 = vmatpush1.msra.mxu0 0.0
    %1793 = vmatprep.subr.mxu0 0.0
    %1794 = vmatpush1.msra.mxu0 0.0
    %1795 = vmatprep.subr.mxu0 0.0
    %1796 = vmatpush1.msra.mxu0 0.0
    %1797 = vmatprep.subr.mxu0 0.0
    %1798 = vmatpush1.msra.mxu0 0.0
    %1799 = vmatprep.subr.mxu0 0.0
    %1800 = vmatpush1.msra.mxu0 0.0
    %1801 = vmatprep.subr.mxu0 0.0
    %1802 = vmatpush1.msra.mxu0 0.0
    %1803 = vmatprep.subr.mxu0 0.0
    %1804 = vmatpush1.msra.mxu0 0.0
    %1805 = vmatprep.subr.mxu0 0.0
    %1806 = vmatpush1.msra.mxu0 0.0
    %1807 = vmatprep.subr.mxu0 0.0
    %1808 = vmatpush1.msra.mxu0 0.0
    %1809 = vmatprep.subr.mxu0 0.0
    %1810 = vmatpush1.msra.mxu0 0.0
    %1811 = vmatprep.subr.mxu0 0.0
    %1812 = vmatpush1.msra.mxu0 0.0
    %1813 = vmatprep.subr.mxu0 0.0
    %1814 = vmatpush1.msra.mxu0 %v1778
    %1815 = vmatprep.subr.mxu0 0.0
    %1816 = vmatpush2.msra.mxu0 0.0
    %1817 = vmatprep.subr.mxu0 0.0
    %1818 = vmatpush2.msra.mxu0 0.0
    %1819 = vmatprep.subr.mxu0 0.0
    %1820 = vmatpush2.msra.mxu0 0.0
    %1821 = vmatprep.subr.mxu0 0.0
    %1822 = vmatpush2.msra.mxu0 0.0
    %1823 = vmatprep.subr.mxu0 0.0
    %1824 = vmatpush2.msra.mxu0 0.0
    %1825 = vmatprep.subr.mxu0 0.0
    %1826 = vmatpush2.msra.mxu0 0.0
    %1827 = vmatprep.subr.mxu0 0.0
    %1828 = vmatpush2.msra.mxu0 0.0
    %1829 = vmatprep.subr.mxu0 0.0
    %1830 = vmatpush2.msra.mxu0 0.0
    %1831 = vmatprep.subr.mxu0 0.0
    %1832 = vmatpush2.msra.mxu0 0.0
    %1833 = vmatprep.subr.mxu0 0.0
    %1834 = vmatpush2.msra.mxu0 0.0
    %1835 = vmatprep.subr.mxu0 0.0
    %1836 = vmatpush2.msra.mxu0 0.0
    %1837 = vmatprep.subr.mxu0 0.0
    %1838 = vmatpush2.msra.mxu0 0.0
    %1839 = vmatprep.subr.mxu0 0.0
    %1840 = vmatpush2.msra.mxu0 0.0
    %1841 = vmatprep.subr.mxu0 0.0
    %1842 = vmatpush2.msra.mxu0 0.0
    %1843 = vmatprep.subr.mxu0 0.0
    %1844 = vmatpush2.msra.mxu0 0.0
    %1845 = vmatprep.subr.mxu0 0.0
    %1846 = vmatpush2.msra.mxu0 0.0
    %1847 = vmatprep.mubr.f32.mxu0 0.0
    %1848 = vmatmul.mubr.f32.gmra.mxu0 %v1781
    %v1849 = vpop.f32.mrf.mxu0
    %v1850 = vadd.f32 0.0, %v1849
    %v1851 = vpop.f32.mrf.mxu0
    %1852 = vdwg.mxu0
    %1853 = vrot.lane.b32.xlu0 %v599, 112
    %v1854 = vpop.permute.xlu0 %1853
    %v1857 = vsel %vm831, %v1545, 0
    %1859 = vmatprep.subr.mxu0 0.0
    %1860 = vmatpush1.msra.mxu0 0.0
    %1861 = vmatprep.subr.mxu0 0.0
    %1862 = vmatpush1.msra.mxu0 0.0
    %1863 = vmatprep.subr.mxu0 0.0
    %1864 = vmatpush1.msra.mxu0 0.0
    %1865 = vmatprep.subr.mxu0 0.0
    %1866 = vmatpush1.msra.mxu0 0.0
    %1867 = vmatprep.subr.mxu0 0.0
    %1868 = vmatpush1.msra.mxu0 0.0
    %1869 = vmatprep.subr.mxu0 0.0
    %1870 = vmatpush1.msra.mxu0 0.0
    %1871 = vmatprep.subr.mxu0 0.0
    %1872 = vmatpush1.msra.mxu0 0.0
    %1873 = vmatprep.subr.mxu0 0.0
    %1874 = vmatpush1.msra.mxu0 0.0
    %1875 = vmatprep.subr.mxu0 0.0
    %1876 = vmatpush1.msra.mxu0 0.0
    %1877 = vmatprep.subr.mxu0 0.0
    %1878 = vmatpush1.msra.mxu0 0.0
    %1879 = vmatprep.subr.mxu0 0.0
    %1880 = vmatpush1.msra.mxu0 0.0
    %1881 = vmatprep.subr.mxu0 0.0
    %1882 = vmatpush1.msra.mxu0 0.0
    %1883 = vmatprep.subr.mxu0 0.0
    %1884 = vmatpush1.msra.mxu0 0.0
    %1885 = vmatprep.subr.mxu0 0.0
    %1886 = vmatpush1.msra.mxu0 0.0
    %1887 = vmatprep.subr.mxu0 0.0
    %1888 = vmatpush1.msra.mxu0 0.0
    %1889 = vmatprep.subr.mxu0 0.0
    %1890 = vmatpush1.msra.mxu0 %v1854
    %1891 = vmatprep.subr.mxu0 0.0
    %1892 = vmatpush2.msra.mxu0 0.0
    %1893 = vmatprep.subr.mxu0 0.0
    %1894 = vmatpush2.msra.mxu0 0.0
    %1895 = vmatprep.subr.mxu0 0.0
    %1896 = vmatpush2.msra.mxu0 0.0
    %1897 = vmatprep.subr.mxu0 0.0
    %1898 = vmatpush2.msra.mxu0 0.0
    %1899 = vmatprep.subr.mxu0 0.0
    %1900 = vmatpush2.msra.mxu0 0.0
    %1901 = vmatprep.subr.mxu0 0.0
    %1902 = vmatpush2.msra.mxu0 0.0
    %1903 = vmatprep.subr.mxu0 0.0
    %1904 = vmatpush2.msra.mxu0 0.0
    %1905 = vmatprep.subr.mxu0 0.0
    %1906 = vmatpush2.msra.mxu0 0.0
    %1907 = vmatprep.subr.mxu0 0.0
    %1908 = vmatpush2.msra.mxu0 0.0
    %1909 = vmatprep.subr.mxu0 0.0
    %1910 = vmatpush2.msra.mxu0 0.0
    %1911 = vmatprep.subr.mxu0 0.0
    %1912 = vmatpush2.msra.mxu0 0.0
    %1913 = vmatprep.subr.mxu0 0.0
    %1914 = vmatpush2.msra.mxu0 0.0
    %1915 = vmatprep.subr.mxu0 0.0
    %1916 = vmatpush2.msra.mxu0 0.0
    %1917 = vmatprep.subr.mxu0 0.0
    %1918 = vmatpush2.msra.mxu0 0.0
    %1919 = vmatprep.subr.mxu0 0.0
    %1920 = vmatpush2.msra.mxu0 0.0
    %1921 = vmatprep.subr.mxu0 0.0
    %1922 = vmatpush2.msra.mxu0 0.0
    %1923 = vmatprep.mubr.f32.mxu0 0.0
    %1924 = vmatmul.mubr.f32.gmra.mxu0 %v1857
    %v1925 = vpop.f32.mrf.mxu0
    %v1926 = vadd.f32 0.0, %v1925
    %v1927 = vpop.f32.mrf.mxu0
    %1928 = vdwg.mxu0
    %1929 = vrot.lane.b32.xlu0 %v669, 112
    %v1930 = vpop.permute.xlu0 %1929
    %v1933 = vsel %vm831, %v1546, 0
    %1935 = vmatprep.subr.mxu0 0.0
    %1936 = vmatpush1.msra.mxu0 0.0
    %1937 = vmatprep.subr.mxu0 0.0
    %1938 = vmatpush1.msra.mxu0 0.0
    %1939 = vmatprep.subr.mxu0 0.0
    %1940 = vmatpush1.msra.mxu0 0.0
    %1941 = vmatprep.subr.mxu0 0.0
    %1942 = vmatpush1.msra.mxu0 0.0
    %1943 = vmatprep.subr.mxu0 0.0
    %1944 = vmatpush1.msra.mxu0 0.0
    %1945 = vmatprep.subr.mxu0 0.0
    %1946 = vmatpush1.msra.mxu0 0.0
    %1947 = vmatprep.subr.mxu0 0.0
    %1948 = vmatpush1.msra.mxu0 0.0
    %1949 = vmatprep.subr.mxu0 0.0
    %1950 = vmatpush1.msra.mxu0 0.0
    %1951 = vmatprep.subr.mxu0 0.0
    %1952 = vmatpush1.msra.mxu0 0.0
    %1953 = vmatprep.subr.mxu0 0.0
    %1954 = vmatpush1.msra.mxu0 0.0
    %1955 = vmatprep.subr.mxu0 0.0
    %1956 = vmatpush1.msra.mxu0 0.0
    %1957 = vmatprep.subr.mxu0 0.0
    %1958 = vmatpush1.msra.mxu0 0.0
    %1959 = vmatprep.subr.mxu0 0.0
    %1960 = vmatpush1.msra.mxu0 0.0
    %1961 = vmatprep.subr.mxu0 0.0
    %1962 = vmatpush1.msra.mxu0 0.0
    %1963 = vmatprep.subr.mxu0 0.0
    %1964 = vmatpush1.msra.mxu0 0.0
    %1965 = vmatprep.subr.mxu0 0.0
    %1966 = vmatpush1.msra.mxu0 %v1930
    %1967 = vmatprep.subr.mxu0 0.0
    %1968 = vmatpush2.msra.mxu0 0.0
    %1969 = vmatprep.subr.mxu0 0.0
    %1970 = vmatpush2.msra.mxu0 0.0
    %1971 = vmatprep.subr.mxu0 0.0
    %1972 = vmatpush2.msra.mxu0 0.0
    %1973 = vmatprep.subr.mxu0 0.0
    %1974 = vmatpush2.msra.mxu0 0.0
    %1975 = vmatprep.subr.mxu0 0.0
    %1976 = vmatpush2.msra.mxu0 0.0
    %1977 = vmatprep.subr.mxu0 0.0
    %1978 = vmatpush2.msra.mxu0 0.0
    %1979 = vmatprep.subr.mxu0 0.0
    %1980 = vmatpush2.msra.mxu0 0.0
    %1981 = vmatprep.subr.mxu0 0.0
    %1982 = vmatpush2.msra.mxu0 0.0
    %1983 = vmatprep.subr.mxu0 0.0
    %1984 = vmatpush2.msra.mxu0 0.0
    %1985 = vmatprep.subr.mxu0 0.0
    %1986 = vmatpush2.msra.mxu0 0.0
    %1987 = vmatprep.subr.mxu0 0.0
    %1988 = vmatpush2.msra.mxu0 0.0
    %1989 = vmatprep.subr.mxu0 0.0
    %1990 = vmatpush2.msra.mxu0 0.0
    %1991 = vmatprep.subr.mxu0 0.0
    %1992 = vmatpush2.msra.mxu0 0.0
    %1993 = vmatprep.subr.mxu0 0.0
    %1994 = vmatpush2.msra.mxu0 0.0
    %1995 = vmatprep.subr.mxu0 0.0
    %1996 = vmatpush2.msra.mxu0 0.0
    %1997 = vmatprep.subr.mxu0 0.0
    %1998 = vmatpush2.msra.mxu0 0.0
    %1999 = vmatprep.mubr.f32.mxu0 0.0
    %2000 = vmatmul.mubr.f32.gmra.mxu0 %v1933
    %v2001 = vpop.f32.mrf.mxu0
    %v2002 = vadd.f32 0.0, %v2001
    %v2003 = vpop.f32.mrf.mxu0
    %2004 = vdwg.mxu0
    %2005 = vrot.lane.b32.xlu0 %v739, 112
    %v2006 = vpop.permute.xlu0 %2005
    %v2009 = vsel %vm831, %v1547, 0
    %2011 = vmatprep.subr.mxu0 0.0
    %2012 = vmatpush1.msra.mxu0 0.0
    %2013 = vmatprep.subr.mxu0 0.0
    %2014 = vmatpush1.msra.mxu0 0.0
    %2015 = vmatprep.subr.mxu0 0.0
    %2016 = vmatpush1.msra.mxu0 0.0
    %2017 = vmatprep.subr.mxu0 0.0
    %2018 = vmatpush1.msra.mxu0 0.0
    %2019 = vmatprep.subr.mxu0 0.0
    %2020 = vmatpush1.msra.mxu0 0.0
    %2021 = vmatprep.subr.mxu0 0.0
    %2022 = vmatpush1.msra.mxu0 0.0
    %2023 = vmatprep.subr.mxu0 0.0
    %2024 = vmatpush1.msra.mxu0 0.0
    %2025 = vmatprep.subr.mxu0 0.0
    %2026 = vmatpush1.msra.mxu0 0.0
    %2027 = vmatprep.subr.mxu0 0.0
    %2028 = vmatpush1.msra.mxu0 0.0
    %2029 = vmatprep.subr.mxu0 0.0
    %2030 = vmatpush1.msra.mxu0 0.0
    %2031 = vmatprep.subr.mxu0 0.0
    %2032 = vmatpush1.msra.mxu0 0.0
    %2033 = vmatprep.subr.mxu0 0.0
    %2034 = vmatpush1.msra.mxu0 0.0
    %2035 = vmatprep.subr.mxu0 0.0
    %2036 = vmatpush1.msra.mxu0 0.0
    %2037 = vmatprep.subr.mxu0 0.0
    %2038 = vmatpush1.msra.mxu0 0.0
    %2039 = vmatprep.subr.mxu0 0.0
    %2040 = vmatpush1.msra.mxu0 0.0
    %2041 = vmatprep.subr.mxu0 0.0
    %2042 = vmatpush1.msra.mxu0 %v2006
    %2043 = vmatprep.subr.mxu0 0.0
    %2044 = vmatpush2.msra.mxu0 0.0
    %2045 = vmatprep.subr.mxu0 0.0
    %2046 = vmatpush2.msra.mxu0 0.0
    %2047 = vmatprep.subr.mxu0 0.0
    %2048 = vmatpush2.msra.mxu0 0.0
    %2049 = vmatprep.subr.mxu0 0.0
    %2050 = vmatpush2.msra.mxu0 0.0
    %2051 = vmatprep.subr.mxu0 0.0
    %2052 = vmatpush2.msra.mxu0 0.0
    %2053 = vmatprep.subr.mxu0 0.0
    %2054 = vmatpush2.msra.mxu0 0.0
    %2055 = vmatprep.subr.mxu0 0.0
    %2056 = vmatpush2.msra.mxu0 0.0
    %2057 = vmatprep.subr.mxu0 0.0
    %2058 = vmatpush2.msra.mxu0 0.0
    %2059 = vmatprep.subr.mxu0 0.0
    %2060 = vmatpush2.msra.mxu0 0.0
    %2061 = vmatprep.subr.mxu0 0.0
    %2062 = vmatpush2.msra.mxu0 0.0
    %2063 = vmatprep.subr.mxu0 0.0
    %2064 = vmatpush2.msra.mxu0 0.0
    %2065 = vmatprep.subr.mxu0 0.0
    %2066 = vmatpush2.msra.mxu0 0.0
    %2067 = vmatprep.subr.mxu0 0.0
    %2068 = vmatpush2.msra.mxu0 0.0
    %2069 = vmatprep.subr.mxu0 0.0
    %2070 = vmatpush2.msra.mxu0 0.0
    %2071 = vmatprep.subr.mxu0 0.0
    %2072 = vmatpush2.msra.mxu0 0.0
    %2073 = vmatprep.subr.mxu0 0.0
    %2074 = vmatpush2.msra.mxu0 0.0
    %2075 = vmatprep.mubr.f32.mxu0 0.0
    %2076 = vmatmul.mubr.f32.gmra.mxu0 %v2009
    %v2077 = vpop.f32.mrf.mxu0
    %v2078 = vadd.f32 0.0, %v2077
    %v2079 = vpop.f32.mrf.mxu0
    %2080 = vdwg.mxu0
    %2081 = vrot.lane.b32.xlu0 %v809, 112
    %v2082 = vpop.permute.xlu0 %2081
    %v2085 = vsel %vm831, %v1548, 0
    %2087 = vmatprep.subr.mxu0 0.0
    %2088 = vmatpush1.msra.mxu0 0.0
    %2089 = vmatprep.subr.mxu0 0.0
    %2090 = vmatpush1.msra.mxu0 0.0
    %2091 = vmatprep.subr.mxu0 0.0
    %2092 = vmatpush1.msra.mxu0 0.0
    %2093 = vmatprep.subr.mxu0 0.0
    %2094 = vmatpush1.msra.mxu0 0.0
    %2095 = vmatprep.subr.mxu0 0.0
    %2096 = vmatpush1.msra.mxu0 0.0
    %2097 = vmatprep.subr.mxu0 0.0
    %2098 = vmatpush1.msra.mxu0 0.0
    %2099 = vmatprep.subr.mxu0 0.0
    %2100 = vmatpush1.msra.mxu0 0.0
    %2101 = vmatprep.subr.mxu0 0.0
    %2102 = vmatpush1.msra.mxu0 0.0
    %2103 = vmatprep.subr.mxu0 0.0
    %2104 = vmatpush1.msra.mxu0 0.0
    %2105 = vmatprep.subr.mxu0 0.0
    %2106 = vmatpush1.msra.mxu0 0.0
    %2107 = vmatprep.subr.mxu0 0.0
    %2108 = vmatpush1.msra.mxu0 0.0
    %2109 = vmatprep.subr.mxu0 0.0
    %2110 = vmatpush1.msra.mxu0 0.0
    %2111 = vmatprep.subr.mxu0 0.0
    %2112 = vmatpush1.msra.mxu0 0.0
    %2113 = vmatprep.subr.mxu0 0.0
    %2114 = vmatpush1.msra.mxu0 0.0
    %2115 = vmatprep.subr.mxu0 0.0
    %2116 = vmatpush1.msra.mxu0 0.0
    %2117 = vmatprep.subr.mxu0 0.0
    %2118 = vmatpush1.msra.mxu0 %v2082
    %2119 = vmatprep.subr.mxu0 0.0
    %2120 = vmatpush2.msra.mxu0 0.0
    %2121 = vmatprep.subr.mxu0 0.0
    %2122 = vmatpush2.msra.mxu0 0.0
    %2123 = vmatprep.subr.mxu0 0.0
    %2124 = vmatpush2.msra.mxu0 0.0
    %2125 = vmatprep.subr.mxu0 0.0
    %2126 = vmatpush2.msra.mxu0 0.0
    %2127 = vmatprep.subr.mxu0 0.0
    %2128 = vmatpush2.msra.mxu0 0.0
    %2129 = vmatprep.subr.mxu0 0.0
    %2130 = vmatpush2.msra.mxu0 0.0
    %2131 = vmatprep.subr.mxu0 0.0
    %2132 = vmatpush2.msra.mxu0 0.0
    %2133 = vmatprep.subr.mxu0 0.0
    %2134 = vmatpush2.msra.mxu0 0.0
    %2135 = vmatprep.subr.mxu0 0.0
    %2136 = vmatpush2.msra.mxu0 0.0
    %2137 = vmatprep.subr.mxu0 0.0
    %2138 = vmatpush2.msra.mxu0 0.0
    %2139 = vmatprep.subr.mxu0 0.0
    %2140 = vmatpush2.msra.mxu0 0.0
    %2141 = vmatprep.subr.mxu0 0.0
    %2142 = vmatpush2.msra.mxu0 0.0
    %2143 = vmatprep.subr.mxu0 0.0
    %2144 = vmatpush2.msra.mxu0 0.0
    %2145 = vmatprep.subr.mxu0 0.0
    %2146 = vmatpush2.msra.mxu0 0.0
    %2147 = vmatprep.subr.mxu0 0.0
    %2148 = vmatpush2.msra.mxu0 0.0
    %2149 = vmatprep.subr.mxu0 0.0
    %2150 = vmatpush2.msra.mxu0 0.0
    %2151 = vmatprep.mubr.f32.mxu0 0.0
    %2152 = vmatmul.mubr.f32.gmra.mxu0 %v2085
    %v2153 = vpop.f32.mrf.mxu0
    %v2154 = vadd.f32 0.0, %v2153
    %v2155 = vpop.f32.mrf.mxu0
    %2156 = vdwg.mxu0
    %v2158 = vsel %vm831, %v1622, 0
    %2160 = vmatprep.subr.mxu0 0.0
    %2161 = vmatpush1.msra.mxu0 0.0
    %2162 = vmatprep.subr.mxu0 0.0
    %2163 = vmatpush1.msra.mxu0 0.0
    %2164 = vmatprep.subr.mxu0 0.0
    %2165 = vmatpush1.msra.mxu0 0.0
    %2166 = vmatprep.subr.mxu0 0.0
    %2167 = vmatpush1.msra.mxu0 0.0
    %2168 = vmatprep.subr.mxu0 0.0
    %2169 = vmatpush1.msra.mxu0 0.0
    %2170 = vmatprep.subr.mxu0 0.0
    %2171 = vmatpush1.msra.mxu0 0.0
    %2172 = vmatprep.subr.mxu0 0.0
    %2173 = vmatpush1.msra.mxu0 0.0
    %2174 = vmatprep.subr.mxu0 0.0
    %2175 = vmatpush1.msra.mxu0 0.0
    %2176 = vmatprep.subr.mxu0 0.0
    %2177 = vmatpush1.msra.mxu0 0.0
    %2178 = vmatprep.subr.mxu0 0.0
    %2179 = vmatpush1.msra.mxu0 0.0
    %2180 = vmatprep.subr.mxu0 0.0
    %2181 = vmatpush1.msra.mxu0 0.0
    %2182 = vmatprep.subr.mxu0 0.0
    %2183 = vmatpush1.msra.mxu0 0.0
    %2184 = vmatprep.subr.mxu0 0.0
    %2185 = vmatpush1.msra.mxu0 0.0
    %2186 = vmatprep.subr.mxu0 0.0
    %2187 = vmatpush1.msra.mxu0 0.0
    %2188 = vmatprep.subr.mxu0 0.0
    %2189 = vmatpush1.msra.mxu0 0.0
    %2190 = vmatprep.subr.mxu0 0.0
    %2191 = vmatpush1.msra.mxu0 %v179
    %2192 = vmatprep.subr.mxu0 0.0
    %2193 = vmatpush2.msra.mxu0 0.0
    %2194 = vmatprep.subr.mxu0 0.0
    %2195 = vmatpush2.msra.mxu0 0.0
    %2196 = vmatprep.subr.mxu0 0.0
    %2197 = vmatpush2.msra.mxu0 0.0
    %2198 = vmatprep.subr.mxu0 0.0
    %2199 = vmatpush2.msra.mxu0 0.0
    %2200 = vmatprep.subr.mxu0 0.0
    %2201 = vmatpush2.msra.mxu0 0.0
    %2202 = vmatprep.subr.mxu0 0.0
    %2203 = vmatpush2.msra.mxu0 0.0
    %2204 = vmatprep.subr.mxu0 0.0
    %2205 = vmatpush2.msra.mxu0 0.0
    %2206 = vmatprep.subr.mxu0 0.0
    %2207 = vmatpush2.msra.mxu0 0.0
    %2208 = vmatprep.subr.mxu0 0.0
    %2209 = vmatpush2.msra.mxu0 0.0
    %2210 = vmatprep.subr.mxu0 0.0
    %2211 = vmatpush2.msra.mxu0 0.0
    %2212 = vmatprep.subr.mxu0 0.0
    %2213 = vmatpush2.msra.mxu0 0.0
    %2214 = vmatprep.subr.mxu0 0.0
    %2215 = vmatpush2.msra.mxu0 0.0
    %2216 = vmatprep.subr.mxu0 0.0
    %2217 = vmatpush2.msra.mxu0 0.0
    %2218 = vmatprep.subr.mxu0 0.0
    %2219 = vmatpush2.msra.mxu0 0.0
    %2220 = vmatprep.subr.mxu0 0.0
    %2221 = vmatpush2.msra.mxu0 0.0
    %2222 = vmatprep.subr.mxu0 0.0
    %2223 = vmatpush2.msra.mxu0 0.0
    %2224 = vmatprep.mubr.f32.mxu0 0.0
    %2225 = vmatmul.mubr.f32.gmra.mxu0 %v2158
    %v2226 = vpop.f32.mrf.mxu0
    %v2227 = vadd.f32 0.0, %v2226
    %v2228 = vpop.f32.mrf.mxu0
    %2229 = vdwg.mxu0
    %v2231 = vsel %vm831, %v1698, 0
    %2233 = vmatprep.subr.mxu0 0.0
    %2234 = vmatpush1.msra.mxu0 0.0
    %2235 = vmatprep.subr.mxu0 0.0
    %2236 = vmatpush1.msra.mxu0 0.0
    %2237 = vmatprep.subr.mxu0 0.0
    %2238 = vmatpush1.msra.mxu0 0.0
    %2239 = vmatprep.subr.mxu0 0.0
    %2240 = vmatpush1.msra.mxu0 0.0
    %2241 = vmatprep.subr.mxu0 0.0
    %2242 = vmatpush1.msra.mxu0 0.0
    %2243 = vmatprep.subr.mxu0 0.0
    %2244 = vmatpush1.msra.mxu0 0.0
    %2245 = vmatprep.subr.mxu0 0.0
    %2246 = vmatpush1.msra.mxu0 0.0
    %2247 = vmatprep.subr.mxu0 0.0
    %2248 = vmatpush1.msra.mxu0 0.0
    %2249 = vmatprep.subr.mxu0 0.0
    %2250 = vmatpush1.msra.mxu0 0.0
    %2251 = vmatprep.subr.mxu0 0.0
    %2252 = vmatpush1.msra.mxu0 0.0
    %2253 = vmatprep.subr.mxu0 0.0
    %2254 = vmatpush1.msra.mxu0 0.0
    %2255 = vmatprep.subr.mxu0 0.0
    %2256 = vmatpush1.msra.mxu0 0.0
    %2257 = vmatprep.subr.mxu0 0.0
    %2258 = vmatpush1.msra.mxu0 0.0
    %2259 = vmatprep.subr.mxu0 0.0
    %2260 = vmatpush1.msra.mxu0 0.0
    %2261 = vmatprep.subr.mxu0 0.0
    %2262 = vmatpush1.msra.mxu0 0.0
    %2263 = vmatprep.subr.mxu0 0.0
    %2264 = vmatpush1.msra.mxu0 %v181
    %2265 = vmatprep.subr.mxu0 0.0
    %2266 = vmatpush2.msra.mxu0 0.0
    %2267 = vmatprep.subr.mxu0 0.0
    %2268 = vmatpush2.msra.mxu0 0.0
    %2269 = vmatprep.subr.mxu0 0.0
    %2270 = vmatpush2.msra.mxu0 0.0
    %2271 = vmatprep.subr.mxu0 0.0
    %2272 = vmatpush2.msra.mxu0 0.0
    %2273 = vmatprep.subr.mxu0 0.0
    %2274 = vmatpush2.msra.mxu0 0.0
    %2275 = vmatprep.subr.mxu0 0.0
    %2276 = vmatpush2.msra.mxu0 0.0
    %2277 = vmatprep.subr.mxu0 0.0
    %2278 = vmatpush2.msra.mxu0 0.0
    %2279 = vmatprep.subr.mxu0 0.0
    %2280 = vmatpush2.msra.mxu0 0.0
    %2281 = vmatprep.subr.mxu0 0.0
    %2282 = vmatpush2.msra.mxu0 0.0
    %2283 = vmatprep.subr.mxu0 0.0
    %2284 = vmatpush2.msra.mxu0 0.0
    %2285 = vmatprep.subr.mxu0 0.0
    %2286 = vmatpush2.msra.mxu0 0.0
    %2287 = vmatprep.subr.mxu0 0.0
    %2288 = vmatpush2.msra.mxu0 0.0
    %2289 = vmatprep.subr.mxu0 0.0
    %2290 = vmatpush2.msra.mxu0 0.0
    %2291 = vmatprep.subr.mxu0 0.0
    %2292 = vmatpush2.msra.mxu0 0.0
    %2293 = vmatprep.subr.mxu0 0.0
    %2294 = vmatpush2.msra.mxu0 0.0
    %2295 = vmatprep.subr.mxu0 0.0
    %2296 = vmatpush2.msra.mxu0 0.0
    %2297 = vmatprep.mubr.f32.mxu0 0.0
    %2298 = vmatmul.mubr.f32.gmra.mxu0 %v2231
    %v2299 = vpop.f32.mrf.mxu0
    %v2300 = vadd.f32 0.0, %v2299
    %v2301 = vpop.f32.mrf.mxu0
    %2302 = vdwg.mxu0
    %v2304 = vsel %vm831, %v1774, 0
    %2306 = vmatprep.subr.mxu0 0.0
    %2307 = vmatpush1.msra.mxu0 0.0
    %2308 = vmatprep.subr.mxu0 0.0
    %2309 = vmatpush1.msra.mxu0 0.0
    %2310 = vmatprep.subr.mxu0 0.0
    %2311 = vmatpush1.msra.mxu0 0.0
    %2312 = vmatprep.subr.mxu0 0.0
    %2313 = vmatpush1.msra.mxu0 0.0
    %2314 = vmatprep.subr.mxu0 0.0
    %2315 = vmatpush1.msra.mxu0 0.0
    %2316 = vmatprep.subr.mxu0 0.0
    %2317 = vmatpush1.msra.mxu0 0.0
    %2318 = vmatprep.subr.mxu0 0.0
    %2319 = vmatpush1.msra.mxu0 0.0
    %2320 = vmatprep.subr.mxu0 0.0
    %2321 = vmatpush1.msra.mxu0 0.0
    %2322 = vmatprep.subr.mxu0 0.0
    %2323 = vmatpush1.msra.mxu0 0.0
    %2324 = vmatprep.subr.mxu0 0.0
    %2325 = vmatpush1.msra.mxu0 0.0
    %2326 = vmatprep.subr.mxu0 0.0
    %2327 = vmatpush1.msra.mxu0 0.0
    %2328 = vmatprep.subr.mxu0 0.0
    %2329 = vmatpush1.msra.mxu0 0.0
    %2330 = vmatprep.subr.mxu0 0.0
    %2331 = vmatpush1.msra.mxu0 0.0
    %2332 = vmatprep.subr.mxu0 0.0
    %2333 = vmatpush1.msra.mxu0 0.0
    %2334 = vmatprep.subr.mxu0 0.0
    %2335 = vmatpush1.msra.mxu0 0.0
    %2336 = vmatprep.subr.mxu0 0.0
    %2337 = vmatpush1.msra.mxu0 %v183
    %2338 = vmatprep.subr.mxu0 0.0
    %2339 = vmatpush2.msra.mxu0 0.0
    %2340 = vmatprep.subr.mxu0 0.0
    %2341 = vmatpush2.msra.mxu0 0.0
    %2342 = vmatprep.subr.mxu0 0.0
    %2343 = vmatpush2.msra.mxu0 0.0
    %2344 = vmatprep.subr.mxu0 0.0
    %2345 = vmatpush2.msra.mxu0 0.0
    %2346 = vmatprep.subr.mxu0 0.0
    %2347 = vmatpush2.msra.mxu0 0.0
    %2348 = vmatprep.subr.mxu0 0.0
    %2349 = vmatpush2.msra.mxu0 0.0
    %2350 = vmatprep.subr.mxu0 0.0
    %2351 = vmatpush2.msra.mxu0 0.0
    %2352 = vmatprep.subr.mxu0 0.0
    %2353 = vmatpush2.msra.mxu0 0.0
    %2354 = vmatprep.subr.mxu0 0.0
    %2355 = vmatpush2.msra.mxu0 0.0
    %2356 = vmatprep.subr.mxu0 0.0
    %2357 = vmatpush2.msra.mxu0 0.0
    %2358 = vmatprep.subr.mxu0 0.0
    %2359 = vmatpush2.msra.mxu0 0.0
    %2360 = vmatprep.subr.mxu0 0.0
    %2361 = vmatpush2.msra.mxu0 0.0
    %2362 = vmatprep.subr.mxu0 0.0
    %2363 = vmatpush2.msra.mxu0 0.0
    %2364 = vmatprep.subr.mxu0 0.0
    %2365 = vmatpush2.msra.mxu0 0.0
    %2366 = vmatprep.subr.mxu0 0.0
    %2367 = vmatpush2.msra.mxu0 0.0
    %2368 = vmatprep.subr.mxu0 0.0
    %2369 = vmatpush2.msra.mxu0 0.0
    %2370 = vmatprep.mubr.f32.mxu0 0.0
    %2371 = vmatmul.mubr.f32.gmra.mxu0 %v2304
    %v2372 = vpop.f32.mrf.mxu0
    %v2373 = vadd.f32 0.0, %v2372
    %v2374 = vpop.f32.mrf.mxu0
    %2375 = vdwg.mxu0
    %v2377 = vsel %vm831, %v1850, 0
    %2379 = vmatprep.subr.mxu0 0.0
    %2380 = vmatpush1.msra.mxu0 0.0
    %2381 = vmatprep.subr.mxu0 0.0
    %2382 = vmatpush1.msra.mxu0 0.0
    %2383 = vmatprep.subr.mxu0 0.0
    %2384 = vmatpush1.msra.mxu0 0.0
    %2385 = vmatprep.subr.mxu0 0.0
    %2386 = vmatpush1.msra.mxu0 0.0
    %2387 = vmatprep.subr.mxu0 0.0
    %2388 = vmatpush1.msra.mxu0 0.0
    %2389 = vmatprep.subr.mxu0 0.0
    %2390 = vmatpush1.msra.mxu0 0.0
    %2391 = vmatprep.subr.mxu0 0.0
    %2392 = vmatpush1.msra.mxu0 0.0
    %2393 = vmatprep.subr.mxu0 0.0
    %2394 = vmatpush1.msra.mxu0 0.0
    %2395 = vmatprep.subr.mxu0 0.0
    %2396 = vmatpush1.msra.mxu0 0.0
    %2397 = vmatprep.subr.mxu0 0.0
    %2398 = vmatpush1.msra.mxu0 0.0
    %2399 = vmatprep.subr.mxu0 0.0
    %2400 = vmatpush1.msra.mxu0 0.0
    %2401 = vmatprep.subr.mxu0 0.0
    %2402 = vmatpush1.msra.mxu0 0.0
    %2403 = vmatprep.subr.mxu0 0.0
    %2404 = vmatpush1.msra.mxu0 0.0
    %2405 = vmatprep.subr.mxu0 0.0
    %2406 = vmatpush1.msra.mxu0 0.0
    %2407 = vmatprep.subr.mxu0 0.0
    %2408 = vmatpush1.msra.mxu0 0.0
    %2409 = vmatprep.subr.mxu0 0.0
    %2410 = vmatpush1.msra.mxu0 %v185
    %2411 = vmatprep.subr.mxu0 0.0
    %2412 = vmatpush2.msra.mxu0 0.0
    %2413 = vmatprep.subr.mxu0 0.0
    %2414 = vmatpush2.msra.mxu0 0.0
    %2415 = vmatprep.subr.mxu0 0.0
    %2416 = vmatpush2.msra.mxu0 0.0
    %2417 = vmatprep.subr.mxu0 0.0
    %2418 = vmatpush2.msra.mxu0 0.0
    %2419 = vmatprep.subr.mxu0 0.0
    %2420 = vmatpush2.msra.mxu0 0.0
    %2421 = vmatprep.subr.mxu0 0.0
    %2422 = vmatpush2.msra.mxu0 0.0
    %2423 = vmatprep.subr.mxu0 0.0
    %2424 = vmatpush2.msra.mxu0 0.0
    %2425 = vmatprep.subr.mxu0 0.0
    %2426 = vmatpush2.msra.mxu0 0.0
    %2427 = vmatprep.subr.mxu0 0.0
    %2428 = vmatpush2.msra.mxu0 0.0
    %2429 = vmatprep.subr.mxu0 0.0
    %2430 = vmatpush2.msra.mxu0 0.0
    %2431 = vmatprep.subr.mxu0 0.0
    %2432 = vmatpush2.msra.mxu0 0.0
    %2433 = vmatprep.subr.mxu0 0.0
    %2434 = vmatpush2.msra.mxu0 0.0
    %2435 = vmatprep.subr.mxu0 0.0
    %2436 = vmatpush2.msra.mxu0 0.0
    %2437 = vmatprep.subr.mxu0 0.0
    %2438 = vmatpush2.msra.mxu0 0.0
    %2439 = vmatprep.subr.mxu0 0.0
    %2440 = vmatpush2.msra.mxu0 0.0
    %2441 = vmatprep.subr.mxu0 0.0
    %2442 = vmatpush2.msra.mxu0 0.0
    %2443 = vmatprep.mubr.f32.mxu0 0.0
    %2444 = vmatmul.mubr.f32.gmra.mxu0 %v2377
    %v2445 = vpop.f32.mrf.mxu0
    %v2446 = vadd.f32 0.0, %v2445
    %v2447 = vpop.f32.mrf.mxu0
    %2448 = vdwg.mxu0
    %v2450 = vsel %vm831, %v1926, 0
    %2452 = vmatprep.subr.mxu0 0.0
    %2453 = vmatpush1.msra.mxu0 0.0
    %2454 = vmatprep.subr.mxu0 0.0
    %2455 = vmatpush1.msra.mxu0 0.0
    %2456 = vmatprep.subr.mxu0 0.0
    %2457 = vmatpush1.msra.mxu0 0.0
    %2458 = vmatprep.subr.mxu0 0.0
    %2459 = vmatpush1.msra.mxu0 0.0
    %2460 = vmatprep.subr.mxu0 0.0
    %2461 = vmatpush1.msra.mxu0 0.0
    %2462 = vmatprep.subr.mxu0 0.0
    %2463 = vmatpush1.msra.mxu0 0.0
    %2464 = vmatprep.subr.mxu0 0.0
    %2465 = vmatpush1.msra.mxu0 0.0
    %2466 = vmatprep.subr.mxu0 0.0
    %2467 = vmatpush1.msra.mxu0 0.0
    %2468 = vmatprep.subr.mxu0 0.0
    %2469 = vmatpush1.msra.mxu0 0.0
    %2470 = vmatprep.subr.mxu0 0.0
    %2471 = vmatpush1.msra.mxu0 0.0
    %2472 = vmatprep.subr.mxu0 0.0
    %2473 = vmatpush1.msra.mxu0 0.0
    %2474 = vmatprep.subr.mxu0 0.0
    %2475 = vmatpush1.msra.mxu0 0.0
    %2476 = vmatprep.subr.mxu0 0.0
    %2477 = vmatpush1.msra.mxu0 0.0
    %2478 = vmatprep.subr.mxu0 0.0
    %2479 = vmatpush1.msra.mxu0 0.0
    %2480 = vmatprep.subr.mxu0 0.0
    %2481 = vmatpush1.msra.mxu0 0.0
    %2482 = vmatprep.subr.mxu0 0.0
    %2483 = vmatpush1.msra.mxu0 %v187
    %2484 = vmatprep.subr.mxu0 0.0
    %2485 = vmatpush2.msra.mxu0 0.0
    %2486 = vmatprep.subr.mxu0 0.0
    %2487 = vmatpush2.msra.mxu0 0.0
    %2488 = vmatprep.subr.mxu0 0.0
    %2489 = vmatpush2.msra.mxu0 0.0
    %2490 = vmatprep.subr.mxu0 0.0
    %2491 = vmatpush2.msra.mxu0 0.0
    %2492 = vmatprep.subr.mxu0 0.0
    %2493 = vmatpush2.msra.mxu0 0.0
    %2494 = vmatprep.subr.mxu0 0.0
    %2495 = vmatpush2.msra.mxu0 0.0
    %2496 = vmatprep.subr.mxu0 0.0
    %2497 = vmatpush2.msra.mxu0 0.0
    %2498 = vmatprep.subr.mxu0 0.0
    %2499 = vmatpush2.msra.mxu0 0.0
    %2500 = vmatprep.subr.mxu0 0.0
    %2501 = vmatpush2.msra.mxu0 0.0
    %2502 = vmatprep.subr.mxu0 0.0
    %2503 = vmatpush2.msra.mxu0 0.0
    %2504 = vmatprep.subr.mxu0 0.0
    %2505 = vmatpush2.msra.mxu0 0.0
    %2506 = vmatprep.subr.mxu0 0.0
    %2507 = vmatpush2.msra.mxu0 0.0
    %2508 = vmatprep.subr.mxu0 0.0
    %2509 = vmatpush2.msra.mxu0 0.0
    %2510 = vmatprep.subr.mxu0 0.0
    %2511 = vmatpush2.msra.mxu0 0.0
    %2512 = vmatprep.subr.mxu0 0.0
    %2513 = vmatpush2.msra.mxu0 0.0
    %2514 = vmatprep.subr.mxu0 0.0
    %2515 = vmatpush2.msra.mxu0 0.0
    %2516 = vmatprep.mubr.f32.mxu0 0.0
    %2517 = vmatmul.mubr.f32.gmra.mxu0 %v2450
    %v2518 = vpop.f32.mrf.mxu0
    %v2519 = vadd.f32 0.0, %v2518
    %v2520 = vpop.f32.mrf.mxu0
    %2521 = vdwg.mxu0
    %v2523 = vsel %vm831, %v2002, 0
    %2525 = vmatprep.subr.mxu0 0.0
    %2526 = vmatpush1.msra.mxu0 0.0
    %2527 = vmatprep.subr.mxu0 0.0
    %2528 = vmatpush1.msra.mxu0 0.0
    %2529 = vmatprep.subr.mxu0 0.0
    %2530 = vmatpush1.msra.mxu0 0.0
    %2531 = vmatprep.subr.mxu0 0.0
    %2532 = vmatpush1.msra.mxu0 0.0
    %2533 = vmatprep.subr.mxu0 0.0
    %2534 = vmatpush1.msra.mxu0 0.0
    %2535 = vmatprep.subr.mxu0 0.0
    %2536 = vmatpush1.msra.mxu0 0.0
    %2537 = vmatprep.subr.mxu0 0.0
    %2538 = vmatpush1.msra.mxu0 0.0
    %2539 = vmatprep.subr.mxu0 0.0
    %2540 = vmatpush1.msra.mxu0 0.0
    %2541 = vmatprep.subr.mxu0 0.0
    %2542 = vmatpush1.msra.mxu0 0.0
    %2543 = vmatprep.subr.mxu0 0.0
    %2544 = vmatpush1.msra.mxu0 0.0
    %2545 = vmatprep.subr.mxu0 0.0
    %2546 = vmatpush1.msra.mxu0 0.0
    %2547 = vmatprep.subr.mxu0 0.0
    %2548 = vmatpush1.msra.mxu0 0.0
    %2549 = vmatprep.subr.mxu0 0.0
    %2550 = vmatpush1.msra.mxu0 0.0
    %2551 = vmatprep.subr.mxu0 0.0
    %2552 = vmatpush1.msra.mxu0 0.0
    %2553 = vmatprep.subr.mxu0 0.0
    %2554 = vmatpush1.msra.mxu0 0.0
    %2555 = vmatprep.subr.mxu0 0.0
    %2556 = vmatpush1.msra.mxu0 %v189
    %2557 = vmatprep.subr.mxu0 0.0
    %2558 = vmatpush2.msra.mxu0 0.0
    %2559 = vmatprep.subr.mxu0 0.0
    %2560 = vmatpush2.msra.mxu0 0.0
    %2561 = vmatprep.subr.mxu0 0.0
    %2562 = vmatpush2.msra.mxu0 0.0
    %2563 = vmatprep.subr.mxu0 0.0
    %2564 = vmatpush2.msra.mxu0 0.0
    %2565 = vmatprep.subr.mxu0 0.0
    %2566 = vmatpush2.msra.mxu0 0.0
    %2567 = vmatprep.subr.mxu0 0.0
    %2568 = vmatpush2.msra.mxu0 0.0
    %2569 = vmatprep.subr.mxu0 0.0
    %2570 = vmatpush2.msra.mxu0 0.0
    %2571 = vmatprep.subr.mxu0 0.0
    %2572 = vmatpush2.msra.mxu0 0.0
    %2573 = vmatprep.subr.mxu0 0.0
    %2574 = vmatpush2.msra.mxu0 0.0
    %2575 = vmatprep.subr.mxu0 0.0
    %2576 = vmatpush2.msra.mxu0 0.0
    %2577 = vmatprep.subr.mxu0 0.0
    %2578 = vmatpush2.msra.mxu0 0.0
    %2579 = vmatprep.subr.mxu0 0.0
    %2580 = vmatpush2.msra.mxu0 0.0
    %2581 = vmatprep.subr.mxu0 0.0
    %2582 = vmatpush2.msra.mxu0 0.0
    %2583 = vmatprep.subr.mxu0 0.0
    %2584 = vmatpush2.msra.mxu0 0.0
    %2585 = vmatprep.subr.mxu0 0.0
    %2586 = vmatpush2.msra.mxu0 0.0
    %2587 = vmatprep.subr.mxu0 0.0
    %2588 = vmatpush2.msra.mxu0 0.0
    %2589 = vmatprep.mubr.f32.mxu0 0.0
    %2590 = vmatmul.mubr.f32.gmra.mxu0 %v2523
    %v2591 = vpop.f32.mrf.mxu0
    %v2592 = vadd.f32 0.0, %v2591
    %v2593 = vpop.f32.mrf.mxu0
    %2594 = vdwg.mxu0
    %v2596 = vsel %vm831, %v2078, 0
    %2598 = vmatprep.subr.mxu0 0.0
    %2599 = vmatpush1.msra.mxu0 0.0
    %2600 = vmatprep.subr.mxu0 0.0
    %2601 = vmatpush1.msra.mxu0 0.0
    %2602 = vmatprep.subr.mxu0 0.0
    %2603 = vmatpush1.msra.mxu0 0.0
    %2604 = vmatprep.subr.mxu0 0.0
    %2605 = vmatpush1.msra.mxu0 0.0
    %2606 = vmatprep.subr.mxu0 0.0
    %2607 = vmatpush1.msra.mxu0 0.0
    %2608 = vmatprep.subr.mxu0 0.0
    %2609 = vmatpush1.msra.mxu0 0.0
    %2610 = vmatprep.subr.mxu0 0.0
    %2611 = vmatpush1.msra.mxu0 0.0
    %2612 = vmatprep.subr.mxu0 0.0
    %2613 = vmatpush1.msra.mxu0 0.0
    %2614 = vmatprep.subr.mxu0 0.0
    %2615 = vmatpush1.msra.mxu0 0.0
    %2616 = vmatprep.subr.mxu0 0.0
    %2617 = vmatpush1.msra.mxu0 0.0
    %2618 = vmatprep.subr.mxu0 0.0
    %2619 = vmatpush1.msra.mxu0 0.0
    %2620 = vmatprep.subr.mxu0 0.0
    %2621 = vmatpush1.msra.mxu0 0.0
    %2622 = vmatprep.subr.mxu0 0.0
    %2623 = vmatpush1.msra.mxu0 0.0
    %2624 = vmatprep.subr.mxu0 0.0
    %2625 = vmatpush1.msra.mxu0 0.0
    %2626 = vmatprep.subr.mxu0 0.0
    %2627 = vmatpush1.msra.mxu0 0.0
    %2628 = vmatprep.subr.mxu0 0.0
    %2629 = vmatpush1.msra.mxu0 %v191
    %2630 = vmatprep.subr.mxu0 0.0
    %2631 = vmatpush2.msra.mxu0 0.0
    %2632 = vmatprep.subr.mxu0 0.0
    %2633 = vmatpush2.msra.mxu0 0.0
    %2634 = vmatprep.subr.mxu0 0.0
    %2635 = vmatpush2.msra.mxu0 0.0
    %2636 = vmatprep.subr.mxu0 0.0
    %2637 = vmatpush2.msra.mxu0 0.0
    %2638 = vmatprep.subr.mxu0 0.0
    %2639 = vmatpush2.msra.mxu0 0.0
    %2640 = vmatprep.subr.mxu0 0.0
    %2641 = vmatpush2.msra.mxu0 0.0
    %2642 = vmatprep.subr.mxu0 0.0
    %2643 = vmatpush2.msra.mxu0 0.0
    %2644 = vmatprep.subr.mxu0 0.0
    %2645 = vmatpush2.msra.mxu0 0.0
    %2646 = vmatprep.subr.mxu0 0.0
    %2647 = vmatpush2.msra.mxu0 0.0
    %2648 = vmatprep.subr.mxu0 0.0
    %2649 = vmatpush2.msra.mxu0 0.0
    %2650 = vmatprep.subr.mxu0 0.0
    %2651 = vmatpush2.msra.mxu0 0.0
    %2652 = vmatprep.subr.mxu0 0.0
    %2653 = vmatpush2.msra.mxu0 0.0
    %2654 = vmatprep.subr.mxu0 0.0
    %2655 = vmatpush2.msra.mxu0 0.0
    %2656 = vmatprep.subr.mxu0 0.0
    %2657 = vmatpush2.msra.mxu0 0.0
    %2658 = vmatprep.subr.mxu0 0.0
    %2659 = vmatpush2.msra.mxu0 0.0
    %2660 = vmatprep.subr.mxu0 0.0
    %2661 = vmatpush2.msra.mxu0 0.0
    %2662 = vmatprep.mubr.f32.mxu0 0.0
    %2663 = vmatmul.mubr.f32.gmra.mxu0 %v2596
    %v2664 = vpop.f32.mrf.mxu0
    %v2665 = vadd.f32 0.0, %v2664
    %v2666 = vpop.f32.mrf.mxu0
    %2667 = vdwg.mxu0
    %v2669 = vsel %vm831, %v2154, 0
    %2671 = vmatprep.subr.mxu0 0.0
    %2672 = vmatpush1.msra.mxu0 0.0
    %2673 = vmatprep.subr.mxu0 0.0
    %2674 = vmatpush1.msra.mxu0 0.0
    %2675 = vmatprep.subr.mxu0 0.0
    %2676 = vmatpush1.msra.mxu0 0.0
    %2677 = vmatprep.subr.mxu0 0.0
    %2678 = vmatpush1.msra.mxu0 0.0
    %2679 = vmatprep.subr.mxu0 0.0
    %2680 = vmatpush1.msra.mxu0 0.0
    %2681 = vmatprep.subr.mxu0 0.0
    %2682 = vmatpush1.msra.mxu0 0.0
    %2683 = vmatprep.subr.mxu0 0.0
    %2684 = vmatpush1.msra.mxu0 0.0
    %2685 = vmatprep.subr.mxu0 0.0
    %2686 = vmatpush1.msra.mxu0 0.0
    %2687 = vmatprep.subr.mxu0 0.0
    %2688 = vmatpush1.msra.mxu0 0.0
    %2689 = vmatprep.subr.mxu0 0.0
    %2690 = vmatpush1.msra.mxu0 0.0
    %2691 = vmatprep.subr.mxu0 0.0
    %2692 = vmatpush1.msra.mxu0 0.0
    %2693 = vmatprep.subr.mxu0 0.0
    %2694 = vmatpush1.msra.mxu0 0.0
    %2695 = vmatprep.subr.mxu0 0.0
    %2696 = vmatpush1.msra.mxu0 0.0
    %2697 = vmatprep.subr.mxu0 0.0
    %2698 = vmatpush1.msra.mxu0 0.0
    %2699 = vmatprep.subr.mxu0 0.0
    %2700 = vmatpush1.msra.mxu0 0.0
    %2701 = vmatprep.subr.mxu0 0.0
    %2702 = vmatpush1.msra.mxu0 %v193
    %2703 = vmatprep.subr.mxu0 0.0
    %2704 = vmatpush2.msra.mxu0 0.0
    %2705 = vmatprep.subr.mxu0 0.0
    %2706 = vmatpush2.msra.mxu0 0.0
    %2707 = vmatprep.subr.mxu0 0.0
    %2708 = vmatpush2.msra.mxu0 0.0
    %2709 = vmatprep.subr.mxu0 0.0
    %2710 = vmatpush2.msra.mxu0 0.0
    %2711 = vmatprep.subr.mxu0 0.0
    %2712 = vmatpush2.msra.mxu0 0.0
    %2713 = vmatprep.subr.mxu0 0.0
    %2714 = vmatpush2.msra.mxu0 0.0
    %2715 = vmatprep.subr.mxu0 0.0
    %2716 = vmatpush2.msra.mxu0 0.0
    %2717 = vmatprep.subr.mxu0 0.0
    %2718 = vmatpush2.msra.mxu0 0.0
    %2719 = vmatprep.subr.mxu0 0.0
    %2720 = vmatpush2.msra.mxu0 0.0
    %2721 = vmatprep.subr.mxu0 0.0
    %2722 = vmatpush2.msra.mxu0 0.0
    %2723 = vmatprep.subr.mxu0 0.0
    %2724 = vmatpush2.msra.mxu0 0.0
    %2725 = vmatprep.subr.mxu0 0.0
    %2726 = vmatpush2.msra.mxu0 0.0
    %2727 = vmatprep.subr.mxu0 0.0
    %2728 = vmatpush2.msra.mxu0 0.0
    %2729 = vmatprep.subr.mxu0 0.0
    %2730 = vmatpush2.msra.mxu0 0.0
    %2731 = vmatprep.subr.mxu0 0.0
    %2732 = vmatpush2.msra.mxu0 0.0
    %2733 = vmatprep.subr.mxu0 0.0
    %2734 = vmatpush2.msra.mxu0 0.0
    %2735 = vmatprep.mubr.f32.mxu0 0.0
    %2736 = vmatmul.mubr.f32.gmra.mxu0 %v2669
    %v2737 = vpop.f32.mrf.mxu0
    %v2738 = vadd.f32 0.0, %v2737
    %v2739 = vpop.f32.mrf.mxu0
    %2740 = vdwg.mxu0
    %v2741 = vadd.f32 %v2227, %v2300
    %v2742 = vadd.f32 %v2519, %v2592
    %v2743 = vadd.f32 %v2741, %v2373
    %v2744 = vadd.f32 %v2742, %v2665
    %v2745 = vadd.f32 %v2743, %v2446
    %v2746 = vadd.f32 %v2744, %v2738
    %v2747 = vlaneseq
    %v2748 = vshrl.u32 %v2747, 7
    %v2749 = vsub.s32 6, %v2748
    %v2750 = vrot.slane %v195, %v2749
    %v2751 = vadd.f32 %v2745, %v2750
    %v2752 = vadd.f32 %v2746, %v2750
    %v2753 = vadd.f32 %v135, %v2751
    %v2754 = vadd.f32 %v136, %v2752
    %v2755 = vsel %vm245, %v2753, 0.0
    %2756 = vadd.xlane.f32.xlu0 %v2755
    %v2757 = vpop.xlane.xlu0 %2756
    %v2758 = vsel %vm245, %v2754, 0.0
    %2759 = vadd.xlane.f32.xlu0 %v2758
    %v2760 = vpop.xlane.xlu0 %2759
    %v2761 = vrcp.pop 32.0
    %v2762 = vmul.f32 %v2757, %v2761
    %v2763 = vmul.f32 %v2760, %v2761
    %v2764 = vsub.f32 %v2753, %v2762
    %v2765 = vsub.f32 %v2754, %v2763
    %v2766 = vmul.f32 %v2764, %v2764
    %v2767 = vmul.f32 %v2765, %v2765
    %v2768 = vsel %vm245, %v2766, 0.0
    %2769 = vadd.xlane.f32.xlu0 %v2768
    %v2770 = vpop.xlane.xlu0 %2769
    %v2771 = vsel %vm245, %v2767, 0.0
    %2772 = vadd.xlane.f32.xlu0 %v2771
    %v2773 = vpop.xlane.xlu0 %2772
    %v2774 = vmul.f32 %v2770, %v2761
    %v2775 = vmul.f32 %v2773, %v2761
    %v2776 = vadd.f32 %v2774, 1e-05
    %v2777 = vadd.f32 %v2775, 1e-05
    %v2778 = vrsqrt.pop %v2776
    %v2779 = vrsqrt.pop %v2777
    %v2780 = vmul.f32 %v2764, %v2778
    %v2781 = vmul.f32 %v2765, %v2779
    %v2782 = vlaneseq
    %v2783 = vshrl.u32 %v2782, 7
    %v2784 = vsub.s32 0, %v2783
    %v2785 = vrot.slane %v195, %v2784
    %v2786 = vmul.f32 %v2780, %v2785
    %v2787 = vmul.f32 %v2781, %v2785
    %v2788 = vlaneseq
    %v2789 = vshrl.u32 %v2788, 7
    %v2790 = vsub.s32 1, %v2789
    %v2791 = vrot.slane %v195, %v2790
    %v2792 = vadd.f32 %v2786, %v2791
    %v2793 = vadd.f32 %v2787, %v2791
    %2798 = vrot.lane.b32.xlu0 %v139, 104
    %v2799 = vpop.permute.xlu0 %2798
    %2800 = vrot.lane.b32.xlu0 %v140, 104
    %v2801 = vpop.permute.xlu0 %2800
    %2802 = vrot.lane.b32.xlu0 %v141, 104
    %v2803 = vpop.permute.xlu0 %2802
    %2804 = vrot.lane.b32.xlu0 %v142, 104
    %v2805 = vpop.permute.xlu0 %2804
    %2810 = vrot.lane.b32.xlu0 %v208, 104
    %v2811 = vpop.permute.xlu0 %2810
    %v2814 = vsel %vm245, %v2792, 0
    %2816 = vmatprep.subr.mxu0 0.0
    %2817 = vmatpush1.msra.mxu0 0.0
    %2818 = vmatprep.subr.mxu0 0.0
    %2819 = vmatpush1.msra.mxu0 0.0
    %2820 = vmatprep.subr.mxu0 0.0
    %2821 = vmatpush1.msra.mxu0 0.0
    %2822 = vmatprep.subr.mxu0 0.0
    %2823 = vmatpush1.msra.mxu0 0.0
    %2824 = vmatprep.subr.mxu0 0.0
    %2825 = vmatpush1.msra.mxu0 0.0
    %2826 = vmatprep.subr.mxu0 0.0
    %2827 = vmatpush1.msra.mxu0 0.0
    %2828 = vmatprep.subr.mxu0 0.0
    %2829 = vmatpush1.msra.mxu0 0.0
    %2830 = vmatprep.subr.mxu0 0.0
    %2831 = vmatpush1.msra.mxu0 0.0
    %2832 = vmatprep.subr.mxu0 0.0
    %2833 = vmatpush1.msra.mxu0 0.0
    %2834 = vmatprep.subr.mxu0 0.0
    %2835 = vmatpush1.msra.mxu0 0.0
    %2836 = vmatprep.subr.mxu0 0.0
    %2837 = vmatpush1.msra.mxu0 0.0
    %2838 = vmatprep.subr.mxu0 0.0
    %2839 = vmatpush1.msra.mxu0 0.0
    %2840 = vmatprep.subr.mxu0 0.0
    %2841 = vmatpush1.msra.mxu0 %v2805
    %2842 = vmatprep.subr.mxu0 0.0
    %2843 = vmatpush1.msra.mxu0 %v2803
    %2844 = vmatprep.subr.mxu0 0.0
    %2845 = vmatpush1.msra.mxu0 %v2801
    %2846 = vmatprep.subr.mxu0 0.0
    %2847 = vmatpush1.msra.mxu0 %v2799
    %2848 = vmatprep.subr.mxu0 0.0
    %2849 = vmatpush2.msra.mxu0 0.0
    %2850 = vmatprep.subr.mxu0 0.0
    %2851 = vmatpush2.msra.mxu0 0.0
    %2852 = vmatprep.subr.mxu0 0.0
    %2853 = vmatpush2.msra.mxu0 0.0
    %2854 = vmatprep.subr.mxu0 0.0
    %2855 = vmatpush2.msra.mxu0 0.0
    %2856 = vmatprep.subr.mxu0 0.0
    %2857 = vmatpush2.msra.mxu0 0.0
    %2858 = vmatprep.subr.mxu0 0.0
    %2859 = vmatpush2.msra.mxu0 0.0
    %2860 = vmatprep.subr.mxu0 0.0
    %2861 = vmatpush2.msra.mxu0 0.0
    %2862 = vmatprep.subr.mxu0 0.0
    %2863 = vmatpush2.msra.mxu0 0.0
    %2864 = vmatprep.subr.mxu0 0.0
    %2865 = vmatpush2.msra.mxu0 0.0
    %2866 = vmatprep.subr.mxu0 0.0
    %2867 = vmatpush2.msra.mxu0 0.0
    %2868 = vmatprep.subr.mxu0 0.0
    %2869 = vmatpush2.msra.mxu0 0.0
    %2870 = vmatprep.subr.mxu0 0.0
    %2871 = vmatpush2.msra.mxu0 0.0
    %2872 = vmatprep.subr.mxu0 0.0
    %2873 = vmatpush2.msra.mxu0 0.0
    %2874 = vmatprep.subr.mxu0 0.0
    %2875 = vmatpush2.msra.mxu0 0.0
    %2876 = vmatprep.subr.mxu0 0.0
    %2877 = vmatpush2.msra.mxu0 0.0
    %2878 = vmatprep.subr.mxu0 0.0
    %2879 = vmatpush2.msra.mxu0 0.0
    %2880 = vmatprep.mubr.f32.mxu0 0.0
    %2881 = vmatmul.mubr.f32.gmra.mxu0 %v2814
    %v2882 = vpop.f32.mrf.mxu0
    %v2883 = vadd.f32 %v2811, %v2882
    %v2884 = vpop.f32.mrf.mxu0
    %2885 = vdwg.mxu0
    %2890 = vrot.lane.b32.xlu0 %v143, 104
    %v2891 = vpop.permute.xlu0 %2890
    %2892 = vrot.lane.b32.xlu0 %v144, 104
    %v2893 = vpop.permute.xlu0 %2892
    %2894 = vrot.lane.b32.xlu0 %v145, 104
    %v2895 = vpop.permute.xlu0 %2894
    %2896 = vrot.lane.b32.xlu0 %v146, 104
    %v2897 = vpop.permute.xlu0 %2896
    %2902 = vrot.lane.b32.xlu0 %v212, 104
    %v2903 = vpop.permute.xlu0 %2902
    %2905 = vmatprep.subr.mxu0 0.0
    %2906 = vmatpush1.msra.mxu0 0.0
    %2907 = vmatprep.subr.mxu0 0.0
    %2908 = vmatpush1.msra.mxu0 0.0
    %2909 = vmatprep.subr.mxu0 0.0
    %2910 = vmatpush1.msra.mxu0 0.0
    %2911 = vmatprep.subr.mxu0 0.0
    %2912 = vmatpush1.msra.mxu0 0.0
    %2913 = vmatprep.subr.mxu0 0.0
    %2914 = vmatpush1.msra.mxu0 0.0
    %2915 = vmatprep.subr.mxu0 0.0
    %2916 = vmatpush1.msra.mxu0 0.0
    %2917 = vmatprep.subr.mxu0 0.0
    %2918 = vmatpush1.msra.mxu0 0.0
    %2919 = vmatprep.subr.mxu0 0.0
    %2920 = vmatpush1.msra.mxu0 0.0
    %2921 = vmatprep.subr.mxu0 0.0
    %2922 = vmatpush1.msra.mxu0 0.0
    %2923 = vmatprep.subr.mxu0 0.0
    %2924 = vmatpush1.msra.mxu0 0.0
    %2925 = vmatprep.subr.mxu0 0.0
    %2926 = vmatpush1.msra.mxu0 0.0
    %2927 = vmatprep.subr.mxu0 0.0
    %2928 = vmatpush1.msra.mxu0 0.0
    %2929 = vmatprep.subr.mxu0 0.0
    %2930 = vmatpush1.msra.mxu0 %v2897
    %2931 = vmatprep.subr.mxu0 0.0
    %2932 = vmatpush1.msra.mxu0 %v2895
    %2933 = vmatprep.subr.mxu0 0.0
    %2934 = vmatpush1.msra.mxu0 %v2893
    %2935 = vmatprep.subr.mxu0 0.0
    %2936 = vmatpush1.msra.mxu0 %v2891
    %2937 = vmatprep.subr.mxu0 0.0
    %2938 = vmatpush2.msra.mxu0 0.0
    %2939 = vmatprep.subr.mxu0 0.0
    %2940 = vmatpush2.msra.mxu0 0.0
    %2941 = vmatprep.subr.mxu0 0.0
    %2942 = vmatpush2.msra.mxu0 0.0
    %2943 = vmatprep.subr.mxu0 0.0
    %2944 = vmatpush2.msra.mxu0 0.0
    %2945 = vmatprep.subr.mxu0 0.0
    %2946 = vmatpush2.msra.mxu0 0.0
    %2947 = vmatprep.subr.mxu0 0.0
    %2948 = vmatpush2.msra.mxu0 0.0
    %2949 = vmatprep.subr.mxu0 0.0
    %2950 = vmatpush2.msra.mxu0 0.0
    %2951 = vmatprep.subr.mxu0 0.0
    %2952 = vmatpush2.msra.mxu0 0.0
    %2953 = vmatprep.subr.mxu0 0.0
    %2954 = vmatpush2.msra.mxu0 0.0
    %2955 = vmatprep.subr.mxu0 0.0
    %2956 = vmatpush2.msra.mxu0 0.0
    %2957 = vmatprep.subr.mxu0 0.0
    %2958 = vmatpush2.msra.mxu0 0.0
    %2959 = vmatprep.subr.mxu0 0.0
    %2960 = vmatpush2.msra.mxu0 0.0
    %2961 = vmatprep.subr.mxu0 0.0
    %2962 = vmatpush2.msra.mxu0 0.0
    %2963 = vmatprep.subr.mxu0 0.0
    %2964 = vmatpush2.msra.mxu0 0.0
    %2965 = vmatprep.subr.mxu0 0.0
    %2966 = vmatpush2.msra.mxu0 0.0
    %2967 = vmatprep.subr.mxu0 0.0
    %2968 = vmatpush2.msra.mxu0 0.0
    %2969 = vmatprep.mubr.f32.mxu0 0.0
    %2970 = vmatmul.mubr.f32.gmra.mxu0 %v2814
    %v2971 = vpop.f32.mrf.mxu0
    %v2972 = vadd.f32 %v2903, %v2971
    %v2973 = vpop.f32.mrf.mxu0
    %2974 = vdwg.mxu0
    %2979 = vrot.lane.b32.xlu0 %v147, 104
    %v2980 = vpop.permute.xlu0 %2979
    %2981 = vrot.lane.b32.xlu0 %v148, 104
    %v2982 = vpop.permute.xlu0 %2981
    %2983 = vrot.lane.b32.xlu0 %v149, 104
    %v2984 = vpop.permute.xlu0 %2983
    %2985 = vrot.lane.b32.xlu0 %v150, 104
    %v2986 = vpop.permute.xlu0 %2985
    %2991 = vrot.lane.b32.xlu0 %v216, 104
    %v2992 = vpop.permute.xlu0 %2991
    %2994 = vmatprep.subr.mxu0 0.0
    %2995 = vmatpush1.msra.mxu0 0.0
    %2996 = vmatprep.subr.mxu0 0.0
    %2997 = vmatpush1.msra.mxu0 0.0
    %2998 = vmatprep.subr.mxu0 0.0
    %2999 = vmatpush1.msra.mxu0 0.0
    %3000 = vmatprep.subr.mxu0 0.0
    %3001 = vmatpush1.msra.mxu0 0.0
    %3002 = vmatprep.subr.mxu0 0.0
    %3003 = vmatpush1.msra.mxu0 0.0
    %3004 = vmatprep.subr.mxu0 0.0
    %3005 = vmatpush1.msra.mxu0 0.0
    %3006 = vmatprep.subr.mxu0 0.0
    %3007 = vmatpush1.msra.mxu0 0.0
    %3008 = vmatprep.subr.mxu0 0.0
    %3009 = vmatpush1.msra.mxu0 0.0
    %3010 = vmatprep.subr.mxu0 0.0
    %3011 = vmatpush1.msra.mxu0 0.0
    %3012 = vmatprep.subr.mxu0 0.0
    %3013 = vmatpush1.msra.mxu0 0.0
    %3014 = vmatprep.subr.mxu0 0.0
    %3015 = vmatpush1.msra.mxu0 0.0
    %3016 = vmatprep.subr.mxu0 0.0
    %3017 = vmatpush1.msra.mxu0 0.0
    %3018 = vmatprep.subr.mxu0 0.0
    %3019 = vmatpush1.msra.mxu0 %v2986
    %3020 = vmatprep.subr.mxu0 0.0
    %3021 = vmatpush1.msra.mxu0 %v2984
    %3022 = vmatprep.subr.mxu0 0.0
    %3023 = vmatpush1.msra.mxu0 %v2982
    %3024 = vmatprep.subr.mxu0 0.0
    %3025 = vmatpush1.msra.mxu0 %v2980
    %3026 = vmatprep.subr.mxu0 0.0
    %3027 = vmatpush2.msra.mxu0 0.0
    %3028 = vmatprep.subr.mxu0 0.0
    %3029 = vmatpush2.msra.mxu0 0.0
    %3030 = vmatprep.subr.mxu0 0.0
    %3031 = vmatpush2.msra.mxu0 0.0
    %3032 = vmatprep.subr.mxu0 0.0
    %3033 = vmatpush2.msra.mxu0 0.0
    %3034 = vmatprep.subr.mxu0 0.0
    %3035 = vmatpush2.msra.mxu0 0.0
    %3036 = vmatprep.subr.mxu0 0.0
    %3037 = vmatpush2.msra.mxu0 0.0
    %3038 = vmatprep.subr.mxu0 0.0
    %3039 = vmatpush2.msra.mxu0 0.0
    %3040 = vmatprep.subr.mxu0 0.0
    %3041 = vmatpush2.msra.mxu0 0.0
    %3042 = vmatprep.subr.mxu0 0.0
    %3043 = vmatpush2.msra.mxu0 0.0
    %3044 = vmatprep.subr.mxu0 0.0
    %3045 = vmatpush2.msra.mxu0 0.0
    %3046 = vmatprep.subr.mxu0 0.0
    %3047 = vmatpush2.msra.mxu0 0.0
    %3048 = vmatprep.subr.mxu0 0.0
    %3049 = vmatpush2.msra.mxu0 0.0
    %3050 = vmatprep.subr.mxu0 0.0
    %3051 = vmatpush2.msra.mxu0 0.0
    %3052 = vmatprep.subr.mxu0 0.0
    %3053 = vmatpush2.msra.mxu0 0.0
    %3054 = vmatprep.subr.mxu0 0.0
    %3055 = vmatpush2.msra.mxu0 0.0
    %3056 = vmatprep.subr.mxu0 0.0
    %3057 = vmatpush2.msra.mxu0 0.0
    %3058 = vmatprep.mubr.f32.mxu0 0.0
    %3059 = vmatmul.mubr.f32.gmra.mxu0 %v2814
    %v3060 = vpop.f32.mrf.mxu0
    %v3061 = vadd.f32 %v2992, %v3060
    %v3062 = vpop.f32.mrf.mxu0
    %3063 = vdwg.mxu0
    %3068 = vrot.lane.b32.xlu0 %v151, 104
    %v3069 = vpop.permute.xlu0 %3068
    %3070 = vrot.lane.b32.xlu0 %v152, 104
    %v3071 = vpop.permute.xlu0 %3070
    %3072 = vrot.lane.b32.xlu0 %v153, 104
    %v3073 = vpop.permute.xlu0 %3072
    %3074 = vrot.lane.b32.xlu0 %v154, 104
    %v3075 = vpop.permute.xlu0 %3074
    %3080 = vrot.lane.b32.xlu0 %v220, 104
    %v3081 = vpop.permute.xlu0 %3080
    %3083 = vmatprep.subr.mxu0 0.0
    %3084 = vmatpush1.msra.mxu0 0.0
    %3085 = vmatprep.subr.mxu0 0.0
    %3086 = vmatpush1.msra.mxu0 0.0
    %3087 = vmatprep.subr.mxu0 0.0
    %3088 = vmatpush1.msra.mxu0 0.0
    %3089 = vmatprep.subr.mxu0 0.0
    %3090 = vmatpush1.msra.mxu0 0.0
    %3091 = vmatprep.subr.mxu0 0.0
    %3092 = vmatpush1.msra.mxu0 0.0
    %3093 = vmatprep.subr.mxu0 0.0
    %3094 = vmatpush1.msra.mxu0 0.0
    %3095 = vmatprep.subr.mxu0 0.0
    %3096 = vmatpush1.msra.mxu0 0.0
    %3097 = vmatprep.subr.mxu0 0.0
    %3098 = vmatpush1.msra.mxu0 0.0
    %3099 = vmatprep.subr.mxu0 0.0
    %3100 = vmatpush1.msra.mxu0 0.0
    %3101 = vmatprep.subr.mxu0 0.0
    %3102 = vmatpush1.msra.mxu0 0.0
    %3103 = vmatprep.subr.mxu0 0.0
    %3104 = vmatpush1.msra.mxu0 0.0
    %3105 = vmatprep.subr.mxu0 0.0
    %3106 = vmatpush1.msra.mxu0 0.0
    %3107 = vmatprep.subr.mxu0 0.0
    %3108 = vmatpush1.msra.mxu0 %v3075
    %3109 = vmatprep.subr.mxu0 0.0
    %3110 = vmatpush1.msra.mxu0 %v3073
    %3111 = vmatprep.subr.mxu0 0.0
    %3112 = vmatpush1.msra.mxu0 %v3071
    %3113 = vmatprep.subr.mxu0 0.0
    %3114 = vmatpush1.msra.mxu0 %v3069
    %3115 = vmatprep.subr.mxu0 0.0
    %3116 = vmatpush2.msra.mxu0 0.0
    %3117 = vmatprep.subr.mxu0 0.0
    %3118 = vmatpush2.msra.mxu0 0.0
    %3119 = vmatprep.subr.mxu0 0.0
    %3120 = vmatpush2.msra.mxu0 0.0
    %3121 = vmatprep.subr.mxu0 0.0
    %3122 = vmatpush2.msra.mxu0 0.0
    %3123 = vmatprep.subr.mxu0 0.0
    %3124 = vmatpush2.msra.mxu0 0.0
    %3125 = vmatprep.subr.mxu0 0.0
    %3126 = vmatpush2.msra.mxu0 0.0
    %3127 = vmatprep.subr.mxu0 0.0
    %3128 = vmatpush2.msra.mxu0 0.0
    %3129 = vmatprep.subr.mxu0 0.0
    %3130 = vmatpush2.msra.mxu0 0.0
    %3131 = vmatprep.subr.mxu0 0.0
    %3132 = vmatpush2.msra.mxu0 0.0
    %3133 = vmatprep.subr.mxu0 0.0
    %3134 = vmatpush2.msra.mxu0 0.0
    %3135 = vmatprep.subr.mxu0 0.0
    %3136 = vmatpush2.msra.mxu0 0.0
    %3137 = vmatprep.subr.mxu0 0.0
    %3138 = vmatpush2.msra.mxu0 0.0
    %3139 = vmatprep.subr.mxu0 0.0
    %3140 = vmatpush2.msra.mxu0 0.0
    %3141 = vmatprep.subr.mxu0 0.0
    %3142 = vmatpush2.msra.mxu0 0.0
    %3143 = vmatprep.subr.mxu0 0.0
    %3144 = vmatpush2.msra.mxu0 0.0
    %3145 = vmatprep.subr.mxu0 0.0
    %3146 = vmatpush2.msra.mxu0 0.0
    %3147 = vmatprep.mubr.f32.mxu0 0.0
    %3148 = vmatmul.mubr.f32.gmra.mxu0 %v2814
    %v3149 = vpop.f32.mrf.mxu0
    %v3150 = vadd.f32 %v3081, %v3149
    %v3151 = vpop.f32.mrf.mxu0
    %3152 = vdwg.mxu0
    %3157 = vrot.lane.b32.xlu0 %v155, 104
    %v3158 = vpop.permute.xlu0 %3157
    %3159 = vrot.lane.b32.xlu0 %v156, 104
    %v3160 = vpop.permute.xlu0 %3159
    %3161 = vrot.lane.b32.xlu0 %v157, 104
    %v3162 = vpop.permute.xlu0 %3161
    %3163 = vrot.lane.b32.xlu0 %v158, 104
    %v3164 = vpop.permute.xlu0 %3163
    %3169 = vrot.lane.b32.xlu0 %v224, 104
    %v3170 = vpop.permute.xlu0 %3169
    %v3173 = vsel %vm245, %v2793, 0
    %3175 = vmatprep.subr.mxu0 0.0
    %3176 = vmatpush1.msra.mxu0 0.0
    %3177 = vmatprep.subr.mxu0 0.0
    %3178 = vmatpush1.msra.mxu0 0.0
    %3179 = vmatprep.subr.mxu0 0.0
    %3180 = vmatpush1.msra.mxu0 0.0
    %3181 = vmatprep.subr.mxu0 0.0
    %3182 = vmatpush1.msra.mxu0 0.0
    %3183 = vmatprep.subr.mxu0 0.0
    %3184 = vmatpush1.msra.mxu0 0.0
    %3185 = vmatprep.subr.mxu0 0.0
    %3186 = vmatpush1.msra.mxu0 0.0
    %3187 = vmatprep.subr.mxu0 0.0
    %3188 = vmatpush1.msra.mxu0 0.0
    %3189 = vmatprep.subr.mxu0 0.0
    %3190 = vmatpush1.msra.mxu0 0.0
    %3191 = vmatprep.subr.mxu0 0.0
    %3192 = vmatpush1.msra.mxu0 0.0
    %3193 = vmatprep.subr.mxu0 0.0
    %3194 = vmatpush1.msra.mxu0 0.0
    %3195 = vmatprep.subr.mxu0 0.0
    %3196 = vmatpush1.msra.mxu0 0.0
    %3197 = vmatprep.subr.mxu0 0.0
    %3198 = vmatpush1.msra.mxu0 0.0
    %3199 = vmatprep.subr.mxu0 0.0
    %3200 = vmatpush1.msra.mxu0 %v3164
    %3201 = vmatprep.subr.mxu0 0.0
    %3202 = vmatpush1.msra.mxu0 %v3162
    %3203 = vmatprep.subr.mxu0 0.0
    %3204 = vmatpush1.msra.mxu0 %v3160
    %3205 = vmatprep.subr.mxu0 0.0
    %3206 = vmatpush1.msra.mxu0 %v3158
    %3207 = vmatprep.subr.mxu0 0.0
    %3208 = vmatpush2.msra.mxu0 0.0
    %3209 = vmatprep.subr.mxu0 0.0
    %3210 = vmatpush2.msra.mxu0 0.0
    %3211 = vmatprep.subr.mxu0 0.0
    %3212 = vmatpush2.msra.mxu0 0.0
    %3213 = vmatprep.subr.mxu0 0.0
    %3214 = vmatpush2.msra.mxu0 0.0
    %3215 = vmatprep.subr.mxu0 0.0
    %3216 = vmatpush2.msra.mxu0 0.0
    %3217 = vmatprep.subr.mxu0 0.0
    %3218 = vmatpush2.msra.mxu0 0.0
    %3219 = vmatprep.subr.mxu0 0.0
    %3220 = vmatpush2.msra.mxu0 0.0
    %3221 = vmatprep.subr.mxu0 0.0
    %3222 = vmatpush2.msra.mxu0 0.0
    %3223 = vmatprep.subr.mxu0 0.0
    %3224 = vmatpush2.msra.mxu0 0.0
    %3225 = vmatprep.subr.mxu0 0.0
    %3226 = vmatpush2.msra.mxu0 0.0
    %3227 = vmatprep.subr.mxu0 0.0
    %3228 = vmatpush2.msra.mxu0 0.0
    %3229 = vmatprep.subr.mxu0 0.0
    %3230 = vmatpush2.msra.mxu0 0.0
    %3231 = vmatprep.subr.mxu0 0.0
    %3232 = vmatpush2.msra.mxu0 0.0
    %3233 = vmatprep.subr.mxu0 0.0
    %3234 = vmatpush2.msra.mxu0 0.0
    %3235 = vmatprep.subr.mxu0 0.0
    %3236 = vmatpush2.msra.mxu0 0.0
    %3237 = vmatprep.subr.mxu0 0.0
    %3238 = vmatpush2.msra.mxu0 0.0
    %3239 = vmatprep.mubr.f32.mxu0 0.0
    %3240 = vmatmul.mubr.f32.gmra.mxu0 %v3173
    %v3241 = vpop.f32.mrf.mxu0
    %v3242 = vadd.f32 %v3170, %v3241
    %v3243 = vpop.f32.mrf.mxu0
    %3244 = vdwg.mxu0
    %3249 = vrot.lane.b32.xlu0 %v159, 104
    %v3250 = vpop.permute.xlu0 %3249
    %3251 = vrot.lane.b32.xlu0 %v160, 104
    %v3252 = vpop.permute.xlu0 %3251
    %3253 = vrot.lane.b32.xlu0 %v161, 104
    %v3254 = vpop.permute.xlu0 %3253
    %3255 = vrot.lane.b32.xlu0 %v162, 104
    %v3256 = vpop.permute.xlu0 %3255
    %3261 = vrot.lane.b32.xlu0 %v228, 104
    %v3262 = vpop.permute.xlu0 %3261
    %3264 = vmatprep.subr.mxu0 0.0
    %3265 = vmatpush1.msra.mxu0 0.0
    %3266 = vmatprep.subr.mxu0 0.0
    %3267 = vmatpush1.msra.mxu0 0.0
    %3268 = vmatprep.subr.mxu0 0.0
    %3269 = vmatpush1.msra.mxu0 0.0
    %3270 = vmatprep.subr.mxu0 0.0
    %3271 = vmatpush1.msra.mxu0 0.0
    %3272 = vmatprep.subr.mxu0 0.0
    %3273 = vmatpush1.msra.mxu0 0.0
    %3274 = vmatprep.subr.mxu0 0.0
    %3275 = vmatpush1.msra.mxu0 0.0
    %3276 = vmatprep.subr.mxu0 0.0
    %3277 = vmatpush1.msra.mxu0 0.0
    %3278 = vmatprep.subr.mxu0 0.0
    %3279 = vmatpush1.msra.mxu0 0.0
    %3280 = vmatprep.subr.mxu0 0.0
    %3281 = vmatpush1.msra.mxu0 0.0
    %3282 = vmatprep.subr.mxu0 0.0
    %3283 = vmatpush1.msra.mxu0 0.0
    %3284 = vmatprep.subr.mxu0 0.0
    %3285 = vmatpush1.msra.mxu0 0.0
    %3286 = vmatprep.subr.mxu0 0.0
    %3287 = vmatpush1.msra.mxu0 0.0
    %3288 = vmatprep.subr.mxu0 0.0
    %3289 = vmatpush1.msra.mxu0 %v3256
    %3290 = vmatprep.subr.mxu0 0.0
    %3291 = vmatpush1.msra.mxu0 %v3254
    %3292 = vmatprep.subr.mxu0 0.0
    %3293 = vmatpush1.msra.mxu0 %v3252
    %3294 = vmatprep.subr.mxu0 0.0
    %3295 = vmatpush1.msra.mxu0 %v3250
    %3296 = vmatprep.subr.mxu0 0.0
    %3297 = vmatpush2.msra.mxu0 0.0
    %3298 = vmatprep.subr.mxu0 0.0
    %3299 = vmatpush2.msra.mxu0 0.0
    %3300 = vmatprep.subr.mxu0 0.0
    %3301 = vmatpush2.msra.mxu0 0.0
    %3302 = vmatprep.subr.mxu0 0.0
    %3303 = vmatpush2.msra.mxu0 0.0
    %3304 = vmatprep.subr.mxu0 0.0
    %3305 = vmatpush2.msra.mxu0 0.0
    %3306 = vmatprep.subr.mxu0 0.0
    %3307 = vmatpush2.msra.mxu0 0.0
    %3308 = vmatprep.subr.mxu0 0.0
    %3309 = vmatpush2.msra.mxu0 0.0
    %3310 = vmatprep.subr.mxu0 0.0
    %3311 = vmatpush2.msra.mxu0 0.0
    %3312 = vmatprep.subr.mxu0 0.0
    %3313 = vmatpush2.msra.mxu0 0.0
    %3314 = vmatprep.subr.mxu0 0.0
    %3315 = vmatpush2.msra.mxu0 0.0
    %3316 = vmatprep.subr.mxu0 0.0
    %3317 = vmatpush2.msra.mxu0 0.0
    %3318 = vmatprep.subr.mxu0 0.0
    %3319 = vmatpush2.msra.mxu0 0.0
    %3320 = vmatprep.subr.mxu0 0.0
    %3321 = vmatpush2.msra.mxu0 0.0
    %3322 = vmatprep.subr.mxu0 0.0
    %3323 = vmatpush2.msra.mxu0 0.0
    %3324 = vmatprep.subr.mxu0 0.0
    %3325 = vmatpush2.msra.mxu0 0.0
    %3326 = vmatprep.subr.mxu0 0.0
    %3327 = vmatpush2.msra.mxu0 0.0
    %3328 = vmatprep.mubr.f32.mxu0 0.0
    %3329 = vmatmul.mubr.f32.gmra.mxu0 %v3173
    %v3330 = vpop.f32.mrf.mxu0
    %v3331 = vadd.f32 %v3262, %v3330
    %v3332 = vpop.f32.mrf.mxu0
    %3333 = vdwg.mxu0
    %3338 = vrot.lane.b32.xlu0 %v163, 104
    %v3339 = vpop.permute.xlu0 %3338
    %3340 = vrot.lane.b32.xlu0 %v164, 104
    %v3341 = vpop.permute.xlu0 %3340
    %3342 = vrot.lane.b32.xlu0 %v165, 104
    %v3343 = vpop.permute.xlu0 %3342
    %3344 = vrot.lane.b32.xlu0 %v166, 104
    %v3345 = vpop.permute.xlu0 %3344
    %3350 = vrot.lane.b32.xlu0 %v232, 104
    %v3351 = vpop.permute.xlu0 %3350
    %3353 = vmatprep.subr.mxu0 0.0
    %3354 = vmatpush1.msra.mxu0 0.0
    %3355 = vmatprep.subr.mxu0 0.0
    %3356 = vmatpush1.msra.mxu0 0.0
    %3357 = vmatprep.subr.mxu0 0.0
    %3358 = vmatpush1.msra.mxu0 0.0
    %3359 = vmatprep.subr.mxu0 0.0
    %3360 = vmatpush1.msra.mxu0 0.0
    %3361 = vmatprep.subr.mxu0 0.0
    %3362 = vmatpush1.msra.mxu0 0.0
    %3363 = vmatprep.subr.mxu0 0.0
    %3364 = vmatpush1.msra.mxu0 0.0
    %3365 = vmatprep.subr.mxu0 0.0
    %3366 = vmatpush1.msra.mxu0 0.0
    %3367 = vmatprep.subr.mxu0 0.0
    %3368 = vmatpush1.msra.mxu0 0.0
    %3369 = vmatprep.subr.mxu0 0.0
    %3370 = vmatpush1.msra.mxu0 0.0
    %3371 = vmatprep.subr.mxu0 0.0
    %3372 = vmatpush1.msra.mxu0 0.0
    %3373 = vmatprep.subr.mxu0 0.0
    %3374 = vmatpush1.msra.mxu0 0.0
    %3375 = vmatprep.subr.mxu0 0.0
    %3376 = vmatpush1.msra.mxu0 0.0
    %3377 = vmatprep.subr.mxu0 0.0
    %3378 = vmatpush1.msra.mxu0 %v3345
    %3379 = vmatprep.subr.mxu0 0.0
    %3380 = vmatpush1.msra.mxu0 %v3343
    %3381 = vmatprep.subr.mxu0 0.0
    %3382 = vmatpush1.msra.mxu0 %v3341
    %3383 = vmatprep.subr.mxu0 0.0
    %3384 = vmatpush1.msra.mxu0 %v3339
    %3385 = vmatprep.subr.mxu0 0.0
    %3386 = vmatpush2.msra.mxu0 0.0
    %3387 = vmatprep.subr.mxu0 0.0
    %3388 = vmatpush2.msra.mxu0 0.0
    %3389 = vmatprep.subr.mxu0 0.0
    %3390 = vmatpush2.msra.mxu0 0.0
    %3391 = vmatprep.subr.mxu0 0.0
    %3392 = vmatpush2.msra.mxu0 0.0
    %3393 = vmatprep.subr.mxu0 0.0
    %3394 = vmatpush2.msra.mxu0 0.0
    %3395 = vmatprep.subr.mxu0 0.0
    %3396 = vmatpush2.msra.mxu0 0.0
    %3397 = vmatprep.subr.mxu0 0.0
    %3398 = vmatpush2.msra.mxu0 0.0
    %3399 = vmatprep.subr.mxu0 0.0
    %3400 = vmatpush2.msra.mxu0 0.0
    %3401 = vmatprep.subr.mxu0 0.0
    %3402 = vmatpush2.msra.mxu0 0.0
    %3403 = vmatprep.subr.mxu0 0.0
    %3404 = vmatpush2.msra.mxu0 0.0
    %3405 = vmatprep.subr.mxu0 0.0
    %3406 = vmatpush2.msra.mxu0 0.0
    %3407 = vmatprep.subr.mxu0 0.0
    %3408 = vmatpush2.msra.mxu0 0.0
    %3409 = vmatprep.subr.mxu0 0.0
    %3410 = vmatpush2.msra.mxu0 0.0
    %3411 = vmatprep.subr.mxu0 0.0
    %3412 = vmatpush2.msra.mxu0 0.0
    %3413 = vmatprep.subr.mxu0 0.0
    %3414 = vmatpush2.msra.mxu0 0.0
    %3415 = vmatprep.subr.mxu0 0.0
    %3416 = vmatpush2.msra.mxu0 0.0
    %3417 = vmatprep.mubr.f32.mxu0 0.0
    %3418 = vmatmul.mubr.f32.gmra.mxu0 %v3173
    %v3419 = vpop.f32.mrf.mxu0
    %v3420 = vadd.f32 %v3351, %v3419
    %v3421 = vpop.f32.mrf.mxu0
    %3422 = vdwg.mxu0
    %3427 = vrot.lane.b32.xlu0 %v167, 104
    %v3428 = vpop.permute.xlu0 %3427
    %3429 = vrot.lane.b32.xlu0 %v168, 104
    %v3430 = vpop.permute.xlu0 %3429
    %3431 = vrot.lane.b32.xlu0 %v169, 104
    %v3432 = vpop.permute.xlu0 %3431
    %3433 = vrot.lane.b32.xlu0 %v170, 104
    %v3434 = vpop.permute.xlu0 %3433
    %3439 = vrot.lane.b32.xlu0 %v236, 104
    %v3440 = vpop.permute.xlu0 %3439
    %3442 = vmatprep.subr.mxu0 0.0
    %3443 = vmatpush1.msra.mxu0 0.0
    %3444 = vmatprep.subr.mxu0 0.0
    %3445 = vmatpush1.msra.mxu0 0.0
    %3446 = vmatprep.subr.mxu0 0.0
    %3447 = vmatpush1.msra.mxu0 0.0
    %3448 = vmatprep.subr.mxu0 0.0
    %3449 = vmatpush1.msra.mxu0 0.0
    %3450 = vmatprep.subr.mxu0 0.0
    %3451 = vmatpush1.msra.mxu0 0.0
    %3452 = vmatprep.subr.mxu0 0.0
    %3453 = vmatpush1.msra.mxu0 0.0
    %3454 = vmatprep.subr.mxu0 0.0
    %3455 = vmatpush1.msra.mxu0 0.0
    %3456 = vmatprep.subr.mxu0 0.0
    %3457 = vmatpush1.msra.mxu0 0.0
    %3458 = vmatprep.subr.mxu0 0.0
    %3459 = vmatpush1.msra.mxu0 0.0
    %3460 = vmatprep.subr.mxu0 0.0
    %3461 = vmatpush1.msra.mxu0 0.0
    %3462 = vmatprep.subr.mxu0 0.0
    %3463 = vmatpush1.msra.mxu0 0.0
    %3464 = vmatprep.subr.mxu0 0.0
    %3465 = vmatpush1.msra.mxu0 0.0
    %3466 = vmatprep.subr.mxu0 0.0
    %3467 = vmatpush1.msra.mxu0 %v3434
    %3468 = vmatprep.subr.mxu0 0.0
    %3469 = vmatpush1.msra.mxu0 %v3432
    %3470 = vmatprep.subr.mxu0 0.0
    %3471 = vmatpush1.msra.mxu0 %v3430
    %3472 = vmatprep.subr.mxu0 0.0
    %3473 = vmatpush1.msra.mxu0 %v3428
    %3474 = vmatprep.subr.mxu0 0.0
    %3475 = vmatpush2.msra.mxu0 0.0
    %3476 = vmatprep.subr.mxu0 0.0
    %3477 = vmatpush2.msra.mxu0 0.0
    %3478 = vmatprep.subr.mxu0 0.0
    %3479 = vmatpush2.msra.mxu0 0.0
    %3480 = vmatprep.subr.mxu0 0.0
    %3481 = vmatpush2.msra.mxu0 0.0
    %3482 = vmatprep.subr.mxu0 0.0
    %3483 = vmatpush2.msra.mxu0 0.0
    %3484 = vmatprep.subr.mxu0 0.0
    %3485 = vmatpush2.msra.mxu0 0.0
    %3486 = vmatprep.subr.mxu0 0.0
    %3487 = vmatpush2.msra.mxu0 0.0
    %3488 = vmatprep.subr.mxu0 0.0
    %3489 = vmatpush2.msra.mxu0 0.0
    %3490 = vmatprep.subr.mxu0 0.0
    %3491 = vmatpush2.msra.mxu0 0.0
    %3492 = vmatprep.subr.mxu0 0.0
    %3493 = vmatpush2.msra.mxu0 0.0
    %3494 = vmatprep.subr.mxu0 0.0
    %3495 = vmatpush2.msra.mxu0 0.0
    %3496 = vmatprep.subr.mxu0 0.0
    %3497 = vmatpush2.msra.mxu0 0.0
    %3498 = vmatprep.subr.mxu0 0.0
    %3499 = vmatpush2.msra.mxu0 0.0
    %3500 = vmatprep.subr.mxu0 0.0
    %3501 = vmatpush2.msra.mxu0 0.0
    %3502 = vmatprep.subr.mxu0 0.0
    %3503 = vmatpush2.msra.mxu0 0.0
    %3504 = vmatprep.subr.mxu0 0.0
    %3505 = vmatpush2.msra.mxu0 0.0
    %3506 = vmatprep.mubr.f32.mxu0 0.0
    %3507 = vmatmul.mubr.f32.gmra.mxu0 %v3173
    %v3508 = vpop.f32.mrf.mxu0
    %v3509 = vadd.f32 %v3440, %v3508
    %v3510 = vpop.f32.mrf.mxu0
    %3511 = vdwg.mxu0
    %3512 = vrot.lane.b32.xlu0 %v139, 96
    %v3513 = vpop.permute.xlu0 %3512
    %3514 = vrot.lane.b32.xlu0 %v140, 96
    %v3515 = vpop.permute.xlu0 %3514
    %3516 = vrot.lane.b32.xlu0 %v141, 96
    %v3517 = vpop.permute.xlu0 %3516
    %3518 = vrot.lane.b32.xlu0 %v142, 96
    %v3519 = vpop.permute.xlu0 %3518
    %3524 = vrot.lane.b32.xlu0 %v208, 96
    %v3525 = vpop.permute.xlu0 %3524
    %v3528 = vsel %vm245, %v137, 0
    %3530 = vmatprep.subr.mxu0 0.0
    %3531 = vmatpush1.msra.mxu0 0.0
    %3532 = vmatprep.subr.mxu0 0.0
    %3533 = vmatpush1.msra.mxu0 0.0
    %3534 = vmatprep.subr.mxu0 0.0
    %3535 = vmatpush1.msra.mxu0 0.0
    %3536 = vmatprep.subr.mxu0 0.0
    %3537 = vmatpush1.msra.mxu0 0.0
    %3538 = vmatprep.subr.mxu0 0.0
    %3539 = vmatpush1.msra.mxu0 0.0
    %3540 = vmatprep.subr.mxu0 0.0
    %3541 = vmatpush1.msra.mxu0 0.0
    %3542 = vmatprep.subr.mxu0 0.0
    %3543 = vmatpush1.msra.mxu0 0.0
    %3544 = vmatprep.subr.mxu0 0.0
    %3545 = vmatpush1.msra.mxu0 0.0
    %3546 = vmatprep.subr.mxu0 0.0
    %3547 = vmatpush1.msra.mxu0 0.0
    %3548 = vmatprep.subr.mxu0 0.0
    %3549 = vmatpush1.msra.mxu0 0.0
    %3550 = vmatprep.subr.mxu0 0.0
    %3551 = vmatpush1.msra.mxu0 0.0
    %3552 = vmatprep.subr.mxu0 0.0
    %3553 = vmatpush1.msra.mxu0 0.0
    %3554 = vmatprep.subr.mxu0 0.0
    %3555 = vmatpush1.msra.mxu0 %v3519
    %3556 = vmatprep.subr.mxu0 0.0
    %3557 = vmatpush1.msra.mxu0 %v3517
    %3558 = vmatprep.subr.mxu0 0.0
    %3559 = vmatpush1.msra.mxu0 %v3515
    %3560 = vmatprep.subr.mxu0 0.0
    %3561 = vmatpush1.msra.mxu0 %v3513
    %3562 = vmatprep.subr.mxu0 0.0
    %3563 = vmatpush2.msra.mxu0 0.0
    %3564 = vmatprep.subr.mxu0 0.0
    %3565 = vmatpush2.msra.mxu0 0.0
    %3566 = vmatprep.subr.mxu0 0.0
    %3567 = vmatpush2.msra.mxu0 0.0
    %3568 = vmatprep.subr.mxu0 0.0
    %3569 = vmatpush2.msra.mxu0 0.0
    %3570 = vmatprep.subr.mxu0 0.0
    %3571 = vmatpush2.msra.mxu0 0.0
    %3572 = vmatprep.subr.mxu0 0.0
    %3573 = vmatpush2.msra.mxu0 0.0
    %3574 = vmatprep.subr.mxu0 0.0
    %3575 = vmatpush2.msra.mxu0 0.0
    %3576 = vmatprep.subr.mxu0 0.0
    %3577 = vmatpush2.msra.mxu0 0.0
    %3578 = vmatprep.subr.mxu0 0.0
    %3579 = vmatpush2.msra.mxu0 0.0
    %3580 = vmatprep.subr.mxu0 0.0
    %3581 = vmatpush2.msra.mxu0 0.0
    %3582 = vmatprep.subr.mxu0 0.0
    %3583 = vmatpush2.msra.mxu0 0.0
    %3584 = vmatprep.subr.mxu0 0.0
    %3585 = vmatpush2.msra.mxu0 0.0
    %3586 = vmatprep.subr.mxu0 0.0
    %3587 = vmatpush2.msra.mxu0 0.0
    %3588 = vmatprep.subr.mxu0 0.0
    %3589 = vmatpush2.msra.mxu0 0.0
    %3590 = vmatprep.subr.mxu0 0.0
    %3591 = vmatpush2.msra.mxu0 0.0
    %3592 = vmatprep.subr.mxu0 0.0
    %3593 = vmatpush2.msra.mxu0 0.0
    %3594 = vmatprep.mubr.f32.mxu0 0.0
    %3595 = vmatmul.mubr.f32.gmra.mxu0 %v3528
    %v3596 = vpop.f32.mrf.mxu0
    %v3597 = vadd.f32 %v3525, %v3596
    %v3598 = vpop.f32.mrf.mxu0
    %3599 = vdwg.mxu0
    %3600 = vrot.lane.b32.xlu0 %v143, 96
    %v3601 = vpop.permute.xlu0 %3600
    %3602 = vrot.lane.b32.xlu0 %v144, 96
    %v3603 = vpop.permute.xlu0 %3602
    %3604 = vrot.lane.b32.xlu0 %v145, 96
    %v3605 = vpop.permute.xlu0 %3604
    %3606 = vrot.lane.b32.xlu0 %v146, 96
    %v3607 = vpop.permute.xlu0 %3606
    %3612 = vrot.lane.b32.xlu0 %v212, 96
    %v3613 = vpop.permute.xlu0 %3612
    %3615 = vmatprep.subr.mxu0 0.0
    %3616 = vmatpush1.msra.mxu0 0.0
    %3617 = vmatprep.subr.mxu0 0.0
    %3618 = vmatpush1.msra.mxu0 0.0
    %3619 = vmatprep.subr.mxu0 0.0
    %3620 = vmatpush1.msra.mxu0 0.0
    %3621 = vmatprep.subr.mxu0 0.0
    %3622 = vmatpush1.msra.mxu0 0.0
    %3623 = vmatprep.subr.mxu0 0.0
    %3624 = vmatpush1.msra.mxu0 0.0
    %3625 = vmatprep.subr.mxu0 0.0
    %3626 = vmatpush1.msra.mxu0 0.0
    %3627 = vmatprep.subr.mxu0 0.0
    %3628 = vmatpush1.msra.mxu0 0.0
    %3629 = vmatprep.subr.mxu0 0.0
    %3630 = vmatpush1.msra.mxu0 0.0
    %3631 = vmatprep.subr.mxu0 0.0
    %3632 = vmatpush1.msra.mxu0 0.0
    %3633 = vmatprep.subr.mxu0 0.0
    %3634 = vmatpush1.msra.mxu0 0.0
    %3635 = vmatprep.subr.mxu0 0.0
    %3636 = vmatpush1.msra.mxu0 0.0
    %3637 = vmatprep.subr.mxu0 0.0
    %3638 = vmatpush1.msra.mxu0 0.0
    %3639 = vmatprep.subr.mxu0 0.0
    %3640 = vmatpush1.msra.mxu0 %v3607
    %3641 = vmatprep.subr.mxu0 0.0
    %3642 = vmatpush1.msra.mxu0 %v3605
    %3643 = vmatprep.subr.mxu0 0.0
    %3644 = vmatpush1.msra.mxu0 %v3603
    %3645 = vmatprep.subr.mxu0 0.0
    %3646 = vmatpush1.msra.mxu0 %v3601
    %3647 = vmatprep.subr.mxu0 0.0
    %3648 = vmatpush2.msra.mxu0 0.0
    %3649 = vmatprep.subr.mxu0 0.0
    %3650 = vmatpush2.msra.mxu0 0.0
    %3651 = vmatprep.subr.mxu0 0.0
    %3652 = vmatpush2.msra.mxu0 0.0
    %3653 = vmatprep.subr.mxu0 0.0
    %3654 = vmatpush2.msra.mxu0 0.0
    %3655 = vmatprep.subr.mxu0 0.0
    %3656 = vmatpush2.msra.mxu0 0.0
    %3657 = vmatprep.subr.mxu0 0.0
    %3658 = vmatpush2.msra.mxu0 0.0
    %3659 = vmatprep.subr.mxu0 0.0
    %3660 = vmatpush2.msra.mxu0 0.0
    %3661 = vmatprep.subr.mxu0 0.0
    %3662 = vmatpush2.msra.mxu0 0.0
    %3663 = vmatprep.subr.mxu0 0.0
    %3664 = vmatpush2.msra.mxu0 0.0
    %3665 = vmatprep.subr.mxu0 0.0
    %3666 = vmatpush2.msra.mxu0 0.0
    %3667 = vmatprep.subr.mxu0 0.0
    %3668 = vmatpush2.msra.mxu0 0.0
    %3669 = vmatprep.subr.mxu0 0.0
    %3670 = vmatpush2.msra.mxu0 0.0
    %3671 = vmatprep.subr.mxu0 0.0
    %3672 = vmatpush2.msra.mxu0 0.0
    %3673 = vmatprep.subr.mxu0 0.0
    %3674 = vmatpush2.msra.mxu0 0.0
    %3675 = vmatprep.subr.mxu0 0.0
    %3676 = vmatpush2.msra.mxu0 0.0
    %3677 = vmatprep.subr.mxu0 0.0
    %3678 = vmatpush2.msra.mxu0 0.0
    %3679 = vmatprep.mubr.f32.mxu0 0.0
    %3680 = vmatmul.mubr.f32.gmra.mxu0 %v3528
    %v3681 = vpop.f32.mrf.mxu0
    %v3682 = vadd.f32 %v3613, %v3681
    %v3683 = vpop.f32.mrf.mxu0
    %3684 = vdwg.mxu0
    %3685 = vrot.lane.b32.xlu0 %v147, 96
    %v3686 = vpop.permute.xlu0 %3685
    %3687 = vrot.lane.b32.xlu0 %v148, 96
    %v3688 = vpop.permute.xlu0 %3687
    %3689 = vrot.lane.b32.xlu0 %v149, 96
    %v3690 = vpop.permute.xlu0 %3689
    %3691 = vrot.lane.b32.xlu0 %v150, 96
    %v3692 = vpop.permute.xlu0 %3691
    %3697 = vrot.lane.b32.xlu0 %v216, 96
    %v3698 = vpop.permute.xlu0 %3697
    %3700 = vmatprep.subr.mxu0 0.0
    %3701 = vmatpush1.msra.mxu0 0.0
    %3702 = vmatprep.subr.mxu0 0.0
    %3703 = vmatpush1.msra.mxu0 0.0
    %3704 = vmatprep.subr.mxu0 0.0
    %3705 = vmatpush1.msra.mxu0 0.0
    %3706 = vmatprep.subr.mxu0 0.0
    %3707 = vmatpush1.msra.mxu0 0.0
    %3708 = vmatprep.subr.mxu0 0.0
    %3709 = vmatpush1.msra.mxu0 0.0
    %3710 = vmatprep.subr.mxu0 0.0
    %3711 = vmatpush1.msra.mxu0 0.0
    %3712 = vmatprep.subr.mxu0 0.0
    %3713 = vmatpush1.msra.mxu0 0.0
    %3714 = vmatprep.subr.mxu0 0.0
    %3715 = vmatpush1.msra.mxu0 0.0
    %3716 = vmatprep.subr.mxu0 0.0
    %3717 = vmatpush1.msra.mxu0 0.0
    %3718 = vmatprep.subr.mxu0 0.0
    %3719 = vmatpush1.msra.mxu0 0.0
    %3720 = vmatprep.subr.mxu0 0.0
    %3721 = vmatpush1.msra.mxu0 0.0
    %3722 = vmatprep.subr.mxu0 0.0
    %3723 = vmatpush1.msra.mxu0 0.0
    %3724 = vmatprep.subr.mxu0 0.0
    %3725 = vmatpush1.msra.mxu0 %v3692
    %3726 = vmatprep.subr.mxu0 0.0
    %3727 = vmatpush1.msra.mxu0 %v3690
    %3728 = vmatprep.subr.mxu0 0.0
    %3729 = vmatpush1.msra.mxu0 %v3688
    %3730 = vmatprep.subr.mxu0 0.0
    %3731 = vmatpush1.msra.mxu0 %v3686
    %3732 = vmatprep.subr.mxu0 0.0
    %3733 = vmatpush2.msra.mxu0 0.0
    %3734 = vmatprep.subr.mxu0 0.0
    %3735 = vmatpush2.msra.mxu0 0.0
    %3736 = vmatprep.subr.mxu0 0.0
    %3737 = vmatpush2.msra.mxu0 0.0
    %3738 = vmatprep.subr.mxu0 0.0
    %3739 = vmatpush2.msra.mxu0 0.0
    %3740 = vmatprep.subr.mxu0 0.0
    %3741 = vmatpush2.msra.mxu0 0.0
    %3742 = vmatprep.subr.mxu0 0.0
    %3743 = vmatpush2.msra.mxu0 0.0
    %3744 = vmatprep.subr.mxu0 0.0
    %3745 = vmatpush2.msra.mxu0 0.0
    %3746 = vmatprep.subr.mxu0 0.0
    %3747 = vmatpush2.msra.mxu0 0.0
    %3748 = vmatprep.subr.mxu0 0.0
    %3749 = vmatpush2.msra.mxu0 0.0
    %3750 = vmatprep.subr.mxu0 0.0
    %3751 = vmatpush2.msra.mxu0 0.0
    %3752 = vmatprep.subr.mxu0 0.0
    %3753 = vmatpush2.msra.mxu0 0.0
    %3754 = vmatprep.subr.mxu0 0.0
    %3755 = vmatpush2.msra.mxu0 0.0
    %3756 = vmatprep.subr.mxu0 0.0
    %3757 = vmatpush2.msra.mxu0 0.0
    %3758 = vmatprep.subr.mxu0 0.0
    %3759 = vmatpush2.msra.mxu0 0.0
    %3760 = vmatprep.subr.mxu0 0.0
    %3761 = vmatpush2.msra.mxu0 0.0
    %3762 = vmatprep.subr.mxu0 0.0
    %3763 = vmatpush2.msra.mxu0 0.0
    %3764 = vmatprep.mubr.f32.mxu0 0.0
    %3765 = vmatmul.mubr.f32.gmra.mxu0 %v3528
    %v3766 = vpop.f32.mrf.mxu0
    %v3767 = vadd.f32 %v3698, %v3766
    %v3768 = vpop.f32.mrf.mxu0
    %3769 = vdwg.mxu0
    %3770 = vrot.lane.b32.xlu0 %v151, 96
    %v3771 = vpop.permute.xlu0 %3770
    %3772 = vrot.lane.b32.xlu0 %v152, 96
    %v3773 = vpop.permute.xlu0 %3772
    %3774 = vrot.lane.b32.xlu0 %v153, 96
    %v3775 = vpop.permute.xlu0 %3774
    %3776 = vrot.lane.b32.xlu0 %v154, 96
    %v3777 = vpop.permute.xlu0 %3776
    %3782 = vrot.lane.b32.xlu0 %v220, 96
    %v3783 = vpop.permute.xlu0 %3782
    %3785 = vmatprep.subr.mxu0 0.0
    %3786 = vmatpush1.msra.mxu0 0.0
    %3787 = vmatprep.subr.mxu0 0.0
    %3788 = vmatpush1.msra.mxu0 0.0
    %3789 = vmatprep.subr.mxu0 0.0
    %3790 = vmatpush1.msra.mxu0 0.0
    %3791 = vmatprep.subr.mxu0 0.0
    %3792 = vmatpush1.msra.mxu0 0.0
    %3793 = vmatprep.subr.mxu0 0.0
    %3794 = vmatpush1.msra.mxu0 0.0
    %3795 = vmatprep.subr.mxu0 0.0
    %3796 = vmatpush1.msra.mxu0 0.0
    %3797 = vmatprep.subr.mxu0 0.0
    %3798 = vmatpush1.msra.mxu0 0.0
    %3799 = vmatprep.subr.mxu0 0.0
    %3800 = vmatpush1.msra.mxu0 0.0
    %3801 = vmatprep.subr.mxu0 0.0
    %3802 = vmatpush1.msra.mxu0 0.0
    %3803 = vmatprep.subr.mxu0 0.0
    %3804 = vmatpush1.msra.mxu0 0.0
    %3805 = vmatprep.subr.mxu0 0.0
    %3806 = vmatpush1.msra.mxu0 0.0
    %3807 = vmatprep.subr.mxu0 0.0
    %3808 = vmatpush1.msra.mxu0 0.0
    %3809 = vmatprep.subr.mxu0 0.0
    %3810 = vmatpush1.msra.mxu0 %v3777
    %3811 = vmatprep.subr.mxu0 0.0
    %3812 = vmatpush1.msra.mxu0 %v3775
    %3813 = vmatprep.subr.mxu0 0.0
    %3814 = vmatpush1.msra.mxu0 %v3773
    %3815 = vmatprep.subr.mxu0 0.0
    %3816 = vmatpush1.msra.mxu0 %v3771
    %3817 = vmatprep.subr.mxu0 0.0
    %3818 = vmatpush2.msra.mxu0 0.0
    %3819 = vmatprep.subr.mxu0 0.0
    %3820 = vmatpush2.msra.mxu0 0.0
    %3821 = vmatprep.subr.mxu0 0.0
    %3822 = vmatpush2.msra.mxu0 0.0
    %3823 = vmatprep.subr.mxu0 0.0
    %3824 = vmatpush2.msra.mxu0 0.0
    %3825 = vmatprep.subr.mxu0 0.0
    %3826 = vmatpush2.msra.mxu0 0.0
    %3827 = vmatprep.subr.mxu0 0.0
    %3828 = vmatpush2.msra.mxu0 0.0
    %3829 = vmatprep.subr.mxu0 0.0
    %3830 = vmatpush2.msra.mxu0 0.0
    %3831 = vmatprep.subr.mxu0 0.0
    %3832 = vmatpush2.msra.mxu0 0.0
    %3833 = vmatprep.subr.mxu0 0.0
    %3834 = vmatpush2.msra.mxu0 0.0
    %3835 = vmatprep.subr.mxu0 0.0
    %3836 = vmatpush2.msra.mxu0 0.0
    %3837 = vmatprep.subr.mxu0 0.0
    %3838 = vmatpush2.msra.mxu0 0.0
    %3839 = vmatprep.subr.mxu0 0.0
    %3840 = vmatpush2.msra.mxu0 0.0
    %3841 = vmatprep.subr.mxu0 0.0
    %3842 = vmatpush2.msra.mxu0 0.0
    %3843 = vmatprep.subr.mxu0 0.0
    %3844 = vmatpush2.msra.mxu0 0.0
    %3845 = vmatprep.subr.mxu0 0.0
    %3846 = vmatpush2.msra.mxu0 0.0
    %3847 = vmatprep.subr.mxu0 0.0
    %3848 = vmatpush2.msra.mxu0 0.0
    %3849 = vmatprep.mubr.f32.mxu0 0.0
    %3850 = vmatmul.mubr.f32.gmra.mxu0 %v3528
    %v3851 = vpop.f32.mrf.mxu0
    %v3852 = vadd.f32 %v3783, %v3851
    %v3853 = vpop.f32.mrf.mxu0
    %3854 = vdwg.mxu0
    %3855 = vrot.lane.b32.xlu0 %v155, 96
    %v3856 = vpop.permute.xlu0 %3855
    %3857 = vrot.lane.b32.xlu0 %v156, 96
    %v3858 = vpop.permute.xlu0 %3857
    %3859 = vrot.lane.b32.xlu0 %v157, 96
    %v3860 = vpop.permute.xlu0 %3859
    %3861 = vrot.lane.b32.xlu0 %v158, 96
    %v3862 = vpop.permute.xlu0 %3861
    %3867 = vrot.lane.b32.xlu0 %v224, 96
    %v3868 = vpop.permute.xlu0 %3867
    %v3871 = vsel %vm245, %v138, 0
    %3873 = vmatprep.subr.mxu0 0.0
    %3874 = vmatpush1.msra.mxu0 0.0
    %3875 = vmatprep.subr.mxu0 0.0
    %3876 = vmatpush1.msra.mxu0 0.0
    %3877 = vmatprep.subr.mxu0 0.0
    %3878 = vmatpush1.msra.mxu0 0.0
    %3879 = vmatprep.subr.mxu0 0.0
    %3880 = vmatpush1.msra.mxu0 0.0
    %3881 = vmatprep.subr.mxu0 0.0
    %3882 = vmatpush1.msra.mxu0 0.0
    %3883 = vmatprep.subr.mxu0 0.0
    %3884 = vmatpush1.msra.mxu0 0.0
    %3885 = vmatprep.subr.mxu0 0.0
    %3886 = vmatpush1.msra.mxu0 0.0
    %3887 = vmatprep.subr.mxu0 0.0
    %3888 = vmatpush1.msra.mxu0 0.0
    %3889 = vmatprep.subr.mxu0 0.0
    %3890 = vmatpush1.msra.mxu0 0.0
    %3891 = vmatprep.subr.mxu0 0.0
    %3892 = vmatpush1.msra.mxu0 0.0
    %3893 = vmatprep.subr.mxu0 0.0
    %3894 = vmatpush1.msra.mxu0 0.0
    %3895 = vmatprep.subr.mxu0 0.0
    %3896 = vmatpush1.msra.mxu0 0.0
    %3897 = vmatprep.subr.mxu0 0.0
    %3898 = vmatpush1.msra.mxu0 %v3862
    %3899 = vmatprep.subr.mxu0 0.0
    %3900 = vmatpush1.msra.mxu0 %v3860
    %3901 = vmatprep.subr.mxu0 0.0
    %3902 = vmatpush1.msra.mxu0 %v3858
    %3903 = vmatprep.subr.mxu0 0.0
    %3904 = vmatpush1.msra.mxu0 %v3856
    %3905 = vmatprep.subr.mxu0 0.0
    %3906 = vmatpush2.msra.mxu0 0.0
    %3907 = vmatprep.subr.mxu0 0.0
    %3908 = vmatpush2.msra.mxu0 0.0
    %3909 = vmatprep.subr.mxu0 0.0
    %3910 = vmatpush2.msra.mxu0 0.0
    %3911 = vmatprep.subr.mxu0 0.0
    %3912 = vmatpush2.msra.mxu0 0.0
    %3913 = vmatprep.subr.mxu0 0.0
    %3914 = vmatpush2.msra.mxu0 0.0
    %3915 = vmatprep.subr.mxu0 0.0
    %3916 = vmatpush2.msra.mxu0 0.0
    %3917 = vmatprep.subr.mxu0 0.0
    %3918 = vmatpush2.msra.mxu0 0.0
    %3919 = vmatprep.subr.mxu0 0.0
    %3920 = vmatpush2.msra.mxu0 0.0
    %3921 = vmatprep.subr.mxu0 0.0
    %3922 = vmatpush2.msra.mxu0 0.0
    %3923 = vmatprep.subr.mxu0 0.0
    %3924 = vmatpush2.msra.mxu0 0.0
    %3925 = vmatprep.subr.mxu0 0.0
    %3926 = vmatpush2.msra.mxu0 0.0
    %3927 = vmatprep.subr.mxu0 0.0
    %3928 = vmatpush2.msra.mxu0 0.0
    %3929 = vmatprep.subr.mxu0 0.0
    %3930 = vmatpush2.msra.mxu0 0.0
    %3931 = vmatprep.subr.mxu0 0.0
    %3932 = vmatpush2.msra.mxu0 0.0
    %3933 = vmatprep.subr.mxu0 0.0
    %3934 = vmatpush2.msra.mxu0 0.0
    %3935 = vmatprep.subr.mxu0 0.0
    %3936 = vmatpush2.msra.mxu0 0.0
    %3937 = vmatprep.mubr.f32.mxu0 0.0
    %3938 = vmatmul.mubr.f32.gmra.mxu0 %v3871
    %v3939 = vpop.f32.mrf.mxu0
    %v3940 = vadd.f32 %v3868, %v3939
    %v3941 = vpop.f32.mrf.mxu0
    %3942 = vdwg.mxu0
    %3943 = vrot.lane.b32.xlu0 %v159, 96
    %v3944 = vpop.permute.xlu0 %3943
    %3945 = vrot.lane.b32.xlu0 %v160, 96
    %v3946 = vpop.permute.xlu0 %3945
    %3947 = vrot.lane.b32.xlu0 %v161, 96
    %v3948 = vpop.permute.xlu0 %3947
    %3949 = vrot.lane.b32.xlu0 %v162, 96
    %v3950 = vpop.permute.xlu0 %3949
    %3955 = vrot.lane.b32.xlu0 %v228, 96
    %v3956 = vpop.permute.xlu0 %3955
    %3958 = vmatprep.subr.mxu0 0.0
    %3959 = vmatpush1.msra.mxu0 0.0
    %3960 = vmatprep.subr.mxu0 0.0
    %3961 = vmatpush1.msra.mxu0 0.0
    %3962 = vmatprep.subr.mxu0 0.0
    %3963 = vmatpush1.msra.mxu0 0.0
    %3964 = vmatprep.subr.mxu0 0.0
    %3965 = vmatpush1.msra.mxu0 0.0
    %3966 = vmatprep.subr.mxu0 0.0
    %3967 = vmatpush1.msra.mxu0 0.0
    %3968 = vmatprep.subr.mxu0 0.0
    %3969 = vmatpush1.msra.mxu0 0.0
    %3970 = vmatprep.subr.mxu0 0.0
    %3971 = vmatpush1.msra.mxu0 0.0
    %3972 = vmatprep.subr.mxu0 0.0
    %3973 = vmatpush1.msra.mxu0 0.0
    %3974 = vmatprep.subr.mxu0 0.0
    %3975 = vmatpush1.msra.mxu0 0.0
    %3976 = vmatprep.subr.mxu0 0.0
    %3977 = vmatpush1.msra.mxu0 0.0
    %3978 = vmatprep.subr.mxu0 0.0
    %3979 = vmatpush1.msra.mxu0 0.0
    %3980 = vmatprep.subr.mxu0 0.0
    %3981 = vmatpush1.msra.mxu0 0.0
    %3982 = vmatprep.subr.mxu0 0.0
    %3983 = vmatpush1.msra.mxu0 %v3950
    %3984 = vmatprep.subr.mxu0 0.0
    %3985 = vmatpush1.msra.mxu0 %v3948
    %3986 = vmatprep.subr.mxu0 0.0
    %3987 = vmatpush1.msra.mxu0 %v3946
    %3988 = vmatprep.subr.mxu0 0.0
    %3989 = vmatpush1.msra.mxu0 %v3944
    %3990 = vmatprep.subr.mxu0 0.0
    %3991 = vmatpush2.msra.mxu0 0.0
    %3992 = vmatprep.subr.mxu0 0.0
    %3993 = vmatpush2.msra.mxu0 0.0
    %3994 = vmatprep.subr.mxu0 0.0
    %3995 = vmatpush2.msra.mxu0 0.0
    %3996 = vmatprep.subr.mxu0 0.0
    %3997 = vmatpush2.msra.mxu0 0.0
    %3998 = vmatprep.subr.mxu0 0.0
    %3999 = vmatpush2.msra.mxu0 0.0
    %4000 = vmatprep.subr.mxu0 0.0
    %4001 = vmatpush2.msra.mxu0 0.0
    %4002 = vmatprep.subr.mxu0 0.0
    %4003 = vmatpush2.msra.mxu0 0.0
    %4004 = vmatprep.subr.mxu0 0.0
    %4005 = vmatpush2.msra.mxu0 0.0
    %4006 = vmatprep.subr.mxu0 0.0
    %4007 = vmatpush2.msra.mxu0 0.0
    %4008 = vmatprep.subr.mxu0 0.0
    %4009 = vmatpush2.msra.mxu0 0.0
    %4010 = vmatprep.subr.mxu0 0.0
    %4011 = vmatpush2.msra.mxu0 0.0
    %4012 = vmatprep.subr.mxu0 0.0
    %4013 = vmatpush2.msra.mxu0 0.0
    %4014 = vmatprep.subr.mxu0 0.0
    %4015 = vmatpush2.msra.mxu0 0.0
    %4016 = vmatprep.subr.mxu0 0.0
    %4017 = vmatpush2.msra.mxu0 0.0
    %4018 = vmatprep.subr.mxu0 0.0
    %4019 = vmatpush2.msra.mxu0 0.0
    %4020 = vmatprep.subr.mxu0 0.0
    %4021 = vmatpush2.msra.mxu0 0.0
    %4022 = vmatprep.mubr.f32.mxu0 0.0
    %4023 = vmatmul.mubr.f32.gmra.mxu0 %v3871
    %v4024 = vpop.f32.mrf.mxu0
    %v4025 = vadd.f32 %v3956, %v4024
    %v4026 = vpop.f32.mrf.mxu0
    %4027 = vdwg.mxu0
    %4028 = vrot.lane.b32.xlu0 %v163, 96
    %v4029 = vpop.permute.xlu0 %4028
    %4030 = vrot.lane.b32.xlu0 %v164, 96
    %v4031 = vpop.permute.xlu0 %4030
    %4032 = vrot.lane.b32.xlu0 %v165, 96
    %v4033 = vpop.permute.xlu0 %4032
    %4034 = vrot.lane.b32.xlu0 %v166, 96
    %v4035 = vpop.permute.xlu0 %4034
    %4040 = vrot.lane.b32.xlu0 %v232, 96
    %v4041 = vpop.permute.xlu0 %4040
    %4043 = vmatprep.subr.mxu0 0.0
    %4044 = vmatpush1.msra.mxu0 0.0
    %4045 = vmatprep.subr.mxu0 0.0
    %4046 = vmatpush1.msra.mxu0 0.0
    %4047 = vmatprep.subr.mxu0 0.0
    %4048 = vmatpush1.msra.mxu0 0.0
    %4049 = vmatprep.subr.mxu0 0.0
    %4050 = vmatpush1.msra.mxu0 0.0
    %4051 = vmatprep.subr.mxu0 0.0
    %4052 = vmatpush1.msra.mxu0 0.0
    %4053 = vmatprep.subr.mxu0 0.0
    %4054 = vmatpush1.msra.mxu0 0.0
    %4055 = vmatprep.subr.mxu0 0.0
    %4056 = vmatpush1.msra.mxu0 0.0
    %4057 = vmatprep.subr.mxu0 0.0
    %4058 = vmatpush1.msra.mxu0 0.0
    %4059 = vmatprep.subr.mxu0 0.0
    %4060 = vmatpush1.msra.mxu0 0.0
    %4061 = vmatprep.subr.mxu0 0.0
    %4062 = vmatpush1.msra.mxu0 0.0
    %4063 = vmatprep.subr.mxu0 0.0
    %4064 = vmatpush1.msra.mxu0 0.0
    %4065 = vmatprep.subr.mxu0 0.0
    %4066 = vmatpush1.msra.mxu0 0.0
    %4067 = vmatprep.subr.mxu0 0.0
    %4068 = vmatpush1.msra.mxu0 %v4035
    %4069 = vmatprep.subr.mxu0 0.0
    %4070 = vmatpush1.msra.mxu0 %v4033
    %4071 = vmatprep.subr.mxu0 0.0
    %4072 = vmatpush1.msra.mxu0 %v4031
    %4073 = vmatprep.subr.mxu0 0.0
    %4074 = vmatpush1.msra.mxu0 %v4029
    %4075 = vmatprep.subr.mxu0 0.0
    %4076 = vmatpush2.msra.mxu0 0.0
    %4077 = vmatprep.subr.mxu0 0.0
    %4078 = vmatpush2.msra.mxu0 0.0
    %4079 = vmatprep.subr.mxu0 0.0
    %4080 = vmatpush2.msra.mxu0 0.0
    %4081 = vmatprep.subr.mxu0 0.0
    %4082 = vmatpush2.msra.mxu0 0.0
    %4083 = vmatprep.subr.mxu0 0.0
    %4084 = vmatpush2.msra.mxu0 0.0
    %4085 = vmatprep.subr.mxu0 0.0
    %4086 = vmatpush2.msra.mxu0 0.0
    %4087 = vmatprep.subr.mxu0 0.0
    %4088 = vmatpush2.msra.mxu0 0.0
    %4089 = vmatprep.subr.mxu0 0.0
    %4090 = vmatpush2.msra.mxu0 0.0
    %4091 = vmatprep.subr.mxu0 0.0
    %4092 = vmatpush2.msra.mxu0 0.0
    %4093 = vmatprep.subr.mxu0 0.0
    %4094 = vmatpush2.msra.mxu0 0.0
    %4095 = vmatprep.subr.mxu0 0.0
    %4096 = vmatpush2.msra.mxu0 0.0
    %4097 = vmatprep.subr.mxu0 0.0
    %4098 = vmatpush2.msra.mxu0 0.0
    %4099 = vmatprep.subr.mxu0 0.0
    %4100 = vmatpush2.msra.mxu0 0.0
    %4101 = vmatprep.subr.mxu0 0.0
    %4102 = vmatpush2.msra.mxu0 0.0
    %4103 = vmatprep.subr.mxu0 0.0
    %4104 = vmatpush2.msra.mxu0 0.0
    %4105 = vmatprep.subr.mxu0 0.0
    %4106 = vmatpush2.msra.mxu0 0.0
    %4107 = vmatprep.mubr.f32.mxu0 0.0
    %4108 = vmatmul.mubr.f32.gmra.mxu0 %v3871
    %v4109 = vpop.f32.mrf.mxu0
    %v4110 = vadd.f32 %v4041, %v4109
    %v4111 = vpop.f32.mrf.mxu0
    %4112 = vdwg.mxu0
    %4113 = vrot.lane.b32.xlu0 %v167, 96
    %v4114 = vpop.permute.xlu0 %4113
    %4115 = vrot.lane.b32.xlu0 %v168, 96
    %v4116 = vpop.permute.xlu0 %4115
    %4117 = vrot.lane.b32.xlu0 %v169, 96
    %v4118 = vpop.permute.xlu0 %4117
    %4119 = vrot.lane.b32.xlu0 %v170, 96
    %v4120 = vpop.permute.xlu0 %4119
    %4125 = vrot.lane.b32.xlu0 %v236, 96
    %v4126 = vpop.permute.xlu0 %4125
    %4128 = vmatprep.subr.mxu0 0.0
    %4129 = vmatpush1.msra.mxu0 0.0
    %4130 = vmatprep.subr.mxu0 0.0
    %4131 = vmatpush1.msra.mxu0 0.0
    %4132 = vmatprep.subr.mxu0 0.0
    %4133 = vmatpush1.msra.mxu0 0.0
    %4134 = vmatprep.subr.mxu0 0.0
    %4135 = vmatpush1.msra.mxu0 0.0
    %4136 = vmatprep.subr.mxu0 0.0
    %4137 = vmatpush1.msra.mxu0 0.0
    %4138 = vmatprep.subr.mxu0 0.0
    %4139 = vmatpush1.msra.mxu0 0.0
    %4140 = vmatprep.subr.mxu0 0.0
    %4141 = vmatpush1.msra.mxu0 0.0
    %4142 = vmatprep.subr.mxu0 0.0
    %4143 = vmatpush1.msra.mxu0 0.0
    %4144 = vmatprep.subr.mxu0 0.0
    %4145 = vmatpush1.msra.mxu0 0.0
    %4146 = vmatprep.subr.mxu0 0.0
    %4147 = vmatpush1.msra.mxu0 0.0
    %4148 = vmatprep.subr.mxu0 0.0
    %4149 = vmatpush1.msra.mxu0 0.0
    %4150 = vmatprep.subr.mxu0 0.0
    %4151 = vmatpush1.msra.mxu0 0.0
    %4152 = vmatprep.subr.mxu0 0.0
    %4153 = vmatpush1.msra.mxu0 %v4120
    %4154 = vmatprep.subr.mxu0 0.0
    %4155 = vmatpush1.msra.mxu0 %v4118
    %4156 = vmatprep.subr.mxu0 0.0
    %4157 = vmatpush1.msra.mxu0 %v4116
    %4158 = vmatprep.subr.mxu0 0.0
    %4159 = vmatpush1.msra.mxu0 %v4114
    %4160 = vmatprep.subr.mxu0 0.0
    %4161 = vmatpush2.msra.mxu0 0.0
    %4162 = vmatprep.subr.mxu0 0.0
    %4163 = vmatpush2.msra.mxu0 0.0
    %4164 = vmatprep.subr.mxu0 0.0
    %4165 = vmatpush2.msra.mxu0 0.0
    %4166 = vmatprep.subr.mxu0 0.0
    %4167 = vmatpush2.msra.mxu0 0.0
    %4168 = vmatprep.subr.mxu0 0.0
    %4169 = vmatpush2.msra.mxu0 0.0
    %4170 = vmatprep.subr.mxu0 0.0
    %4171 = vmatpush2.msra.mxu0 0.0
    %4172 = vmatprep.subr.mxu0 0.0
    %4173 = vmatpush2.msra.mxu0 0.0
    %4174 = vmatprep.subr.mxu0 0.0
    %4175 = vmatpush2.msra.mxu0 0.0
    %4176 = vmatprep.subr.mxu0 0.0
    %4177 = vmatpush2.msra.mxu0 0.0
    %4178 = vmatprep.subr.mxu0 0.0
    %4179 = vmatpush2.msra.mxu0 0.0
    %4180 = vmatprep.subr.mxu0 0.0
    %4181 = vmatpush2.msra.mxu0 0.0
    %4182 = vmatprep.subr.mxu0 0.0
    %4183 = vmatpush2.msra.mxu0 0.0
    %4184 = vmatprep.subr.mxu0 0.0
    %4185 = vmatpush2.msra.mxu0 0.0
    %4186 = vmatprep.subr.mxu0 0.0
    %4187 = vmatpush2.msra.mxu0 0.0
    %4188 = vmatprep.subr.mxu0 0.0
    %4189 = vmatpush2.msra.mxu0 0.0
    %4190 = vmatprep.subr.mxu0 0.0
    %4191 = vmatpush2.msra.mxu0 0.0
    %4192 = vmatprep.mubr.f32.mxu0 0.0
    %4193 = vmatmul.mubr.f32.gmra.mxu0 %v3871
    %v4194 = vpop.f32.mrf.mxu0
    %v4195 = vadd.f32 %v4126, %v4194
    %v4196 = vpop.f32.mrf.mxu0
    %4197 = vdwg.mxu0
    %v4198 = vld [vmem:[#allocation7] sm:$0xff]
    %v4199 = vld [vmem:[#allocation7 + $0x8] sm:$0xff]
    %v4200 = vld [vmem:[#allocation7 + $0x10] sm:$0xff]
    %v4201 = vld [vmem:[#allocation7 + $0x18] sm:$0xff]
    %v4202 = vld [vmem:[#allocation7 + $0x20] sm:$0xff]
    %v4203 = vld [vmem:[#allocation7 + $0x28] sm:$0xff]
    %v4204 = vld [vmem:[#allocation7 + $0x30] sm:$0xff]
    %v4205 = vld [vmem:[#allocation7 + $0x38] sm:$0xff]
    %v4206 = vmul.f32 %v2883, 0.35355338
    %v4207 = vmul.f32 %v2972, 0.35355338
    %v4208 = vmul.f32 %v3061, 0.35355338
    %v4209 = vmul.f32 %v3150, 0.35355338
    %v4210 = vmul.f32 %v3242, 0.35355338
    %v4211 = vmul.f32 %v3331, 0.35355338
    %v4212 = vmul.f32 %v3420, 0.35355338
    %v4213 = vmul.f32 %v3509, 0.35355338
    %v4215 = vsel %vm831, %v4206, 0
    %v4218 = vsel %vm831, %v3597, 0
    %4220 = vmatprep.subr.mxu0 0.0
    %4221 = vmatpush1.xpose.msra.mxu0 0.0
    %4222 = vmatprep.subr.mxu0 0.0
    %4223 = vmatpush1.xpose.msra.mxu0 0.0
    %4224 = vmatprep.subr.mxu0 0.0
    %4225 = vmatpush1.xpose.msra.mxu0 0.0
    %4226 = vmatprep.subr.mxu0 0.0
    %4227 = vmatpush1.xpose.msra.mxu0 0.0
    %4228 = vmatprep.subr.mxu0 0.0
    %4229 = vmatpush1.xpose.msra.mxu0 0.0
    %4230 = vmatprep.subr.mxu0 0.0
    %4231 = vmatpush1.xpose.msra.mxu0 0.0
    %4232 = vmatprep.subr.mxu0 0.0
    %4233 = vmatpush1.xpose.msra.mxu0 0.0
    %4234 = vmatprep.subr.mxu0 0.0
    %4235 = vmatpush1.xpose.msra.mxu0 0.0
    %4236 = vmatprep.subr.mxu0 0.0
    %4237 = vmatpush1.xpose.msra.mxu0 0.0
    %4238 = vmatprep.subr.mxu0 0.0
    %4239 = vmatpush1.xpose.msra.mxu0 0.0
    %4240 = vmatprep.subr.mxu0 0.0
    %4241 = vmatpush1.xpose.msra.mxu0 0.0
    %4242 = vmatprep.subr.mxu0 0.0
    %4243 = vmatpush1.xpose.msra.mxu0 0.0
    %4244 = vmatprep.subr.mxu0 0.0
    %4245 = vmatpush1.xpose.msra.mxu0 0.0
    %4246 = vmatprep.subr.mxu0 0.0
    %4247 = vmatpush1.xpose.msra.mxu0 0.0
    %4248 = vmatprep.subr.mxu0 0.0
    %4249 = vmatpush1.xpose.msra.mxu0 0.0
    %4250 = vmatprep.subr.mxu0 0.0
    %4251 = vmatpush1.xpose.msra.mxu0 %v4218
    %4252 = vmatprep.subr.mxu0 0.0
    %4253 = vmatpush2.xpose.msra.mxu0 0.0
    %4254 = vmatprep.subr.mxu0 0.0
    %4255 = vmatpush2.xpose.msra.mxu0 0.0
    %4256 = vmatprep.subr.mxu0 0.0
    %4257 = vmatpush2.xpose.msra.mxu0 0.0
    %4258 = vmatprep.subr.mxu0 0.0
    %4259 = vmatpush2.xpose.msra.mxu0 0.0
    %4260 = vmatprep.subr.mxu0 0.0
    %4261 = vmatpush2.xpose.msra.mxu0 0.0
    %4262 = vmatprep.subr.mxu0 0.0
    %4263 = vmatpush2.xpose.msra.mxu0 0.0
    %4264 = vmatprep.subr.mxu0 0.0
    %4265 = vmatpush2.xpose.msra.mxu0 0.0
    %4266 = vmatprep.subr.mxu0 0.0
    %4267 = vmatpush2.xpose.msra.mxu0 0.0
    %4268 = vmatprep.subr.mxu0 0.0
    %4269 = vmatpush2.xpose.msra.mxu0 0.0
    %4270 = vmatprep.subr.mxu0 0.0
    %4271 = vmatpush2.xpose.msra.mxu0 0.0
    %4272 = vmatprep.subr.mxu0 0.0
    %4273 = vmatpush2.xpose.msra.mxu0 0.0
    %4274 = vmatprep.subr.mxu0 0.0
    %4275 = vmatpush2.xpose.msra.mxu0 0.0
    %4276 = vmatprep.subr.mxu0 0.0
    %4277 = vmatpush2.xpose.msra.mxu0 0.0
    %4278 = vmatprep.subr.mxu0 0.0
    %4279 = vmatpush2.xpose.msra.mxu0 0.0
    %4280 = vmatprep.subr.mxu0 0.0
    %4281 = vmatpush2.xpose.msra.mxu0 0.0
    %4282 = vmatprep.subr.mxu0 0.0
    %4283 = vmatpush2.xpose.msra.mxu0 0.0
    %4284 = vmatprep.mubr.f32.mxu0 0.0
    %4285 = vmatmul.mubr.f32.gmra.mxu0 %v4215
    %v4286 = vpop.f32.mrf.mxu0
    %v4287 = vadd.f32 %v4198, %v4286
    %v4288 = vpop.f32.mrf.mxu0
    %4289 = vdwg.mxu0
    %v4291 = vsel %vm831, %v4207, 0
    %v4294 = vsel %vm831, %v3682, 0
    %4296 = vmatprep.subr.mxu0 0.0
    %4297 = vmatpush1.xpose.msra.mxu0 0.0
    %4298 = vmatprep.subr.mxu0 0.0
    %4299 = vmatpush1.xpose.msra.mxu0 0.0
    %4300 = vmatprep.subr.mxu0 0.0
    %4301 = vmatpush1.xpose.msra.mxu0 0.0
    %4302 = vmatprep.subr.mxu0 0.0
    %4303 = vmatpush1.xpose.msra.mxu0 0.0
    %4304 = vmatprep.subr.mxu0 0.0
    %4305 = vmatpush1.xpose.msra.mxu0 0.0
    %4306 = vmatprep.subr.mxu0 0.0
    %4307 = vmatpush1.xpose.msra.mxu0 0.0
    %4308 = vmatprep.subr.mxu0 0.0
    %4309 = vmatpush1.xpose.msra.mxu0 0.0
    %4310 = vmatprep.subr.mxu0 0.0
    %4311 = vmatpush1.xpose.msra.mxu0 0.0
    %4312 = vmatprep.subr.mxu0 0.0
    %4313 = vmatpush1.xpose.msra.mxu0 0.0
    %4314 = vmatprep.subr.mxu0 0.0
    %4315 = vmatpush1.xpose.msra.mxu0 0.0
    %4316 = vmatprep.subr.mxu0 0.0
    %4317 = vmatpush1.xpose.msra.mxu0 0.0
    %4318 = vmatprep.subr.mxu0 0.0
    %4319 = vmatpush1.xpose.msra.mxu0 0.0
    %4320 = vmatprep.subr.mxu0 0.0
    %4321 = vmatpush1.xpose.msra.mxu0 0.0
    %4322 = vmatprep.subr.mxu0 0.0
    %4323 = vmatpush1.xpose.msra.mxu0 0.0
    %4324 = vmatprep.subr.mxu0 0.0
    %4325 = vmatpush1.xpose.msra.mxu0 0.0
    %4326 = vmatprep.subr.mxu0 0.0
    %4327 = vmatpush1.xpose.msra.mxu0 %v4294
    %4328 = vmatprep.subr.mxu0 0.0
    %4329 = vmatpush2.xpose.msra.mxu0 0.0
    %4330 = vmatprep.subr.mxu0 0.0
    %4331 = vmatpush2.xpose.msra.mxu0 0.0
    %4332 = vmatprep.subr.mxu0 0.0
    %4333 = vmatpush2.xpose.msra.mxu0 0.0
    %4334 = vmatprep.subr.mxu0 0.0
    %4335 = vmatpush2.xpose.msra.mxu0 0.0
    %4336 = vmatprep.subr.mxu0 0.0
    %4337 = vmatpush2.xpose.msra.mxu0 0.0
    %4338 = vmatprep.subr.mxu0 0.0
    %4339 = vmatpush2.xpose.msra.mxu0 0.0
    %4340 = vmatprep.subr.mxu0 0.0
    %4341 = vmatpush2.xpose.msra.mxu0 0.0
    %4342 = vmatprep.subr.mxu0 0.0
    %4343 = vmatpush2.xpose.msra.mxu0 0.0
    %4344 = vmatprep.subr.mxu0 0.0
    %4345 = vmatpush2.xpose.msra.mxu0 0.0
    %4346 = vmatprep.subr.mxu0 0.0
    %4347 = vmatpush2.xpose.msra.mxu0 0.0
    %4348 = vmatprep.subr.mxu0 0.0
    %4349 = vmatpush2.xpose.msra.mxu0 0.0
    %4350 = vmatprep.subr.mxu0 0.0
    %4351 = vmatpush2.xpose.msra.mxu0 0.0
    %4352 = vmatprep.subr.mxu0 0.0
    %4353 = vmatpush2.xpose.msra.mxu0 0.0
    %4354 = vmatprep.subr.mxu0 0.0
    %4355 = vmatpush2.xpose.msra.mxu0 0.0
    %4356 = vmatprep.subr.mxu0 0.0
    %4357 = vmatpush2.xpose.msra.mxu0 0.0
    %4358 = vmatprep.subr.mxu0 0.0
    %4359 = vmatpush2.xpose.msra.mxu0 0.0
    %4360 = vmatprep.mubr.f32.mxu0 0.0
    %4361 = vmatmul.mubr.f32.gmra.mxu0 %v4291
    %v4362 = vpop.f32.mrf.mxu0
    %v4363 = vadd.f32 %v4199, %v4362
    %v4364 = vpop.f32.mrf.mxu0
    %4365 = vdwg.mxu0
    %v4367 = vsel %vm831, %v4208, 0
    %v4370 = vsel %vm831, %v3767, 0
    %4372 = vmatprep.subr.mxu0 0.0
    %4373 = vmatpush1.xpose.msra.mxu0 0.0
    %4374 = vmatprep.subr.mxu0 0.0
    %4375 = vmatpush1.xpose.msra.mxu0 0.0
    %4376 = vmatprep.subr.mxu0 0.0
    %4377 = vmatpush1.xpose.msra.mxu0 0.0
    %4378 = vmatprep.subr.mxu0 0.0
    %4379 = vmatpush1.xpose.msra.mxu0 0.0
    %4380 = vmatprep.subr.mxu0 0.0
    %4381 = vmatpush1.xpose.msra.mxu0 0.0
    %4382 = vmatprep.subr.mxu0 0.0
    %4383 = vmatpush1.xpose.msra.mxu0 0.0
    %4384 = vmatprep.subr.mxu0 0.0
    %4385 = vmatpush1.xpose.msra.mxu0 0.0
    %4386 = vmatprep.subr.mxu0 0.0
    %4387 = vmatpush1.xpose.msra.mxu0 0.0
    %4388 = vmatprep.subr.mxu0 0.0
    %4389 = vmatpush1.xpose.msra.mxu0 0.0
    %4390 = vmatprep.subr.mxu0 0.0
    %4391 = vmatpush1.xpose.msra.mxu0 0.0
    %4392 = vmatprep.subr.mxu0 0.0
    %4393 = vmatpush1.xpose.msra.mxu0 0.0
    %4394 = vmatprep.subr.mxu0 0.0
    %4395 = vmatpush1.xpose.msra.mxu0 0.0
    %4396 = vmatprep.subr.mxu0 0.0
    %4397 = vmatpush1.xpose.msra.mxu0 0.0
    %4398 = vmatprep.subr.mxu0 0.0
    %4399 = vmatpush1.xpose.msra.mxu0 0.0
    %4400 = vmatprep.subr.mxu0 0.0
    %4401 = vmatpush1.xpose.msra.mxu0 0.0
    %4402 = vmatprep.subr.mxu0 0.0
    %4403 = vmatpush1.xpose.msra.mxu0 %v4370
    %4404 = vmatprep.subr.mxu0 0.0
    %4405 = vmatpush2.xpose.msra.mxu0 0.0
    %4406 = vmatprep.subr.mxu0 0.0
    %4407 = vmatpush2.xpose.msra.mxu0 0.0
    %4408 = vmatprep.subr.mxu0 0.0
    %4409 = vmatpush2.xpose.msra.mxu0 0.0
    %4410 = vmatprep.subr.mxu0 0.0
    %4411 = vmatpush2.xpose.msra.mxu0 0.0
    %4412 = vmatprep.subr.mxu0 0.0
    %4413 = vmatpush2.xpose.msra.mxu0 0.0
    %4414 = vmatprep.subr.mxu0 0.0
    %4415 = vmatpush2.xpose.msra.mxu0 0.0
    %4416 = vmatprep.subr.mxu0 0.0
    %4417 = vmatpush2.xpose.msra.mxu0 0.0
    %4418 = vmatprep.subr.mxu0 0.0
    %4419 = vmatpush2.xpose.msra.mxu0 0.0
    %4420 = vmatprep.subr.mxu0 0.0
    %4421 = vmatpush2.xpose.msra.mxu0 0.0
    %4422 = vmatprep.subr.mxu0 0.0
    %4423 = vmatpush2.xpose.msra.mxu0 0.0
    %4424 = vmatprep.subr.mxu0 0.0
    %4425 = vmatpush2.xpose.msra.mxu0 0.0
    %4426 = vmatprep.subr.mxu0 0.0
    %4427 = vmatpush2.xpose.msra.mxu0 0.0
    %4428 = vmatprep.subr.mxu0 0.0
    %4429 = vmatpush2.xpose.msra.mxu0 0.0
    %4430 = vmatprep.subr.mxu0 0.0
    %4431 = vmatpush2.xpose.msra.mxu0 0.0
    %4432 = vmatprep.subr.mxu0 0.0
    %4433 = vmatpush2.xpose.msra.mxu0 0.0
    %4434 = vmatprep.subr.mxu0 0.0
    %4435 = vmatpush2.xpose.msra.mxu0 0.0
    %4436 = vmatprep.mubr.f32.mxu0 0.0
    %4437 = vmatmul.mubr.f32.gmra.mxu0 %v4367
    %v4438 = vpop.f32.mrf.mxu0
    %v4439 = vadd.f32 %v4200, %v4438
    %v4440 = vpop.f32.mrf.mxu0
    %4441 = vdwg.mxu0
    %v4443 = vsel %vm831, %v4209, 0
    %v4446 = vsel %vm831, %v3852, 0
    %4448 = vmatprep.subr.mxu0 0.0
    %4449 = vmatpush1.xpose.msra.mxu0 0.0
    %4450 = vmatprep.subr.mxu0 0.0
    %4451 = vmatpush1.xpose.msra.mxu0 0.0
    %4452 = vmatprep.subr.mxu0 0.0
    %4453 = vmatpush1.xpose.msra.mxu0 0.0
    %4454 = vmatprep.subr.mxu0 0.0
    %4455 = vmatpush1.xpose.msra.mxu0 0.0
    %4456 = vmatprep.subr.mxu0 0.0
    %4457 = vmatpush1.xpose.msra.mxu0 0.0
    %4458 = vmatprep.subr.mxu0 0.0
    %4459 = vmatpush1.xpose.msra.mxu0 0.0
    %4460 = vmatprep.subr.mxu0 0.0
    %4461 = vmatpush1.xpose.msra.mxu0 0.0
    %4462 = vmatprep.subr.mxu0 0.0
    %4463 = vmatpush1.xpose.msra.mxu0 0.0
    %4464 = vmatprep.subr.mxu0 0.0
    %4465 = vmatpush1.xpose.msra.mxu0 0.0
    %4466 = vmatprep.subr.mxu0 0.0
    %4467 = vmatpush1.xpose.msra.mxu0 0.0
    %4468 = vmatprep.subr.mxu0 0.0
    %4469 = vmatpush1.xpose.msra.mxu0 0.0
    %4470 = vmatprep.subr.mxu0 0.0
    %4471 = vmatpush1.xpose.msra.mxu0 0.0
    %4472 = vmatprep.subr.mxu0 0.0
    %4473 = vmatpush1.xpose.msra.mxu0 0.0
    %4474 = vmatprep.subr.mxu0 0.0
    %4475 = vmatpush1.xpose.msra.mxu0 0.0
    %4476 = vmatprep.subr.mxu0 0.0
    %4477 = vmatpush1.xpose.msra.mxu0 0.0
    %4478 = vmatprep.subr.mxu0 0.0
    %4479 = vmatpush1.xpose.msra.mxu0 %v4446
    %4480 = vmatprep.subr.mxu0 0.0
    %4481 = vmatpush2.xpose.msra.mxu0 0.0
    %4482 = vmatprep.subr.mxu0 0.0
    %4483 = vmatpush2.xpose.msra.mxu0 0.0
    %4484 = vmatprep.subr.mxu0 0.0
    %4485 = vmatpush2.xpose.msra.mxu0 0.0
    %4486 = vmatprep.subr.mxu0 0.0
    %4487 = vmatpush2.xpose.msra.mxu0 0.0
    %4488 = vmatprep.subr.mxu0 0.0
    %4489 = vmatpush2.xpose.msra.mxu0 0.0
    %4490 = vmatprep.subr.mxu0 0.0
    %4491 = vmatpush2.xpose.msra.mxu0 0.0
    %4492 = vmatprep.subr.mxu0 0.0
    %4493 = vmatpush2.xpose.msra.mxu0 0.0
    %4494 = vmatprep.subr.mxu0 0.0
    %4495 = vmatpush2.xpose.msra.mxu0 0.0
    %4496 = vmatprep.subr.mxu0 0.0
    %4497 = vmatpush2.xpose.msra.mxu0 0.0
    %4498 = vmatprep.subr.mxu0 0.0
    %4499 = vmatpush2.xpose.msra.mxu0 0.0
    %4500 = vmatprep.subr.mxu0 0.0
    %4501 = vmatpush2.xpose.msra.mxu0 0.0
    %4502 = vmatprep.subr.mxu0 0.0
    %4503 = vmatpush2.xpose.msra.mxu0 0.0
    %4504 = vmatprep.subr.mxu0 0.0
    %4505 = vmatpush2.xpose.msra.mxu0 0.0
    %4506 = vmatprep.subr.mxu0 0.0
    %4507 = vmatpush2.xpose.msra.mxu0 0.0
    %4508 = vmatprep.subr.mxu0 0.0
    %4509 = vmatpush2.xpose.msra.mxu0 0.0
    %4510 = vmatprep.subr.mxu0 0.0
    %4511 = vmatpush2.xpose.msra.mxu0 0.0
    %4512 = vmatprep.mubr.f32.mxu0 0.0
    %4513 = vmatmul.mubr.f32.gmra.mxu0 %v4443
    %v4514 = vpop.f32.mrf.mxu0
    %v4515 = vadd.f32 %v4201, %v4514
    %v4516 = vpop.f32.mrf.mxu0
    %4517 = vdwg.mxu0
    %v4519 = vsel %vm831, %v4210, 0
    %v4522 = vsel %vm831, %v3940, 0
    %4524 = vmatprep.subr.mxu0 0.0
    %4525 = vmatpush1.xpose.msra.mxu0 0.0
    %4526 = vmatprep.subr.mxu0 0.0
    %4527 = vmatpush1.xpose.msra.mxu0 0.0
    %4528 = vmatprep.subr.mxu0 0.0
    %4529 = vmatpush1.xpose.msra.mxu0 0.0
    %4530 = vmatprep.subr.mxu0 0.0
    %4531 = vmatpush1.xpose.msra.mxu0 0.0
    %4532 = vmatprep.subr.mxu0 0.0
    %4533 = vmatpush1.xpose.msra.mxu0 0.0
    %4534 = vmatprep.subr.mxu0 0.0
    %4535 = vmatpush1.xpose.msra.mxu0 0.0
    %4536 = vmatprep.subr.mxu0 0.0
    %4537 = vmatpush1.xpose.msra.mxu0 0.0
    %4538 = vmatprep.subr.mxu0 0.0
    %4539 = vmatpush1.xpose.msra.mxu0 0.0
    %4540 = vmatprep.subr.mxu0 0.0
    %4541 = vmatpush1.xpose.msra.mxu0 0.0
    %4542 = vmatprep.subr.mxu0 0.0
    %4543 = vmatpush1.xpose.msra.mxu0 0.0
    %4544 = vmatprep.subr.mxu0 0.0
    %4545 = vmatpush1.xpose.msra.mxu0 0.0
    %4546 = vmatprep.subr.mxu0 0.0
    %4547 = vmatpush1.xpose.msra.mxu0 0.0
    %4548 = vmatprep.subr.mxu0 0.0
    %4549 = vmatpush1.xpose.msra.mxu0 0.0
    %4550 = vmatprep.subr.mxu0 0.0
    %4551 = vmatpush1.xpose.msra.mxu0 0.0
    %4552 = vmatprep.subr.mxu0 0.0
    %4553 = vmatpush1.xpose.msra.mxu0 0.0
    %4554 = vmatprep.subr.mxu0 0.0
    %4555 = vmatpush1.xpose.msra.mxu0 %v4522
    %4556 = vmatprep.subr.mxu0 0.0
    %4557 = vmatpush2.xpose.msra.mxu0 0.0
    %4558 = vmatprep.subr.mxu0 0.0
    %4559 = vmatpush2.xpose.msra.mxu0 0.0
    %4560 = vmatprep.subr.mxu0 0.0
    %4561 = vmatpush2.xpose.msra.mxu0 0.0
    %4562 = vmatprep.subr.mxu0 0.0
    %4563 = vmatpush2.xpose.msra.mxu0 0.0
    %4564 = vmatprep.subr.mxu0 0.0
    %4565 = vmatpush2.xpose.msra.mxu0 0.0
    %4566 = vmatprep.subr.mxu0 0.0
    %4567 = vmatpush2.xpose.msra.mxu0 0.0
    %4568 = vmatprep.subr.mxu0 0.0
    %4569 = vmatpush2.xpose.msra.mxu0 0.0
    %4570 = vmatprep.subr.mxu0 0.0
    %4571 = vmatpush2.xpose.msra.mxu0 0.0
    %4572 = vmatprep.subr.mxu0 0.0
    %4573 = vmatpush2.xpose.msra.mxu0 0.0
    %4574 = vmatprep.subr.mxu0 0.0
    %4575 = vmatpush2.xpose.msra.mxu0 0.0
    %4576 = vmatprep.subr.mxu0 0.0
    %4577 = vmatpush2.xpose.msra.mxu0 0.0
    %4578 = vmatprep.subr.mxu0 0.0
    %4579 = vmatpush2.xpose.msra.mxu0 0.0
    %4580 = vmatprep.subr.mxu0 0.0
    %4581 = vmatpush2.xpose.msra.mxu0 0.0
    %4582 = vmatprep.subr.mxu0 0.0
    %4583 = vmatpush2.xpose.msra.mxu0 0.0
    %4584 = vmatprep.subr.mxu0 0.0
    %4585 = vmatpush2.xpose.msra.mxu0 0.0
    %4586 = vmatprep.subr.mxu0 0.0
    %4587 = vmatpush2.xpose.msra.mxu0 0.0
    %4588 = vmatprep.mubr.f32.mxu0 0.0
    %4589 = vmatmul.mubr.f32.gmra.mxu0 %v4519
    %v4590 = vpop.f32.mrf.mxu0
    %v4591 = vadd.f32 %v4202, %v4590
    %v4592 = vpop.f32.mrf.mxu0
    %4593 = vdwg.mxu0
    %v4595 = vsel %vm831, %v4211, 0
    %v4598 = vsel %vm831, %v4025, 0
    %4600 = vmatprep.subr.mxu0 0.0
    %4601 = vmatpush1.xpose.msra.mxu0 0.0
    %4602 = vmatprep.subr.mxu0 0.0
    %4603 = vmatpush1.xpose.msra.mxu0 0.0
    %4604 = vmatprep.subr.mxu0 0.0
    %4605 = vmatpush1.xpose.msra.mxu0 0.0
    %4606 = vmatprep.subr.mxu0 0.0
    %4607 = vmatpush1.xpose.msra.mxu0 0.0
    %4608 = vmatprep.subr.mxu0 0.0
    %4609 = vmatpush1.xpose.msra.mxu0 0.0
    %4610 = vmatprep.subr.mxu0 0.0
    %4611 = vmatpush1.xpose.msra.mxu0 0.0
    %4612 = vmatprep.subr.mxu0 0.0
    %4613 = vmatpush1.xpose.msra.mxu0 0.0
    %4614 = vmatprep.subr.mxu0 0.0
    %4615 = vmatpush1.xpose.msra.mxu0 0.0
    %4616 = vmatprep.subr.mxu0 0.0
    %4617 = vmatpush1.xpose.msra.mxu0 0.0
    %4618 = vmatprep.subr.mxu0 0.0
    %4619 = vmatpush1.xpose.msra.mxu0 0.0
    %4620 = vmatprep.subr.mxu0 0.0
    %4621 = vmatpush1.xpose.msra.mxu0 0.0
    %4622 = vmatprep.subr.mxu0 0.0
    %4623 = vmatpush1.xpose.msra.mxu0 0.0
    %4624 = vmatprep.subr.mxu0 0.0
    %4625 = vmatpush1.xpose.msra.mxu0 0.0
    %4626 = vmatprep.subr.mxu0 0.0
    %4627 = vmatpush1.xpose.msra.mxu0 0.0
    %4628 = vmatprep.subr.mxu0 0.0
    %4629 = vmatpush1.xpose.msra.mxu0 0.0
    %4630 = vmatprep.subr.mxu0 0.0
    %4631 = vmatpush1.xpose.msra.mxu0 %v4598
    %4632 = vmatprep.subr.mxu0 0.0
    %4633 = vmatpush2.xpose.msra.mxu0 0.0
    %4634 = vmatprep.subr.mxu0 0.0
    %4635 = vmatpush2.xpose.msra.mxu0 0.0
    %4636 = vmatprep.subr.mxu0 0.0
    %4637 = vmatpush2.xpose.msra.mxu0 0.0
    %4638 = vmatprep.subr.mxu0 0.0
    %4639 = vmatpush2.xpose.msra.mxu0 0.0
    %4640 = vmatprep.subr.mxu0 0.0
    %4641 = vmatpush2.xpose.msra.mxu0 0.0
    %4642 = vmatprep.subr.mxu0 0.0
    %4643 = vmatpush2.xpose.msra.mxu0 0.0
    %4644 = vmatprep.subr.mxu0 0.0
    %4645 = vmatpush2.xpose.msra.mxu0 0.0
    %4646 = vmatprep.subr.mxu0 0.0
    %4647 = vmatpush2.xpose.msra.mxu0 0.0
    %4648 = vmatprep.subr.mxu0 0.0
    %4649 = vmatpush2.xpose.msra.mxu0 0.0
    %4650 = vmatprep.subr.mxu0 0.0
    %4651 = vmatpush2.xpose.msra.mxu0 0.0
    %4652 = vmatprep.subr.mxu0 0.0
    %4653 = vmatpush2.xpose.msra.mxu0 0.0
    %4654 = vmatprep.subr.mxu0 0.0
    %4655 = vmatpush2.xpose.msra.mxu0 0.0
    %4656 = vmatprep.subr.mxu0 0.0
    %4657 = vmatpush2.xpose.msra.mxu0 0.0
    %4658 = vmatprep.subr.mxu0 0.0
    %4659 = vmatpush2.xpose.msra.mxu0 0.0
    %4660 = vmatprep.subr.mxu0 0.0
    %4661 = vmatpush2.xpose.msra.mxu0 0.0
    %4662 = vmatprep.subr.mxu0 0.0
    %4663 = vmatpush2.xpose.msra.mxu0 0.0
    %4664 = vmatprep.mubr.f32.mxu0 0.0
    %4665 = vmatmul.mubr.f32.gmra.mxu0 %v4595
    %v4666 = vpop.f32.mrf.mxu0
    %v4667 = vadd.f32 %v4203, %v4666
    %v4668 = vpop.f32.mrf.mxu0
    %4669 = vdwg.mxu0
    %v4671 = vsel %vm831, %v4212, 0
    %v4674 = vsel %vm831, %v4110, 0
    %4676 = vmatprep.subr.mxu0 0.0
    %4677 = vmatpush1.xpose.msra.mxu0 0.0
    %4678 = vmatprep.subr.mxu0 0.0
    %4679 = vmatpush1.xpose.msra.mxu0 0.0
    %4680 = vmatprep.subr.mxu0 0.0
    %4681 = vmatpush1.xpose.msra.mxu0 0.0
    %4682 = vmatprep.subr.mxu0 0.0
    %4683 = vmatpush1.xpose.msra.mxu0 0.0
    %4684 = vmatprep.subr.mxu0 0.0
    %4685 = vmatpush1.xpose.msra.mxu0 0.0
    %4686 = vmatprep.subr.mxu0 0.0
    %4687 = vmatpush1.xpose.msra.mxu0 0.0
    %4688 = vmatprep.subr.mxu0 0.0
    %4689 = vmatpush1.xpose.msra.mxu0 0.0
    %4690 = vmatprep.subr.mxu0 0.0
    %4691 = vmatpush1.xpose.msra.mxu0 0.0
    %4692 = vmatprep.subr.mxu0 0.0
    %4693 = vmatpush1.xpose.msra.mxu0 0.0
    %4694 = vmatprep.subr.mxu0 0.0
    %4695 = vmatpush1.xpose.msra.mxu0 0.0
    %4696 = vmatprep.subr.mxu0 0.0
    %4697 = vmatpush1.xpose.msra.mxu0 0.0
    %4698 = vmatprep.subr.mxu0 0.0
    %4699 = vmatpush1.xpose.msra.mxu0 0.0
    %4700 = vmatprep.subr.mxu0 0.0
    %4701 = vmatpush1.xpose.msra.mxu0 0.0
    %4702 = vmatprep.subr.mxu0 0.0
    %4703 = vmatpush1.xpose.msra.mxu0 0.0
    %4704 = vmatprep.subr.mxu0 0.0
    %4705 = vmatpush1.xpose.msra.mxu0 0.0
    %4706 = vmatprep.subr.mxu0 0.0
    %4707 = vmatpush1.xpose.msra.mxu0 %v4674
    %4708 = vmatprep.subr.mxu0 0.0
    %4709 = vmatpush2.xpose.msra.mxu0 0.0
    %4710 = vmatprep.subr.mxu0 0.0
    %4711 = vmatpush2.xpose.msra.mxu0 0.0
    %4712 = vmatprep.subr.mxu0 0.0
    %4713 = vmatpush2.xpose.msra.mxu0 0.0
    %4714 = vmatprep.subr.mxu0 0.0
    %4715 = vmatpush2.xpose.msra.mxu0 0.0
    %4716 = vmatprep.subr.mxu0 0.0
    %4717 = vmatpush2.xpose.msra.mxu0 0.0
    %4718 = vmatprep.subr.mxu0 0.0
    %4719 = vmatpush2.xpose.msra.mxu0 0.0
    %4720 = vmatprep.subr.mxu0 0.0
    %4721 = vmatpush2.xpose.msra.mxu0 0.0
    %4722 = vmatprep.subr.mxu0 0.0
    %4723 = vmatpush2.xpose.msra.mxu0 0.0
    %4724 = vmatprep.subr.mxu0 0.0
    %4725 = vmatpush2.xpose.msra.mxu0 0.0
    %4726 = vmatprep.subr.mxu0 0.0
    %4727 = vmatpush2.xpose.msra.mxu0 0.0
    %4728 = vmatprep.subr.mxu0 0.0
    %4729 = vmatpush2.xpose.msra.mxu0 0.0
    %4730 = vmatprep.subr.mxu0 0.0
    %4731 = vmatpush2.xpose.msra.mxu0 0.0
    %4732 = vmatprep.subr.mxu0 0.0
    %4733 = vmatpush2.xpose.msra.mxu0 0.0
    %4734 = vmatprep.subr.mxu0 0.0
    %4735 = vmatpush2.xpose.msra.mxu0 0.0
    %4736 = vmatprep.subr.mxu0 0.0
    %4737 = vmatpush2.xpose.msra.mxu0 0.0
    %4738 = vmatprep.subr.mxu0 0.0
    %4739 = vmatpush2.xpose.msra.mxu0 0.0
    %4740 = vmatprep.mubr.f32.mxu0 0.0
    %4741 = vmatmul.mubr.f32.gmra.mxu0 %v4671
    %v4742 = vpop.f32.mrf.mxu0
    %v4743 = vadd.f32 %v4204, %v4742
    %v4744 = vpop.f32.mrf.mxu0
    %4745 = vdwg.mxu0
    %v4747 = vsel %vm831, %v4213, 0
    %v4750 = vsel %vm831, %v4195, 0
    %4752 = vmatprep.subr.mxu0 0.0
    %4753 = vmatpush1.xpose.msra.mxu0 0.0
    %4754 = vmatprep.subr.mxu0 0.0
    %4755 = vmatpush1.xpose.msra.mxu0 0.0
    %4756 = vmatprep.subr.mxu0 0.0
    %4757 = vmatpush1.xpose.msra.mxu0 0.0
    %4758 = vmatprep.subr.mxu0 0.0
    %4759 = vmatpush1.xpose.msra.mxu0 0.0
    %4760 = vmatprep.subr.mxu0 0.0
    %4761 = vmatpush1.xpose.msra.mxu0 0.0
    %4762 = vmatprep.subr.mxu0 0.0
    %4763 = vmatpush1.xpose.msra.mxu0 0.0
    %4764 = vmatprep.subr.mxu0 0.0
    %4765 = vmatpush1.xpose.msra.mxu0 0.0
    %4766 = vmatprep.subr.mxu0 0.0
    %4767 = vmatpush1.xpose.msra.mxu0 0.0
    %4768 = vmatprep.subr.mxu0 0.0
    %4769 = vmatpush1.xpose.msra.mxu0 0.0
    %4770 = vmatprep.subr.mxu0 0.0
    %4771 = vmatpush1.xpose.msra.mxu0 0.0
    %4772 = vmatprep.subr.mxu0 0.0
    %4773 = vmatpush1.xpose.msra.mxu0 0.0
    %4774 = vmatprep.subr.mxu0 0.0
    %4775 = vmatpush1.xpose.msra.mxu0 0.0
    %4776 = vmatprep.subr.mxu0 0.0
    %4777 = vmatpush1.xpose.msra.mxu0 0.0
    %4778 = vmatprep.subr.mxu0 0.0
    %4779 = vmatpush1.xpose.msra.mxu0 0.0
    %4780 = vmatprep.subr.mxu0 0.0
    %4781 = vmatpush1.xpose.msra.mxu0 0.0
    %4782 = vmatprep.subr.mxu0 0.0
    %4783 = vmatpush1.xpose.msra.mxu0 %v4750
    %4784 = vmatprep.subr.mxu0 0.0
    %4785 = vmatpush2.xpose.msra.mxu0 0.0
    %4786 = vmatprep.subr.mxu0 0.0
    %4787 = vmatpush2.xpose.msra.mxu0 0.0
    %4788 = vmatprep.subr.mxu0 0.0
    %4789 = vmatpush2.xpose.msra.mxu0 0.0
    %4790 = vmatprep.subr.mxu0 0.0
    %4791 = vmatpush2.xpose.msra.mxu0 0.0
    %4792 = vmatprep.subr.mxu0 0.0
    %4793 = vmatpush2.xpose.msra.mxu0 0.0
    %4794 = vmatprep.subr.mxu0 0.0
    %4795 = vmatpush2.xpose.msra.mxu0 0.0
    %4796 = vmatprep.subr.mxu0 0.0
    %4797 = vmatpush2.xpose.msra.mxu0 0.0
    %4798 = vmatprep.subr.mxu0 0.0
    %4799 = vmatpush2.xpose.msra.mxu0 0.0
    %4800 = vmatprep.subr.mxu0 0.0
    %4801 = vmatpush2.xpose.msra.mxu0 0.0
    %4802 = vmatprep.subr.mxu0 0.0
    %4803 = vmatpush2.xpose.msra.mxu0 0.0
    %4804 = vmatprep.subr.mxu0 0.0
    %4805 = vmatpush2.xpose.msra.mxu0 0.0
    %4806 = vmatprep.subr.mxu0 0.0
    %4807 = vmatpush2.xpose.msra.mxu0 0.0
    %4808 = vmatprep.subr.mxu0 0.0
    %4809 = vmatpush2.xpose.msra.mxu0 0.0
    %4810 = vmatprep.subr.mxu0 0.0
    %4811 = vmatpush2.xpose.msra.mxu0 0.0
    %4812 = vmatprep.subr.mxu0 0.0
    %4813 = vmatpush2.xpose.msra.mxu0 0.0
    %4814 = vmatprep.subr.mxu0 0.0
    %4815 = vmatpush2.xpose.msra.mxu0 0.0
    %4816 = vmatprep.mubr.f32.mxu0 0.0
    %4817 = vmatmul.mubr.f32.gmra.mxu0 %v4747
    %v4818 = vpop.f32.mrf.mxu0
    %v4819 = vadd.f32 %v4205, %v4818
    %v4820 = vpop.f32.mrf.mxu0
    %4821 = vdwg.mxu0
    %v4822 = vsel %vm831, %v4287, -inf
    %4823 = vmax.xlane.f32.xlu0 %v4822
    %v4824 = vpop.xlane.xlu0 %4823
    %v4825 = vsel %vm831, %v4363, -inf
    %4826 = vmax.xlane.f32.xlu0 %v4825
    %v4827 = vpop.xlane.xlu0 %4826
    %v4828 = vsel %vm831, %v4439, -inf
    %4829 = vmax.xlane.f32.xlu0 %v4828
    %v4830 = vpop.xlane.xlu0 %4829
    %v4831 = vsel %vm831, %v4515, -inf
    %4832 = vmax.xlane.f32.xlu0 %v4831
    %v4833 = vpop.xlane.xlu0 %4832
    %v4834 = vsel %vm831, %v4591, -inf
    %4835 = vmax.xlane.f32.xlu0 %v4834
    %v4836 = vpop.xlane.xlu0 %4835
    %v4837 = vsel %vm831, %v4667, -inf
    %4838 = vmax.xlane.f32.xlu0 %v4837
    %v4839 = vpop.xlane.xlu0 %4838
    %v4840 = vsel %vm831, %v4743, -inf
    %4841 = vmax.xlane.f32.xlu0 %v4840
    %v4842 = vpop.xlane.xlu0 %4841
    %v4843 = vsel %vm831, %v4819, -inf
    %4844 = vmax.xlane.f32.xlu0 %v4843
    %v4845 = vpop.xlane.xlu0 %4844
    %v4846 = vsub.f32 %v4287, %v4824
    %v4847 = vsub.f32 %v4363, %v4827
    %v4848 = vsub.f32 %v4439, %v4830
    %v4849 = vsub.f32 %v4515, %v4833
    %v4850 = vsub.f32 %v4591, %v4836
    %v4851 = vsub.f32 %v4667, %v4839
    %v4852 = vsub.f32 %v4743, %v4842
    %v4853 = vsub.f32 %v4819, %v4845
    %v4854 = vmul.f32 %v4846, 1.442695
    %v4855 = vpow.pop %v4854
    %v4856 = vmul.f32 %v4847, 1.442695
    %v4857 = vpow.pop %v4856
    %v4858 = vmul.f32 %v4848, 1.442695
    %v4859 = vpow.pop %v4858
    %v4860 = vmul.f32 %v4849, 1.442695
    %v4861 = vpow.pop %v4860
    %v4862 = vmul.f32 %v4850, 1.442695
    %v4863 = vpow.pop %v4862
    %v4864 = vmul.f32 %v4851, 1.442695
    %v4865 = vpow.pop %v4864
    %v4866 = vmul.f32 %v4852, 1.442695
    %v4867 = vpow.pop %v4866
    %v4868 = vmul.f32 %v4853, 1.442695
    %v4869 = vpow.pop %v4868
    %v4870 = vsel %vm831, %v4855, 0.0
    %4871 = vadd.xlane.f32.xlu0 %v4870
    %v4872 = vpop.xlane.xlu0 %4871
    %v4873 = vsel %vm831, %v4857, 0.0
    %4874 = vadd.xlane.f32.xlu0 %v4873
    %v4875 = vpop.xlane.xlu0 %4874
    %v4876 = vsel %vm831, %v4859, 0.0
    %4877 = vadd.xlane.f32.xlu0 %v4876
    %v4878 = vpop.xlane.xlu0 %4877
    %v4879 = vsel %vm831, %v4861, 0.0
    %4880 = vadd.xlane.f32.xlu0 %v4879
    %v4881 = vpop.xlane.xlu0 %4880
    %v4882 = vsel %vm831, %v4863, 0.0
    %4883 = vadd.xlane.f32.xlu0 %v4882
    %v4884 = vpop.xlane.xlu0 %4883
    %v4885 = vsel %vm831, %v4865, 0.0
    %4886 = vadd.xlane.f32.xlu0 %v4885
    %v4887 = vpop.xlane.xlu0 %4886
    %v4888 = vsel %vm831, %v4867, 0.0
    %4889 = vadd.xlane.f32.xlu0 %v4888
    %v4890 = vpop.xlane.xlu0 %4889
    %v4891 = vsel %vm831, %v4869, 0.0
    %4892 = vadd.xlane.f32.xlu0 %v4891
    %v4893 = vpop.xlane.xlu0 %4892
    %v4894 = vrcp.pop %v4872
    %v4895 = vmul.f32 1.0, %v4894
    %v4896 = vrcp.pop %v4875
    %v4897 = vmul.f32 1.0, %v4896
    %v4898 = vrcp.pop %v4878
    %v4899 = vmul.f32 1.0, %v4898
    %v4900 = vrcp.pop %v4881
    %v4901 = vmul.f32 1.0, %v4900
    %v4902 = vrcp.pop %v4884
    %v4903 = vmul.f32 1.0, %v4902
    %v4904 = vrcp.pop %v4887
    %v4905 = vmul.f32 1.0, %v4904
    %v4906 = vrcp.pop %v4890
    %v4907 = vmul.f32 1.0, %v4906
    %v4908 = vrcp.pop %v4893
    %v4909 = vmul.f32 1.0, %v4908
    %v4910 = vmul.f32 %v4855, %v4895
    %v4911 = vmul.f32 %v4857, %v4897
    %v4912 = vmul.f32 %v4859, %v4899
    %v4913 = vmul.f32 %v4861, %v4901
    %v4914 = vmul.f32 %v4863, %v4903
    %v4915 = vmul.f32 %v4865, %v4905
    %v4916 = vmul.f32 %v4867, %v4907
    %v4917 = vmul.f32 %v4869, %v4909
    %4918 = vrot.lane.b32.xlu0 %v3597, 120
    %v4919 = vpop.permute.xlu0 %4918
    %v4922 = vsel %vm831, %v4910, 0
    %4924 = vmatprep.subr.mxu0 0.0
    %4925 = vmatpush1.msra.mxu0 0.0
    %4926 = vmatprep.subr.mxu0 0.0
    %4927 = vmatpush1.msra.mxu0 0.0
    %4928 = vmatprep.subr.mxu0 0.0
    %4929 = vmatpush1.msra.mxu0 0.0
    %4930 = vmatprep.subr.mxu0 0.0
    %4931 = vmatpush1.msra.mxu0 0.0
    %4932 = vmatprep.subr.mxu0 0.0
    %4933 = vmatpush1.msra.mxu0 0.0
    %4934 = vmatprep.subr.mxu0 0.0
    %4935 = vmatpush1.msra.mxu0 0.0
    %4936 = vmatprep.subr.mxu0 0.0
    %4937 = vmatpush1.msra.mxu0 0.0
    %4938 = vmatprep.subr.mxu0 0.0
    %4939 = vmatpush1.msra.mxu0 0.0
    %4940 = vmatprep.subr.mxu0 0.0
    %4941 = vmatpush1.msra.mxu0 0.0
    %4942 = vmatprep.subr.mxu0 0.0
    %4943 = vmatpush1.msra.mxu0 0.0
    %4944 = vmatprep.subr.mxu0 0.0
    %4945 = vmatpush1.msra.mxu0 0.0
    %4946 = vmatprep.subr.mxu0 0.0
    %4947 = vmatpush1.msra.mxu0 0.0
    %4948 = vmatprep.subr.mxu0 0.0
    %4949 = vmatpush1.msra.mxu0 0.0
    %4950 = vmatprep.subr.mxu0 0.0
    %4951 = vmatpush1.msra.mxu0 0.0
    %4952 = vmatprep.subr.mxu0 0.0
    %4953 = vmatpush1.msra.mxu0 0.0
    %4954 = vmatprep.subr.mxu0 0.0
    %4955 = vmatpush1.msra.mxu0 %v4919
    %4956 = vmatprep.subr.mxu0 0.0
    %4957 = vmatpush2.msra.mxu0 0.0
    %4958 = vmatprep.subr.mxu0 0.0
    %4959 = vmatpush2.msra.mxu0 0.0
    %4960 = vmatprep.subr.mxu0 0.0
    %4961 = vmatpush2.msra.mxu0 0.0
    %4962 = vmatprep.subr.mxu0 0.0
    %4963 = vmatpush2.msra.mxu0 0.0
    %4964 = vmatprep.subr.mxu0 0.0
    %4965 = vmatpush2.msra.mxu0 0.0
    %4966 = vmatprep.subr.mxu0 0.0
    %4967 = vmatpush2.msra.mxu0 0.0
    %4968 = vmatprep.subr.mxu0 0.0
    %4969 = vmatpush2.msra.mxu0 0.0
    %4970 = vmatprep.subr.mxu0 0.0
    %4971 = vmatpush2.msra.mxu0 0.0
    %4972 = vmatprep.subr.mxu0 0.0
    %4973 = vmatpush2.msra.mxu0 0.0
    %4974 = vmatprep.subr.mxu0 0.0
    %4975 = vmatpush2.msra.mxu0 0.0
    %4976 = vmatprep.subr.mxu0 0.0
    %4977 = vmatpush2.msra.mxu0 0.0
    %4978 = vmatprep.subr.mxu0 0.0
    %4979 = vmatpush2.msra.mxu0 0.0
    %4980 = vmatprep.subr.mxu0 0.0
    %4981 = vmatpush2.msra.mxu0 0.0
    %4982 = vmatprep.subr.mxu0 0.0
    %4983 = vmatpush2.msra.mxu0 0.0
    %4984 = vmatprep.subr.mxu0 0.0
    %4985 = vmatpush2.msra.mxu0 0.0
    %4986 = vmatprep.subr.mxu0 0.0
    %4987 = vmatpush2.msra.mxu0 0.0
    %4988 = vmatprep.mubr.f32.mxu0 0.0
    %4989 = vmatmul.mubr.f32.gmra.mxu0 %v4922
    %v4990 = vpop.f32.mrf.mxu0
    %v4991 = vadd.f32 0.0, %v4990
    %v4992 = vpop.f32.mrf.mxu0
    %4993 = vdwg.mxu0
    %4994 = vrot.lane.b32.xlu0 %v3682, 120
    %v4995 = vpop.permute.xlu0 %4994
    %v4998 = vsel %vm831, %v4911, 0
    %5000 = vmatprep.subr.mxu0 0.0
    %5001 = vmatpush1.msra.mxu0 0.0
    %5002 = vmatprep.subr.mxu0 0.0
    %5003 = vmatpush1.msra.mxu0 0.0
    %5004 = vmatprep.subr.mxu0 0.0
    %5005 = vmatpush1.msra.mxu0 0.0
    %5006 = vmatprep.subr.mxu0 0.0
    %5007 = vmatpush1.msra.mxu0 0.0
    %5008 = vmatprep.subr.mxu0 0.0
    %5009 = vmatpush1.msra.mxu0 0.0
    %5010 = vmatprep.subr.mxu0 0.0
    %5011 = vmatpush1.msra.mxu0 0.0
    %5012 = vmatprep.subr.mxu0 0.0
    %5013 = vmatpush1.msra.mxu0 0.0
    %5014 = vmatprep.subr.mxu0 0.0
    %5015 = vmatpush1.msra.mxu0 0.0
    %5016 = vmatprep.subr.mxu0 0.0
    %5017 = vmatpush1.msra.mxu0 0.0
    %5018 = vmatprep.subr.mxu0 0.0
    %5019 = vmatpush1.msra.mxu0 0.0
    %5020 = vmatprep.subr.mxu0 0.0
    %5021 = vmatpush1.msra.mxu0 0.0
    %5022 = vmatprep.subr.mxu0 0.0
    %5023 = vmatpush1.msra.mxu0 0.0
    %5024 = vmatprep.subr.mxu0 0.0
    %5025 = vmatpush1.msra.mxu0 0.0
    %5026 = vmatprep.subr.mxu0 0.0
    %5027 = vmatpush1.msra.mxu0 0.0
    %5028 = vmatprep.subr.mxu0 0.0
    %5029 = vmatpush1.msra.mxu0 0.0
    %5030 = vmatprep.subr.mxu0 0.0
    %5031 = vmatpush1.msra.mxu0 %v4995
    %5032 = vmatprep.subr.mxu0 0.0
    %5033 = vmatpush2.msra.mxu0 0.0
    %5034 = vmatprep.subr.mxu0 0.0
    %5035 = vmatpush2.msra.mxu0 0.0
    %5036 = vmatprep.subr.mxu0 0.0
    %5037 = vmatpush2.msra.mxu0 0.0
    %5038 = vmatprep.subr.mxu0 0.0
    %5039 = vmatpush2.msra.mxu0 0.0
    %5040 = vmatprep.subr.mxu0 0.0
    %5041 = vmatpush2.msra.mxu0 0.0
    %5042 = vmatprep.subr.mxu0 0.0
    %5043 = vmatpush2.msra.mxu0 0.0
    %5044 = vmatprep.subr.mxu0 0.0
    %5045 = vmatpush2.msra.mxu0 0.0
    %5046 = vmatprep.subr.mxu0 0.0
    %5047 = vmatpush2.msra.mxu0 0.0
    %5048 = vmatprep.subr.mxu0 0.0
    %5049 = vmatpush2.msra.mxu0 0.0
    %5050 = vmatprep.subr.mxu0 0.0
    %5051 = vmatpush2.msra.mxu0 0.0
    %5052 = vmatprep.subr.mxu0 0.0
    %5053 = vmatpush2.msra.mxu0 0.0
    %5054 = vmatprep.subr.mxu0 0.0
    %5055 = vmatpush2.msra.mxu0 0.0
    %5056 = vmatprep.subr.mxu0 0.0
    %5057 = vmatpush2.msra.mxu0 0.0
    %5058 = vmatprep.subr.mxu0 0.0
    %5059 = vmatpush2.msra.mxu0 0.0
    %5060 = vmatprep.subr.mxu0 0.0
    %5061 = vmatpush2.msra.mxu0 0.0
    %5062 = vmatprep.subr.mxu0 0.0
    %5063 = vmatpush2.msra.mxu0 0.0
    %5064 = vmatprep.mubr.f32.mxu0 0.0
    %5065 = vmatmul.mubr.f32.gmra.mxu0 %v4998
    %v5066 = vpop.f32.mrf.mxu0
    %v5067 = vadd.f32 0.0, %v5066
    %v5068 = vpop.f32.mrf.mxu0
    %5069 = vdwg.mxu0
    %5070 = vrot.lane.b32.xlu0 %v3767, 120
    %v5071 = vpop.permute.xlu0 %5070
    %v5074 = vsel %vm831, %v4912, 0
    %5076 = vmatprep.subr.mxu0 0.0
    %5077 = vmatpush1.msra.mxu0 0.0
    %5078 = vmatprep.subr.mxu0 0.0
    %5079 = vmatpush1.msra.mxu0 0.0
    %5080 = vmatprep.subr.mxu0 0.0
    %5081 = vmatpush1.msra.mxu0 0.0
    %5082 = vmatprep.subr.mxu0 0.0
    %5083 = vmatpush1.msra.mxu0 0.0
    %5084 = vmatprep.subr.mxu0 0.0
    %5085 = vmatpush1.msra.mxu0 0.0
    %5086 = vmatprep.subr.mxu0 0.0
    %5087 = vmatpush1.msra.mxu0 0.0
    %5088 = vmatprep.subr.mxu0 0.0
    %5089 = vmatpush1.msra.mxu0 0.0
    %5090 = vmatprep.subr.mxu0 0.0
    %5091 = vmatpush1.msra.mxu0 0.0
    %5092 = vmatprep.subr.mxu0 0.0
    %5093 = vmatpush1.msra.mxu0 0.0
    %5094 = vmatprep.subr.mxu0 0.0
    %5095 = vmatpush1.msra.mxu0 0.0
    %5096 = vmatprep.subr.mxu0 0.0
    %5097 = vmatpush1.msra.mxu0 0.0
    %5098 = vmatprep.subr.mxu0 0.0
    %5099 = vmatpush1.msra.mxu0 0.0
    %5100 = vmatprep.subr.mxu0 0.0
    %5101 = vmatpush1.msra.mxu0 0.0
    %5102 = vmatprep.subr.mxu0 0.0
    %5103 = vmatpush1.msra.mxu0 0.0
    %5104 = vmatprep.subr.mxu0 0.0
    %5105 = vmatpush1.msra.mxu0 0.0
    %5106 = vmatprep.subr.mxu0 0.0
    %5107 = vmatpush1.msra.mxu0 %v5071
    %5108 = vmatprep.subr.mxu0 0.0
    %5109 = vmatpush2.msra.mxu0 0.0
    %5110 = vmatprep.subr.mxu0 0.0
    %5111 = vmatpush2.msra.mxu0 0.0
    %5112 = vmatprep.subr.mxu0 0.0
    %5113 = vmatpush2.msra.mxu0 0.0
    %5114 = vmatprep.subr.mxu0 0.0
    %5115 = vmatpush2.msra.mxu0 0.0
    %5116 = vmatprep.subr.mxu0 0.0
    %5117 = vmatpush2.msra.mxu0 0.0
    %5118 = vmatprep.subr.mxu0 0.0
    %5119 = vmatpush2.msra.mxu0 0.0
    %5120 = vmatprep.subr.mxu0 0.0
    %5121 = vmatpush2.msra.mxu0 0.0
    %5122 = vmatprep.subr.mxu0 0.0
    %5123 = vmatpush2.msra.mxu0 0.0
    %5124 = vmatprep.subr.mxu0 0.0
    %5125 = vmatpush2.msra.mxu0 0.0
    %5126 = vmatprep.subr.mxu0 0.0
    %5127 = vmatpush2.msra.mxu0 0.0
    %5128 = vmatprep.subr.mxu0 0.0
    %5129 = vmatpush2.msra.mxu0 0.0
    %5130 = vmatprep.subr.mxu0 0.0
    %5131 = vmatpush2.msra.mxu0 0.0
    %5132 = vmatprep.subr.mxu0 0.0
    %5133 = vmatpush2.msra.mxu0 0.0
    %5134 = vmatprep.subr.mxu0 0.0
    %5135 = vmatpush2.msra.mxu0 0.0
    %5136 = vmatprep.subr.mxu0 0.0
    %5137 = vmatpush2.msra.mxu0 0.0
    %5138 = vmatprep.subr.mxu0 0.0
    %5139 = vmatpush2.msra.mxu0 0.0
    %5140 = vmatprep.mubr.f32.mxu0 0.0
    %5141 = vmatmul.mubr.f32.gmra.mxu0 %v5074
    %v5142 = vpop.f32.mrf.mxu0
    %v5143 = vadd.f32 0.0, %v5142
    %v5144 = vpop.f32.mrf.mxu0
    %5145 = vdwg.mxu0
    %5146 = vrot.lane.b32.xlu0 %v3852, 120
    %v5147 = vpop.permute.xlu0 %5146
    %v5150 = vsel %vm831, %v4913, 0
    %5152 = vmatprep.subr.mxu0 0.0
    %5153 = vmatpush1.msra.mxu0 0.0
    %5154 = vmatprep.subr.mxu0 0.0
    %5155 = vmatpush1.msra.mxu0 0.0
    %5156 = vmatprep.subr.mxu0 0.0
    %5157 = vmatpush1.msra.mxu0 0.0
    %5158 = vmatprep.subr.mxu0 0.0
    %5159 = vmatpush1.msra.mxu0 0.0
    %5160 = vmatprep.subr.mxu0 0.0
    %5161 = vmatpush1.msra.mxu0 0.0
    %5162 = vmatprep.subr.mxu0 0.0
    %5163 = vmatpush1.msra.mxu0 0.0
    %5164 = vmatprep.subr.mxu0 0.0
    %5165 = vmatpush1.msra.mxu0 0.0
    %5166 = vmatprep.subr.mxu0 0.0
    %5167 = vmatpush1.msra.mxu0 0.0
    %5168 = vmatprep.subr.mxu0 0.0
    %5169 = vmatpush1.msra.mxu0 0.0
    %5170 = vmatprep.subr.mxu0 0.0
    %5171 = vmatpush1.msra.mxu0 0.0
    %5172 = vmatprep.subr.mxu0 0.0
    %5173 = vmatpush1.msra.mxu0 0.0
    %5174 = vmatprep.subr.mxu0 0.0
    %5175 = vmatpush1.msra.mxu0 0.0
    %5176 = vmatprep.subr.mxu0 0.0
    %5177 = vmatpush1.msra.mxu0 0.0
    %5178 = vmatprep.subr.mxu0 0.0
    %5179 = vmatpush1.msra.mxu0 0.0
    %5180 = vmatprep.subr.mxu0 0.0
    %5181 = vmatpush1.msra.mxu0 0.0
    %5182 = vmatprep.subr.mxu0 0.0
    %5183 = vmatpush1.msra.mxu0 %v5147
    %5184 = vmatprep.subr.mxu0 0.0
    %5185 = vmatpush2.msra.mxu0 0.0
    %5186 = vmatprep.subr.mxu0 0.0
    %5187 = vmatpush2.msra.mxu0 0.0
    %5188 = vmatprep.subr.mxu0 0.0
    %5189 = vmatpush2.msra.mxu0 0.0
    %5190 = vmatprep.subr.mxu0 0.0
    %5191 = vmatpush2.msra.mxu0 0.0
    %5192 = vmatprep.subr.mxu0 0.0
    %5193 = vmatpush2.msra.mxu0 0.0
    %5194 = vmatprep.subr.mxu0 0.0
    %5195 = vmatpush2.msra.mxu0 0.0
    %5196 = vmatprep.subr.mxu0 0.0
    %5197 = vmatpush2.msra.mxu0 0.0
    %5198 = vmatprep.subr.mxu0 0.0
    %5199 = vmatpush2.msra.mxu0 0.0
    %5200 = vmatprep.subr.mxu0 0.0
    %5201 = vmatpush2.msra.mxu0 0.0
    %5202 = vmatprep.subr.mxu0 0.0
    %5203 = vmatpush2.msra.mxu0 0.0
    %5204 = vmatprep.subr.mxu0 0.0
    %5205 = vmatpush2.msra.mxu0 0.0
    %5206 = vmatprep.subr.mxu0 0.0
    %5207 = vmatpush2.msra.mxu0 0.0
    %5208 = vmatprep.subr.mxu0 0.0
    %5209 = vmatpush2.msra.mxu0 0.0
    %5210 = vmatprep.subr.mxu0 0.0
    %5211 = vmatpush2.msra.mxu0 0.0
    %5212 = vmatprep.subr.mxu0 0.0
    %5213 = vmatpush2.msra.mxu0 0.0
    %5214 = vmatprep.subr.mxu0 0.0
    %5215 = vmatpush2.msra.mxu0 0.0
    %5216 = vmatprep.mubr.f32.mxu0 0.0
    %5217 = vmatmul.mubr.f32.gmra.mxu0 %v5150
    %v5218 = vpop.f32.mrf.mxu0
    %v5219 = vadd.f32 0.0, %v5218
    %v5220 = vpop.f32.mrf.mxu0
    %5221 = vdwg.mxu0
    %5222 = vrot.lane.b32.xlu0 %v3940, 120
    %v5223 = vpop.permute.xlu0 %5222
    %v5226 = vsel %vm831, %v4914, 0
    %5228 = vmatprep.subr.mxu0 0.0
    %5229 = vmatpush1.msra.mxu0 0.0
    %5230 = vmatprep.subr.mxu0 0.0
    %5231 = vmatpush1.msra.mxu0 0.0
    %5232 = vmatprep.subr.mxu0 0.0
    %5233 = vmatpush1.msra.mxu0 0.0
    %5234 = vmatprep.subr.mxu0 0.0
    %5235 = vmatpush1.msra.mxu0 0.0
    %5236 = vmatprep.subr.mxu0 0.0
    %5237 = vmatpush1.msra.mxu0 0.0
    %5238 = vmatprep.subr.mxu0 0.0
    %5239 = vmatpush1.msra.mxu0 0.0
    %5240 = vmatprep.subr.mxu0 0.0
    %5241 = vmatpush1.msra.mxu0 0.0
    %5242 = vmatprep.subr.mxu0 0.0
    %5243 = vmatpush1.msra.mxu0 0.0
    %5244 = vmatprep.subr.mxu0 0.0
    %5245 = vmatpush1.msra.mxu0 0.0
    %5246 = vmatprep.subr.mxu0 0.0
    %5247 = vmatpush1.msra.mxu0 0.0
    %5248 = vmatprep.subr.mxu0 0.0
    %5249 = vmatpush1.msra.mxu0 0.0
    %5250 = vmatprep.subr.mxu0 0.0
    %5251 = vmatpush1.msra.mxu0 0.0
    %5252 = vmatprep.subr.mxu0 0.0
    %5253 = vmatpush1.msra.mxu0 0.0
    %5254 = vmatprep.subr.mxu0 0.0
    %5255 = vmatpush1.msra.mxu0 0.0
    %5256 = vmatprep.subr.mxu0 0.0
    %5257 = vmatpush1.msra.mxu0 0.0
    %5258 = vmatprep.subr.mxu0 0.0
    %5259 = vmatpush1.msra.mxu0 %v5223
    %5260 = vmatprep.subr.mxu0 0.0
    %5261 = vmatpush2.msra.mxu0 0.0
    %5262 = vmatprep.subr.mxu0 0.0
    %5263 = vmatpush2.msra.mxu0 0.0
    %5264 = vmatprep.subr.mxu0 0.0
    %5265 = vmatpush2.msra.mxu0 0.0
    %5266 = vmatprep.subr.mxu0 0.0
    %5267 = vmatpush2.msra.mxu0 0.0
    %5268 = vmatprep.subr.mxu0 0.0
    %5269 = vmatpush2.msra.mxu0 0.0
    %5270 = vmatprep.subr.mxu0 0.0
    %5271 = vmatpush2.msra.mxu0 0.0
    %5272 = vmatprep.subr.mxu0 0.0
    %5273 = vmatpush2.msra.mxu0 0.0
    %5274 = vmatprep.subr.mxu0 0.0
    %5275 = vmatpush2.msra.mxu0 0.0
    %5276 = vmatprep.subr.mxu0 0.0
    %5277 = vmatpush2.msra.mxu0 0.0
    %5278 = vmatprep.subr.mxu0 0.0
    %5279 = vmatpush2.msra.mxu0 0.0
    %5280 = vmatprep.subr.mxu0 0.0
    %5281 = vmatpush2.msra.mxu0 0.0
    %5282 = vmatprep.subr.mxu0 0.0
    %5283 = vmatpush2.msra.mxu0 0.0
    %5284 = vmatprep.subr.mxu0 0.0
    %5285 = vmatpush2.msra.mxu0 0.0
    %5286 = vmatprep.subr.mxu0 0.0
    %5287 = vmatpush2.msra.mxu0 0.0
    %5288 = vmatprep.subr.mxu0 0.0
    %5289 = vmatpush2.msra.mxu0 0.0
    %5290 = vmatprep.subr.mxu0 0.0
    %5291 = vmatpush2.msra.mxu0 0.0
    %5292 = vmatprep.mubr.f32.mxu0 0.0
    %5293 = vmatmul.mubr.f32.gmra.mxu0 %v5226
    %v5294 = vpop.f32.mrf.mxu0
    %v5295 = vadd.f32 0.0, %v5294
    %v5296 = vpop.f32.mrf.mxu0
    %5297 = vdwg.mxu0
    %5298 = vrot.lane.b32.xlu0 %v4025, 120
    %v5299 = vpop.permute.xlu0 %5298
    %v5302 = vsel %vm831, %v4915, 0
    %5304 = vmatprep.subr.mxu0 0.0
    %5305 = vmatpush1.msra.mxu0 0.0
    %5306 = vmatprep.subr.mxu0 0.0
    %5307 = vmatpush1.msra.mxu0 0.0
    %5308 = vmatprep.subr.mxu0 0.0
    %5309 = vmatpush1.msra.mxu0 0.0
    %5310 = vmatprep.subr.mxu0 0.0
    %5311 = vmatpush1.msra.mxu0 0.0
    %5312 = vmatprep.subr.mxu0 0.0
    %5313 = vmatpush1.msra.mxu0 0.0
    %5314 = vmatprep.subr.mxu0 0.0
    %5315 = vmatpush1.msra.mxu0 0.0
    %5316 = vmatprep.subr.mxu0 0.0
    %5317 = vmatpush1.msra.mxu0 0.0
    %5318 = vmatprep.subr.mxu0 0.0
    %5319 = vmatpush1.msra.mxu0 0.0
    %5320 = vmatprep.subr.mxu0 0.0
    %5321 = vmatpush1.msra.mxu0 0.0
    %5322 = vmatprep.subr.mxu0 0.0
    %5323 = vmatpush1.msra.mxu0 0.0
    %5324 = vmatprep.subr.mxu0 0.0
    %5325 = vmatpush1.msra.mxu0 0.0
    %5326 = vmatprep.subr.mxu0 0.0
    %5327 = vmatpush1.msra.mxu0 0.0
    %5328 = vmatprep.subr.mxu0 0.0
    %5329 = vmatpush1.msra.mxu0 0.0
    %5330 = vmatprep.subr.mxu0 0.0
    %5331 = vmatpush1.msra.mxu0 0.0
    %5332 = vmatprep.subr.mxu0 0.0
    %5333 = vmatpush1.msra.mxu0 0.0
    %5334 = vmatprep.subr.mxu0 0.0
    %5335 = vmatpush1.msra.mxu0 %v5299
    %5336 = vmatprep.subr.mxu0 0.0
    %5337 = vmatpush2.msra.mxu0 0.0
    %5338 = vmatprep.subr.mxu0 0.0
    %5339 = vmatpush2.msra.mxu0 0.0
    %5340 = vmatprep.subr.mxu0 0.0
    %5341 = vmatpush2.msra.mxu0 0.0
    %5342 = vmatprep.subr.mxu0 0.0
    %5343 = vmatpush2.msra.mxu0 0.0
    %5344 = vmatprep.subr.mxu0 0.0
    %5345 = vmatpush2.msra.mxu0 0.0
    %5346 = vmatprep.subr.mxu0 0.0
    %5347 = vmatpush2.msra.mxu0 0.0
    %5348 = vmatprep.subr.mxu0 0.0
    %5349 = vmatpush2.msra.mxu0 0.0
    %5350 = vmatprep.subr.mxu0 0.0
    %5351 = vmatpush2.msra.mxu0 0.0
    %5352 = vmatprep.subr.mxu0 0.0
    %5353 = vmatpush2.msra.mxu0 0.0
    %5354 = vmatprep.subr.mxu0 0.0
    %5355 = vmatpush2.msra.mxu0 0.0
    %5356 = vmatprep.subr.mxu0 0.0
    %5357 = vmatpush2.msra.mxu0 0.0
    %5358 = vmatprep.subr.mxu0 0.0
    %5359 = vmatpush2.msra.mxu0 0.0
    %5360 = vmatprep.subr.mxu0 0.0
    %5361 = vmatpush2.msra.mxu0 0.0
    %5362 = vmatprep.subr.mxu0 0.0
    %5363 = vmatpush2.msra.mxu0 0.0
    %5364 = vmatprep.subr.mxu0 0.0
    %5365 = vmatpush2.msra.mxu0 0.0
    %5366 = vmatprep.subr.mxu0 0.0
    %5367 = vmatpush2.msra.mxu0 0.0
    %5368 = vmatprep.mubr.f32.mxu0 0.0
    %5369 = vmatmul.mubr.f32.gmra.mxu0 %v5302
    %v5370 = vpop.f32.mrf.mxu0
    %v5371 = vadd.f32 0.0, %v5370
    %v5372 = vpop.f32.mrf.mxu0
    %5373 = vdwg.mxu0
    %5374 = vrot.lane.b32.xlu0 %v4110, 120
    %v5375 = vpop.permute.xlu0 %5374
    %v5378 = vsel %vm831, %v4916, 0
    %5380 = vmatprep.subr.mxu0 0.0
    %5381 = vmatpush1.msra.mxu0 0.0
    %5382 = vmatprep.subr.mxu0 0.0
    %5383 = vmatpush1.msra.mxu0 0.0
    %5384 = vmatprep.subr.mxu0 0.0
    %5385 = vmatpush1.msra.mxu0 0.0
    %5386 = vmatprep.subr.mxu0 0.0
    %5387 = vmatpush1.msra.mxu0 0.0
    %5388 = vmatprep.subr.mxu0 0.0
    %5389 = vmatpush1.msra.mxu0 0.0
    %5390 = vmatprep.subr.mxu0 0.0
    %5391 = vmatpush1.msra.mxu0 0.0
    %5392 = vmatprep.subr.mxu0 0.0
    %5393 = vmatpush1.msra.mxu0 0.0
    %5394 = vmatprep.subr.mxu0 0.0
    %5395 = vmatpush1.msra.mxu0 0.0
    %5396 = vmatprep.subr.mxu0 0.0
    %5397 = vmatpush1.msra.mxu0 0.0
    %5398 = vmatprep.subr.mxu0 0.0
    %5399 = vmatpush1.msra.mxu0 0.0
    %5400 = vmatprep.subr.mxu0 0.0
    %5401 = vmatpush1.msra.mxu0 0.0
    %5402 = vmatprep.subr.mxu0 0.0
    %5403 = vmatpush1.msra.mxu0 0.0
    %5404 = vmatprep.subr.mxu0 0.0
    %5405 = vmatpush1.msra.mxu0 0.0
    %5406 = vmatprep.subr.mxu0 0.0
    %5407 = vmatpush1.msra.mxu0 0.0
    %5408 = vmatprep.subr.mxu0 0.0
    %5409 = vmatpush1.msra.mxu0 0.0
    %5410 = vmatprep.subr.mxu0 0.0
    %5411 = vmatpush1.msra.mxu0 %v5375
    %5412 = vmatprep.subr.mxu0 0.0
    %5413 = vmatpush2.msra.mxu0 0.0
    %5414 = vmatprep.subr.mxu0 0.0
    %5415 = vmatpush2.msra.mxu0 0.0
    %5416 = vmatprep.subr.mxu0 0.0
    %5417 = vmatpush2.msra.mxu0 0.0
    %5418 = vmatprep.subr.mxu0 0.0
    %5419 = vmatpush2.msra.mxu0 0.0
    %5420 = vmatprep.subr.mxu0 0.0
    %5421 = vmatpush2.msra.mxu0 0.0
    %5422 = vmatprep.subr.mxu0 0.0
    %5423 = vmatpush2.msra.mxu0 0.0
    %5424 = vmatprep.subr.mxu0 0.0
    %5425 = vmatpush2.msra.mxu0 0.0
    %5426 = vmatprep.subr.mxu0 0.0
    %5427 = vmatpush2.msra.mxu0 0.0
    %5428 = vmatprep.subr.mxu0 0.0
    %5429 = vmatpush2.msra.mxu0 0.0
    %5430 = vmatprep.subr.mxu0 0.0
    %5431 = vmatpush2.msra.mxu0 0.0
    %5432 = vmatprep.subr.mxu0 0.0
    %5433 = vmatpush2.msra.mxu0 0.0
    %5434 = vmatprep.subr.mxu0 0.0
    %5435 = vmatpush2.msra.mxu0 0.0
    %5436 = vmatprep.subr.mxu0 0.0
    %5437 = vmatpush2.msra.mxu0 0.0
    %5438 = vmatprep.subr.mxu0 0.0
    %5439 = vmatpush2.msra.mxu0 0.0
    %5440 = vmatprep.subr.mxu0 0.0
    %5441 = vmatpush2.msra.mxu0 0.0
    %5442 = vmatprep.subr.mxu0 0.0
    %5443 = vmatpush2.msra.mxu0 0.0
    %5444 = vmatprep.mubr.f32.mxu0 0.0
    %5445 = vmatmul.mubr.f32.gmra.mxu0 %v5378
    %v5446 = vpop.f32.mrf.mxu0
    %v5447 = vadd.f32 0.0, %v5446
    %v5448 = vpop.f32.mrf.mxu0
    %5449 = vdwg.mxu0
    %5450 = vrot.lane.b32.xlu0 %v4195, 120
    %v5451 = vpop.permute.xlu0 %5450
    %v5454 = vsel %vm831, %v4917, 0
    %5456 = vmatprep.subr.mxu0 0.0
    %5457 = vmatpush1.msra.mxu0 0.0
    %5458 = vmatprep.subr.mxu0 0.0
    %5459 = vmatpush1.msra.mxu0 0.0
    %5460 = vmatprep.subr.mxu0 0.0
    %5461 = vmatpush1.msra.mxu0 0.0
    %5462 = vmatprep.subr.mxu0 0.0
    %5463 = vmatpush1.msra.mxu0 0.0
    %5464 = vmatprep.subr.mxu0 0.0
    %5465 = vmatpush1.msra.mxu0 0.0
    %5466 = vmatprep.subr.mxu0 0.0
    %5467 = vmatpush1.msra.mxu0 0.0
    %5468 = vmatprep.subr.mxu0 0.0
    %5469 = vmatpush1.msra.mxu0 0.0
    %5470 = vmatprep.subr.mxu0 0.0
    %5471 = vmatpush1.msra.mxu0 0.0
    %5472 = vmatprep.subr.mxu0 0.0
    %5473 = vmatpush1.msra.mxu0 0.0
    %5474 = vmatprep.subr.mxu0 0.0
    %5475 = vmatpush1.msra.mxu0 0.0
    %5476 = vmatprep.subr.mxu0 0.0
    %5477 = vmatpush1.msra.mxu0 0.0
    %5478 = vmatprep.subr.mxu0 0.0
    %5479 = vmatpush1.msra.mxu0 0.0
    %5480 = vmatprep.subr.mxu0 0.0
    %5481 = vmatpush1.msra.mxu0 0.0
    %5482 = vmatprep.subr.mxu0 0.0
    %5483 = vmatpush1.msra.mxu0 0.0
    %5484 = vmatprep.subr.mxu0 0.0
    %5485 = vmatpush1.msra.mxu0 0.0
    %5486 = vmatprep.subr.mxu0 0.0
    %5487 = vmatpush1.msra.mxu0 %v5451
    %5488 = vmatprep.subr.mxu0 0.0
    %5489 = vmatpush2.msra.mxu0 0.0
    %5490 = vmatprep.subr.mxu0 0.0
    %5491 = vmatpush2.msra.mxu0 0.0
    %5492 = vmatprep.subr.mxu0 0.0
    %5493 = vmatpush2.msra.mxu0 0.0
    %5494 = vmatprep.subr.mxu0 0.0
    %5495 = vmatpush2.msra.mxu0 0.0
    %5496 = vmatprep.subr.mxu0 0.0
    %5497 = vmatpush2.msra.mxu0 0.0
    %5498 = vmatprep.subr.mxu0 0.0
    %5499 = vmatpush2.msra.mxu0 0.0
    %5500 = vmatprep.subr.mxu0 0.0
    %5501 = vmatpush2.msra.mxu0 0.0
    %5502 = vmatprep.subr.mxu0 0.0
    %5503 = vmatpush2.msra.mxu0 0.0
    %5504 = vmatprep.subr.mxu0 0.0
    %5505 = vmatpush2.msra.mxu0 0.0
    %5506 = vmatprep.subr.mxu0 0.0
    %5507 = vmatpush2.msra.mxu0 0.0
    %5508 = vmatprep.subr.mxu0 0.0
    %5509 = vmatpush2.msra.mxu0 0.0
    %5510 = vmatprep.subr.mxu0 0.0
    %5511 = vmatpush2.msra.mxu0 0.0
    %5512 = vmatprep.subr.mxu0 0.0
    %5513 = vmatpush2.msra.mxu0 0.0
    %5514 = vmatprep.subr.mxu0 0.0
    %5515 = vmatpush2.msra.mxu0 0.0
    %5516 = vmatprep.subr.mxu0 0.0
    %5517 = vmatpush2.msra.mxu0 0.0
    %5518 = vmatprep.subr.mxu0 0.0
    %5519 = vmatpush2.msra.mxu0 0.0
    %5520 = vmatprep.mubr.f32.mxu0 0.0
    %5521 = vmatmul.mubr.f32.gmra.mxu0 %v5454
    %v5522 = vpop.f32.mrf.mxu0
    %v5523 = vadd.f32 0.0, %v5522
    %v5524 = vpop.f32.mrf.mxu0
    %5525 = vdwg.mxu0
    %v5527 = vsel %vm831, %v4991, 0
    %5529 = vmatprep.subr.mxu0 0.0
    %5530 = vmatpush1.msra.mxu0 0.0
    %5531 = vmatprep.subr.mxu0 0.0
    %5532 = vmatpush1.msra.mxu0 0.0
    %5533 = vmatprep.subr.mxu0 0.0
    %5534 = vmatpush1.msra.mxu0 0.0
    %5535 = vmatprep.subr.mxu0 0.0
    %5536 = vmatpush1.msra.mxu0 0.0
    %5537 = vmatprep.subr.mxu0 0.0
    %5538 = vmatpush1.msra.mxu0 0.0
    %5539 = vmatprep.subr.mxu0 0.0
    %5540 = vmatpush1.msra.mxu0 0.0
    %5541 = vmatprep.subr.mxu0 0.0
    %5542 = vmatpush1.msra.mxu0 0.0
    %5543 = vmatprep.subr.mxu0 0.0
    %5544 = vmatpush1.msra.mxu0 0.0
    %5545 = vmatprep.subr.mxu0 0.0
    %5546 = vmatpush1.msra.mxu0 0.0
    %5547 = vmatprep.subr.mxu0 0.0
    %5548 = vmatpush1.msra.mxu0 0.0
    %5549 = vmatprep.subr.mxu0 0.0
    %5550 = vmatpush1.msra.mxu0 0.0
    %5551 = vmatprep.subr.mxu0 0.0
    %5552 = vmatpush1.msra.mxu0 0.0
    %5553 = vmatprep.subr.mxu0 0.0
    %5554 = vmatpush1.msra.mxu0 0.0
    %5555 = vmatprep.subr.mxu0 0.0
    %5556 = vmatpush1.msra.mxu0 0.0
    %5557 = vmatprep.subr.mxu0 0.0
    %5558 = vmatpush1.msra.mxu0 0.0
    %5559 = vmatprep.subr.mxu0 0.0
    %5560 = vmatpush1.msra.mxu0 %v180
    %5561 = vmatprep.subr.mxu0 0.0
    %5562 = vmatpush2.msra.mxu0 0.0
    %5563 = vmatprep.subr.mxu0 0.0
    %5564 = vmatpush2.msra.mxu0 0.0
    %5565 = vmatprep.subr.mxu0 0.0
    %5566 = vmatpush2.msra.mxu0 0.0
    %5567 = vmatprep.subr.mxu0 0.0
    %5568 = vmatpush2.msra.mxu0 0.0
    %5569 = vmatprep.subr.mxu0 0.0
    %5570 = vmatpush2.msra.mxu0 0.0
    %5571 = vmatprep.subr.mxu0 0.0
    %5572 = vmatpush2.msra.mxu0 0.0
    %5573 = vmatprep.subr.mxu0 0.0
    %5574 = vmatpush2.msra.mxu0 0.0
    %5575 = vmatprep.subr.mxu0 0.0
    %5576 = vmatpush2.msra.mxu0 0.0
    %5577 = vmatprep.subr.mxu0 0.0
    %5578 = vmatpush2.msra.mxu0 0.0
    %5579 = vmatprep.subr.mxu0 0.0
    %5580 = vmatpush2.msra.mxu0 0.0
    %5581 = vmatprep.subr.mxu0 0.0
    %5582 = vmatpush2.msra.mxu0 0.0
    %5583 = vmatprep.subr.mxu0 0.0
    %5584 = vmatpush2.msra.mxu0 0.0
    %5585 = vmatprep.subr.mxu0 0.0
    %5586 = vmatpush2.msra.mxu0 0.0
    %5587 = vmatprep.subr.mxu0 0.0
    %5588 = vmatpush2.msra.mxu0 0.0
    %5589 = vmatprep.subr.mxu0 0.0
    %5590 = vmatpush2.msra.mxu0 0.0
    %5591 = vmatprep.subr.mxu0 0.0
    %5592 = vmatpush2.msra.mxu0 0.0
    %5593 = vmatprep.mubr.f32.mxu0 0.0
    %5594 = vmatmul.mubr.f32.gmra.mxu0 %v5527
    %v5595 = vpop.f32.mrf.mxu0
    %v5596 = vadd.f32 0.0, %v5595
    %v5597 = vpop.f32.mrf.mxu0
    %5598 = vdwg.mxu0
    %v5600 = vsel %vm831, %v5067, 0
    %5602 = vmatprep.subr.mxu0 0.0
    %5603 = vmatpush1.msra.mxu0 0.0
    %5604 = vmatprep.subr.mxu0 0.0
    %5605 = vmatpush1.msra.mxu0 0.0
    %5606 = vmatprep.subr.mxu0 0.0
    %5607 = vmatpush1.msra.mxu0 0.0
    %5608 = vmatprep.subr.mxu0 0.0
    %5609 = vmatpush1.msra.mxu0 0.0
    %5610 = vmatprep.subr.mxu0 0.0
    %5611 = vmatpush1.msra.mxu0 0.0
    %5612 = vmatprep.subr.mxu0 0.0
    %5613 = vmatpush1.msra.mxu0 0.0
    %5614 = vmatprep.subr.mxu0 0.0
    %5615 = vmatpush1.msra.mxu0 0.0
    %5616 = vmatprep.subr.mxu0 0.0
    %5617 = vmatpush1.msra.mxu0 0.0
    %5618 = vmatprep.subr.mxu0 0.0
    %5619 = vmatpush1.msra.mxu0 0.0
    %5620 = vmatprep.subr.mxu0 0.0
    %5621 = vmatpush1.msra.mxu0 0.0
    %5622 = vmatprep.subr.mxu0 0.0
    %5623 = vmatpush1.msra.mxu0 0.0
    %5624 = vmatprep.subr.mxu0 0.0
    %5625 = vmatpush1.msra.mxu0 0.0
    %5626 = vmatprep.subr.mxu0 0.0
    %5627 = vmatpush1.msra.mxu0 0.0
    %5628 = vmatprep.subr.mxu0 0.0
    %5629 = vmatpush1.msra.mxu0 0.0
    %5630 = vmatprep.subr.mxu0 0.0
    %5631 = vmatpush1.msra.mxu0 0.0
    %5632 = vmatprep.subr.mxu0 0.0
    %5633 = vmatpush1.msra.mxu0 %v182
    %5634 = vmatprep.subr.mxu0 0.0
    %5635 = vmatpush2.msra.mxu0 0.0
    %5636 = vmatprep.subr.mxu0 0.0
    %5637 = vmatpush2.msra.mxu0 0.0
    %5638 = vmatprep.subr.mxu0 0.0
    %5639 = vmatpush2.msra.mxu0 0.0
    %5640 = vmatprep.subr.mxu0 0.0
    %5641 = vmatpush2.msra.mxu0 0.0
    %5642 = vmatprep.subr.mxu0 0.0
    %5643 = vmatpush2.msra.mxu0 0.0
    %5644 = vmatprep.subr.mxu0 0.0
    %5645 = vmatpush2.msra.mxu0 0.0
    %5646 = vmatprep.subr.mxu0 0.0
    %5647 = vmatpush2.msra.mxu0 0.0
    %5648 = vmatprep.subr.mxu0 0.0
    %5649 = vmatpush2.msra.mxu0 0.0
    %5650 = vmatprep.subr.mxu0 0.0
    %5651 = vmatpush2.msra.mxu0 0.0
    %5652 = vmatprep.subr.mxu0 0.0
    %5653 = vmatpush2.msra.mxu0 0.0
    %5654 = vmatprep.subr.mxu0 0.0
    %5655 = vmatpush2.msra.mxu0 0.0
    %5656 = vmatprep.subr.mxu0 0.0
    %5657 = vmatpush2.msra.mxu0 0.0
    %5658 = vmatprep.subr.mxu0 0.0
    %5659 = vmatpush2.msra.mxu0 0.0
    %5660 = vmatprep.subr.mxu0 0.0
    %5661 = vmatpush2.msra.mxu0 0.0
    %5662 = vmatprep.subr.mxu0 0.0
    %5663 = vmatpush2.msra.mxu0 0.0
    %5664 = vmatprep.subr.mxu0 0.0
    %5665 = vmatpush2.msra.mxu0 0.0
    %5666 = vmatprep.mubr.f32.mxu0 0.0
    %5667 = vmatmul.mubr.f32.gmra.mxu0 %v5600
    %v5668 = vpop.f32.mrf.mxu0
    %v5669 = vadd.f32 0.0, %v5668
    %v5670 = vpop.f32.mrf.mxu0
    %5671 = vdwg.mxu0
    %v5673 = vsel %vm831, %v5143, 0
    %5675 = vmatprep.subr.mxu0 0.0
    %5676 = vmatpush1.msra.mxu0 0.0
    %5677 = vmatprep.subr.mxu0 0.0
    %5678 = vmatpush1.msra.mxu0 0.0
    %5679 = vmatprep.subr.mxu0 0.0
    %5680 = vmatpush1.msra.mxu0 0.0
    %5681 = vmatprep.subr.mxu0 0.0
    %5682 = vmatpush1.msra.mxu0 0.0
    %5683 = vmatprep.subr.mxu0 0.0
    %5684 = vmatpush1.msra.mxu0 0.0
    %5685 = vmatprep.subr.mxu0 0.0
    %5686 = vmatpush1.msra.mxu0 0.0
    %5687 = vmatprep.subr.mxu0 0.0
    %5688 = vmatpush1.msra.mxu0 0.0
    %5689 = vmatprep.subr.mxu0 0.0
    %5690 = vmatpush1.msra.mxu0 0.0
    %5691 = vmatprep.subr.mxu0 0.0
    %5692 = vmatpush1.msra.mxu0 0.0
    %5693 = vmatprep.subr.mxu0 0.0
    %5694 = vmatpush1.msra.mxu0 0.0
    %5695 = vmatprep.subr.mxu0 0.0
    %5696 = vmatpush1.msra.mxu0 0.0
    %5697 = vmatprep.subr.mxu0 0.0
    %5698 = vmatpush1.msra.mxu0 0.0
    %5699 = vmatprep.subr.mxu0 0.0
    %5700 = vmatpush1.msra.mxu0 0.0
    %5701 = vmatprep.subr.mxu0 0.0
    %5702 = vmatpush1.msra.mxu0 0.0
    %5703 = vmatprep.subr.mxu0 0.0
    %5704 = vmatpush1.msra.mxu0 0.0
    %5705 = vmatprep.subr.mxu0 0.0
    %5706 = vmatpush1.msra.mxu0 %v184
    %5707 = vmatprep.subr.mxu0 0.0
    %5708 = vmatpush2.msra.mxu0 0.0
    %5709 = vmatprep.subr.mxu0 0.0
    %5710 = vmatpush2.msra.mxu0 0.0
    %5711 = vmatprep.subr.mxu0 0.0
    %5712 = vmatpush2.msra.mxu0 0.0
    %5713 = vmatprep.subr.mxu0 0.0
    %5714 = vmatpush2.msra.mxu0 0.0
    %5715 = vmatprep.subr.mxu0 0.0
    %5716 = vmatpush2.msra.mxu0 0.0
    %5717 = vmatprep.subr.mxu0 0.0
    %5718 = vmatpush2.msra.mxu0 0.0
    %5719 = vmatprep.subr.mxu0 0.0
    %5720 = vmatpush2.msra.mxu0 0.0
    %5721 = vmatprep.subr.mxu0 0.0
    %5722 = vmatpush2.msra.mxu0 0.0
    %5723 = vmatprep.subr.mxu0 0.0
    %5724 = vmatpush2.msra.mxu0 0.0
    %5725 = vmatprep.subr.mxu0 0.0
    %5726 = vmatpush2.msra.mxu0 0.0
    %5727 = vmatprep.subr.mxu0 0.0
    %5728 = vmatpush2.msra.mxu0 0.0
    %5729 = vmatprep.subr.mxu0 0.0
    %5730 = vmatpush2.msra.mxu0 0.0
    %5731 = vmatprep.subr.mxu0 0.0
    %5732 = vmatpush2.msra.mxu0 0.0
    %5733 = vmatprep.subr.mxu0 0.0
    %5734 = vmatpush2.msra.mxu0 0.0
    %5735 = vmatprep.subr.mxu0 0.0
    %5736 = vmatpush2.msra.mxu0 0.0
    %5737 = vmatprep.subr.mxu0 0.0
    %5738 = vmatpush2.msra.mxu0 0.0
    %5739 = vmatprep.mubr.f32.mxu0 0.0
    %5740 = vmatmul.mubr.f32.gmra.mxu0 %v5673
    %v5741 = vpop.f32.mrf.mxu0
    %v5742 = vadd.f32 0.0, %v5741
    %v5743 = vpop.f32.mrf.mxu0
    %5744 = vdwg.mxu0
    %v5746 = vsel %vm831, %v5219, 0
    %5748 = vmatprep.subr.mxu0 0.0
    %5749 = vmatpush1.msra.mxu0 0.0
    %5750 = vmatprep.subr.mxu0 0.0
    %5751 = vmatpush1.msra.mxu0 0.0
    %5752 = vmatprep.subr.mxu0 0.0
    %5753 = vmatpush1.msra.mxu0 0.0
    %5754 = vmatprep.subr.mxu0 0.0
    %5755 = vmatpush1.msra.mxu0 0.0
    %5756 = vmatprep.subr.mxu0 0.0
    %5757 = vmatpush1.msra.mxu0 0.0
    %5758 = vmatprep.subr.mxu0 0.0
    %5759 = vmatpush1.msra.mxu0 0.0
    %5760 = vmatprep.subr.mxu0 0.0
    %5761 = vmatpush1.msra.mxu0 0.0
    %5762 = vmatprep.subr.mxu0 0.0
    %5763 = vmatpush1.msra.mxu0 0.0
    %5764 = vmatprep.subr.mxu0 0.0
    %5765 = vmatpush1.msra.mxu0 0.0
    %5766 = vmatprep.subr.mxu0 0.0
    %5767 = vmatpush1.msra.mxu0 0.0
    %5768 = vmatprep.subr.mxu0 0.0
    %5769 = vmatpush1.msra.mxu0 0.0
    %5770 = vmatprep.subr.mxu0 0.0
    %5771 = vmatpush1.msra.mxu0 0.0
    %5772 = vmatprep.subr.mxu0 0.0
    %5773 = vmatpush1.msra.mxu0 0.0
    %5774 = vmatprep.subr.mxu0 0.0
    %5775 = vmatpush1.msra.mxu0 0.0
    %5776 = vmatprep.subr.mxu0 0.0
    %5777 = vmatpush1.msra.mxu0 0.0
    %5778 = vmatprep.subr.mxu0 0.0
    %5779 = vmatpush1.msra.mxu0 %v186
    %5780 = vmatprep.subr.mxu0 0.0
    %5781 = vmatpush2.msra.mxu0 0.0
    %5782 = vmatprep.subr.mxu0 0.0
    %5783 = vmatpush2.msra.mxu0 0.0
    %5784 = vmatprep.subr.mxu0 0.0
    %5785 = vmatpush2.msra.mxu0 0.0
    %5786 = vmatprep.subr.mxu0 0.0
    %5787 = vmatpush2.msra.mxu0 0.0
    %5788 = vmatprep.subr.mxu0 0.0
    %5789 = vmatpush2.msra.mxu0 0.0
    %5790 = vmatprep.subr.mxu0 0.0
    %5791 = vmatpush2.msra.mxu0 0.0
    %5792 = vmatprep.subr.mxu0 0.0
    %5793 = vmatpush2.msra.mxu0 0.0
    %5794 = vmatprep.subr.mxu0 0.0
    %5795 = vmatpush2.msra.mxu0 0.0
    %5796 = vmatprep.subr.mxu0 0.0
    %5797 = vmatpush2.msra.mxu0 0.0
    %5798 = vmatprep.subr.mxu0 0.0
    %5799 = vmatpush2.msra.mxu0 0.0
    %5800 = vmatprep.subr.mxu0 0.0
    %5801 = vmatpush2.msra.mxu0 0.0
    %5802 = vmatprep.subr.mxu0 0.0
    %5803 = vmatpush2.msra.mxu0 0.0
    %5804 = vmatprep.subr.mxu0 0.0
    %5805 = vmatpush2.msra.mxu0 0.0
    %5806 = vmatprep.subr.mxu0 0.0
    %5807 = vmatpush2.msra.mxu0 0.0
    %5808 = vmatprep.subr.mxu0 0.0
    %5809 = vmatpush2.msra.mxu0 0.0
    %5810 = vmatprep.subr.mxu0 0.0
    %5811 = vmatpush2.msra.mxu0 0.0
    %5812 = vmatprep.mubr.f32.mxu0 0.0
    %5813 = vmatmul.mubr.f32.gmra.mxu0 %v5746
    %v5814 = vpop.f32.mrf.mxu0
    %v5815 = vadd.f32 0.0, %v5814
    %v5816 = vpop.f32.mrf.mxu0
    %5817 = vdwg.mxu0
    %v5819 = vsel %vm831, %v5295, 0
    %5821 = vmatprep.subr.mxu0 0.0
    %5822 = vmatpush1.msra.mxu0 0.0
    %5823 = vmatprep.subr.mxu0 0.0
    %5824 = vmatpush1.msra.mxu0 0.0
    %5825 = vmatprep.subr.mxu0 0.0
    %5826 = vmatpush1.msra.mxu0 0.0
    %5827 = vmatprep.subr.mxu0 0.0
    %5828 = vmatpush1.msra.mxu0 0.0
    %5829 = vmatprep.subr.mxu0 0.0
    %5830 = vmatpush1.msra.mxu0 0.0
    %5831 = vmatprep.subr.mxu0 0.0
    %5832 = vmatpush1.msra.mxu0 0.0
    %5833 = vmatprep.subr.mxu0 0.0
    %5834 = vmatpush1.msra.mxu0 0.0
    %5835 = vmatprep.subr.mxu0 0.0
    %5836 = vmatpush1.msra.mxu0 0.0
    %5837 = vmatprep.subr.mxu0 0.0
    %5838 = vmatpush1.msra.mxu0 0.0
    %5839 = vmatprep.subr.mxu0 0.0
    %5840 = vmatpush1.msra.mxu0 0.0
    %5841 = vmatprep.subr.mxu0 0.0
    %5842 = vmatpush1.msra.mxu0 0.0
    %5843 = vmatprep.subr.mxu0 0.0
    %5844 = vmatpush1.msra.mxu0 0.0
    %5845 = vmatprep.subr.mxu0 0.0
    %5846 = vmatpush1.msra.mxu0 0.0
    %5847 = vmatprep.subr.mxu0 0.0
    %5848 = vmatpush1.msra.mxu0 0.0
    %5849 = vmatprep.subr.mxu0 0.0
    %5850 = vmatpush1.msra.mxu0 0.0
    %5851 = vmatprep.subr.mxu0 0.0
    %5852 = vmatpush1.msra.mxu0 %v188
    %5853 = vmatprep.subr.mxu0 0.0
    %5854 = vmatpush2.msra.mxu0 0.0
    %5855 = vmatprep.subr.mxu0 0.0
    %5856 = vmatpush2.msra.mxu0 0.0
    %5857 = vmatprep.subr.mxu0 0.0
    %5858 = vmatpush2.msra.mxu0 0.0
    %5859 = vmatprep.subr.mxu0 0.0
    %5860 = vmatpush2.msra.mxu0 0.0
    %5861 = vmatprep.subr.mxu0 0.0
    %5862 = vmatpush2.msra.mxu0 0.0
    %5863 = vmatprep.subr.mxu0 0.0
    %5864 = vmatpush2.msra.mxu0 0.0
    %5865 = vmatprep.subr.mxu0 0.0
    %5866 = vmatpush2.msra.mxu0 0.0
    %5867 = vmatprep.subr.mxu0 0.0
    %5868 = vmatpush2.msra.mxu0 0.0
    %5869 = vmatprep.subr.mxu0 0.0
    %5870 = vmatpush2.msra.mxu0 0.0
    %5871 = vmatprep.subr.mxu0 0.0
    %5872 = vmatpush2.msra.mxu0 0.0
    %5873 = vmatprep.subr.mxu0 0.0
    %5874 = vmatpush2.msra.mxu0 0.0
    %5875 = vmatprep.subr.mxu0 0.0
    %5876 = vmatpush2.msra.mxu0 0.0
    %5877 = vmatprep.subr.mxu0 0.0
    %5878 = vmatpush2.msra.mxu0 0.0
    %5879 = vmatprep.subr.mxu0 0.0
    %5880 = vmatpush2.msra.mxu0 0.0
    %5881 = vmatprep.subr.mxu0 0.0
    %5882 = vmatpush2.msra.mxu0 0.0
    %5883 = vmatprep.subr.mxu0 0.0
    %5884 = vmatpush2.msra.mxu0 0.0
    %5885 = vmatprep.mubr.f32.mxu0 0.0
    %5886 = vmatmul.mubr.f32.gmra.mxu0 %v5819
    %v5887 = vpop.f32.mrf.mxu0
    %v5888 = vadd.f32 0.0, %v5887
    %v5889 = vpop.f32.mrf.mxu0
    %5890 = vdwg.mxu0
    %v5892 = vsel %vm831, %v5371, 0
    %5894 = vmatprep.subr.mxu0 0.0
    %5895 = vmatpush1.msra.mxu0 0.0
    %5896 = vmatprep.subr.mxu0 0.0
    %5897 = vmatpush1.msra.mxu0 0.0
    %5898 = vmatprep.subr.mxu0 0.0
    %5899 = vmatpush1.msra.mxu0 0.0
    %5900 = vmatprep.subr.mxu0 0.0
    %5901 = vmatpush1.msra.mxu0 0.0
    %5902 = vmatprep.subr.mxu0 0.0
    %5903 = vmatpush1.msra.mxu0 0.0
    %5904 = vmatprep.subr.mxu0 0.0
    %5905 = vmatpush1.msra.mxu0 0.0
    %5906 = vmatprep.subr.mxu0 0.0
    %5907 = vmatpush1.msra.mxu0 0.0
    %5908 = vmatprep.subr.mxu0 0.0
    %5909 = vmatpush1.msra.mxu0 0.0
    %5910 = vmatprep.subr.mxu0 0.0
    %5911 = vmatpush1.msra.mxu0 0.0
    %5912 = vmatprep.subr.mxu0 0.0
    %5913 = vmatpush1.msra.mxu0 0.0
    %5914 = vmatprep.subr.mxu0 0.0
    %5915 = vmatpush1.msra.mxu0 0.0
    %5916 = vmatprep.subr.mxu0 0.0
    %5917 = vmatpush1.msra.mxu0 0.0
    %5918 = vmatprep.subr.mxu0 0.0
    %5919 = vmatpush1.msra.mxu0 0.0
    %5920 = vmatprep.subr.mxu0 0.0
    %5921 = vmatpush1.msra.mxu0 0.0
    %5922 = vmatprep.subr.mxu0 0.0
    %5923 = vmatpush1.msra.mxu0 0.0
    %5924 = vmatprep.subr.mxu0 0.0
    %5925 = vmatpush1.msra.mxu0 %v190
    %5926 = vmatprep.subr.mxu0 0.0
    %5927 = vmatpush2.msra.mxu0 0.0
    %5928 = vmatprep.subr.mxu0 0.0
    %5929 = vmatpush2.msra.mxu0 0.0
    %5930 = vmatprep.subr.mxu0 0.0
    %5931 = vmatpush2.msra.mxu0 0.0
    %5932 = vmatprep.subr.mxu0 0.0
    %5933 = vmatpush2.msra.mxu0 0.0
    %5934 = vmatprep.subr.mxu0 0.0
    %5935 = vmatpush2.msra.mxu0 0.0
    %5936 = vmatprep.subr.mxu0 0.0
    %5937 = vmatpush2.msra.mxu0 0.0
    %5938 = vmatprep.subr.mxu0 0.0
    %5939 = vmatpush2.msra.mxu0 0.0
    %5940 = vmatprep.subr.mxu0 0.0
    %5941 = vmatpush2.msra.mxu0 0.0
    %5942 = vmatprep.subr.mxu0 0.0
    %5943 = vmatpush2.msra.mxu0 0.0
    %5944 = vmatprep.subr.mxu0 0.0
    %5945 = vmatpush2.msra.mxu0 0.0
    %5946 = vmatprep.subr.mxu0 0.0
    %5947 = vmatpush2.msra.mxu0 0.0
    %5948 = vmatprep.subr.mxu0 0.0
    %5949 = vmatpush2.msra.mxu0 0.0
    %5950 = vmatprep.subr.mxu0 0.0
    %5951 = vmatpush2.msra.mxu0 0.0
    %5952 = vmatprep.subr.mxu0 0.0
    %5953 = vmatpush2.msra.mxu0 0.0
    %5954 = vmatprep.subr.mxu0 0.0
    %5955 = vmatpush2.msra.mxu0 0.0
    %5956 = vmatprep.subr.mxu0 0.0
    %5957 = vmatpush2.msra.mxu0 0.0
    %5958 = vmatprep.mubr.f32.mxu0 0.0
    %5959 = vmatmul.mubr.f32.gmra.mxu0 %v5892
    %v5960 = vpop.f32.mrf.mxu0
    %v5961 = vadd.f32 0.0, %v5960
    %v5962 = vpop.f32.mrf.mxu0
    %5963 = vdwg.mxu0
    %v5965 = vsel %vm831, %v5447, 0
    %5967 = vmatprep.subr.mxu0 0.0
    %5968 = vmatpush1.msra.mxu0 0.0
    %5969 = vmatprep.subr.mxu0 0.0
    %5970 = vmatpush1.msra.mxu0 0.0
    %5971 = vmatprep.subr.mxu0 0.0
    %5972 = vmatpush1.msra.mxu0 0.0
    %5973 = vmatprep.subr.mxu0 0.0
    %5974 = vmatpush1.msra.mxu0 0.0
    %5975 = vmatprep.subr.mxu0 0.0
    %5976 = vmatpush1.msra.mxu0 0.0
    %5977 = vmatprep.subr.mxu0 0.0
    %5978 = vmatpush1.msra.mxu0 0.0
    %5979 = vmatprep.subr.mxu0 0.0
    %5980 = vmatpush1.msra.mxu0 0.0
    %5981 = vmatprep.subr.mxu0 0.0
    %5982 = vmatpush1.msra.mxu0 0.0
    %5983 = vmatprep.subr.mxu0 0.0
    %5984 = vmatpush1.msra.mxu0 0.0
    %5985 = vmatprep.subr.mxu0 0.0
    %5986 = vmatpush1.msra.mxu0 0.0
    %5987 = vmatprep.subr.mxu0 0.0
    %5988 = vmatpush1.msra.mxu0 0.0
    %5989 = vmatprep.subr.mxu0 0.0
    %5990 = vmatpush1.msra.mxu0 0.0
    %5991 = vmatprep.subr.mxu0 0.0
    %5992 = vmatpush1.msra.mxu0 0.0
    %5993 = vmatprep.subr.mxu0 0.0
    %5994 = vmatpush1.msra.mxu0 0.0
    %5995 = vmatprep.subr.mxu0 0.0
    %5996 = vmatpush1.msra.mxu0 0.0
    %5997 = vmatprep.subr.mxu0 0.0
    %5998 = vmatpush1.msra.mxu0 %v192
    %5999 = vmatprep.subr.mxu0 0.0
    %6000 = vmatpush2.msra.mxu0 0.0
    %6001 = vmatprep.subr.mxu0 0.0
    %6002 = vmatpush2.msra.mxu0 0.0
    %6003 = vmatprep.subr.mxu0 0.0
    %6004 = vmatpush2.msra.mxu0 0.0
    %6005 = vmatprep.subr.mxu0 0.0
    %6006 = vmatpush2.msra.mxu0 0.0
    %6007 = vmatprep.subr.mxu0 0.0
    %6008 = vmatpush2.msra.mxu0 0.0
    %6009 = vmatprep.subr.mxu0 0.0
    %6010 = vmatpush2.msra.mxu0 0.0
    %6011 = vmatprep.subr.mxu0 0.0
    %6012 = vmatpush2.msra.mxu0 0.0
    %6013 = vmatprep.subr.mxu0 0.0
    %6014 = vmatpush2.msra.mxu0 0.0
    %6015 = vmatprep.subr.mxu0 0.0
    %6016 = vmatpush2.msra.mxu0 0.0
    %6017 = vmatprep.subr.mxu0 0.0
    %6018 = vmatpush2.msra.mxu0 0.0
    %6019 = vmatprep.subr.mxu0 0.0
    %6020 = vmatpush2.msra.mxu0 0.0
    %6021 = vmatprep.subr.mxu0 0.0
    %6022 = vmatpush2.msra.mxu0 0.0
    %6023 = vmatprep.subr.mxu0 0.0
    %6024 = vmatpush2.msra.mxu0 0.0
    %6025 = vmatprep.subr.mxu0 0.0
    %6026 = vmatpush2.msra.mxu0 0.0
    %6027 = vmatprep.subr.mxu0 0.0
    %6028 = vmatpush2.msra.mxu0 0.0
    %6029 = vmatprep.subr.mxu0 0.0
    %6030 = vmatpush2.msra.mxu0 0.0
    %6031 = vmatprep.mubr.f32.mxu0 0.0
    %6032 = vmatmul.mubr.f32.gmra.mxu0 %v5965
    %v6033 = vpop.f32.mrf.mxu0
    %v6034 = vadd.f32 0.0, %v6033
    %v6035 = vpop.f32.mrf.mxu0
    %6036 = vdwg.mxu0
    %v6038 = vsel %vm831, %v5523, 0
    %6040 = vmatprep.subr.mxu0 0.0
    %6041 = vmatpush1.msra.mxu0 0.0
    %6042 = vmatprep.subr.mxu0 0.0
    %6043 = vmatpush1.msra.mxu0 0.0
    %6044 = vmatprep.subr.mxu0 0.0
    %6045 = vmatpush1.msra.mxu0 0.0
    %6046 = vmatprep.subr.mxu0 0.0
    %6047 = vmatpush1.msra.mxu0 0.0
    %6048 = vmatprep.subr.mxu0 0.0
    %6049 = vmatpush1.msra.mxu0 0.0
    %6050 = vmatprep.subr.mxu0 0.0
    %6051 = vmatpush1.msra.mxu0 0.0
    %6052 = vmatprep.subr.mxu0 0.0
    %6053 = vmatpush1.msra.mxu0 0.0
    %6054 = vmatprep.subr.mxu0 0.0
    %6055 = vmatpush1.msra.mxu0 0.0
    %6056 = vmatprep.subr.mxu0 0.0
    %6057 = vmatpush1.msra.mxu0 0.0
    %6058 = vmatprep.subr.mxu0 0.0
    %6059 = vmatpush1.msra.mxu0 0.0
    %6060 = vmatprep.subr.mxu0 0.0
    %6061 = vmatpush1.msra.mxu0 0.0
    %6062 = vmatprep.subr.mxu0 0.0
    %6063 = vmatpush1.msra.mxu0 0.0
    %6064 = vmatprep.subr.mxu0 0.0
    %6065 = vmatpush1.msra.mxu0 0.0
    %6066 = vmatprep.subr.mxu0 0.0
    %6067 = vmatpush1.msra.mxu0 0.0
    %6068 = vmatprep.subr.mxu0 0.0
    %6069 = vmatpush1.msra.mxu0 0.0
    %6070 = vmatprep.subr.mxu0 0.0
    %6071 = vmatpush1.msra.mxu0 %v194
    %6072 = vmatprep.subr.mxu0 0.0
    %6073 = vmatpush2.msra.mxu0 0.0
    %6074 = vmatprep.subr.mxu0 0.0
    %6075 = vmatpush2.msra.mxu0 0.0
    %6076 = vmatprep.subr.mxu0 0.0
    %6077 = vmatpush2.msra.mxu0 0.0
    %6078 = vmatprep.subr.mxu0 0.0
    %6079 = vmatpush2.msra.mxu0 0.0
    %6080 = vmatprep.subr.mxu0 0.0
    %6081 = vmatpush2.msra.mxu0 0.0
    %6082 = vmatprep.subr.mxu0 0.0
    %6083 = vmatpush2.msra.mxu0 0.0
    %6084 = vmatprep.subr.mxu0 0.0
    %6085 = vmatpush2.msra.mxu0 0.0
    %6086 = vmatprep.subr.mxu0 0.0
    %6087 = vmatpush2.msra.mxu0 0.0
    %6088 = vmatprep.subr.mxu0 0.0
    %6089 = vmatpush2.msra.mxu0 0.0
    %6090 = vmatprep.subr.mxu0 0.0
    %6091 = vmatpush2.msra.mxu0 0.0
    %6092 = vmatprep.subr.mxu0 0.0
    %6093 = vmatpush2.msra.mxu0 0.0
    %6094 = vmatprep.subr.mxu0 0.0
    %6095 = vmatpush2.msra.mxu0 0.0
    %6096 = vmatprep.subr.mxu0 0.0
    %6097 = vmatpush2.msra.mxu0 0.0
    %6098 = vmatprep.subr.mxu0 0.0
    %6099 = vmatpush2.msra.mxu0 0.0
    %6100 = vmatprep.subr.mxu0 0.0
    %6101 = vmatpush2.msra.mxu0 0.0
    %6102 = vmatprep.subr.mxu0 0.0
    %6103 = vmatpush2.msra.mxu0 0.0
    %6104 = vmatprep.mubr.f32.mxu0 0.0
    %6105 = vmatmul.mubr.f32.gmra.mxu0 %v6038
    %v6106 = vpop.f32.mrf.mxu0
    %v6107 = vadd.f32 0.0, %v6106
    %v6108 = vpop.f32.mrf.mxu0
    %6109 = vdwg.mxu0
    %v6110 = vadd.f32 %v5596, %v5669
    %v6111 = vadd.f32 %v5888, %v5961
    %v6112 = vadd.f32 %v6110, %v5742
    %v6113 = vadd.f32 %v6111, %v6034
    %v6114 = vadd.f32 %v6112, %v5815
    %v6115 = vadd.f32 %v6113, %v6107
    %v6116 = vlaneseq
    %v6117 = vshrl.u32 %v6116, 7
    %v6118 = vsub.s32 7, %v6117
    %v6119 = vrot.slane %v195, %v6118
    %v6120 = vadd.f32 %v6114, %v6119
    %v6121 = vadd.f32 %v6115, %v6119
    %v6122 = vadd.f32 %v2792, %v6120
    %v6123 = vadd.f32 %v2793, %v6121
    %v6124 = vsel %vm245, %v6122, 0.0
    %6125 = vadd.xlane.f32.xlu0 %v6124
    %v6126 = vpop.xlane.xlu0 %6125
    %v6127 = vsel %vm245, %v6123, 0.0
    %6128 = vadd.xlane.f32.xlu0 %v6127
    %v6129 = vpop.xlane.xlu0 %6128
    %v6130 = vmul.f32 %v6126, %v2761
    %v6131 = vmul.f32 %v6129, %v2761
    %v6132 = vsub.f32 %v6122, %v6130
    %v6133 = vsub.f32 %v6123, %v6131
    %v6134 = vmul.f32 %v6132, %v6132
    %v6135 = vmul.f32 %v6133, %v6133
    %v6136 = vsel %vm245, %v6134, 0.0
    %6137 = vadd.xlane.f32.xlu0 %v6136
    %v6138 = vpop.xlane.xlu0 %6137
    %v6139 = vsel %vm245, %v6135, 0.0
    %6140 = vadd.xlane.f32.xlu0 %v6139
    %v6141 = vpop.xlane.xlu0 %6140
    %v6142 = vmul.f32 %v6138, %v2761
    %v6143 = vmul.f32 %v6141, %v2761
    %v6144 = vadd.f32 %v6142, 1e-05
    %v6145 = vadd.f32 %v6143, 1e-05
    %v6146 = vrsqrt.pop %v6144
    %v6147 = vrsqrt.pop %v6145
    %v6148 = vmul.f32 %v6132, %v6146
    %v6149 = vmul.f32 %v6133, %v6147
    %v6150 = vlaneseq
    %v6151 = vshrl.u32 %v6150, 7
    %v6152 = vsub.s32 2, %v6151
    %v6153 = vrot.slane %v195, %v6152
    %v6154 = vmul.f32 %v6148, %v6153
    %v6155 = vmul.f32 %v6149, %v6153
    %v6156 = vlaneseq
    %v6157 = vshrl.u32 %v6156, 7
    %v6158 = vsub.s32 3, %v6157
    %v6159 = vrot.slane %v195, %v6158
    %v6160 = vadd.f32 %v6154, %v6159
    %v6161 = vadd.f32 %v6155, %v6159
    %v6162 = vadd.f32 %v4910, %v4911
    %v6163 = vadd.f32 %v4914, %v4915
    %v6164 = vadd.f32 %v6162, %v4912
    %v6165 = vadd.f32 %v6163, %v4916
    %v6166 = vadd.f32 %v6164, %v4913
    %v6167 = vadd.f32 %v6165, %v4917
    %v6168 = vmul.f32 %v6166, 0.25
    %v6169 = vmul.f32 %v6167, 0.25
    %6170 = vst.msk [vmem:[#allocation15] sm:$0xff] %vm831, %v6168
    %6171 = vst.msk [vmem:[#allocation15 + $0x8] sm:$0xff] %vm831, %v6169
    %v6172 = vld [vmem:[%s7] sm:$0xff]
    %v6173 = vld [vmem:[%s7 + $0x8] sm:$0xff]
    %v6174 = vld [vmem:[%s7 + $0x10] sm:$0xff]
    %v6175 = vld [vmem:[%s7 + $0x18] sm:$0xff]
    %v6176 = vld [vmem:[#allocation13] sm:$0x1]
    %v6178 = vlaneseq
    %v6179 = vshrl.u32 %v6178, 7
    %v6180 = vsub.s32 0, %v6179
    %v6181 = vrot.slane %v6176, %v6180
    %v6184 = vsel %vm245, %v6160, 0
    %v6187 = vsel %vm245, %v6161, 0
    %6189 = vmatprep.subr.mxu0 0.0
    %6190 = vmatpush1.msra.mxu0 0.0
    %6191 = vmatprep.subr.mxu0 0.0
    %6192 = vmatpush1.msra.mxu0 0.0
    %6193 = vmatprep.subr.mxu0 0.0
    %6194 = vmatpush1.msra.mxu0 0.0
    %6195 = vmatprep.subr.mxu0 0.0
    %6196 = vmatpush1.msra.mxu0 0.0
    %6197 = vmatprep.subr.mxu0 0.0
    %6198 = vmatpush1.msra.mxu0 0.0
    %6199 = vmatprep.subr.mxu0 0.0
    %6200 = vmatpush1.msra.mxu0 0.0
    %6201 = vmatprep.subr.mxu0 0.0
    %6202 = vmatpush1.msra.mxu0 0.0
    %6203 = vmatprep.subr.mxu0 0.0
    %6204 = vmatpush1.msra.mxu0 0.0
    %6205 = vmatprep.subr.mxu0 0.0
    %6206 = vmatpush1.msra.mxu0 0.0
    %6207 = vmatprep.subr.mxu0 0.0
    %6208 = vmatpush1.msra.mxu0 0.0
    %6209 = vmatprep.subr.mxu0 0.0
    %6210 = vmatpush1.msra.mxu0 0.0
    %6211 = vmatprep.subr.mxu0 0.0
    %6212 = vmatpush1.msra.mxu0 0.0
    %6213 = vmatprep.subr.mxu0 0.0
    %6214 = vmatpush1.msra.mxu0 %v6175
    %6215 = vmatprep.subr.mxu0 0.0
    %6216 = vmatpush1.msra.mxu0 %v6174
    %6217 = vmatprep.subr.mxu0 0.0
    %6218 = vmatpush1.msra.mxu0 %v6173
    %6219 = vmatprep.subr.mxu0 0.0
    %6220 = vmatpush1.msra.mxu0 %v6172
    %6221 = vmatprep.subr.mxu0 0.0
    %6222 = vmatpush2.msra.mxu0 0.0
    %6223 = vmatprep.subr.mxu0 0.0
    %6224 = vmatpush2.msra.mxu0 0.0
    %6225 = vmatprep.subr.mxu0 0.0
    %6226 = vmatpush2.msra.mxu0 0.0
    %6227 = vmatprep.subr.mxu0 0.0
    %6228 = vmatpush2.msra.mxu0 0.0
    %6229 = vmatprep.subr.mxu0 0.0
    %6230 = vmatpush2.msra.mxu0 0.0
    %6231 = vmatprep.subr.mxu0 0.0
    %6232 = vmatpush2.msra.mxu0 0.0
    %6233 = vmatprep.subr.mxu0 0.0
    %6234 = vmatpush2.msra.mxu0 0.0
    %6235 = vmatprep.subr.mxu0 0.0
    %6236 = vmatpush2.msra.mxu0 0.0
    %6237 = vmatprep.subr.mxu0 0.0
    %6238 = vmatpush2.msra.mxu0 0.0
    %6239 = vmatprep.subr.mxu0 0.0
    %6240 = vmatpush2.msra.mxu0 0.0
    %6241 = vmatprep.subr.mxu0 0.0
    %6242 = vmatpush2.msra.mxu0 0.0
    %6243 = vmatprep.subr.mxu0 0.0
    %6244 = vmatpush2.msra.mxu0 0.0
    %6245 = vmatprep.subr.mxu0 0.0
    %6246 = vmatpush2.msra.mxu0 0.0
    %6247 = vmatprep.subr.mxu0 0.0
    %6248 = vmatpush2.msra.mxu0 0.0
    %6249 = vmatprep.subr.mxu0 0.0
    %6250 = vmatpush2.msra.mxu0 0.0
    %6251 = vmatprep.subr.mxu0 0.0
    %6252 = vmatpush2.msra.mxu0 0.0
    %6253 = vmatprep.mubr.f32.mxu0 0.0
    %6254 = vmatmul.mubr.f32.gmra.mxu0 %v6184
    %v6255 = vpop.f32.mrf.mxu0
    %v6256 = vadd.f32 %v6181, %v6255
    %v6257 = vpop.f32.mrf.mxu0
    %6258 = vmatprep.mubr.f32.mxu0 0.0
    %6259 = vmatmul.mubr.f32.gmra.mxu0 %v6187
    %v6260 = vpop.f32.mrf.mxu0
    %v6261 = vadd.f32 %v6181, %v6260
    %v6262 = vpop.f32.mrf.mxu0
    %6263 = vdwg.mxu0
    %v6264 = vmax.f32 %v6256, 0.0
    %v6265 = vmax.f32 %v6261, 0.0
    %v6266 = vld [vmem:[%s9] sm:$0xff]
    %v6267 = vld [vmem:[%s9 + $0x8] sm:$0xff]
    %v6268 = vld [vmem:[%s9 + $0x10] sm:$0xff]
    %v6269 = vld [vmem:[%s9 + $0x18] sm:$0xff]
    %v6270 = vld [vmem:[%s9 + $0x20] sm:$0xff]
    %v6271 = vld [vmem:[%s9 + $0x28] sm:$0xff]
    %v6272 = vld [vmem:[%s9 + $0x30] sm:$0xff]
    %v6273 = vld [vmem:[%s9 + $0x38] sm:$0xff]
    %v6274 = vlaneseq
    %v6275 = vshrl.u32 %v6274, 7
    %v6276 = vsub.s32 0, %v6275
    %v6277 = vrot.slane %v196, %v6276
    %vm6278 = vcmask 523264
    %v6280 = vsel %vm6278, %v6264, 0
    %v6283 = vsel %vm6278, %v6265, 0
    %6285 = vmatprep.subr.mxu0 0.0
    %6286 = vmatpush1.msra.mxu0 0.0
    %6287 = vmatprep.subr.mxu0 0.0
    %6288 = vmatpush1.msra.mxu0 0.0
    %6289 = vmatprep.subr.mxu0 0.0
    %6290 = vmatpush1.msra.mxu0 0.0
    %6291 = vmatprep.subr.mxu0 0.0
    %6292 = vmatpush1.msra.mxu0 0.0
    %6293 = vmatprep.subr.mxu0 0.0
    %6294 = vmatpush1.msra.mxu0 0.0
    %6295 = vmatprep.subr.mxu0 0.0
    %6296 = vmatpush1.msra.mxu0 0.0
    %6297 = vmatprep.subr.mxu0 0.0
    %6298 = vmatpush1.msra.mxu0 0.0
    %6299 = vmatprep.subr.mxu0 0.0
    %6300 = vmatpush1.msra.mxu0 0.0
    %6301 = vmatprep.subr.mxu0 0.0
    %6302 = vmatpush1.msra.mxu0 %v6273
    %6303 = vmatprep.subr.mxu0 0.0
    %6304 = vmatpush1.msra.mxu0 %v6272
    %6305 = vmatprep.subr.mxu0 0.0
    %6306 = vmatpush1.msra.mxu0 %v6271
    %6307 = vmatprep.subr.mxu0 0.0
    %6308 = vmatpush1.msra.mxu0 %v6270
    %6309 = vmatprep.subr.mxu0 0.0
    %6310 = vmatpush1.msra.mxu0 %v6269
    %6311 = vmatprep.subr.mxu0 0.0
    %6312 = vmatpush1.msra.mxu0 %v6268
    %6313 = vmatprep.subr.mxu0 0.0
    %6314 = vmatpush1.msra.mxu0 %v6267
    %6315 = vmatprep.subr.mxu0 0.0
    %6316 = vmatpush1.msra.mxu0 %v6266
    %6317 = vmatprep.subr.mxu0 0.0
    %6318 = vmatpush2.msra.mxu0 0.0
    %6319 = vmatprep.subr.mxu0 0.0
    %6320 = vmatpush2.msra.mxu0 0.0
    %6321 = vmatprep.subr.mxu0 0.0
    %6322 = vmatpush2.msra.mxu0 0.0
    %6323 = vmatprep.subr.mxu0 0.0
    %6324 = vmatpush2.msra.mxu0 0.0
    %6325 = vmatprep.subr.mxu0 0.0
    %6326 = vmatpush2.msra.mxu0 0.0
    %6327 = vmatprep.subr.mxu0 0.0
    %6328 = vmatpush2.msra.mxu0 0.0
    %6329 = vmatprep.subr.mxu0 0.0
    %6330 = vmatpush2.msra.mxu0 0.0
    %6331 = vmatprep.subr.mxu0 0.0
    %6332 = vmatpush2.msra.mxu0 0.0
    %6333 = vmatprep.subr.mxu0 0.0
    %6334 = vmatpush2.msra.mxu0 0.0
    %6335 = vmatprep.subr.mxu0 0.0
    %6336 = vmatpush2.msra.mxu0 0.0
    %6337 = vmatprep.subr.mxu0 0.0
    %6338 = vmatpush2.msra.mxu0 0.0
    %6339 = vmatprep.subr.mxu0 0.0
    %6340 = vmatpush2.msra.mxu0 0.0
    %6341 = vmatprep.subr.mxu0 0.0
    %6342 = vmatpush2.msra.mxu0 0.0
    %6343 = vmatprep.subr.mxu0 0.0
    %6344 = vmatpush2.msra.mxu0 0.0
    %6345 = vmatprep.subr.mxu0 0.0
    %6346 = vmatpush2.msra.mxu0 0.0
    %6347 = vmatprep.subr.mxu0 0.0
    %6348 = vmatpush2.msra.mxu0 0.0
    %6349 = vmatprep.mubr.f32.mxu0 0.0
    %6350 = vmatmul.mubr.f32.gmra.mxu0 %v6280
    %v6351 = vpop.f32.mrf.mxu0
    %v6352 = vadd.f32 %v6277, %v6351
    %v6353 = vpop.f32.mrf.mxu0
    %6354 = vmatprep.mubr.f32.mxu0 0.0
    %6355 = vmatmul.mubr.f32.gmra.mxu0 %v6283
    %v6356 = vpop.f32.mrf.mxu0
    %v6357 = vadd.f32 %v6277, %v6356
    %v6358 = vpop.f32.mrf.mxu0
    %6359 = vdwg.mxu0
    %v6360 = vadd.f32 %v6160, %v6352
    %v6361 = vadd.f32 %v6161, %v6357
    %v6362 = vsel %vm245, %v6360, 0.0
    %6363 = vadd.xlane.f32.xlu0 %v6362
    %v6364 = vpop.xlane.xlu0 %6363
    %v6365 = vsel %vm245, %v6361, 0.0
    %6366 = vadd.xlane.f32.xlu0 %v6365
    %v6367 = vpop.xlane.xlu0 %6366
    %v6368 = vmul.f32 %v6364, %v2761
    %v6369 = vmul.f32 %v6367, %v2761
    %v6370 = vsub.f32 %v6360, %v6368
    %v6371 = vsub.f32 %v6361, %v6369
    %v6372 = vmul.f32 %v6370, %v6370
    %v6373 = vmul.f32 %v6371, %v6371
    %v6374 = vsel %vm245, %v6372, 0.0
    %6375 = vadd.xlane.f32.xlu0 %v6374
    %v6376 = vpop.xlane.xlu0 %6375
    %v6377 = vsel %vm245, %v6373, 0.0
    %6378 = vadd.xlane.f32.xlu0 %v6377
    %v6379 = vpop.xlane.xlu0 %6378
    %v6380 = vmul.f32 %v6376, %v2761
    %v6381 = vmul.f32 %v6379, %v2761
    %v6382 = vadd.f32 %v6380, 1e-05
    %v6383 = vadd.f32 %v6381, 1e-05
    %v6384 = vrsqrt.pop %v6382
    %v6385 = vrsqrt.pop %v6383
    %v6386 = vmul.f32 %v6370, %v6384
    %v6387 = vmul.f32 %v6371, %v6385
    %v6388 = vlaneseq
    %v6389 = vshrl.u32 %v6388, 7
    %v6390 = vsub.s32 4, %v6389
    %v6391 = vrot.slane %v195, %v6390
    %v6392 = vmul.f32 %v6386, %v6391
    %v6393 = vmul.f32 %v6387, %v6391
    %v6394 = vlaneseq
    %v6395 = vshrl.u32 %v6394, 7
    %v6396 = vsub.s32 5, %v6395
    %v6397 = vrot.slane %v195, %v6396
    %v6398 = vadd.f32 %v6392, %v6397
    %v6399 = vadd.f32 %v6393, %v6397
    %6400 = vst.msk [vmem:[#allocation14] sm:$0xff] %vm245, %v6398
    %6401 = vst.msk [vmem:[#allocation14 + $0x8] sm:$0xff] %vm245, %v6399
    // Predicated region
    $region74: #{tpu_custom_call.1} parent=1 // pred_check
      _
    $region75: #{tpu_custom_call.1} parent=1 // pred_check_branch
      %6403 = sbr.rel (0) target = $region77
    $region76: #{tpu_custom_call.1} parent=1 // pred_region
      %s6405 = ssub.s32 256, 256
      %6406 = vsyncadd [#allocation4], %s6405
      %s6407 = sshll.u32 [#allocation14], 4
      %s6408 = int_to_ptr.vmem [resolvable:$true] %s6407
      %6413 = dma.vmem_to_hbm [thread:$0]  %s6408, 256, %s11, [#allocation4], 128, 128, 8
    $region77: #{tpu_custom_call.1} parent=1 // pred_fallthru
      _
    // Predicated region
    $region78: #{tpu_custom_call.1} parent=1 // pred_check
      _
    $region79: #{tpu_custom_call.1} parent=1 // pred_check_branch
      %6415 = sbr.rel (0) target = $region81
    $region80: #{tpu_custom_call.1} parent=1 // pred_region
      %s6417 = ssub.s32 256, 256
      %6418 = vsyncadd [#allocation16], %s6417
      %s6419 = sshll.u32 [#allocation15], 4
      %s6420 = int_to_ptr.vmem [resolvable:$true] %s6419
      %6425 = dma.vmem_to_hbm [thread:$0]  %s6420, 256, %s12, [#allocation16], 128, 128, 8
    $region81: #{tpu_custom_call.1} parent=1 // pred_fallthru
      _
    // Predicated region
    $region82: #{tpu_custom_call.1} parent=1 // pred_check
      _
    $region83: #{tpu_custom_call.1} parent=1 // pred_check_branch
      %6427 = sbr.rel (0) target = $region85
    $region84: #{tpu_custom_call.1} parent=1 // pred_region
      %6428 = dma.done [#allocation4], 256
    $region85: #{tpu_custom_call.1} parent=1 // pred_fallthru
      _
    // Predicated region
    $region86: #{tpu_custom_call.1} parent=1 // pred_check
      _
    $region87: #{tpu_custom_call.1} parent=1 // pred_check_branch
      %6430 = sbr.rel (0) target = $region89
    $region88: #{tpu_custom_call.1} parent=1 // pred_region
      %6431 = dma.done [#allocation16], 256
    $region89: #{tpu_custom_call.1} parent=1 // pred_fallthru
      _
    %6432 = vsyncpa [#allocation3], 1
    %6433 = vsyncpa [#allocation6], 1
    %6434 = vsyncpa [#allocation9], 1
    %6435 = vsyncpa [#allocation12], 1
    %6436 = vsyncpa [#allocation4], 1
    %6437 = vsyncpa [#allocation16], 1

</llo_original>
